<compile_context>
chip_gen: v6e
topology: v6e:2x2x1
jax: 0.10.0
libtpu: 0.0.40
codegen_flags: <defaults>
</compile_context>

<pallas_src>
import math
import functools
from collections import namedtuple

import jax
import jax.numpy as jnp
from jax.experimental import pallas as pl
from jax.experimental.pallas import tpu as pltpu

F32 = jnp.float32
BF16 = jnp.bfloat16
BN_EPS = 1e-5
_VMEM_LIMIT = 48 * 1024 * 1024  # above the 16/32 MiB scoped default, below v7x 64 MiB physical

STAGE = namedtuple("block", "layers,out_features,stride,kernel,expansion")
SCALING = namedtuple("scaling", "width_multiplier,depth_multiplier,dropout")


def _round_up(x, m):
    return (x + m - 1) // m * m


# ----------------------------- Pallas kernels ------------------------------

def _matmul_bias_act_kernel(x_ref, w_ref, b_ref, o_ref, acc_ref, *, act):
    # tiled matmul with f32 accumulator; bias + activation fused on the last K step
    @pl.when(pl.program_id(2) == 0)
    def _init():
        acc_ref[...] = jnp.zeros_like(acc_ref)

    acc_ref[...] += jnp.dot(x_ref[...], w_ref[...],
                            preferred_element_type=jnp.float32)

    @pl.when(pl.program_id(2) == pl.num_programs(2) - 1)
    def _finalize():
        y = acc_ref[...] + b_ref[...]
        if act == "silu":
            y = y * jax.nn.sigmoid(y)
        o_ref[...] = y.astype(o_ref.dtype)


def _dwconv_bn_silu_pool_kernel(planes_ref, w_ref, b_ref, o_ref, pool_ref, *,
                                stride, ho, wo):
    # 3x3 depthwise conv; the 9 taps are built from in-VMEM slices of the padded
    # activation (stride 1) or its 4 stride-2 phase planes. BN is pre-folded into
    # (w, b). The SE "squeeze" (global average pool) is fused into the epilogue.
    s = stride
    acc = None
    for k in range(9):
        dy, dx = divmod(k, 3)
        p = (dy % s) * s + (dx % s)            # phase plane (static)
        oy, ox = dy // s, dx // s              # static offset inside the plane
        tap = planes_ref[p, oy:oy + ho, ox:ox + wo, :].astype(jnp.float32)
        term = tap * w_ref[k]                  # (ho, wo, C) * (1, C)
        acc = term if acc is None else acc + term
    y = acc + b_ref[...]                       # folded BN bias
    y = y * jax.nn.sigmoid(y)                  # SiLU
    o_ref[0] = y.astype(o_ref.dtype)
    pool_ref[...] = (jnp.sum(jnp.sum(y, axis=0, keepdims=True), axis=1, keepdims=True)
                     * (1.0 / float(ho * wo)))


def _se_pw_res_kernel(x_ref, pooled_ref, w1_ref, b1_ref, w2_ref, b2_ref,
                      pww_ref, pwb_ref, *refs, residual):
    # SE excitation + channel gating + pointwise projection (folded BN) + residual,
    # all fused (one HBM pass over the activation).
    if residual:
        res_ref, o_ref = refs
    else:
        (o_ref,) = refs
    pooled = pooled_ref[0]                                                  # (1, cexp) f32
    h = jnp.dot(pooled, w1_ref[...], preferred_element_type=jnp.float32) + b1_ref[...]
    h = h * jax.nn.sigmoid(h)                                               # SiLU
    g = jnp.dot(h, w2_ref[...], preferred_element_type=jnp.float32) + b2_ref[...]
    g = jax.nn.sigmoid(g)                                                   # (1, cexp)
    xs = (x_ref[0].astype(jnp.float32) * g).astype(jnp.bfloat16)            # (HW, cexp)
    y = jnp.dot(xs, pww_ref[...], preferred_element_type=jnp.float32) + pwb_ref[...]
    if residual:
        # StochasticDepth(p=0.2, mode='row') is identity in eval mode
        y = y + res_ref[0].astype(jnp.float32)
    o_ref[0] = y.astype(o_ref.dtype)


# ----------------------------- Pallas wrappers ------------------------------

def matmul_bias_act(x, w, b, act="none", *, out_dtype=BF16, tm=512, tn=640, tk=512):
    """y = act(x @ w + b): bf16 operands, f32 MXU accumulation, fused epilogue."""
    M, K = x.shape
    _, N = w.shape
    tm_e = min(tm, _round_up(M, 8))
    tn_e = min(tn, _round_up(N, 128))
    tk_e = min(tk, _round_up(K, 128))
    Mp, Np, Kp = _round_up(M, tm_e), _round_up(N, tn_e), _round_up(K, tk_e)

    xb = jnp.pad(x.astype(BF16), ((0, Mp - M), (0, Kp - K)))
    wb = jnp.pad(w.astype(BF16), ((0, Kp - K), (0, Np - N)))
    bb = jnp.pad(b.astype(F32), ((0, 0), (0, Np - N)))

    grid = (Mp // tm_e, Np // tn_e, Kp // tk_e)
    out = pl.pallas_call(
        functools.partial(_matmul_bias_act_kernel, act=act),
        grid=grid,
        in_specs=[
            pl.BlockSpec((tm_e, tk_e), lambda i, j, k: (i, k)),
            pl.BlockSpec((tk_e, tn_e), lambda i, j, k: (k, j)),
            pl.BlockSpec((1, tn_e), lambda i, j, k: (0, j)),
        ],
        out_specs=pl.BlockSpec((tm_e, tn_e), lambda i, j, k: (i, j)),
        out_shape=jax.ShapeDtypeStruct((Mp, Np), out_dtype),
        scratch_shapes=[pltpu.VMEM((tm_e, tn_e), jnp.float32)],
        compiler_params=pltpu.CompilerParams(
            dimension_semantics=("parallel", "parallel", "arbitrary"),
            vmem_limit_bytes=_VMEM_LIMIT),
        cost_estimate=pl.CostEstimate(
            flops=2 * Mp * Np * Kp,
            transcendentals=Mp * Np if act == "silu" else 0,
            bytes_accessed=2 * (Mp * Kp + Kp * Np + Mp * Np)),
    )(xb, wb, bb)
    if (Mp, Np) != (M, N):
        out = out[:M, :N]
    return out


def depthwise_conv_bn_silu_pool(x, w, b, stride):
    """3x3 depthwise conv (pad=1) + folded BN + SiLU, with the SE global pool fused.

    HBM traffic is ~1x the activation (padded / phase-planed), not the 9x of an
    explicit im2col/tap tensor.
    """
    N, H, W, C = x.shape
    ho = (H - 1) // stride + 1
    wo = (W - 1) // stride + 1
    if stride == 1:
        npl, hh, wh = 1, ho + 2, wo + 2
        planes = jnp.pad(x, ((0, 0), (1, 1), (1, 1), (0, 0)))        # (N*1, hh, wh, C)
    elif stride == 2:
        npl, hh, wh = 4, ho + 1, wo + 1
        xp = jnp.pad(x, ((0, 0), (1, 2 * hh - H - 1), (1, 2 * wh - W - 1), (0, 0)))
        planes = xp.reshape(N, hh, 2, wh, 2, C).transpose(0, 2, 4, 1, 3, 5)
        planes = planes.reshape(N * 4, hh, wh, C)                    # (N*4, hh, wh, C)
    else:
        raise ValueError("depthwise stride must be 1 or 2")

    out, pooled = pl.pallas_call(
        functools.partial(_dwconv_bn_silu_pool_kernel, stride=stride, ho=ho, wo=wo),
        grid=(N,),
        in_specs=[
            pl.BlockSpec((npl, hh, wh, C), lambda n: (n, 0, 0, 0)),
            pl.BlockSpec((9, 1, C), lambda n: (0, 0, 0)),
            pl.BlockSpec((1, C), lambda n: (0, 0)),
        ],
        out_specs=(pl.BlockSpec((1, ho, wo, C), lambda n: (n, 0, 0, 0)),
                   pl.BlockSpec((1, 1, C), lambda n: (n, 0, 0))),
        out_shape=(jax.ShapeDtypeStruct((N, ho, wo, C), BF16),
                   jax.ShapeDtypeStruct((N, 1, C), F32)),
        compiler_params=pltpu.CompilerParams(
            dimension_semantics=("parallel",),
            vmem_limit_bytes=_VMEM_LIMIT),
    )(planes, w, b)
    return out, pooled


def se_pointwise_residual(x_flat, pooled, p, residual, res_flat=None):
    N, HW, cexp = x_flat.shape
    cse = p["se1_w"].shape[1]
    cout = p["pw_w"].shape[1]
    in_specs = [
        pl.BlockSpec((1, HW, cexp), lambda n: (n, 0, 0)),
        pl.BlockSpec((1, 1, cexp), lambda n: (n, 0, 0)),
        pl.BlockSpec((cexp, cse), lambda n: (0, 0)),
        pl.BlockSpec((1, cse), lambda n: (0, 0)),
        pl.BlockSpec((cse, cexp), lambda n: (0, 0)),
        pl.BlockSpec((1, cexp), lambda n: (0, 0)),
        pl.BlockSpec((cexp, cout), lambda n: (0, 0)),
        pl.BlockSpec((1, cout), lambda n: (0, 0)),
    ]
    args = [x_flat, pooled, p["se1_w"], p["se1_b"], p["se2_w"], p["se2_b"],
            p["pw_w"], p["pw_b"]]
    if residual:
        in_specs.append(pl.BlockSpec((1, HW, cout), lambda n: (n, 0, 0)))
        args.append(res_flat)
    return pl.pallas_call(
        functools.partial(_se_pw_res_kernel, residual=residual),
        grid=(N,),
        in_specs=in_specs,
        out_specs=pl.BlockSpec((1, HW, cout), lambda n: (n, 0, 0)),
        out_shape=jax.ShapeDtypeStruct((N, HW, cout), BF16),
        compiler_params=pltpu.CompilerParams(
            dimension_semantics=("parallel",),
            vmem_limit_bytes=_VMEM_LIMIT),
    )(*args)


# ------------------------- parameter initialization -------------------------

class _Rng:
    def __init__(self, seed):
        self._key = jax.random.PRNGKey(seed)

    def next(self):
        self._key, sub = jax.random.split(self._key)
        return sub


def _init_linear(rng, cin, cout, w_dtype=BF16):
    w = (1.0 / math.sqrt(cin)) * jax.random.normal(rng.next(), (cin, cout), F32)
    b = 0.01 * jax.random.normal(rng.next(), (1, cout), F32)
    return w.astype(w_dtype), b


def _init_bn_fold(rng, c):
    # eval-mode BN with running_mean=0, running_var=1 (fresh init) -> affine fold
    gamma = 1.0 + 0.1 * jax.random.normal(rng.next(), (1, c), F32)
    beta = 0.1 * jax.random.normal(rng.next(), (1, c), F32)
    scale = gamma / jnp.sqrt(1.0 + BN_EPS)
    shift = beta
    return scale, shift


def _init_conv_bn(rng, cin, cout):
    # 1x1 conv (+bias) followed by eval BN, folded: w' = w*scale, b' = b*scale + shift
    w, b = _init_linear(rng, cin, cout, F32)
    scale, shift = _init_bn_fold(rng, cout)
    return (w * scale).astype(BF16), (b * scale + shift)


def _init_dw_bn(rng, c):
    # depthwise 3x3 conv (+bias) followed by eval BN, folded per channel
    w = (1.0 / 3.0) * jax.random.normal(rng.next(), (9, 1, c), F32)
    b = 0.01 * jax.random.normal(rng.next(), (1, c), F32)
    scale, shift = _init_bn_fold(rng, c)
    return w * scale, (b * scale + shift)


def init_mbconv(rng, cin, cout, expansion):
    cexp = expansion * cin
    cse = cexp // 4  # SENet s_ratio=4
    p = {}
    p["exp_w"], p["exp_b"] = _init_linear(rng, cin, cexp)        # conv bias, no BN (module)
    p["dw_w"], p["dw_b"] = _init_dw_bn(rng, cexp)                # conv + BN folded
    p["se1_w"], p["se1_b"] = _init_linear(rng, cexp, cse, F32)
    p["se2_w"], p["se2_b"] = _init_linear(rng, cse, cexp, F32)
    # TODO(synk): PointwiseConv source not provided; standard projection (conv+BN, no act) assumed.
    p["pw_w"], p["pw_b"] = _init_conv_bn(rng, cexp, cout)
    return p


def adjust_architecture(arch, scaling):
    new = []
    for st in arch:
        layers = int(math.ceil(st.layers * scaling.depth_multiplier))
        out_features = int(st.out_features * scaling.width_multiplier // 8 * 8)
        new.append(STAGE(layers, out_features, st.stride, st.kernel, st.expansion))
    return new


def init_efficientnet(seed, architecture, scaling, img_channels=1, labels=2):
    rng = _Rng(seed)
    arch = adjust_architecture(architecture, scaling)
    params = {}
    # stage:1 -- 3x3 stride-2 conv in im2col layout (9*Cin, 32) + BN, folded
    w, b = _init_linear(rng, 9 * img_channels, 32, F32)
    scale, shift = _init_bn_fold(rng, 32)
    params["stem_w"] = (w * scale).astype(BF16)
    params["stem_b"] = b * scale + shift

    blocks, cfgs = [], []
    in_features = 32
    for s, stage in enumerate(arch):
        for l in range(1, stage.layers + 1):
            stride = stage.stride if l == 1 else 1
            residual = bool(l > 1 and s != 0)
            blocks.append(init_mbconv(rng, in_features, stage.out_features,
                                      stage.expansion))
            cfgs.append((stride, residual))
            in_features = stage.out_features
    params["blocks"] = blocks

    # stage:9 (1x1 conv padding=3 + SiLU + global pool) and classifier
    params["head_w"], params["head_b"] = _init_linear(rng, in_features, 1280)
    params["fc_w"], params["fc_b"] = _init_linear(rng, 1280, labels, F32)
    return params, tuple(cfgs)


# ------------------------------- forward pass -------------------------------

def stem_forward(x, w, b):
    # stage:1 -- 3x3 conv stride 2 pad 1 + folded BN + SiLU via im2col + tiled matmul.
    # The im2col only touches the raw (stride-2 subsampled) input, a negligible cost;
    # K = 9*Cin is tiny so the MXU pads the reduction, but the stem is ~0% of total work.
    N, H, W, C = x.shape
    ho = (H - 1) // 2 + 1
    wo = (W - 1) // 2 + 1
    xp = jnp.pad(x, ((0, 0), (1, 1), (1, 1), (0, 0)))
    cols = []
    for dy in range(3):
        for dx in range(3):
            cols.append(xp[:, dy:dy + 2 * (ho - 1) + 1:2,
                             dx:dx + 2 * (wo - 1) + 1:2, :])
    patches = jnp.concatenate(cols, axis=-1).reshape(N * ho * wo, 9 * C)
    out = matmul_bias_act(patches, w, b, act="silu")
    return out.reshape(N, ho, wo, -1)


def mbconv_forward(x, p, stride, residual):
    N, H, W, cin = x.shape
    cexp = p["exp_w"].shape[1]
    cout = p["pw_w"].shape[1]

    # 1) expansion 1x1 conv + SiLU (Conv2d bias, no BN on this path in the module)
    out = matmul_bias_act(x.reshape(N * H * W, cin), p["exp_w"], p["exp_b"], act="silu")
    out = out.reshape(N, H, W, cexp)

    # 2) depthwise 3x3 + folded BN + SiLU, SE global pool fused into the epilogue
    dw, pooled = depthwise_conv_bn_silu_pool(out, p["dw_w"], p["dw_b"], stride)
    _, ho, wo, _ = dw.shape

    # 3) SE excitation + channel gating + pointwise projection (folded BN) + residual
    res_flat = None
    if residual:
        assert cin == cout and stride == 1 and (ho, wo) == (H, W), \
            "residual requires matching shapes"
        res_flat = x.reshape(N, H * W, cin)
    out = se_pointwise_residual(dw.reshape(N, ho * wo, cexp), pooled, p,
                                residual, res_flat)
    return out.reshape(N, ho, wo, cout)


def head_and_classifier(x, params):
    N, H, W, C = x.shape
    chid = params["head_w"].shape[1]  # 1280
    # stage:9 -- 1x1 conv (padding=3, no BN) + SiLU on the interior via the tiled matmul
    y = matmul_bias_act(x.reshape(N * H * W, C), params["head_w"], params["head_b"],
                        act="silu")
    y = y.reshape(N, H * W, chid)
    # the 3-wide zero border of the padding=3 conv contributes silu(bias) per border
    # pixel to the AdaptiveAvgPool2d(1) mean
    n_total = (H + 6) * (W + 6)
    b = params["head_b"].astype(F32)
    border = b * jax.nn.sigmoid(b)                                    # (1, chid)
    pooled = (jnp.sum(y.astype(F32), axis=1)
              + float(n_total - H * W) * border) / float(n_total)     # (N, chid)
    # classifier: Flatten -> Dropout (identity in eval) -> Linear; + softmax.
    # Kept in plain JAX: a labels(=2)-wide Pallas store would waste 126/128 lanes.
    logits = pooled @ params["fc_w"] + params["fc_b"]
    preds = jax.nn.softmax(logits, axis=1)
    return logits, preds


@functools.partial(jax.jit, static_argnums=(2,))
def efficientnet_forward(x_nchw, params, block_cfgs):
    # PyTorch-style NCHW input -> NHWC (channels on the 128-lane axis), bf16 activations
    x = jnp.transpose(x_nchw, (0, 2, 3, 1)).astype(BF16)
    out = stem_forward(x, params["stem_w"], params["stem_b"])
    for bp, (stride, residual) in zip(params["blocks"], block_cfgs):
        out = mbconv_forward(out, bp, stride, residual)
    return head_and_classifier(out, params)


# ----------------------------------- main -----------------------------------

if __name__ == "__main__":
    architecture = [
        STAGE(layers=1, out_features=16, stride=1, kernel=3, expansion=1),
        STAGE(layers=2, out_features=24, stride=2, kernel=3, expansion=6),
    ]
    scaling = SCALING(width_multiplier=1.0, depth_multiplier=1.0, dropout=0.2)

    params, cfgs = init_efficientnet(42, architecture, scaling, img_channels=1, labels=2)

    key = jax.random.PRNGKey(0)
    x = jax.random.normal(key, (2, 1, 16, 16), F32)  # NCHW, like the PyTorch module

    logits, preds = efficientnet_forward(x, params, cfgs)
    jax.block_until_ready((logits, preds))

    assert logits.shape == (2, 2) and preds.shape == (2, 2)
    assert bool(jnp.all(jnp.isfinite(logits))) and bool(jnp.all(jnp.isfinite(preds)))
    assert bool(jnp.allclose(jnp.sum(preds, axis=1), 1.0, atol=1e-5))
    print("KERNEL_OK")
</pallas_src>

<mosaic_0001>
module attributes {stable_mosaic.version = 11 : i64} {
  func.func @_matmul_bias_act_kernel(%arg0: i32, %arg1: i32, %arg2: i32, %arg3: memref<128x128xbf16, #tpu.memory_space<vmem>>, %arg4: memref<128x128xbf16, #tpu.memory_space<vmem>>, %arg5: memref<1x128xf32, #tpu.memory_space<vmem>>, %arg6: memref<128x128xbf16, #tpu.memory_space<vmem>>, %arg7: memref<128x128xf32, #tpu.memory_space<vmem>>) attributes {dimension_semantics = [#tpu.dimension_semantics<parallel>, #tpu.dimension_semantics<parallel>, #tpu.dimension_semantics<arbitrary>], iteration_bounds = array<i64: 1, 1, 1>, scalar_prefetch = 0 : i64, scratch_operands = 1 : i64, tpu.core_type = #tpu.core_type<tc>, window_params = [{transform_indices = @transform_0, window_bounds = array<i64: 128, 128>}, {transform_indices = @transform_1, window_bounds = array<i64: 128, 128>}, {transform_indices = @transform_2, window_bounds = array<i64: 1, 128>}, {transform_indices = @transform_3, window_bounds = array<i64: 128, 128>}]} {
    %c0_i32 = arith.constant 0 : i32
    %0 = arith.cmpi eq, %arg2, %c0_i32 : i32
    %1 = arith.extui %0 : i1 to i32
    %c0_i32_0 = arith.constant 0 : i32
    %2 = arith.cmpi ne, %1, %c0_i32_0 : i32
    scf.if %2 {
      %cst_10 = arith.constant 0.000000e+00 : f32
      %12 = vector.broadcast %cst_10 : f32 to vector<128x128xf32>
      %c0_11 = arith.constant 0 : index
      %c0_12 = arith.constant 0 : index
      %13 = vector.load %arg7[%c0_11, %c0_12] : memref<128x128xf32, #tpu.memory_space<vmem>>, vector<128x128xf32>
      tpu.vector_store %arg7[%c0_11, %c0_12], %12 {strides = array<i32>} : memref<128x128xf32, #tpu.memory_space<vmem>>, vector<128x128xf32>,
    } else {
    }
    %c0 = arith.constant 0 : index
    %c0_1 = arith.constant 0 : index
    %3 = vector.load %arg7[%c0, %c0_1] : memref<128x128xf32, #tpu.memory_space<vmem>>, vector<128x128xf32>
    %c0_2 = arith.constant 0 : index
    %c0_3 = arith.constant 0 : index
    %4 = vector.load %arg3[%c0_2, %c0_3] : memref<128x128xbf16, #tpu.memory_space<vmem>>, vector<128x128xbf16>
    %c0_4 = arith.constant 0 : index
    %c0_5 = arith.constant 0 : index
    %5 = vector.load %arg4[%c0_4, %c0_5] : memref<128x128xbf16, #tpu.memory_space<vmem>>, vector<128x128xbf16>
    %cst = arith.constant dense<0.000000e+00> : vector<128x128xf32>
    %6 = tpu.matmul %4, %5, %cst {dimension_numbers = #tpu.dot_dimension_numbers<[1], [0], [0], [1], [0, 0, 1, 1], [], []>} : vector<128x128xbf16>, vector<128x128xbf16>, vector<128x128xf32> -> vector<128x128xf32>
    %7 = arith.addf %3, %6 : vector<128x128xf32>
    %c0_6 = arith.constant 0 : index
    %c0_7 = arith.constant 0 : index
    %8 = vector.load %arg7[%c0_6, %c0_7] : memref<128x128xf32, #tpu.memory_space<vmem>>, vector<128x128xf32>
    tpu.vector_store %arg7[%c0_6, %c0_7], %7 {strides = array<i32>} : memref<128x128xf32, #tpu.memory_space<vmem>>, vector<128x128xf32>,
    %c0_i32_8 = arith.constant 0 : i32
    %9 = arith.cmpi eq, %arg2, %c0_i32_8 : i32
    %10 = arith.extui %9 : i1 to i32
    %c0_i32_9 = arith.constant 0 : i32
    %11 = arith.cmpi ne, %10, %c0_i32_9 : i32
    scf.if %11 {
      %c0_10 = arith.constant 0 : index
      %c0_11 = arith.constant 0 : index
      %12 = vector.load %arg7[%c0_10, %c0_11] : memref<128x128xf32, #tpu.memory_space<vmem>>, vector<128x128xf32>
      %c0_12 = arith.constant 0 : index
      %c0_13 = arith.constant 0 : index
      %13 = vector.load %arg5[%c0_12, %c0_13] : memref<1x128xf32, #tpu.memory_space<vmem>>, vector<1x128xf32>
      %14 = vector.broadcast %13 : vector<1x128xf32> to vector<128x128xf32>
      %15 = arith.addf %12, %14 : vector<128x128xf32>
      %16 = arith.negf %15 : vector<128x128xf32>
      %17 = math.exp %16 : vector<128x128xf32>
      %cst_14 = arith.constant 1.000000e+00 : f32
      %18 = vector.broadcast %cst_14 : f32 to vector<128x128xf32>
      %19 = arith.addf %18, %17 : vector<128x128xf32>
      %20 = arith.divf %18, %19 : vector<128x128xf32>
      %21 = arith.mulf %15, %20 : vector<128x128xf32>
      %22 = arith.truncf %21 : vector<128x128xf32> to vector<128x128xbf16>
      %c0_15 = arith.constant 0 : index
      %c0_16 = arith.constant 0 : index
      %23 = vector.load %arg6[%c0_15, %c0_16] : memref<128x128xbf16, #tpu.memory_space<vmem>>, vector<128x128xbf16>
      tpu.vector_store %arg6[%c0_15, %c0_16], %22 {strides = array<i32>} : memref<128x128xbf16, #tpu.memory_space<vmem>>, vector<128x128xbf16>,
    } else {
    }
    return
  }
  func.func @transform_0(%arg0: i32, %arg1: i32, %arg2: i32) -> (i32, i32) {
    %c0_i32 = arith.constant 0 : i32
    return %arg0, %arg2 : i32, i32
  }
  func.func @transform_1(%arg0: i32, %arg1: i32, %arg2: i32) -> (i32, i32) {
    %c0_i32 = arith.constant 0 : i32
    return %arg2, %arg1 : i32, i32
  }
  func.func @transform_2(%arg0: i32, %arg1: i32, %arg2: i32) -> (i32, i32) {
    %c0_i32 = arith.constant 0 : i32
    %c0_i32_0 = arith.constant 0 : i32
    return %c0_i32, %arg1 : i32, i32
  }
  func.func @transform_3(%arg0: i32, %arg1: i32, %arg2: i32) -> (i32, i32) {
    %c0_i32 = arith.constant 0 : i32
    return %arg0, %arg1 : i32, i32
  }
}

module attributes {stable_mosaic.version = 11 : i64} {
  func.func @_dwconv_bn_silu_pool_kernel(%arg0: i32, %arg1: memref<1x10x10x32xbf16, #tpu.memory_space<vmem>>, %arg2: memref<9x1x32xf32, #tpu.memory_space<vmem>>, %arg3: memref<1x32xf32, #tpu.memory_space<vmem>>, %arg4: memref<1x8x8x32xbf16, #tpu.memory_space<vmem>>, %arg5: memref<1x1x32xf32, #tpu.memory_space<vmem>>) attributes {dimension_semantics = [#tpu.dimension_semantics<parallel>], iteration_bounds = array<i64: 2>, scalar_prefetch = 0 : i64, scratch_operands = 0 : i64, tpu.core_type = #tpu.core_type<tc>, window_params = [{transform_indices = @transform_0, window_bounds = array<i64: 1, 10, 10, 32>}, {pipeline_mode = #tpu.pipeline_mode<synchronous>, transform_indices = @transform_1, window_bounds = array<i64: 9, 1, 32>}, {pipeline_mode = #tpu.pipeline_mode<synchronous>, transform_indices = @transform_2, window_bounds = array<i64: 1, 32>}, {transform_indices = @transform_3, window_bounds = array<i64: 1, 8, 8, 32>}, {transform_indices = @transform_4, window_bounds = array<i64: 1, 1, 32>}]} {
    %c0 = arith.constant 0 : index
    %c0_0 = arith.constant 0 : index
    %c0_1 = arith.constant 0 : index
    %c0_2 = arith.constant 0 : index
    %0 = vector.load %arg1[%c0, %c0_0, %c0_1, %c0_2] : memref<1x10x10x32xbf16, #tpu.memory_space<vmem>>, vector<1x8x8x32xbf16>
    %1 = vector.shape_cast %0 : vector<1x8x8x32xbf16> to vector<8x8x32xbf16>
    %2 = arith.extf %1 : vector<8x8x32xbf16> to vector<8x8x32xf32>
    %c0_3 = arith.constant 0 : index
    %c0_4 = arith.constant 0 : index
    %c0_5 = arith.constant 0 : index
    %3 = vector.load %arg2[%c0_3, %c0_4, %c0_5] : memref<9x1x32xf32, #tpu.memory_space<vmem>>, vector<1x1x32xf32>
    %4 = vector.shape_cast %3 : vector<1x1x32xf32> to vector<1x32xf32>
    %5 = vector.shape_cast %4 : vector<1x32xf32> to vector<1x1x32xf32>
    %6 = vector.broadcast %5 : vector<1x1x32xf32> to vector<8x8x32xf32>
    %7 = arith.mulf %2, %6 : vector<8x8x32xf32>
    %c0_6 = arith.constant 0 : index
    %c0_7 = arith.constant 0 : index
    %c1 = arith.constant 1 : index
    %c0_8 = arith.constant 0 : index
    %8 = vector.load %arg1[%c0_6, %c0_7, %c1, %c0_8] : memref<1x10x10x32xbf16, #tpu.memory_space<vmem>>, vector<1x8x8x32xbf16>
    %9 = vector.shape_cast %8 : vector<1x8x8x32xbf16> to vector<8x8x32xbf16>
    %10 = arith.extf %9 : vector<8x8x32xbf16> to vector<8x8x32xf32>
    %c1_9 = arith.constant 1 : index
    %c0_10 = arith.constant 0 : index
    %c0_11 = arith.constant 0 : index
    %11 = vector.load %arg2[%c1_9, %c0_10, %c0_11] : memref<9x1x32xf32, #tpu.memory_space<vmem>>, vector<1x1x32xf32>
    %12 = vector.shape_cast %11 : vector<1x1x32xf32> to vector<1x32xf32>
    %13 = vector.shape_cast %12 : vector<1x32xf32> to vector<1x1x32xf32>
    %14 = vector.broadcast %13 : vector<1x1x32xf32> to vector<8x8x32xf32>
    %15 = arith.mulf %10, %14 : vector<8x8x32xf32>
    %16 = arith.addf %7, %15 : vector<8x8x32xf32>
    %c0_12 = arith.constant 0 : index
    %c0_13 = arith.constant 0 : index
    %c2 = arith.constant 2 : index
    %c0_14 = arith.constant 0 : index
    %17 = vector.load %arg1[%c0_12, %c0_13, %c2, %c0_14] : memref<1x10x10x32xbf16, #tpu.memory_space<vmem>>, vector<1x8x8x32xbf16>
    %18 = vector.shape_cast %17 : vector<1x8x8x32xbf16> to vector<8x8x32xbf16>
    %19 = arith.extf %18 : vector<8x8x32xbf16> to vector<8x8x32xf32>
    %c2_15 = arith.constant 2 : index
    %c0_16 = arith.constant 0 : index
    %c0_17 = arith.constant 0 : index
    %20 = vector.load %arg2[%c2_15, %c0_16, %c0_17] : memref<9x1x32xf32, #tpu.memory_space<vmem>>, vector<1x1x32xf32>
    %21 = vector.shape_cast %20 : vector<1x1x32xf32> to vector<1x32xf32>
    %22 = vector.shape_cast %21 : vector<1x32xf32> to vector<1x1x32xf32>
    %23 = vector.broadcast %22 : vector<1x1x32xf32> to vector<8x8x32xf32>
    %24 = arith.mulf %19, %23 : vector<8x8x32xf32>
    %25 = arith.addf %16, %24 : vector<8x8x32xf32>
    %c0_18 = arith.constant 0 : index
    %c1_19 = arith.constant 1 : index
    %c0_20 = arith.constant 0 : index
    %c0_21 = arith.constant 0 : index
    %26 = vector.load %arg1[%c0_18, %c1_19, %c0_20, %c0_21] : memref<1x10x10x32xbf16, #tpu.memory_space<vmem>>, vector<1x8x8x32xbf16>
    %27 = vector.shape_cast %26 : vector<1x8x8x32xbf16> to vector<8x8x32xbf16>
    %28 = arith.extf %27 : vector<8x8x32xbf16> to vector<8x8x32xf32>
    %c3 = arith.constant 3 : index
    %c0_22 = arith.constant 0 : index
    %c0_23 = arith.constant 0 : index
    %29 = vector.load %arg2[%c3, %c0_22, %c0_23] : memref<9x1x32xf32, #tpu.memory_space<vmem>>, vector<1x1x32xf32>
    %30 = vector.shape_cast %29 : vector<1x1x32xf32> to vector<1x32xf32>
    %31 = vector.shape_cast %30 : vector<1x32xf32> to vector<1x1x32xf32>
    %32 = vector.broadcast %31 : vector<1x1x32xf32> to vector<8x8x32xf32>
    %33 = arith.mulf %28, %32 : vector<8x8x32xf32>
    %34 = arith.addf %25, %33 : vector<8x8x32xf32>
    %c0_24 = arith.constant 0 : index
    %c1_25 = arith.constant 1 : index
    %c1_26 = arith.constant 1 : index
    %c0_27 = arith.constant 0 : index
    %35 = vector.load %arg1[%c0_24, %c1_25, %c1_26, %c0_27] : memref<1x10x10x32xbf16, #tpu.memory_space<vmem>>, vector<1x8x8x32xbf16>
    %36 = vector.shape_cast %35 : vector<1x8x8x32xbf16> to vector<8x8x32xbf16>
    %37 = arith.extf %36 : vector<8x8x32xbf16> to vector<8x8x32xf32>
    %c4 = arith.constant 4 : index
    %c0_28 = arith.constant 0 : index
    %c0_29 = arith.constant 0 : index
    %38 = vector.load %arg2[%c4, %c0_28, %c0_29] : memref<9x1x32xf32, #tpu.memory_space<vmem>>, vector<1x1x32xf32>
    %39 = vector.shape_cast %38 : vector<1x1x32xf32> to vector<1x32xf32>
    %40 = vector.shape_cast %39 : vector<1x32xf32> to vector<1x1x32xf32>
    %41 = vector.broadcast %40 : vector<1x1x32xf32> to vector<8x8x32xf32>
    %42 = arith.mulf %37, %41 : vector<8x8x32xf32>
    %43 = arith.addf %34, %42 : vector<8x8x32xf32>
    %c0_30 = arith.constant 0 : index
    %c1_31 = arith.constant 1 : index
    %c2_32 = arith.constant 2 : index
    %c0_33 = arith.constant 0 : index
    %44 = vector.load %arg1[%c0_30, %c1_31, %c2_32, %c0_33] : memref<1x10x10x32xbf16, #tpu.memory_space<vmem>>, vector<1x8x8x32xbf16>
    %45 = vector.shape_cast %44 : vector<1x8x8x32xbf16> to vector<8x8x32xbf16>
    %46 = arith.extf %45 : vector<8x8x32xbf16> to vector<8x8x32xf32>
    %c5 = arith.constant 5 : index
    %c0_34 = arith.constant 0 : index
    %c0_35 = arith.constant 0 : index
    %47 = vector.load %arg2[%c5, %c0_34, %c0_35] : memref<9x1x32xf32, #tpu.memory_space<vmem>>, vector<1x1x32xf32>
    %48 = vector.shape_cast %47 : vector<1x1x32xf32> to vector<1x32xf32>
    %49 = vector.shape_cast %48 : vector<1x32xf32> to vector<1x1x32xf32>
    %50 = vector.broadcast %49 : vector<1x1x32xf32> to vector<8x8x32xf32>
    %51 = arith.mulf %46, %50 : vector<8x8x32xf32>
    %52 = arith.addf %43, %51 : vector<8x8x32xf32>
    %c0_36 = arith.constant 0 : index
    %c2_37 = arith.constant 2 : index
    %c0_38 = arith.constant 0 : index
    %c0_39 = arith.constant 0 : index
    %53 = vector.load %arg1[%c0_36, %c2_37, %c0_38, %c0_39] : memref<1x10x10x32xbf16, #tpu.memory_space<vmem>>, vector<1x8x8x32xbf16>
    %54 = vector.shape_cast %53 : vector<1x8x8x32xbf16> to vector<8x8x32xbf16>
    %55 = arith.extf %54 : vector<8x8x32xbf16> to vector<8x8x32xf32>
    %c6 = arith.constant 6 : index
    %c0_40 = arith.constant 0 : index
    %c0_41 = arith.constant 0 : index
    %56 = vector.load %arg2[%c6, %c0_40, %c0_41] : memref<9x1x32xf32, #tpu.memory_space<vmem>>, vector<1x1x32xf32>
    %57 = vector.shape_cast %56 : vector<1x1x32xf32> to vector<1x32xf32>
    %58 = vector.shape_cast %57 : vector<1x32xf32> to vector<1x1x32xf32>
    %59 = vector.broadcast %58 : vector<1x1x32xf32> to vector<8x8x32xf32>
    %60 = arith.mulf %55, %59 : vector<8x8x32xf32>
    %61 = arith.addf %52, %60 : vector<8x8x32xf32>
    %c0_42 = arith.constant 0 : index
    %c2_43 = arith.constant 2 : index
    %c1_44 = arith.constant 1 : index
    %c0_45 = arith.constant 0 : index
    %62 = vector.load %arg1[%c0_42, %c2_43, %c1_44, %c0_45] : memref<1x10x10x32xbf16, #tpu.memory_space<vmem>>, vector<1x8x8x32xbf16>
    %63 = vector.shape_cast %62 : vector<1x8x8x32xbf16> to vector<8x8x32xbf16>
    %64 = arith.extf %63 : vector<8x8x32xbf16> to vector<8x8x32xf32>
    %c7 = arith.constant 7 : index
    %c0_46 = arith.constant 0 : index
    %c0_47 = arith.constant 0 : index
    %65 = vector.load %arg2[%c7, %c0_46, %c0_47] : memref<9x1x32xf32, #tpu.memory_space<vmem>>, vector<1x1x32xf32>
    %66 = vector.shape_cast %65 : vector<1x1x32xf32> to vector<1x32xf32>
    %67 = vector.shape_cast %66 : vector<1x32xf32> to vector<1x1x32xf32>
    %68 = vector.broadcast %67 : vector<1x1x32xf32> to vector<8x8x32xf32>
    %69 = arith.mulf %64, %68 : vector<8x8x32xf32>
    %70 = arith.addf %61, %69 : vector<8x8x32xf32>
    %c0_48 = arith.constant 0 : index
    %c2_49 = arith.constant 2 : index
    %c2_50 = arith.constant 2 : index
    %c0_51 = arith.constant 0 : index
    %71 = vector.load %arg1[%c0_48, %c2_49, %c2_50, %c0_51] : memref<1x10x10x32xbf16, #tpu.memory_space<vmem>>, vector<1x8x8x32xbf16>
    %72 = vector.shape_cast %71 : vector<1x8x8x32xbf16> to vector<8x8x32xbf16>
    %73 = arith.extf %72 : vector<8x8x32xbf16> to vector<8x8x32xf32>
    %c8 = arith.constant 8 : index
    %c0_52 = arith.constant 0 : index
    %c0_53 = arith.constant 0 : index
    %74 = vector.load %arg2[%c8, %c0_52, %c0_53] : memref<9x1x32xf32, #tpu.memory_space<vmem>>, vector<1x1x32xf32>
    %75 = vector.shape_cast %74 : vector<1x1x32xf32> to vector<1x32xf32>
    %76 = vector.shape_cast %75 : vector<1x32xf32> to vector<1x1x32xf32>
    %77 = vector.broadcast %76 : vector<1x1x32xf32> to vector<8x8x32xf32>
    %78 = arith.mulf %73, %77 : vector<8x8x32xf32>
    %79 = arith.addf %70, %78 : vector<8x8x32xf32>
    %c0_54 = arith.constant 0 : index
    %c0_55 = arith.constant 0 : index
    %80 = vector.load %arg3[%c0_54, %c0_55] : memref<1x32xf32, #tpu.memory_space<vmem>>, vector<1x32xf32>
    %81 = vector.shape_cast %80 : vector<1x32xf32> to vector<1x1x32xf32>
    %82 = vector.broadcast %81 : vector<1x1x32xf32> to vector<8x8x32xf32>
    %83 = arith.addf %79, %82 : vector<8x8x32xf32>
    %84 = arith.negf %83 : vector<8x8x32xf32>
    %85 = math.exp %84 : vector<8x8x32xf32>
    %cst = arith.constant 1.000000e+00 : f32
    %86 = vector.broadcast %cst : f32 to vector<8x8x32xf32>
    %87 = arith.addf %86, %85 : vector<8x8x32xf32>
    %88 = arith.divf %86, %87 : vector<8x8x32xf32>
    %89 = arith.mulf %83, %88 : vector<8x8x32xf32>
    %90 = arith.truncf %89 : vector<8x8x32xf32> to vector<8x8x32xbf16>
    %c0_56 = arith.constant 0 : index
    %c0_57 = arith.constant 0 : index
    %c0_58 = arith.constant 0 : index
    %c0_59 = arith.constant 0 : index
    %91 = vector.load %arg4[%c0_56, %c0_57, %c0_58, %c0_59] : memref<1x8x8x32xbf16, #tpu.memory_space<vmem>>, vector<1x8x8x32xbf16>
    %92 = vector.shape_cast %91 : vector<1x8x8x32xbf16> to vector<8x8x32xbf16>
    %93 = vector.shape_cast %90 : vector<8x8x32xbf16> to vector<1x8x8x32xbf16>
    tpu.vector_store %arg4[%c0_56, %c0_57, %c0_58, %c0_59], %93 {strides = array<i32>} : memref<1x8x8x32xbf16, #tpu.memory_space<vmem>>, vector<1x8x8x32xbf16>,
    %cst_60 = arith.constant dense<0.000000e+00> : vector<8x32xf32>
    %94 = vector.multi_reduction <add>, %89, %cst_60 [0] : vector<8x8x32xf32> to vector<8x32xf32>
    %95 = vector.shape_cast %94 : vector<8x32xf32> to vector<1x8x32xf32>
    %cst_61 = arith.constant dense<0.000000e+00> : vector<1x32xf32>
    %96 = vector.multi_reduction <add>, %95, %cst_61 [1] : vector<1x8x32xf32> to vector<1x32xf32>
    %97 = vector.shape_cast %96 : vector<1x32xf32> to vector<1x1x32xf32>
    %cst_62 = arith.constant 1.562500e-02 : f32
    %98 = vector.broadcast %cst_62 : f32 to vector<1x1x32xf32>
    %99 = arith.mulf %97, %98 : vector<1x1x32xf32>
    %c0_63 = arith.constant 0 : index
    %c0_64 = arith.constant 0 : index
    %c0_65 = arith.constant 0 : index
    %100 = vector.load %arg5[%c0_63, %c0_64, %c0_65] : memref<1x1x32xf32, #tpu.memory_space<vmem>>, vector<1x1x32xf32>
    tpu.vector_store %arg5[%c0_63, %c0_64, %c0_65], %99 {strides = array<i32>} : memref<1x1x32xf32, #tpu.memory_space<vmem>>, vector<1x1x32xf32>,
    return
  }
  func.func @transform_0(%arg0: i32) -> (i32, i32, i32, i32) {
    %c0_i32 = arith.constant 0 : i32
    %c0_i32_0 = arith.constant 0 : i32
    %c0_i32_1 = arith.constant 0 : i32
    %c0_i32_2 = arith.constant 0 : i32
    return %arg0, %c0_i32, %c0_i32_0, %c0_i32_1 : i32, i32, i32, i32
  }
  func.func @transform_1(%arg0: i32) -> (i32, i32, i32) {
    %c0_i32 = arith.constant 0 : i32
    %c0_i32_0 = arith.constant 0 : i32
    %c0_i32_1 = arith.constant 0 : i32
    %c0_i32_2 = arith.constant 0 : i32
    return %c0_i32, %c0_i32_0, %c0_i32_1 : i32, i32, i32
  }
  func.func @transform_2(%arg0: i32) -> (i32, i32) {
    %c0_i32 = arith.constant 0 : i32
    %c0_i32_0 = arith.constant 0 : i32
    %c0_i32_1 = arith.constant 0 : i32
    return %c0_i32, %c0_i32_0 : i32, i32
  }
  func.func @transform_3(%arg0: i32) -> (i32, i32, i32, i32) {
    %c0_i32 = arith.constant 0 : i32
    %c0_i32_0 = arith.constant 0 : i32
    %c0_i32_1 = arith.constant 0 : i32
    %c0_i32_2 = arith.constant 0 : i32
    return %arg0, %c0_i32, %c0_i32_0, %c0_i32_1 : i32, i32, i32, i32
  }
  func.func @transform_4(%arg0: i32) -> (i32, i32, i32) {
    %c0_i32 = arith.constant 0 : i32
    %c0_i32_0 = arith.constant 0 : i32
    %c0_i32_1 = arith.constant 0 : i32
    return %arg0, %c0_i32, %c0_i32_0 : i32, i32, i32
  }
}

module attributes {stable_mosaic.version = 11 : i64} {
  func.func @_se_pw_res_kernel(%arg0: i32, %arg1: memref<1x64x32xbf16, #tpu.memory_space<vmem>>, %arg2: memref<1x1x32xf32, #tpu.memory_space<vmem>>, %arg3: memref<32x8xf32, #tpu.memory_space<vmem>>, %arg4: memref<1x8xf32, #tpu.memory_space<vmem>>, %arg5: memref<8x32xf32, #tpu.memory_space<vmem>>, %arg6: memref<1x32xf32, #tpu.memory_space<vmem>>, %arg7: memref<32x16xbf16, #tpu.memory_space<vmem>>, %arg8: memref<1x16xf32, #tpu.memory_space<vmem>>, %arg9: memref<1x64x16xbf16, #tpu.memory_space<vmem>>) attributes {dimension_semantics = [#tpu.dimension_semantics<parallel>], iteration_bounds = array<i64: 2>, scalar_prefetch = 0 : i64, scratch_operands = 0 : i64, tpu.core_type = #tpu.core_type<tc>, window_params = [{transform_indices = @transform_0, window_bounds = array<i64: 1, 64, 32>}, {transform_indices = @transform_1, window_bounds = array<i64: 1, 1, 32>}, {pipeline_mode = #tpu.pipeline_mode<synchronous>, transform_indices = @transform_2, window_bounds = array<i64: 32, 8>}, {pipeline_mode = #tpu.pipeline_mode<synchronous>, transform_indices = @transform_3, window_bounds = array<i64: 1, 8>}, {pipeline_mode = #tpu.pipeline_mode<synchronous>, transform_indices = @transform_4, window_bounds = array<i64: 8, 32>}, {pipeline_mode = #tpu.pipeline_mode<synchronous>, transform_indices = @transform_5, window_bounds = array<i64: 1, 32>}, {pipeline_mode = #tpu.pipeline_mode<synchronous>, transform_indices = @transform_6, window_bounds = array<i64: 32, 16>}, {pipeline_mode = #tpu.pipeline_mode<synchronous>, transform_indices = @transform_7, window_bounds = array<i64: 1, 16>}, {transform_indices = @transform_8, window_bounds = array<i64: 1, 64, 16>}]} {
    %c0 = arith.constant 0 : index
    %c0_0 = arith.constant 0 : index
    %c0_1 = arith.constant 0 : index
    %0 = vector.load %arg2[%c0, %c0_0, %c0_1] : memref<1x1x32xf32, #tpu.memory_space<vmem>>, vector<1x1x32xf32>
    %1 = vector.shape_cast %0 : vector<1x1x32xf32> to vector<1x32xf32>
    %c0_2 = arith.constant 0 : index
    %c0_3 = arith.constant 0 : index
    %2 = vector.load %arg3[%c0_2, %c0_3] : memref<32x8xf32, #tpu.memory_space<vmem>>, vector<32x8xf32>
    %cst = arith.constant dense<0.000000e+00> : vector<1x8xf32>
    %3 = tpu.matmul %1, %2, %cst {dimension_numbers = #tpu.dot_dimension_numbers<[1], [0], [0], [1], [0, 0, 1, 1], [], []>} : vector<1x32xf32>, vector<32x8xf32>, vector<1x8xf32> -> vector<1x8xf32>
    %c0_4 = arith.constant 0 : index
    %c0_5 = arith.constant 0 : index
    %4 = vector.load %arg4[%c0_4, %c0_5] : memref<1x8xf32, #tpu.memory_space<vmem>>, vector<1x8xf32>
    %5 = arith.addf %3, %4 : vector<1x8xf32>
    %6 = arith.negf %5 : vector<1x8xf32>
    %7 = math.exp %6 : vector<1x8xf32>
    %cst_6 = arith.constant 1.000000e+00 : f32
    %8 = vector.broadcast %cst_6 : f32 to vector<1x8xf32>
    %9 = arith.addf %8, %7 : vector<1x8xf32>
    %10 = arith.divf %8, %9 : vector<1x8xf32>
    %11 = arith.mulf %5, %10 : vector<1x8xf32>
    %c0_7 = arith.constant 0 : index
    %c0_8 = arith.constant 0 : index
    %12 = vector.load %arg5[%c0_7, %c0_8] : memref<8x32xf32, #tpu.memory_space<vmem>>, vector<8x32xf32>
    %cst_9 = arith.constant dense<0.000000e+00> : vector<1x32xf32>
    %13 = tpu.matmul %11, %12, %cst_9 {dimension_numbers = #tpu.dot_dimension_numbers<[1], [0], [0], [1], [0, 0, 1, 1], [], []>} : vector<1x8xf32>, vector<8x32xf32>, vector<1x32xf32> -> vector<1x32xf32>
    %c0_10 = arith.constant 0 : index
    %c0_11 = arith.constant 0 : index
    %14 = vector.load %arg6[%c0_10, %c0_11] : memref<1x32xf32, #tpu.memory_space<vmem>>, vector<1x32xf32>
    %15 = arith.addf %13, %14 : vector<1x32xf32>
    %16 = arith.negf %15 : vector<1x32xf32>
    %17 = math.exp %16 : vector<1x32xf32>
    %cst_12 = arith.constant 1.000000e+00 : f32
    %18 = vector.broadcast %cst_12 : f32 to vector<1x32xf32>
    %19 = arith.addf %18, %17 : vector<1x32xf32>
    %20 = arith.divf %18, %19 : vector<1x32xf32>
    %c0_13 = arith.constant 0 : index
    %c0_14 = arith.constant 0 : index
    %c0_15 = arith.constant 0 : index
    %21 = vector.load %arg1[%c0_13, %c0_14, %c0_15] : memref<1x64x32xbf16, #tpu.memory_space<vmem>>, vector<1x64x32xbf16>
    %22 = vector.shape_cast %21 : vector<1x64x32xbf16> to vector<64x32xbf16>
    %23 = arith.extf %22 : vector<64x32xbf16> to vector<64x32xf32>
    %24 = vector.broadcast %20 : vector<1x32xf32> to vector<64x32xf32>
    %25 = arith.mulf %23, %24 : vector<64x32xf32>
    %26 = arith.truncf %25 : vector<64x32xf32> to vector<64x32xbf16>
    %c0_16 = arith.constant 0 : index
    %c0_17 = arith.constant 0 : index
    %27 = vector.load %arg7[%c0_16, %c0_17] : memref<32x16xbf16, #tpu.memory_space<vmem>>, vector<32x16xbf16>
    %cst_18 = arith.constant dense<0.000000e+00> : vector<64x16xf32>
    %28 = tpu.matmul %26, %27, %cst_18 {dimension_numbers = #tpu.dot_dimension_numbers<[1], [0], [0], [1], [0, 0, 1, 1], [], []>} : vector<64x32xbf16>, vector<32x16xbf16>, vector<64x16xf32> -> vector<64x16xf32>
    %c0_19 = arith.constant 0 : index
    %c0_20 = arith.constant 0 : index
    %29 = vector.load %arg8[%c0_19, %c0_20] : memref<1x16xf32, #tpu.memory_space<vmem>>, vector<1x16xf32>
    %30 = vector.broadcast %29 : vector<1x16xf32> to vector<64x16xf32>
    %31 = arith.addf %28, %30 : vector<64x16xf32>
    %32 = arith.truncf %31 : vector<64x16xf32> to vector<64x16xbf16>
    %c0_21 = arith.constant 0 : index
    %c0_22 = arith.constant 0 : index
    %c0_23 = arith.constant 0 : index
    %33 = vector.load %arg9[%c0_21, %c0_22, %c0_23] : memref<1x64x16xbf16, #tpu.memory_space<vmem>>, vector<1x64x16xbf16>
    %34 = vector.shape_cast %33 : vector<1x64x16xbf16> to vector<64x16xbf16>
    %35 = vector.shape_cast %32 : vector<64x16xbf16> to vector<1x64x16xbf16>
    tpu.vector_store %arg9[%c0_21, %c0_22, %c0_23], %35 {strides = array<i32>} : memref<1x64x16xbf16, #tpu.memory_space<vmem>>, vector<1x64x16xbf16>,
    return
  }
  func.func @transform_0(%arg0: i32) -> (i32, i32, i32) {
    %c0_i32 = arith.constant 0 : i32
    %c0_i32_0 = arith.constant 0 : i32
    %c0_i32_1 = arith.constant 0 : i32
    return %arg0, %c0_i32, %c0_i32_0 : i32, i32, i32
  }
  func.func @transform_1(%arg0: i32) -> (i32, i32, i32) {
    %c0_i32 = arith.constant 0 : i32
    %c0_i32_0 = arith.constant 0 : i32
    %c0_i32_1 = arith.constant 0 : i32
    return %arg0, %c0_i32, %c0_i32_0 : i32, i32, i32
  }
  func.func @transform_2(%arg0: i32) -> (i32, i32) {
    %c0_i32 = arith.constant 0 : i32
    %c0_i32_0 = arith.constant 0 : i32
    %c0_i32_1 = arith.constant 0 : i32
    return %c0_i32, %c0_i32_0 : i32, i32
  }
  func.func @transform_3(%arg0: i32) -> (i32, i32) {
    %c0_i32 = arith.constant 0 : i32
    %c0_i32_0 = arith.constant 0 : i32
    %c0_i32_1 = arith.constant 0 : i32
    return %c0_i32, %c0_i32_0 : i32, i32
  }
  func.func @transform_4(%arg0: i32) -> (i32, i32) {
    %c0_i32 = arith.constant 0 : i32
    %c0_i32_0 = arith.constant 0 : i32
    %c0_i32_1 = arith.constant 0 : i32
    return %c0_i32, %c0_i32_0 : i32, i32
  }
  func.func @transform_5(%arg0: i32) -> (i32, i32) {
    %c0_i32 = arith.constant 0 : i32
    %c0_i32_0 = arith.constant 0 : i32
    %c0_i32_1 = arith.constant 0 : i32
    return %c0_i32, %c0_i32_0 : i32, i32
  }
  func.func @transform_6(%arg0: i32) -> (i32, i32) {
    %c0_i32 = arith.constant 0 : i32
    %c0_i32_0 = arith.constant 0 : i32
    %c0_i32_1 = arith.constant 0 : i32
    return %c0_i32, %c0_i32_0 : i32, i32
  }
  func.func @transform_7(%arg0: i32) -> (i32, i32) {
    %c0_i32 = arith.constant 0 : i32
    %c0_i32_0 = arith.constant 0 : i32
    %c0_i32_1 = arith.constant 0 : i32
    return %c0_i32, %c0_i32_0 : i32, i32
  }
  func.func @transform_8(%arg0: i32) -> (i32, i32, i32) {
    %c0_i32 = arith.constant 0 : i32
    %c0_i32_0 = arith.constant 0 : i32
    %c0_i32_1 = arith.constant 0 : i32
    return %arg0, %c0_i32, %c0_i32_0 : i32, i32, i32
  }
}

module attributes {stable_mosaic.version = 11 : i64} {
  func.func @_dwconv_bn_silu_pool_kernel(%arg0: i32, %arg1: memref<4x5x5x96xbf16, #tpu.memory_space<vmem>>, %arg2: memref<9x1x96xf32, #tpu.memory_space<vmem>>, %arg3: memref<1x96xf32, #tpu.memory_space<vmem>>, %arg4: memref<1x4x4x96xbf16, #tpu.memory_space<vmem>>, %arg5: memref<1x1x96xf32, #tpu.memory_space<vmem>>) attributes {dimension_semantics = [#tpu.dimension_semantics<parallel>], iteration_bounds = array<i64: 2>, scalar_prefetch = 0 : i64, scratch_operands = 0 : i64, tpu.core_type = #tpu.core_type<tc>, window_params = [{transform_indices = @transform_0, window_bounds = array<i64: 4, 5, 5, 96>}, {pipeline_mode = #tpu.pipeline_mode<synchronous>, transform_indices = @transform_1, window_bounds = array<i64: 9, 1, 96>}, {pipeline_mode = #tpu.pipeline_mode<synchronous>, transform_indices = @transform_2, window_bounds = array<i64: 1, 96>}, {transform_indices = @transform_3, window_bounds = array<i64: 1, 4, 4, 96>}, {transform_indices = @transform_4, window_bounds = array<i64: 1, 1, 96>}]} {
    %c0 = arith.constant 0 : index
    %c0_0 = arith.constant 0 : index
    %c0_1 = arith.constant 0 : index
    %c0_2 = arith.constant 0 : index
    %0 = vector.load %arg1[%c0, %c0_0, %c0_1, %c0_2] : memref<4x5x5x96xbf16, #tpu.memory_space<vmem>>, vector<1x4x4x96xbf16>
    %1 = vector.shape_cast %0 : vector<1x4x4x96xbf16> to vector<4x4x96xbf16>
    %2 = arith.extf %1 : vector<4x4x96xbf16> to vector<4x4x96xf32>
    %c0_3 = arith.constant 0 : index
    %c0_4 = arith.constant 0 : index
    %c0_5 = arith.constant 0 : index
    %3 = vector.load %arg2[%c0_3, %c0_4, %c0_5] : memref<9x1x96xf32, #tpu.memory_space<vmem>>, vector<1x1x96xf32>
    %4 = vector.shape_cast %3 : vector<1x1x96xf32> to vector<1x96xf32>
    %5 = vector.shape_cast %4 : vector<1x96xf32> to vector<1x1x96xf32>
    %6 = vector.broadcast %5 : vector<1x1x96xf32> to vector<4x4x96xf32>
    %7 = arith.mulf %2, %6 : vector<4x4x96xf32>
    %c1 = arith.constant 1 : index
    %c0_6 = arith.constant 0 : index
    %c0_7 = arith.constant 0 : index
    %c0_8 = arith.constant 0 : index
    %8 = vector.load %arg1[%c1, %c0_6, %c0_7, %c0_8] : memref<4x5x5x96xbf16, #tpu.memory_space<vmem>>, vector<1x4x4x96xbf16>
    %9 = vector.shape_cast %8 : vector<1x4x4x96xbf16> to vector<4x4x96xbf16>
    %10 = arith.extf %9 : vector<4x4x96xbf16> to vector<4x4x96xf32>
    %c1_9 = arith.constant 1 : index
    %c0_10 = arith.constant 0 : index
    %c0_11 = arith.constant 0 : index
    %11 = vector.load %arg2[%c1_9, %c0_10, %c0_11] : memref<9x1x96xf32, #tpu.memory_space<vmem>>, vector<1x1x96xf32>
    %12 = vector.shape_cast %11 : vector<1x1x96xf32> to vector<1x96xf32>
    %13 = vector.shape_cast %12 : vector<1x96xf32> to vector<1x1x96xf32>
    %14 = vector.broadcast %13 : vector<1x1x96xf32> to vector<4x4x96xf32>
    %15 = arith.mulf %10, %14 : vector<4x4x96xf32>
    %16 = arith.addf %7, %15 : vector<4x4x96xf32>
    %c0_12 = arith.constant 0 : index
    %c0_13 = arith.constant 0 : index
    %c1_14 = arith.constant 1 : index
    %c0_15 = arith.constant 0 : index
    %17 = vector.load %arg1[%c0_12, %c0_13, %c1_14, %c0_15] : memref<4x5x5x96xbf16, #tpu.memory_space<vmem>>, vector<1x4x4x96xbf16>
    %18 = vector.shape_cast %17 : vector<1x4x4x96xbf16> to vector<4x4x96xbf16>
    %19 = arith.extf %18 : vector<4x4x96xbf16> to vector<4x4x96xf32>
    %c2 = arith.constant 2 : index
    %c0_16 = arith.constant 0 : index
    %c0_17 = arith.constant 0 : index
    %20 = vector.load %arg2[%c2, %c0_16, %c0_17] : memref<9x1x96xf32, #tpu.memory_space<vmem>>, vector<1x1x96xf32>
    %21 = vector.shape_cast %20 : vector<1x1x96xf32> to vector<1x96xf32>
    %22 = vector.shape_cast %21 : vector<1x96xf32> to vector<1x1x96xf32>
    %23 = vector.broadcast %22 : vector<1x1x96xf32> to vector<4x4x96xf32>
    %24 = arith.mulf %19, %23 : vector<4x4x96xf32>
    %25 = arith.addf %16, %24 : vector<4x4x96xf32>
    %c2_18 = arith.constant 2 : index
    %c0_19 = arith.constant 0 : index
    %c0_20 = arith.constant 0 : index
    %c0_21 = arith.constant 0 : index
    %26 = vector.load %arg1[%c2_18, %c0_19, %c0_20, %c0_21] : memref<4x5x5x96xbf16, #tpu.memory_space<vmem>>, vector<1x4x4x96xbf16>
    %27 = vector.shape_cast %26 : vector<1x4x4x96xbf16> to vector<4x4x96xbf16>
    %28 = arith.extf %27 : vector<4x4x96xbf16> to vector<4x4x96xf32>
    %c3 = arith.constant 3 : index
    %c0_22 = arith.constant 0 : index
    %c0_23 = arith.constant 0 : index
    %29 = vector.load %arg2[%c3, %c0_22, %c0_23] : memref<9x1x96xf32, #tpu.memory_space<vmem>>, vector<1x1x96xf32>
    %30 = vector.shape_cast %29 : vector<1x1x96xf32> to vector<1x96xf32>
    %31 = vector.shape_cast %30 : vector<1x96xf32> to vector<1x1x96xf32>
    %32 = vector.broadcast %31 : vector<1x1x96xf32> to vector<4x4x96xf32>
    %33 = arith.mulf %28, %32 : vector<4x4x96xf32>
    %34 = arith.addf %25, %33 : vector<4x4x96xf32>
    %c3_24 = arith.constant 3 : index
    %c0_25 = arith.constant 0 : index
    %c0_26 = arith.constant 0 : index
    %c0_27 = arith.constant 0 : index
    %35 = vector.load %arg1[%c3_24, %c0_25, %c0_26, %c0_27] : memref<4x5x5x96xbf16, #tpu.memory_space<vmem>>, vector<1x4x4x96xbf16>
    %36 = vector.shape_cast %35 : vector<1x4x4x96xbf16> to vector<4x4x96xbf16>
    %37 = arith.extf %36 : vector<4x4x96xbf16> to vector<4x4x96xf32>
    %c4 = arith.constant 4 : index
    %c0_28 = arith.constant 0 : index
    %c0_29 = arith.constant 0 : index
    %38 = vector.load %arg2[%c4, %c0_28, %c0_29] : memref<9x1x96xf32, #tpu.memory_space<vmem>>, vector<1x1x96xf32>
    %39 = vector.shape_cast %38 : vector<1x1x96xf32> to vector<1x96xf32>
    %40 = vector.shape_cast %39 : vector<1x96xf32> to vector<1x1x96xf32>
    %41 = vector.broadcast %40 : vector<1x1x96xf32> to vector<4x4x96xf32>
    %42 = arith.mulf %37, %41 : vector<4x4x96xf32>
    %43 = arith.addf %34, %42 : vector<4x4x96xf32>
    %c2_30 = arith.constant 2 : index
    %c0_31 = arith.constant 0 : index
    %c1_32 = arith.constant 1 : index
    %c0_33 = arith.constant 0 : index
    %44 = vector.load %arg1[%c2_30, %c0_31, %c1_32, %c0_33] : memref<4x5x5x96xbf16, #tpu.memory_space<vmem>>, vector<1x4x4x96xbf16>
    %45 = vector.shape_cast %44 : vector<1x4x4x96xbf16> to vector<4x4x96xbf16>
    %46 = arith.extf %45 : vector<4x4x96xbf16> to vector<4x4x96xf32>
    %c5 = arith.constant 5 : index
    %c0_34 = arith.constant 0 : index
    %c0_35 = arith.constant 0 : index
    %47 = vector.load %arg2[%c5, %c0_34, %c0_35] : memref<9x1x96xf32, #tpu.memory_space<vmem>>, vector<1x1x96xf32>
    %48 = vector.shape_cast %47 : vector<1x1x96xf32> to vector<1x96xf32>
    %49 = vector.shape_cast %48 : vector<1x96xf32> to vector<1x1x96xf32>
    %50 = vector.broadcast %49 : vector<1x1x96xf32> to vector<4x4x96xf32>
    %51 = arith.mulf %46, %50 : vector<4x4x96xf32>
    %52 = arith.addf %43, %51 : vector<4x4x96xf32>
    %c0_36 = arith.constant 0 : index
    %c1_37 = arith.constant 1 : index
    %c0_38 = arith.constant 0 : index
    %c0_39 = arith.constant 0 : index
    %53 = vector.load %arg1[%c0_36, %c1_37, %c0_38, %c0_39] : memref<4x5x5x96xbf16, #tpu.memory_space<vmem>>, vector<1x4x4x96xbf16>
    %54 = vector.shape_cast %53 : vector<1x4x4x96xbf16> to vector<4x4x96xbf16>
    %55 = arith.extf %54 : vector<4x4x96xbf16> to vector<4x4x96xf32>
    %c6 = arith.constant 6 : index
    %c0_40 = arith.constant 0 : index
    %c0_41 = arith.constant 0 : index
    %56 = vector.load %arg2[%c6, %c0_40, %c0_41] : memref<9x1x96xf32, #tpu.memory_space<vmem>>, vector<1x1x96xf32>
    %57 = vector.shape_cast %56 : vector<1x1x96xf32> to vector<1x96xf32>
    %58 = vector.shape_cast %57 : vector<1x96xf32> to vector<1x1x96xf32>
    %59 = vector.broadcast %58 : vector<1x1x96xf32> to vector<4x4x96xf32>
    %60 = arith.mulf %55, %59 : vector<4x4x96xf32>
    %61 = arith.addf %52, %60 : vector<4x4x96xf32>
    %c1_42 = arith.constant 1 : index
    %c1_43 = arith.constant 1 : index
    %c0_44 = arith.constant 0 : index
    %c0_45 = arith.constant 0 : index
    %62 = vector.load %arg1[%c1_42, %c1_43, %c0_44, %c0_45] : memref<4x5x5x96xbf16, #tpu.memory_space<vmem>>, vector<1x4x4x96xbf16>
    %63 = vector.shape_cast %62 : vector<1x4x4x96xbf16> to vector<4x4x96xbf16>
    %64 = arith.extf %63 : vector<4x4x96xbf16> to vector<4x4x96xf32>
    %c7 = arith.constant 7 : index
    %c0_46 = arith.constant 0 : index
    %c0_47 = arith.constant 0 : index
    %65 = vector.load %arg2[%c7, %c0_46, %c0_47] : memref<9x1x96xf32, #tpu.memory_space<vmem>>, vector<1x1x96xf32>
    %66 = vector.shape_cast %65 : vector<1x1x96xf32> to vector<1x96xf32>
    %67 = vector.shape_cast %66 : vector<1x96xf32> to vector<1x1x96xf32>
    %68 = vector.broadcast %67 : vector<1x1x96xf32> to vector<4x4x96xf32>
    %69 = arith.mulf %64, %68 : vector<4x4x96xf32>
    %70 = arith.addf %61, %69 : vector<4x4x96xf32>
    %c0_48 = arith.constant 0 : index
    %c1_49 = arith.constant 1 : index
    %c1_50 = arith.constant 1 : index
    %c0_51 = arith.constant 0 : index
    %71 = vector.load %arg1[%c0_48, %c1_49, %c1_50, %c0_51] : memref<4x5x5x96xbf16, #tpu.memory_space<vmem>>, vector<1x4x4x96xbf16>
    %72 = vector.shape_cast %71 : vector<1x4x4x96xbf16> to vector<4x4x96xbf16>
    %73 = arith.extf %72 : vector<4x4x96xbf16> to vector<4x4x96xf32>
    %c8 = arith.constant 8 : index
    %c0_52 = arith.constant 0 : index
    %c0_53 = arith.constant 0 : index
    %74 = vector.load %arg2[%c8, %c0_52, %c0_53] : memref<9x1x96xf32, #tpu.memory_space<vmem>>, vector<1x1x96xf32>
    %75 = vector.shape_cast %74 : vector<1x1x96xf32> to vector<1x96xf32>
    %76 = vector.shape_cast %75 : vector<1x96xf32> to vector<1x1x96xf32>
    %77 = vector.broadcast %76 : vector<1x1x96xf32> to vector<4x4x96xf32>
    %78 = arith.mulf %73, %77 : vector<4x4x96xf32>
    %79 = arith.addf %70, %78 : vector<4x4x96xf32>
    %c0_54 = arith.constant 0 : index
    %c0_55 = arith.constant 0 : index
    %80 = vector.load %arg3[%c0_54, %c0_55] : memref<1x96xf32, #tpu.memory_space<vmem>>, vector<1x96xf32>
    %81 = vector.shape_cast %80 : vector<1x96xf32> to vector<1x1x96xf32>
    %82 = vector.broadcast %81 : vector<1x1x96xf32> to vector<4x4x96xf32>
    %83 = arith.addf %79, %82 : vector<4x4x96xf32>
    %84 = arith.negf %83 : vector<4x4x96xf32>
    %85 = math.exp %84 : vector<4x4x96xf32>
    %cst = arith.constant 1.000000e+00 : f32
    %86 = vector.broadcast %cst : f32 to vector<4x4x96xf32>
    %87 = arith.addf %86, %85 : vector<4x4x96xf32>
    %88 = arith.divf %86, %87 : vector<4x4x96xf32>
    %89 = arith.mulf %83, %88 : vector<4x4x96xf32>
    %90 = arith.truncf %89 : vector<4x4x96xf32> to vector<4x4x96xbf16>
    %c0_56 = arith.constant 0 : index
    %c0_57 = arith.constant 0 : index
    %c0_58 = arith.constant 0 : index
    %c0_59 = arith.constant 0 : index
    %91 = vector.load %arg4[%c0_56, %c0_57, %c0_58, %c0_59] : memref<1x4x4x96xbf16, #tpu.memory_space<vmem>>, vector<1x4x4x96xbf16>
    %92 = vector.shape_cast %91 : vector<1x4x4x96xbf16> to vector<4x4x96xbf16>
    %93 = vector.shape_cast %90 : vector<4x4x96xbf16> to vector<1x4x4x96xbf16>
    tpu.vector_store %arg4[%c0_56, %c0_57, %c0_58, %c0_59], %93 {strides = array<i32>} : memref<1x4x4x96xbf16, #tpu.memory_space<vmem>>, vector<1x4x4x96xbf16>,
    %cst_60 = arith.constant dense<0.000000e+00> : vector<4x96xf32>
    %94 = vector.multi_reduction <add>, %89, %cst_60 [0] : vector<4x4x96xf32> to vector<4x96xf32>
    %95 = vector.shape_cast %94 : vector<4x96xf32> to vector<1x4x96xf32>
    %cst_61 = arith.constant dense<0.000000e+00> : vector<1x96xf32>
    %96 = vector.multi_reduction <add>, %95, %cst_61 [1] : vector<1x4x96xf32> to vector<1x96xf32>
    %97 = vector.shape_cast %96 : vector<1x96xf32> to vector<1x1x96xf32>
    %cst_62 = arith.constant 6.250000e-02 : f32
    %98 = vector.broadcast %cst_62 : f32 to vector<1x1x96xf32>
    %99 = arith.mulf %97, %98 : vector<1x1x96xf32>
    %c0_63 = arith.constant 0 : index
    %c0_64 = arith.constant 0 : index
    %c0_65 = arith.constant 0 : index
    %100 = vector.load %arg5[%c0_63, %c0_64, %c0_65] : memref<1x1x96xf32, #tpu.memory_space<vmem>>, vector<1x1x96xf32>
    tpu.vector_store %arg5[%c0_63, %c0_64, %c0_65], %99 {strides = array<i32>} : memref<1x1x96xf32, #tpu.memory_space<vmem>>, vector<1x1x96xf32>,
    return
  }
  func.func @transform_0(%arg0: i32) -> (i32, i32, i32, i32) {
    %c0_i32 = arith.constant 0 : i32
    %c0_i32_0 = arith.constant 0 : i32
    %c0_i32_1 = arith.constant 0 : i32
    %c0_i32_2 = arith.constant 0 : i32
    return %arg0, %c0_i32, %c0_i32_0, %c0_i32_1 : i32, i32, i32, i32
  }
  func.func @transform_1(%arg0: i32) -> (i32, i32, i32) {
    %c0_i32 = arith.constant 0 : i32
    %c0_i32_0 = arith.constant 0 : i32
    %c0_i32_1 = arith.constant 0 : i32
    %c0_i32_2 = arith.constant 0 : i32
    return %c0_i32, %c0_i32_0, %c0_i32_1 : i32, i32, i32
  }
  func.func @transform_2(%arg0: i32) -> (i32, i32) {
    %c0_i32 = arith.constant 0 : i32
    %c0_i32_0 = arith.constant 0 : i32
    %c0_i32_1 = arith.constant 0 : i32
    return %c0_i32, %c0_i32_0 : i32, i32
  }
  func.func @transform_3(%arg0: i32) -> (i32, i32, i32, i32) {
    %c0_i32 = arith.constant 0 : i32
    %c0_i32_0 = arith.constant 0 : i32
    %c0_i32_1 = arith.constant 0 : i32
    %c0_i32_2 = arith.constant 0 : i32
    return %arg0, %c0_i32, %c0_i32_0, %c0_i32_1 : i32, i32, i32, i32
  }
  func.func @transform_4(%arg0: i32) -> (i32, i32, i32) {
    %c0_i32 = arith.constant 0 : i32
    %c0_i32_0 = arith.constant 0 : i32
    %c0_i32_1 = arith.constant 0 : i32
    return %arg0, %c0_i32, %c0_i32_0 : i32, i32, i32
  }
}

module attributes {stable_mosaic.version = 11 : i64} {
  func.func @_se_pw_res_kernel(%arg0: i32, %arg1: memref<1x16x96xbf16, #tpu.memory_space<vmem>>, %arg2: memref<1x1x96xf32, #tpu.memory_space<vmem>>, %arg3: memref<96x24xf32, #tpu.memory_space<vmem>>, %arg4: memref<1x24xf32, #tpu.memory_space<vmem>>, %arg5: memref<24x96xf32, #tpu.memory_space<vmem>>, %arg6: memref<1x96xf32, #tpu.memory_space<vmem>>, %arg7: memref<96x24xbf16, #tpu.memory_space<vmem>>, %arg8: memref<1x24xf32, #tpu.memory_space<vmem>>, %arg9: memref<1x16x24xbf16, #tpu.memory_space<vmem>>) attributes {dimension_semantics = [#tpu.dimension_semantics<parallel>], iteration_bounds = array<i64: 2>, scalar_prefetch = 0 : i64, scratch_operands = 0 : i64, tpu.core_type = #tpu.core_type<tc>, window_params = [{transform_indices = @transform_0, window_bounds = array<i64: 1, 16, 96>}, {transform_indices = @transform_1, window_bounds = array<i64: 1, 1, 96>}, {pipeline_mode = #tpu.pipeline_mode<synchronous>, transform_indices = @transform_2, window_bounds = array<i64: 96, 24>}, {pipeline_mode = #tpu.pipeline_mode<synchronous>, transform_indices = @transform_3, window_bounds = array<i64: 1, 24>}, {pipeline_mode = #tpu.pipeline_mode<synchronous>, transform_indices = @transform_4, window_bounds = array<i64: 24, 96>}, {pipeline_mode = #tpu.pipeline_mode<synchronous>, transform_indices = @transform_5, window_bounds = array<i64: 1, 96>}, {pipeline_mode = #tpu.pipeline_mode<synchronous>, transform_indices = @transform_6, window_bounds = array<i64: 96, 24>}, {pipeline_mode = #tpu.pipeline_mode<synchronous>, transform_indices = @transform_7, window_bounds = array<i64: 1, 24>}, {transform_indices = @transform_8, window_bounds = array<i64: 1, 16, 24>}]} {
    %c0 = arith.constant 0 : index
    %c0_0 = arith.constant 0 : index
    %c0_1 = arith.constant 0 : index
    %0 = vector.load %arg2[%c0, %c0_0, %c0_1] : memref<1x1x96xf32, #tpu.memory_space<vmem>>, vector<1x1x96xf32>
    %1 = vector.shape_cast %0 : vector<1x1x96xf32> to vector<1x96xf32>
    %c0_2 = arith.constant 0 : index
    %c0_3 = arith.constant 0 : index
    %2 = vector.load %arg3[%c0_2, %c0_3] : memref<96x24xf32, #tpu.memory_space<vmem>>, vector<96x24xf32>
    %cst = arith.constant dense<0.000000e+00> : vector<1x24xf32>
    %3 = tpu.matmul %1, %2, %cst {dimension_numbers = #tpu.dot_dimension_numbers<[1], [0], [0], [1], [0, 0, 1, 1], [], []>} : vector<1x96xf32>, vector<96x24xf32>, vector<1x24xf32> -> vector<1x24xf32>
    %c0_4 = arith.constant 0 : index
    %c0_5 = arith.constant 0 : index
    %4 = vector.load %arg4[%c0_4, %c0_5] : memref<1x24xf32, #tpu.memory_space<vmem>>, vector<1x24xf32>
    %5 = arith.addf %3, %4 : vector<1x24xf32>
    %6 = arith.negf %5 : vector<1x24xf32>
    %7 = math.exp %6 : vector<1x24xf32>
    %cst_6 = arith.constant 1.000000e+00 : f32
    %8 = vector.broadcast %cst_6 : f32 to vector<1x24xf32>
    %9 = arith.addf %8, %7 : vector<1x24xf32>
    %10 = arith.divf %8, %9 : vector<1x24xf32>
    %11 = arith.mulf %5, %10 : vector<1x24xf32>
    %c0_7 = arith.constant 0 : index
    %c0_8 = arith.constant 0 : index
    %12 = vector.load %arg5[%c0_7, %c0_8] : memref<24x96xf32, #tpu.memory_space<vmem>>, vector<24x96xf32>
    %cst_9 = arith.constant dense<0.000000e+00> : vector<1x96xf32>
    %13 = tpu.matmul %11, %12, %cst_9 {dimension_numbers = #tpu.dot_dimension_numbers<[1], [0], [0], [1], [0, 0, 1, 1], [], []>} : vector<1x24xf32>, vector<24x96xf32>, vector<1x96xf32> -> vector<1x96xf32>
    %c0_10 = arith.constant 0 : index
    %c0_11 = arith.constant 0 : index
    %14 = vector.load %arg6[%c0_10, %c0_11] : memref<1x96xf32, #tpu.memory_space<vmem>>, vector<1x96xf32>
    %15 = arith.addf %13, %14 : vector<1x96xf32>
    %16 = arith.negf %15 : vector<1x96xf32>
    %17 = math.exp %16 : vector<1x96xf32>
    %cst_12 = arith.constant 1.000000e+00 : f32
    %18 = vector.broadcast %cst_12 : f32 to vector<1x96xf32>
    %19 = arith.addf %18, %17 : vector<1x96xf32>
    %20 = arith.divf %18, %19 : vector<1x96xf32>
    %c0_13 = arith.constant 0 : index
    %c0_14 = arith.constant 0 : index
    %c0_15 = arith.constant 0 : index
    %21 = vector.load %arg1[%c0_13, %c0_14, %c0_15] : memref<1x16x96xbf16, #tpu.memory_space<vmem>>, vector<1x16x96xbf16>
    %22 = vector.shape_cast %21 : vector<1x16x96xbf16> to vector<16x96xbf16>
    %23 = arith.extf %22 : vector<16x96xbf16> to vector<16x96xf32>
    %24 = vector.broadcast %20 : vector<1x96xf32> to vector<16x96xf32>
    %25 = arith.mulf %23, %24 : vector<16x96xf32>
    %26 = arith.truncf %25 : vector<16x96xf32> to vector<16x96xbf16>
    %c0_16 = arith.constant 0 : index
    %c0_17 = arith.constant 0 : index
    %27 = vector.load %arg7[%c0_16, %c0_17] : memref<96x24xbf16, #tpu.memory_space<vmem>>, vector<96x24xbf16>
    %cst_18 = arith.constant dense<0.000000e+00> : vector<16x24xf32>
    %28 = tpu.matmul %26, %27, %cst_18 {dimension_numbers = #tpu.dot_dimension_numbers<[1], [0], [0], [1], [0, 0, 1, 1], [], []>} : vector<16x96xbf16>, vector<96x24xbf16>, vector<16x24xf32> -> vector<16x24xf32>
    %c0_19 = arith.constant 0 : index
    %c0_20 = arith.constant 0 : index
    %29 = vector.load %arg8[%c0_19, %c0_20] : memref<1x24xf32, #tpu.memory_space<vmem>>, vector<1x24xf32>
    %30 = vector.broadcast %29 : vector<1x24xf32> to vector<16x24xf32>
    %31 = arith.addf %28, %30 : vector<16x24xf32>
    %32 = arith.truncf %31 : vector<16x24xf32> to vector<16x24xbf16>
    %c0_21 = arith.constant 0 : index
    %c0_22 = arith.constant 0 : index
    %c0_23 = arith.constant 0 : index
    %33 = vector.load %arg9[%c0_21, %c0_22, %c0_23] : memref<1x16x24xbf16, #tpu.memory_space<vmem>>, vector<1x16x24xbf16>
    %34 = vector.shape_cast %33 : vector<1x16x24xbf16> to vector<16x24xbf16>
    %35 = vector.shape_cast %32 : vector<16x24xbf16> to vector<1x16x24xbf16>
    tpu.vector_store %arg9[%c0_21, %c0_22, %c0_23], %35 {strides = array<i32>} : memref<1x16x24xbf16, #tpu.memory_space<vmem>>, vector<1x16x24xbf16>,
    return
  }
  func.func @transform_0(%arg0: i32) -> (i32, i32, i32) {
    %c0_i32 = arith.constant 0 : i32
    %c0_i32_0 = arith.constant 0 : i32
    %c0_i32_1 = arith.constant 0 : i32
    return %arg0, %c0_i32, %c0_i32_0 : i32, i32, i32
  }
  func.func @transform_1(%arg0: i32) -> (i32, i32, i32) {
    %c0_i32 = arith.constant 0 : i32
    %c0_i32_0 = arith.constant 0 : i32
    %c0_i32_1 = arith.constant 0 : i32
    return %arg0, %c0_i32, %c0_i32_0 : i32, i32, i32
  }
  func.func @transform_2(%arg0: i32) -> (i32, i32) {
    %c0_i32 = arith.constant 0 : i32
    %c0_i32_0 = arith.constant 0 : i32
    %c0_i32_1 = arith.constant 0 : i32
    return %c0_i32, %c0_i32_0 : i32, i32
  }
  func.func @transform_3(%arg0: i32) -> (i32, i32) {
    %c0_i32 = arith.constant 0 : i32
    %c0_i32_0 = arith.constant 0 : i32
    %c0_i32_1 = arith.constant 0 : i32
    return %c0_i32, %c0_i32_0 : i32, i32
  }
  func.func @transform_4(%arg0: i32) -> (i32, i32) {
    %c0_i32 = arith.constant 0 : i32
    %c0_i32_0 = arith.constant 0 : i32
    %c0_i32_1 = arith.constant 0 : i32
    return %c0_i32, %c0_i32_0 : i32, i32
  }
  func.func @transform_5(%arg0: i32) -> (i32, i32) {
    %c0_i32 = arith.constant 0 : i32
    %c0_i32_0 = arith.constant 0 : i32
    %c0_i32_1 = arith.constant 0 : i32
    return %c0_i32, %c0_i32_0 : i32, i32
  }
  func.func @transform_6(%arg0: i32) -> (i32, i32) {
    %c0_i32 = arith.constant 0 : i32
    %c0_i32_0 = arith.constant 0 : i32
    %c0_i32_1 = arith.constant 0 : i32
    return %c0_i32, %c0_i32_0 : i32, i32
  }
  func.func @transform_7(%arg0: i32) -> (i32, i32) {
    %c0_i32 = arith.constant 0 : i32
    %c0_i32_0 = arith.constant 0 : i32
    %c0_i32_1 = arith.constant 0 : i32
    return %c0_i32, %c0_i32_0 : i32, i32
  }
  func.func @transform_8(%arg0: i32) -> (i32, i32, i32) {
    %c0_i32 = arith.constant 0 : i32
    %c0_i32_0 = arith.constant 0 : i32
    %c0_i32_1 = arith.constant 0 : i32
    return %arg0, %c0_i32, %c0_i32_0 : i32, i32, i32
  }
}

module attributes {stable_mosaic.version = 11 : i64} {
  func.func @_matmul_bias_act_kernel(%arg0: i32, %arg1: i32, %arg2: i32, %arg3: memref<32x128xbf16, #tpu.memory_space<vmem>>, %arg4: memref<128x256xbf16, #tpu.memory_space<vmem>>, %arg5: memref<1x256xf32, #tpu.memory_space<vmem>>, %arg6: memref<32x256xbf16, #tpu.memory_space<vmem>>, %arg7: memref<32x256xf32, #tpu.memory_space<vmem>>) attributes {dimension_semantics = [#tpu.dimension_semantics<parallel>, #tpu.dimension_semantics<parallel>, #tpu.dimension_semantics<arbitrary>], iteration_bounds = array<i64: 1, 1, 1>, scalar_prefetch = 0 : i64, scratch_operands = 1 : i64, tpu.core_type = #tpu.core_type<tc>, window_params = [{transform_indices = @transform_0, window_bounds = array<i64: 32, 128>}, {transform_indices = @transform_1, window_bounds = array<i64: 128, 256>}, {transform_indices = @transform_2, window_bounds = array<i64: 1, 256>}, {transform_indices = @transform_3, window_bounds = array<i64: 32, 256>}]} {
    %c0_i32 = arith.constant 0 : i32
    %0 = arith.cmpi eq, %arg2, %c0_i32 : i32
    %1 = arith.extui %0 : i1 to i32
    %c0_i32_0 = arith.constant 0 : i32
    %2 = arith.cmpi ne, %1, %c0_i32_0 : i32
    scf.if %2 {
      %cst_10 = arith.constant 0.000000e+00 : f32
      %12 = vector.broadcast %cst_10 : f32 to vector<32x256xf32>
      %c0_11 = arith.constant 0 : index
      %c0_12 = arith.constant 0 : index
      %13 = vector.load %arg7[%c0_11, %c0_12] : memref<32x256xf32, #tpu.memory_space<vmem>>, vector<32x256xf32>
      tpu.vector_store %arg7[%c0_11, %c0_12], %12 {strides = array<i32>} : memref<32x256xf32, #tpu.memory_space<vmem>>, vector<32x256xf32>,
    } else {
    }
    %c0 = arith.constant 0 : index
    %c0_1 = arith.constant 0 : index
    %3 = vector.load %arg7[%c0, %c0_1] : memref<32x256xf32, #tpu.memory_space<vmem>>, vector<32x256xf32>
    %c0_2 = arith.constant 0 : index
    %c0_3 = arith.constant 0 : index
    %4 = vector.load %arg3[%c0_2, %c0_3] : memref<32x128xbf16, #tpu.memory_space<vmem>>, vector<32x128xbf16>
    %c0_4 = arith.constant 0 : index
    %c0_5 = arith.constant 0 : index
    %5 = vector.load %arg4[%c0_4, %c0_5] : memref<128x256xbf16, #tpu.memory_space<vmem>>, vector<128x256xbf16>
    %cst = arith.constant dense<0.000000e+00> : vector<32x256xf32>
    %6 = tpu.matmul %4, %5, %cst {dimension_numbers = #tpu.dot_dimension_numbers<[1], [0], [0], [1], [0, 0, 1, 1], [], []>} : vector<32x128xbf16>, vector<128x256xbf16>, vector<32x256xf32> -> vector<32x256xf32>
    %7 = arith.addf %3, %6 : vector<32x256xf32>
    %c0_6 = arith.constant 0 : index
    %c0_7 = arith.constant 0 : index
    %8 = vector.load %arg7[%c0_6, %c0_7] : memref<32x256xf32, #tpu.memory_space<vmem>>, vector<32x256xf32>
    tpu.vector_store %arg7[%c0_6, %c0_7], %7 {strides = array<i32>} : memref<32x256xf32, #tpu.memory_space<vmem>>, vector<32x256xf32>,
    %c0_i32_8 = arith.constant 0 : i32
    %9 = arith.cmpi eq, %arg2, %c0_i32_8 : i32
    %10 = arith.extui %9 : i1 to i32
    %c0_i32_9 = arith.constant 0 : i32
    %11 = arith.cmpi ne, %10, %c0_i32_9 : i32
    scf.if %11 {
      %c0_10 = arith.constant 0 : index
      %c0_11 = arith.constant 0 : index
      %12 = vector.load %arg7[%c0_10, %c0_11] : memref<32x256xf32, #tpu.memory_space<vmem>>, vector<32x256xf32>
      %c0_12 = arith.constant 0 : index
      %c0_13 = arith.constant 0 : index
      %13 = vector.load %arg5[%c0_12, %c0_13] : memref<1x256xf32, #tpu.memory_space<vmem>>, vector<1x256xf32>
      %14 = vector.broadcast %13 : vector<1x256xf32> to vector<32x256xf32>
      %15 = arith.addf %12, %14 : vector<32x256xf32>
      %16 = arith.negf %15 : vector<32x256xf32>
      %17 = math.exp %16 : vector<32x256xf32>
      %cst_14 = arith.constant 1.000000e+00 : f32
      %18 = vector.broadcast %cst_14 : f32 to vector<32x256xf32>
      %19 = arith.addf %18, %17 : vector<32x256xf32>
      %20 = arith.divf %18, %19 : vector<32x256xf32>
      %21 = arith.mulf %15, %20 : vector<32x256xf32>
      %22 = arith.truncf %21 : vector<32x256xf32> to vector<32x256xbf16>
      %c0_15 = arith.constant 0 : index
      %c0_16 = arith.constant 0 : index
      %23 = vector.load %arg6[%c0_15, %c0_16] : memref<32x256xbf16, #tpu.memory_space<vmem>>, vector<32x256xbf16>
      tpu.vector_store %arg6[%c0_15, %c0_16], %22 {strides = array<i32>} : memref<32x256xbf16, #tpu.memory_space<vmem>>, vector<32x256xbf16>,
    } else {
    }
    return
  }
  func.func @transform_0(%arg0: i32, %arg1: i32, %arg2: i32) -> (i32, i32) {
    %c0_i32 = arith.constant 0 : i32
    return %arg0, %arg2 : i32, i32
  }
  func.func @transform_1(%arg0: i32, %arg1: i32, %arg2: i32) -> (i32, i32) {
    %c0_i32 = arith.constant 0 : i32
    return %arg2, %arg1 : i32, i32
  }
  func.func @transform_2(%arg0: i32, %arg1: i32, %arg2: i32) -> (i32, i32) {
    %c0_i32 = arith.constant 0 : i32
    %c0_i32_0 = arith.constant 0 : i32
    return %c0_i32, %arg1 : i32, i32
  }
  func.func @transform_3(%arg0: i32, %arg1: i32, %arg2: i32) -> (i32, i32) {
    %c0_i32 = arith.constant 0 : i32
    return %arg0, %arg1 : i32, i32
  }
}

module attributes {stable_mosaic.version = 11 : i64} {
  func.func @_dwconv_bn_silu_pool_kernel(%arg0: i32, %arg1: memref<1x6x6x144xbf16, #tpu.memory_space<vmem>>, %arg2: memref<9x1x144xf32, #tpu.memory_space<vmem>>, %arg3: memref<1x144xf32, #tpu.memory_space<vmem>>, %arg4: memref<1x4x4x144xbf16, #tpu.memory_space<vmem>>, %arg5: memref<1x1x144xf32, #tpu.memory_space<vmem>>) attributes {dimension_semantics = [#tpu.dimension_semantics<parallel>], iteration_bounds = array<i64: 2>, scalar_prefetch = 0 : i64, scratch_operands = 0 : i64, tpu.core_type = #tpu.core_type<tc>, window_params = [{transform_indices = @transform_0, window_bounds = array<i64: 1, 6, 6, 144>}, {pipeline_mode = #tpu.pipeline_mode<synchronous>, transform_indices = @transform_1, window_bounds = array<i64: 9, 1, 144>}, {pipeline_mode = #tpu.pipeline_mode<synchronous>, transform_indices = @transform_2, window_bounds = array<i64: 1, 144>}, {transform_indices = @transform_3, window_bounds = array<i64: 1, 4, 4, 144>}, {transform_indices = @transform_4, window_bounds = array<i64: 1, 1, 144>}]} {
    %c0 = arith.constant 0 : index
    %c0_0 = arith.constant 0 : index
    %c0_1 = arith.constant 0 : index
    %c0_2 = arith.constant 0 : index
    %0 = vector.load %arg1[%c0, %c0_0, %c0_1, %c0_2] : memref<1x6x6x144xbf16, #tpu.memory_space<vmem>>, vector<1x4x4x144xbf16>
    %1 = vector.shape_cast %0 : vector<1x4x4x144xbf16> to vector<4x4x144xbf16>
    %2 = arith.extf %1 : vector<4x4x144xbf16> to vector<4x4x144xf32>
    %c0_3 = arith.constant 0 : index
    %c0_4 = arith.constant 0 : index
    %c0_5 = arith.constant 0 : index
    %3 = vector.load %arg2[%c0_3, %c0_4, %c0_5] : memref<9x1x144xf32, #tpu.memory_space<vmem>>, vector<1x1x144xf32>
    %4 = vector.shape_cast %3 : vector<1x1x144xf32> to vector<1x144xf32>
    %5 = vector.shape_cast %4 : vector<1x144xf32> to vector<1x1x144xf32>
    %6 = vector.broadcast %5 : vector<1x1x144xf32> to vector<4x4x144xf32>
    %7 = arith.mulf %2, %6 : vector<4x4x144xf32>
    %c0_6 = arith.constant 0 : index
    %c0_7 = arith.constant 0 : index
    %c1 = arith.constant 1 : index
    %c0_8 = arith.constant 0 : index
    %8 = vector.load %arg1[%c0_6, %c0_7, %c1, %c0_8] : memref<1x6x6x144xbf16, #tpu.memory_space<vmem>>, vector<1x4x4x144xbf16>
    %9 = vector.shape_cast %8 : vector<1x4x4x144xbf16> to vector<4x4x144xbf16>
    %10 = arith.extf %9 : vector<4x4x144xbf16> to vector<4x4x144xf32>
    %c1_9 = arith.constant 1 : index
    %c0_10 = arith.constant 0 : index
    %c0_11 = arith.constant 0 : index
    %11 = vector.load %arg2[%c1_9, %c0_10, %c0_11] : memref<9x1x144xf32, #tpu.memory_space<vmem>>, vector<1x1x144xf32>
    %12 = vector.shape_cast %11 : vector<1x1x144xf32> to vector<1x144xf32>
    %13 = vector.shape_cast %12 : vector<1x144xf32> to vector<1x1x144xf32>
    %14 = vector.broadcast %13 : vector<1x1x144xf32> to vector<4x4x144xf32>
    %15 = arith.mulf %10, %14 : vector<4x4x144xf32>
    %16 = arith.addf %7, %15 : vector<4x4x144xf32>
    %c0_12 = arith.constant 0 : index
    %c0_13 = arith.constant 0 : index
    %c2 = arith.constant 2 : index
    %c0_14 = arith.constant 0 : index
    %17 = vector.load %arg1[%c0_12, %c0_13, %c2, %c0_14] : memref<1x6x6x144xbf16, #tpu.memory_space<vmem>>, vector<1x4x4x144xbf16>
    %18 = vector.shape_cast %17 : vector<1x4x4x144xbf16> to vector<4x4x144xbf16>
    %19 = arith.extf %18 : vector<4x4x144xbf16> to vector<4x4x144xf32>
    %c2_15 = arith.constant 2 : index
    %c0_16 = arith.constant 0 : index
    %c0_17 = arith.constant 0 : index
    %20 = vector.load %arg2[%c2_15, %c0_16, %c0_17] : memref<9x1x144xf32, #tpu.memory_space<vmem>>, vector<1x1x144xf32>
    %21 = vector.shape_cast %20 : vector<1x1x144xf32> to vector<1x144xf32>
    %22 = vector.shape_cast %21 : vector<1x144xf32> to vector<1x1x144xf32>
    %23 = vector.broadcast %22 : vector<1x1x144xf32> to vector<4x4x144xf32>
    %24 = arith.mulf %19, %23 : vector<4x4x144xf32>
    %25 = arith.addf %16, %24 : vector<4x4x144xf32>
    %c0_18 = arith.constant 0 : index
    %c1_19 = arith.constant 1 : index
    %c0_20 = arith.constant 0 : index
    %c0_21 = arith.constant 0 : index
    %26 = vector.load %arg1[%c0_18, %c1_19, %c0_20, %c0_21] : memref<1x6x6x144xbf16, #tpu.memory_space<vmem>>, vector<1x4x4x144xbf16>
    %27 = vector.shape_cast %26 : vector<1x4x4x144xbf16> to vector<4x4x144xbf16>
    %28 = arith.extf %27 : vector<4x4x144xbf16> to vector<4x4x144xf32>
    %c3 = arith.constant 3 : index
    %c0_22 = arith.constant 0 : index
    %c0_23 = arith.constant 0 : index
    %29 = vector.load %arg2[%c3, %c0_22, %c0_23] : memref<9x1x144xf32, #tpu.memory_space<vmem>>, vector<1x1x144xf32>
    %30 = vector.shape_cast %29 : vector<1x1x144xf32> to vector<1x144xf32>
    %31 = vector.shape_cast %30 : vector<1x144xf32> to vector<1x1x144xf32>
    %32 = vector.broadcast %31 : vector<1x1x144xf32> to vector<4x4x144xf32>
    %33 = arith.mulf %28, %32 : vector<4x4x144xf32>
    %34 = arith.addf %25, %33 : vector<4x4x144xf32>
    %c0_24 = arith.constant 0 : index
    %c1_25 = arith.constant 1 : index
    %c1_26 = arith.constant 1 : index
    %c0_27 = arith.constant 0 : index
    %35 = vector.load %arg1[%c0_24, %c1_25, %c1_26, %c0_27] : memref<1x6x6x144xbf16, #tpu.memory_space<vmem>>, vector<1x4x4x144xbf16>
    %36 = vector.shape_cast %35 : vector<1x4x4x144xbf16> to vector<4x4x144xbf16>
    %37 = arith.extf %36 : vector<4x4x144xbf16> to vector<4x4x144xf32>
    %c4 = arith.constant 4 : index
    %c0_28 = arith.constant 0 : index
    %c0_29 = arith.constant 0 : index
    %38 = vector.load %arg2[%c4, %c0_28, %c0_29] : memref<9x1x144xf32, #tpu.memory_space<vmem>>, vector<1x1x144xf32>
    %39 = vector.shape_cast %38 : vector<1x1x144xf32> to vector<1x144xf32>
    %40 = vector.shape_cast %39 : vector<1x144xf32> to vector<1x1x144xf32>
    %41 = vector.broadcast %40 : vector<1x1x144xf32> to vector<4x4x144xf32>
    %42 = arith.mulf %37, %41 : vector<4x4x144xf32>
    %43 = arith.addf %34, %42 : vector<4x4x144xf32>
    %c0_30 = arith.constant 0 : index
    %c1_31 = arith.constant 1 : index
    %c2_32 = arith.constant 2 : index
    %c0_33 = arith.constant 0 : index
    %44 = vector.load %arg1[%c0_30, %c1_31, %c2_32, %c0_33] : memref<1x6x6x144xbf16, #tpu.memory_space<vmem>>, vector<1x4x4x144xbf16>
    %45 = vector.shape_cast %44 : vector<1x4x4x144xbf16> to vector<4x4x144xbf16>
    %46 = arith.extf %45 : vector<4x4x144xbf16> to vector<4x4x144xf32>
    %c5 = arith.constant 5 : index
    %c0_34 = arith.constant 0 : index
    %c0_35 = arith.constant 0 : index
    %47 = vector.load %arg2[%c5, %c0_34, %c0_35] : memref<9x1x144xf32, #tpu.memory_space<vmem>>, vector<1x1x144xf32>
    %48 = vector.shape_cast %47 : vector<1x1x144xf32> to vector<1x144xf32>
    %49 = vector.shape_cast %48 : vector<1x144xf32> to vector<1x1x144xf32>
    %50 = vector.broadcast %49 : vector<1x1x144xf32> to vector<4x4x144xf32>
    %51 = arith.mulf %46, %50 : vector<4x4x144xf32>
    %52 = arith.addf %43, %51 : vector<4x4x144xf32>
    %c0_36 = arith.constant 0 : index
    %c2_37 = arith.constant 2 : index
    %c0_38 = arith.constant 0 : index
    %c0_39 = arith.constant 0 : index
    %53 = vector.load %arg1[%c0_36, %c2_37, %c0_38, %c0_39] : memref<1x6x6x144xbf16, #tpu.memory_space<vmem>>, vector<1x4x4x144xbf16>
    %54 = vector.shape_cast %53 : vector<1x4x4x144xbf16> to vector<4x4x144xbf16>
    %55 = arith.extf %54 : vector<4x4x144xbf16> to vector<4x4x144xf32>
    %c6 = arith.constant 6 : index
    %c0_40 = arith.constant 0 : index
    %c0_41 = arith.constant 0 : index
    %56 = vector.load %arg2[%c6, %c0_40, %c0_41] : memref<9x1x144xf32, #tpu.memory_space<vmem>>, vector<1x1x144xf32>
    %57 = vector.shape_cast %56 : vector<1x1x144xf32> to vector<1x144xf32>
    %58 = vector.shape_cast %57 : vector<1x144xf32> to vector<1x1x144xf32>
    %59 = vector.broadcast %58 : vector<1x1x144xf32> to vector<4x4x144xf32>
    %60 = arith.mulf %55, %59 : vector<4x4x144xf32>
    %61 = arith.addf %52, %60 : vector<4x4x144xf32>
    %c0_42 = arith.constant 0 : index
    %c2_43 = arith.constant 2 : index
    %c1_44 = arith.constant 1 : index
    %c0_45 = arith.constant 0 : index
    %62 = vector.load %arg1[%c0_42, %c2_43, %c1_44, %c0_45] : memref<1x6x6x144xbf16, #tpu.memory_space<vmem>>, vector<1x4x4x144xbf16>
    %63 = vector.shape_cast %62 : vector<1x4x4x144xbf16> to vector<4x4x144xbf16>
    %64 = arith.extf %63 : vector<4x4x144xbf16> to vector<4x4x144xf32>
    %c7 = arith.constant 7 : index
    %c0_46 = arith.constant 0 : index
    %c0_47 = arith.constant 0 : index
    %65 = vector.load %arg2[%c7, %c0_46, %c0_47] : memref<9x1x144xf32, #tpu.memory_space<vmem>>, vector<1x1x144xf32>
    %66 = vector.shape_cast %65 : vector<1x1x144xf32> to vector<1x144xf32>
    %67 = vector.shape_cast %66 : vector<1x144xf32> to vector<1x1x144xf32>
    %68 = vector.broadcast %67 : vector<1x1x144xf32> to vector<4x4x144xf32>
    %69 = arith.mulf %64, %68 : vector<4x4x144xf32>
    %70 = arith.addf %61, %69 : vector<4x4x144xf32>
    %c0_48 = arith.constant 0 : index
    %c2_49 = arith.constant 2 : index
    %c2_50 = arith.constant 2 : index
    %c0_51 = arith.constant 0 : index
    %71 = vector.load %arg1[%c0_48, %c2_49, %c2_50, %c0_51] : memref<1x6x6x144xbf16, #tpu.memory_space<vmem>>, vector<1x4x4x144xbf16>
    %72 = vector.shape_cast %71 : vector<1x4x4x144xbf16> to vector<4x4x144xbf16>
    %73 = arith.extf %72 : vector<4x4x144xbf16> to vector<4x4x144xf32>
    %c8 = arith.constant 8 : index
    %c0_52 = arith.constant 0 : index
    %c0_53 = arith.constant 0 : index
    %74 = vector.load %arg2[%c8, %c0_52, %c0_53] : memref<9x1x144xf32, #tpu.memory_space<vmem>>, vector<1x1x144xf32>
    %75 = vector.shape_cast %74 : vector<1x1x144xf32> to vector<1x144xf32>
    %76 = vector.shape_cast %75 : vector<1x144xf32> to vector<1x1x144xf32>
    %77 = vector.broadcast %76 : vector<1x1x144xf32> to vector<4x4x144xf32>
    %78 = arith.mulf %73, %77 : vector<4x4x144xf32>
    %79 = arith.addf %70, %78 : vector<4x4x144xf32>
    %c0_54 = arith.constant 0 : index
    %c0_55 = arith.constant 0 : index
    %80 = vector.load %arg3[%c0_54, %c0_55] : memref<1x144xf32, #tpu.memory_space<vmem>>, vector<1x144xf32>
    %81 = vector.shape_cast %80 : vector<1x144xf32> to vector<1x1x144xf32>
    %82 = vector.broadcast %81 : vector<1x1x144xf32> to vector<4x4x144xf32>
    %83 = arith.addf %79, %82 : vector<4x4x144xf32>
    %84 = arith.negf %83 : vector<4x4x144xf32>
    %85 = math.exp %84 : vector<4x4x144xf32>
    %cst = arith.constant 1.000000e+00 : f32
    %86 = vector.broadcast %cst : f32 to vector<4x4x144xf32>
    %87 = arith.addf %86, %85 : vector<4x4x144xf32>
    %88 = arith.divf %86, %87 : vector<4x4x144xf32>
    %89 = arith.mulf %83, %88 : vector<4x4x144xf32>
    %90 = arith.truncf %89 : vector<4x4x144xf32> to vector<4x4x144xbf16>
    %c0_56 = arith.constant 0 : index
    %c0_57 = arith.constant 0 : index
    %c0_58 = arith.constant 0 : index
    %c0_59 = arith.constant 0 : index
    %91 = vector.load %arg4[%c0_56, %c0_57, %c0_58, %c0_59] : memref<1x4x4x144xbf16, #tpu.memory_space<vmem>>, vector<1x4x4x144xbf16>
    %92 = vector.shape_cast %91 : vector<1x4x4x144xbf16> to vector<4x4x144xbf16>
    %93 = vector.shape_cast %90 : vector<4x4x144xbf16> to vector<1x4x4x144xbf16>
    tpu.vector_store %arg4[%c0_56, %c0_57, %c0_58, %c0_59], %93 {strides = array<i32>} : memref<1x4x4x144xbf16, #tpu.memory_space<vmem>>, vector<1x4x4x144xbf16>,
    %cst_60 = arith.constant dense<0.000000e+00> : vector<4x144xf32>
    %94 = vector.multi_reduction <add>, %89, %cst_60 [0] : vector<4x4x144xf32> to vector<4x144xf32>
    %95 = vector.shape_cast %94 : vector<4x144xf32> to vector<1x4x144xf32>
    %cst_61 = arith.constant dense<0.000000e+00> : vector<1x144xf32>
    %96 = vector.multi_reduction <add>, %95, %cst_61 [1] : vector<1x4x144xf32> to vector<1x144xf32>
    %97 = vector.shape_cast %96 : vector<1x144xf32> to vector<1x1x144xf32>
    %cst_62 = arith.constant 6.250000e-02 : f32
    %98 = vector.broadcast %cst_62 : f32 to vector<1x1x144xf32>
    %99 = arith.mulf %97, %98 : vector<1x1x144xf32>
    %c0_63 = arith.constant 0 : index
    %c0_64 = arith.constant 0 : index
    %c0_65 = arith.constant 0 : index
    %100 = vector.load %arg5[%c0_63, %c0_64, %c0_65] : memref<1x1x144xf32, #tpu.memory_space<vmem>>, vector<1x1x144xf32>
    tpu.vector_store %arg5[%c0_63, %c0_64, %c0_65], %99 {strides = array<i32>} : memref<1x1x144xf32, #tpu.memory_space<vmem>>, vector<1x1x144xf32>,
    return
  }
  func.func @transform_0(%arg0: i32) -> (i32, i32, i32, i32) {
    %c0_i32 = arith.constant 0 : i32
    %c0_i32_0 = arith.constant 0 : i32
    %c0_i32_1 = arith.constant 0 : i32
    %c0_i32_2 = arith.constant 0 : i32
    return %arg0, %c0_i32, %c0_i32_0, %c0_i32_1 : i32, i32, i32, i32
  }
  func.func @transform_1(%arg0: i32) -> (i32, i32, i32) {
    %c0_i32 = arith.constant 0 : i32
    %c0_i32_0 = arith.constant 0 : i32
    %c0_i32_1 = arith.constant 0 : i32
    %c0_i32_2 = arith.constant 0 : i32
    return %c0_i32, %c0_i32_0, %c0_i32_1 : i32, i32, i32
  }
  func.func @transform_2(%arg0: i32) -> (i32, i32) {
    %c0_i32 = arith.constant 0 : i32
    %c0_i32_0 = arith.constant 0 : i32
    %c0_i32_1 = arith.constant 0 : i32
    return %c0_i32, %c0_i32_0 : i32, i32
  }
  func.func @transform_3(%arg0: i32) -> (i32, i32, i32, i32) {
    %c0_i32 = arith.constant 0 : i32
    %c0_i32_0 = arith.constant 0 : i32
    %c0_i32_1 = arith.constant 0 : i32
    %c0_i32_2 = arith.constant 0 : i32
    return %arg0, %c0_i32, %c0_i32_0, %c0_i32_1 : i32, i32, i32, i32
  }
  func.func @transform_4(%arg0: i32) -> (i32, i32, i32) {
    %c0_i32 = arith.constant 0 : i32
    %c0_i32_0 = arith.constant 0 : i32
    %c0_i32_1 = arith.constant 0 : i32
    return %arg0, %c0_i32, %c0_i32_0 : i32, i32, i32
  }
}

module attributes {stable_mosaic.version = 11 : i64} {
  func.func @_se_pw_res_kernel(%arg0: i32, %arg1: memref<1x16x144xbf16, #tpu.memory_space<vmem>>, %arg2: memref<1x1x144xf32, #tpu.memory_space<vmem>>, %arg3: memref<144x36xf32, #tpu.memory_space<vmem>>, %arg4: memref<1x36xf32, #tpu.memory_space<vmem>>, %arg5: memref<36x144xf32, #tpu.memory_space<vmem>>, %arg6: memref<1x144xf32, #tpu.memory_space<vmem>>, %arg7: memref<144x24xbf16, #tpu.memory_space<vmem>>, %arg8: memref<1x24xf32, #tpu.memory_space<vmem>>, %arg9: memref<1x16x24xbf16, #tpu.memory_space<vmem>>, %arg10: memref<1x16x24xbf16, #tpu.memory_space<vmem>>) attributes {dimension_semantics = [#tpu.dimension_semantics<parallel>], iteration_bounds = array<i64: 2>, scalar_prefetch = 0 : i64, scratch_operands = 0 : i64, tpu.core_type = #tpu.core_type<tc>, window_params = [{transform_indices = @transform_0, window_bounds = array<i64: 1, 16, 144>}, {transform_indices = @transform_1, window_bounds = array<i64: 1, 1, 144>}, {pipeline_mode = #tpu.pipeline_mode<synchronous>, transform_indices = @transform_2, window_bounds = array<i64: 144, 36>}, {pipeline_mode = #tpu.pipeline_mode<synchronous>, transform_indices = @transform_3, window_bounds = array<i64: 1, 36>}, {pipeline_mode = #tpu.pipeline_mode<synchronous>, transform_indices = @transform_4, window_bounds = array<i64: 36, 144>}, {pipeline_mode = #tpu.pipeline_mode<synchronous>, transform_indices = @transform_5, window_bounds = array<i64: 1, 144>}, {pipeline_mode = #tpu.pipeline_mode<synchronous>, transform_indices = @transform_6, window_bounds = array<i64: 144, 24>}, {pipeline_mode = #tpu.pipeline_mode<synchronous>, transform_indices = @transform_7, window_bounds = array<i64: 1, 24>}, {transform_indices = @transform_8, window_bounds = array<i64: 1, 16, 24>}, {transform_indices = @transform_9, window_bounds = array<i64: 1, 16, 24>}]} {
    %c0 = arith.constant 0 : index
    %c0_0 = arith.constant 0 : index
    %c0_1 = arith.constant 0 : index
    %0 = vector.load %arg2[%c0, %c0_0, %c0_1] : memref<1x1x144xf32, #tpu.memory_space<vmem>>, vector<1x1x144xf32>
    %1 = vector.shape_cast %0 : vector<1x1x144xf32> to vector<1x144xf32>
    %c0_2 = arith.constant 0 : index
    %c0_3 = arith.constant 0 : index
    %2 = vector.load %arg3[%c0_2, %c0_3] : memref<144x36xf32, #tpu.memory_space<vmem>>, vector<144x36xf32>
    %cst = arith.constant dense<0.000000e+00> : vector<1x36xf32>
    %3 = tpu.matmul %1, %2, %cst {dimension_numbers = #tpu.dot_dimension_numbers<[1], [0], [0], [1], [0, 0, 1, 1], [], []>} : vector<1x144xf32>, vector<144x36xf32>, vector<1x36xf32> -> vector<1x36xf32>
    %c0_4 = arith.constant 0 : index
    %c0_5 = arith.constant 0 : index
    %4 = vector.load %arg4[%c0_4, %c0_5] : memref<1x36xf32, #tpu.memory_space<vmem>>, vector<1x36xf32>
    %5 = arith.addf %3, %4 : vector<1x36xf32>
    %6 = arith.negf %5 : vector<1x36xf32>
    %7 = math.exp %6 : vector<1x36xf32>
    %cst_6 = arith.constant 1.000000e+00 : f32
    %8 = vector.broadcast %cst_6 : f32 to vector<1x36xf32>
    %9 = arith.addf %8, %7 : vector<1x36xf32>
    %10 = arith.divf %8, %9 : vector<1x36xf32>
    %11 = arith.mulf %5, %10 : vector<1x36xf32>
    %c0_7 = arith.constant 0 : index
    %c0_8 = arith.constant 0 : index
    %12 = vector.load %arg5[%c0_7, %c0_8] : memref<36x144xf32, #tpu.memory_space<vmem>>, vector<36x144xf32>
    %cst_9 = arith.constant dense<0.000000e+00> : vector<1x144xf32>
    %13 = tpu.matmul %11, %12, %cst_9 {dimension_numbers = #tpu.dot_dimension_numbers<[1], [0], [0], [1], [0, 0, 1, 1], [], []>} : vector<1x36xf32>, vector<36x144xf32>, vector<1x144xf32> -> vector<1x144xf32>
    %c0_10 = arith.constant 0 : index
    %c0_11 = arith.constant 0 : index
    %14 = vector.load %arg6[%c0_10, %c0_11] : memref<1x144xf32, #tpu.memory_space<vmem>>, vector<1x144xf32>
    %15 = arith.addf %13, %14 : vector<1x144xf32>
    %16 = arith.negf %15 : vector<1x144xf32>
    %17 = math.exp %16 : vector<1x144xf32>
    %cst_12 = arith.constant 1.000000e+00 : f32
    %18 = vector.broadcast %cst_12 : f32 to vector<1x144xf32>
    %19 = arith.addf %18, %17 : vector<1x144xf32>
    %20 = arith.divf %18, %19 : vector<1x144xf32>
    %c0_13 = arith.constant 0 : index
    %c0_14 = arith.constant 0 : index
    %c0_15 = arith.constant 0 : index
    %21 = vector.load %arg1[%c0_13, %c0_14, %c0_15] : memref<1x16x144xbf16, #tpu.memory_space<vmem>>, vector<1x16x144xbf16>
    %22 = vector.shape_cast %21 : vector<1x16x144xbf16> to vector<16x144xbf16>
    %23 = arith.extf %22 : vector<16x144xbf16> to vector<16x144xf32>
    %24 = vector.broadcast %20 : vector<1x144xf32> to vector<16x144xf32>
    %25 = arith.mulf %23, %24 : vector<16x144xf32>
    %26 = arith.truncf %25 : vector<16x144xf32> to vector<16x144xbf16>
    %c0_16 = arith.constant 0 : index
    %c0_17 = arith.constant 0 : index
    %27 = vector.load %arg7[%c0_16, %c0_17] : memref<144x24xbf16, #tpu.memory_space<vmem>>, vector<144x24xbf16>
    %cst_18 = arith.constant dense<0.000000e+00> : vector<16x24xf32>
    %28 = tpu.matmul %26, %27, %cst_18 {dimension_numbers = #tpu.dot_dimension_numbers<[1], [0], [0], [1], [0, 0, 1, 1], [], []>} : vector<16x144xbf16>, vector<144x24xbf16>, vector<16x24xf32> -> vector<16x24xf32>
    %c0_19 = arith.constant 0 : index
    %c0_20 = arith.constant 0 : index
    %29 = vector.load %arg8[%c0_19, %c0_20] : memref<1x24xf32, #tpu.memory_space<vmem>>, vector<1x24xf32>
    %30 = vector.broadcast %29 : vector<1x24xf32> to vector<16x24xf32>
    %31 = arith.addf %28, %30 : vector<16x24xf32>
    %c0_21 = arith.constant 0 : index
    %c0_22 = arith.constant 0 : index
    %c0_23 = arith.constant 0 : index
    %32 = vector.load %arg9[%c0_21, %c0_22, %c0_23] : memref<1x16x24xbf16, #tpu.memory_space<vmem>>, vector<1x16x24xbf16>
    %33 = vector.shape_cast %32 : vector<1x16x24xbf16> to vector<16x24xbf16>
    %34 = arith.extf %33 : vector<16x24xbf16> to vector<16x24xf32>
    %35 = arith.addf %31, %34 : vector<16x24xf32>
    %36 = arith.truncf %35 : vector<16x24xf32> to vector<16x24xbf16>
    %c0_24 = arith.constant 0 : index
    %c0_25 = arith.constant 0 : index
    %c0_26 = arith.constant 0 : index
    %37 = vector.load %arg10[%c0_24, %c0_25, %c0_26] : memref<1x16x24xbf16, #tpu.memory_space<vmem>>, vector<1x16x24xbf16>
    %38 = vector.shape_cast %37 : vector<1x16x24xbf16> to vector<16x24xbf16>
    %39 = vector.shape_cast %36 : vector<16x24xbf16> to vector<1x16x24xbf16>
    tpu.vector_store %arg10[%c0_24, %c0_25, %c0_26], %39 {strides = array<i32>} : memref<1x16x24xbf16, #tpu.memory_space<vmem>>, vector<1x16x24xbf16>,
    return
  }
  func.func @transform_0(%arg0: i32) -> (i32, i32, i32) {
    %c0_i32 = arith.constant 0 : i32
    %c0_i32_0 = arith.constant 0 : i32
    %c0_i32_1 = arith.constant 0 : i32
    return %arg0, %c0_i32, %c0_i32_0 : i32, i32, i32
  }
  func.func @transform_1(%arg0: i32) -> (i32, i32, i32) {
    %c0_i32 = arith.constant 0 : i32
    %c0_i32_0 = arith.constant 0 : i32
    %c0_i32_1 = arith.constant 0 : i32
    return %arg0, %c0_i32, %c0_i32_0 : i32, i32, i32
  }
  func.func @transform_2(%arg0: i32) -> (i32, i32) {
    %c0_i32 = arith.constant 0 : i32
    %c0_i32_0 = arith.constant 0 : i32
    %c0_i32_1 = arith.constant 0 : i32
    return %c0_i32, %c0_i32_0 : i32, i32
  }
  func.func @transform_3(%arg0: i32) -> (i32, i32) {
    %c0_i32 = arith.constant 0 : i32
    %c0_i32_0 = arith.constant 0 : i32
    %c0_i32_1 = arith.constant 0 : i32
    return %c0_i32, %c0_i32_0 : i32, i32
  }
  func.func @transform_4(%arg0: i32) -> (i32, i32) {
    %c0_i32 = arith.constant 0 : i32
    %c0_i32_0 = arith.constant 0 : i32
    %c0_i32_1 = arith.constant 0 : i32
    return %c0_i32, %c0_i32_0 : i32, i32
  }
  func.func @transform_5(%arg0: i32) -> (i32, i32) {
    %c0_i32 = arith.constant 0 : i32
    %c0_i32_0 = arith.constant 0 : i32
    %c0_i32_1 = arith.constant 0 : i32
    return %c0_i32, %c0_i32_0 : i32, i32
  }
  func.func @transform_6(%arg0: i32) -> (i32, i32) {
    %c0_i32 = arith.constant 0 : i32
    %c0_i32_0 = arith.constant 0 : i32
    %c0_i32_1 = arith.constant 0 : i32
    return %c0_i32, %c0_i32_0 : i32, i32
  }
  func.func @transform_7(%arg0: i32) -> (i32, i32) {
    %c0_i32 = arith.constant 0 : i32
    %c0_i32_0 = arith.constant 0 : i32
    %c0_i32_1 = arith.constant 0 : i32
    return %c0_i32, %c0_i32_0 : i32, i32
  }
  func.func @transform_8(%arg0: i32) -> (i32, i32, i32) {
    %c0_i32 = arith.constant 0 : i32
    %c0_i32_0 = arith.constant 0 : i32
    %c0_i32_1 = arith.constant 0 : i32
    return %arg0, %c0_i32, %c0_i32_0 : i32, i32, i32
  }
  func.func @transform_9(%arg0: i32) -> (i32, i32, i32) {
    %c0_i32 = arith.constant 0 : i32
    %c0_i32_0 = arith.constant 0 : i32
    %c0_i32_1 = arith.constant 0 : i32
    return %arg0, %c0_i32, %c0_i32_0 : i32, i32, i32
  }
}

module attributes {stable_mosaic.version = 11 : i64} {
  func.func @_matmul_bias_act_kernel(%arg0: i32, %arg1: i32, %arg2: i32, %arg3: memref<32x128xbf16, #tpu.memory_space<vmem>>, %arg4: memref<128x640xbf16, #tpu.memory_space<vmem>>, %arg5: memref<1x640xf32, #tpu.memory_space<vmem>>, %arg6: memref<32x640xbf16, #tpu.memory_space<vmem>>, %arg7: memref<32x640xf32, #tpu.memory_space<vmem>>) attributes {dimension_semantics = [#tpu.dimension_semantics<parallel>, #tpu.dimension_semantics<parallel>, #tpu.dimension_semantics<arbitrary>], iteration_bounds = array<i64: 1, 2, 1>, scalar_prefetch = 0 : i64, scratch_operands = 1 : i64, tpu.core_type = #tpu.core_type<tc>, window_params = [{transform_indices = @transform_0, window_bounds = array<i64: 32, 128>}, {transform_indices = @transform_1, window_bounds = array<i64: 128, 640>}, {transform_indices = @transform_2, window_bounds = array<i64: 1, 640>}, {transform_indices = @transform_3, window_bounds = array<i64: 32, 640>}]} {
    %c0_i32 = arith.constant 0 : i32
    %0 = arith.cmpi eq, %arg2, %c0_i32 : i32
    %1 = arith.extui %0 : i1 to i32
    %c0_i32_0 = arith.constant 0 : i32
    %2 = arith.cmpi ne, %1, %c0_i32_0 : i32
    scf.if %2 {
      %cst_10 = arith.constant 0.000000e+00 : f32
      %12 = vector.broadcast %cst_10 : f32 to vector<32x640xf32>
      %c0_11 = arith.constant 0 : index
      %c0_12 = arith.constant 0 : index
      %13 = vector.load %arg7[%c0_11, %c0_12] : memref<32x640xf32, #tpu.memory_space<vmem>>, vector<32x640xf32>
      tpu.vector_store %arg7[%c0_11, %c0_12], %12 {strides = array<i32>} : memref<32x640xf32, #tpu.memory_space<vmem>>, vector<32x640xf32>,
    } else {
    }
    %c0 = arith.constant 0 : index
    %c0_1 = arith.constant 0 : index
    %3 = vector.load %arg7[%c0, %c0_1] : memref<32x640xf32, #tpu.memory_space<vmem>>, vector<32x640xf32>
    %c0_2 = arith.constant 0 : index
    %c0_3 = arith.constant 0 : index
    %4 = vector.load %arg3[%c0_2, %c0_3] : memref<32x128xbf16, #tpu.memory_space<vmem>>, vector<32x128xbf16>
    %c0_4 = arith.constant 0 : index
    %c0_5 = arith.constant 0 : index
    %5 = vector.load %arg4[%c0_4, %c0_5] : memref<128x640xbf16, #tpu.memory_space<vmem>>, vector<128x640xbf16>
    %cst = arith.constant dense<0.000000e+00> : vector<32x640xf32>
    %6 = tpu.matmul %4, %5, %cst {dimension_numbers = #tpu.dot_dimension_numbers<[1], [0], [0], [1], [0, 0, 1, 1], [], []>} : vector<32x128xbf16>, vector<128x640xbf16>, vector<32x640xf32> -> vector<32x640xf32>
    %7 = arith.addf %3, %6 : vector<32x640xf32>
    %c0_6 = arith.constant 0 : index
    %c0_7 = arith.constant 0 : index
    %8 = vector.load %arg7[%c0_6, %c0_7] : memref<32x640xf32, #tpu.memory_space<vmem>>, vector<32x640xf32>
    tpu.vector_store %arg7[%c0_6, %c0_7], %7 {strides = array<i32>} : memref<32x640xf32, #tpu.memory_space<vmem>>, vector<32x640xf32>,
    %c0_i32_8 = arith.constant 0 : i32
    %9 = arith.cmpi eq, %arg2, %c0_i32_8 : i32
    %10 = arith.extui %9 : i1 to i32
    %c0_i32_9 = arith.constant 0 : i32
    %11 = arith.cmpi ne, %10, %c0_i32_9 : i32
    scf.if %11 {
      %c0_10 = arith.constant 0 : index
      %c0_11 = arith.constant 0 : index
      %12 = vector.load %arg7[%c0_10, %c0_11] : memref<32x640xf32, #tpu.memory_space<vmem>>, vector<32x640xf32>
      %c0_12 = arith.constant 0 : index
      %c0_13 = arith.constant 0 : index
      %13 = vector.load %arg5[%c0_12, %c0_13] : memref<1x640xf32, #tpu.memory_space<vmem>>, vector<1x640xf32>
      %14 = vector.broadcast %13 : vector<1x640xf32> to vector<32x640xf32>
      %15 = arith.addf %12, %14 : vector<32x640xf32>
      %16 = arith.negf %15 : vector<32x640xf32>
      %17 = math.exp %16 : vector<32x640xf32>
      %cst_14 = arith.constant 1.000000e+00 : f32
      %18 = vector.broadcast %cst_14 : f32 to vector<32x640xf32>
      %19 = arith.addf %18, %17 : vector<32x640xf32>
      %20 = arith.divf %18, %19 : vector<32x640xf32>
      %21 = arith.mulf %15, %20 : vector<32x640xf32>
      %22 = arith.truncf %21 : vector<32x640xf32> to vector<32x640xbf16>
      %c0_15 = arith.constant 0 : index
      %c0_16 = arith.constant 0 : index
      %23 = vector.load %arg6[%c0_15, %c0_16] : memref<32x640xbf16, #tpu.memory_space<vmem>>, vector<32x640xbf16>
      tpu.vector_store %arg6[%c0_15, %c0_16], %22 {strides = array<i32>} : memref<32x640xbf16, #tpu.memory_space<vmem>>, vector<32x640xbf16>,
    } else {
    }
    return
  }
  func.func @transform_0(%arg0: i32, %arg1: i32, %arg2: i32) -> (i32, i32) {
    %c0_i32 = arith.constant 0 : i32
    return %arg0, %arg2 : i32, i32
  }
  func.func @transform_1(%arg0: i32, %arg1: i32, %arg2: i32) -> (i32, i32) {
    %c0_i32 = arith.constant 0 : i32
    return %arg2, %arg1 : i32, i32
  }
  func.func @transform_2(%arg0: i32, %arg1: i32, %arg2: i32) -> (i32, i32) {
    %c0_i32 = arith.constant 0 : i32
    %c0_i32_0 = arith.constant 0 : i32
    return %c0_i32, %arg1 : i32, i32
  }
  func.func @transform_3(%arg0: i32, %arg1: i32, %arg2: i32) -> (i32, i32) {
    %c0_i32 = arith.constant 0 : i32
    return %arg0, %arg1 : i32, i32
  }
}

</mosaic_0001>

<llo_original>
// kernel: efficientnet_forward.11
$region0: #{efficientnet_forward.11}
  #allocation0 [shape = 'u32[]', space=smem, size = 0x4, offset = 0x4, fixed_abs, tag = 'smem constant byte address 0x4 - core index']
  #allocation1 [shape = 'u32[144,128]{1,0:T(1,128)}', space=vmem, size = 0x12000, scoped, tag = 'internal scratch']
  #allocation2 [shape = 'f32[128,128]{1,0:T(8,128)}', space=vmem, size = 0x10000, scoped, tag = 'scratch operand']
  %s0 = inlined_call_operand.vmem [shape: bf16[128,128], index: 0, kind: input, shape index: {}]
  %s1 = inlined_call_operand.vmem [shape: bf16[128,128], index: 1, kind: input, shape index: {}]
  %s2 = inlined_call_operand.vmem [shape: f32[1,128], index: 2, kind: input, shape index: {}]
  %s3 = inlined_call_operand.vmem [shape: bf16[128,128], index: 3, kind: output, shape index: {}]
  %s4 = sld [smem:[#allocation0]]
  $region30: #{efficientnet_forward.11} parent=0
    _
  %s6 = ssub.s32 1, %s4
  %s7 = scalar_select 0, %s6, %s4
  // Predicated region
  $region2: #{efficientnet_forward.11} parent=0 // pred_check
    _
  $region3: #{efficientnet_forward.11} parent=0 // pred_check_branch
    %9 = sbr.rel (0) target = $region5
  $region4: #{efficientnet_forward.11} parent=0 // pred_region
    _
  $region5: #{efficientnet_forward.11} parent=0 // pred_fallthru
    _
  // Predicated region
  $region6: #{efficientnet_forward.11} parent=0 // pred_check
    _
  $region7: #{efficientnet_forward.11} parent=0 // pred_check_branch
    %11 = sbr.rel (0) target = $region9
  $region8: #{efficientnet_forward.11} parent=0 // pred_region
    _
  $region9: #{efficientnet_forward.11} parent=0 // pred_fallthru
    _
  // Predicated region
  $region10: #{efficientnet_forward.11} parent=0 // pred_check
    _
  $region11: #{efficientnet_forward.11} parent=0 // pred_check_branch
    %13 = sbr.rel (0) target = $region13
  $region12: #{efficientnet_forward.11} parent=0 // pred_region
    _
  $region13: #{efficientnet_forward.11} parent=0 // pred_fallthru
    _
  %p15 = scmp.eq.s32.totalorder 0, 0
  // Predicated region
  $region14: #{efficientnet_forward.11} parent=0 // pred_check
    %p16 = pneg %p15
  $region15: #{efficientnet_forward.11} parent=0 // pred_check_branch
    %18 = sbr.rel (%p16) target = $region17
  $region16: #{efficientnet_forward.11} parent=0 // pred_region
    %19 = vst [vmem:[#allocation2] sm:$0xff] 0.0
    %20 = vst [vmem:[#allocation2 + $0x8] sm:$0xff] 0.0
    %21 = vst [vmem:[#allocation2 + $0x10] sm:$0xff] 0.0
    %22 = vst [vmem:[#allocation2 + $0x18] sm:$0xff] 0.0
    %23 = vst [vmem:[#allocation2 + $0x20] sm:$0xff] 0.0
    %24 = vst [vmem:[#allocation2 + $0x28] sm:$0xff] 0.0
    %25 = vst [vmem:[#allocation2 + $0x30] sm:$0xff] 0.0
    %26 = vst [vmem:[#allocation2 + $0x38] sm:$0xff] 0.0
    %27 = vst [vmem:[#allocation2 + $0x40] sm:$0xff] 0.0
    %28 = vst [vmem:[#allocation2 + $0x48] sm:$0xff] 0.0
    %29 = vst [vmem:[#allocation2 + $0x50] sm:$0xff] 0.0
    %30 = vst [vmem:[#allocation2 + $0x58] sm:$0xff] 0.0
    %31 = vst [vmem:[#allocation2 + $0x60] sm:$0xff] 0.0
    %32 = vst [vmem:[#allocation2 + $0x68] sm:$0xff] 0.0
    %33 = vst [vmem:[#allocation2 + $0x70] sm:$0xff] 0.0
    %34 = vst [vmem:[#allocation2 + $0x78] sm:$0xff] 0.0
  $region17: #{efficientnet_forward.11} parent=0 // pred_fallthru
    _
  %v35 = vld [vmem:[#allocation2] sm:$0xff]
  %v36 = vld [vmem:[#allocation2 + $0x8] sm:$0xff]
  %v37 = vld [vmem:[#allocation2 + $0x10] sm:$0xff]
  %v38 = vld [vmem:[#allocation2 + $0x18] sm:$0xff]
  %v39 = vld [vmem:[#allocation2 + $0x20] sm:$0xff]
  %v40 = vld [vmem:[#allocation2 + $0x28] sm:$0xff]
  %v41 = vld [vmem:[#allocation2 + $0x30] sm:$0xff]
  %v42 = vld [vmem:[#allocation2 + $0x38] sm:$0xff]
  %v43 = vld [vmem:[#allocation2 + $0x40] sm:$0xff]
  %v44 = vld [vmem:[#allocation2 + $0x48] sm:$0xff]
  %v45 = vld [vmem:[#allocation2 + $0x50] sm:$0xff]
  %v46 = vld [vmem:[#allocation2 + $0x58] sm:$0xff]
  %v47 = vld [vmem:[#allocation2 + $0x60] sm:$0xff]
  %v48 = vld [vmem:[#allocation2 + $0x68] sm:$0xff]
  %v49 = vld [vmem:[#allocation2 + $0x70] sm:$0xff]
  %v50 = vld [vmem:[#allocation2 + $0x78] sm:$0xff]
  %v51 = vld [vmem:[%s0] sm:$0xf]
  %v52 = vld [vmem:[%s0 + $0x4] sm:$0xf]
  %v53 = vld [vmem:[%s0 + $0x8] sm:$0xf]
  %v54 = vld [vmem:[%s0 + $0xc] sm:$0xf]
  %v55 = vld [vmem:[%s0 + $0x10] sm:$0xf]
  %v56 = vld [vmem:[%s0 + $0x14] sm:$0xf]
  %v57 = vld [vmem:[%s0 + $0x18] sm:$0xf]
  %v58 = vld [vmem:[%s0 + $0x1c] sm:$0xf]
  %v59 = vld [vmem:[%s0 + $0x20] sm:$0xf]
  %v60 = vld [vmem:[%s0 + $0x24] sm:$0xf]
  %v61 = vld [vmem:[%s0 + $0x28] sm:$0xf]
  %v62 = vld [vmem:[%s0 + $0x2c] sm:$0xf]
  %v63 = vld [vmem:[%s0 + $0x30] sm:$0xf]
  %v64 = vld [vmem:[%s0 + $0x34] sm:$0xf]
  %v65 = vld [vmem:[%s0 + $0x38] sm:$0xf]
  %v66 = vld [vmem:[%s0 + $0x3c] sm:$0xf]
  %v67 = vld [vmem:[%s1] sm:$0xf]
  %v68 = vld [vmem:[%s1 + $0x4] sm:$0xf]
  %v69 = vld [vmem:[%s1 + $0x8] sm:$0xf]
  %v70 = vld [vmem:[%s1 + $0xc] sm:$0xf]
  %v71 = vld [vmem:[%s1 + $0x10] sm:$0xf]
  %v72 = vld [vmem:[%s1 + $0x14] sm:$0xf]
  %v73 = vld [vmem:[%s1 + $0x18] sm:$0xf]
  %v74 = vld [vmem:[%s1 + $0x1c] sm:$0xf]
  %v75 = vld [vmem:[%s1 + $0x20] sm:$0xf]
  %v76 = vld [vmem:[%s1 + $0x24] sm:$0xf]
  %v77 = vld [vmem:[%s1 + $0x28] sm:$0xf]
  %v78 = vld [vmem:[%s1 + $0x2c] sm:$0xf]
  %v79 = vld [vmem:[%s1 + $0x30] sm:$0xf]
  %v80 = vld [vmem:[%s1 + $0x34] sm:$0xf]
  %v81 = vld [vmem:[%s1 + $0x38] sm:$0xf]
  %v82 = vld [vmem:[%s1 + $0x3c] sm:$0xf]
  %v99 = vunpack.c.l.b16 %v51
  %v100 = vunpack.c.l.b16 %v52
  %v101 = vunpack.c.l.b16 %v53
  %v102 = vunpack.c.l.b16 %v54
  %v103 = vunpack.c.l.b16 %v55
  %v104 = vunpack.c.l.b16 %v56
  %v105 = vunpack.c.l.b16 %v57
  %v106 = vunpack.c.l.b16 %v58
  %v107 = vunpack.c.l.b16 %v59
  %v108 = vunpack.c.l.b16 %v60
  %v109 = vunpack.c.l.b16 %v61
  %v110 = vunpack.c.l.b16 %v62
  %v111 = vunpack.c.l.b16 %v63
  %v112 = vunpack.c.l.b16 %v64
  %v113 = vunpack.c.l.b16 %v65
  %v114 = vunpack.c.l.b16 %v66
  %v115 = vpack.c.b16 %v100, %v99
  %v116 = vpack.c.b16 %v102, %v101
  %v117 = vpack.c.b16 %v104, %v103
  %v118 = vpack.c.b16 %v106, %v105
  %v119 = vpack.c.b16 %v108, %v107
  %v120 = vpack.c.b16 %v110, %v109
  %v121 = vpack.c.b16 %v112, %v111
  %v122 = vpack.c.b16 %v114, %v113
  %v147 = vunpack.c.l.b16 %v67
  %v148 = vunpack.c.l.b16 %v68
  %v149 = vunpack.c.l.b16 %v69
  %v150 = vunpack.c.l.b16 %v70
  %v151 = vunpack.c.l.b16 %v71
  %v152 = vunpack.c.l.b16 %v72
  %v153 = vunpack.c.l.b16 %v73
  %v154 = vunpack.c.l.b16 %v74
  %v155 = vunpack.c.l.b16 %v75
  %v156 = vunpack.c.l.b16 %v76
  %v157 = vunpack.c.l.b16 %v77
  %v158 = vunpack.c.l.b16 %v78
  %v159 = vunpack.c.l.b16 %v79
  %v160 = vunpack.c.l.b16 %v80
  %v161 = vunpack.c.l.b16 %v81
  %v162 = vunpack.c.l.b16 %v82
  %v163 = vpack.c.b16 %v148, %v147
  %v164 = vpack.c.b16 %v150, %v149
  %v165 = vpack.c.b16 %v152, %v151
  %v166 = vpack.c.b16 %v154, %v153
  %v167 = vpack.c.b16 %v156, %v155
  %v168 = vpack.c.b16 %v158, %v157
  %v169 = vpack.c.b16 %v160, %v159
  %v170 = vpack.c.b16 %v162, %v161
  %179 = vmatprep.subr.bf16.mxu0 0
  %180 = vmatpush1.bf16.msra.mxu0 %v170
  %181 = vmatprep.subr.bf16.mxu0 0
  %182 = vmatpush1.bf16.msra.mxu0 %v169
  %183 = vmatprep.subr.bf16.mxu0 0
  %184 = vmatpush1.bf16.msra.mxu0 %v168
  %185 = vmatprep.subr.bf16.mxu0 0
  %186 = vmatpush1.bf16.msra.mxu0 %v167
  %187 = vmatprep.subr.bf16.mxu0 0
  %188 = vmatpush1.bf16.msra.mxu0 %v166
  %189 = vmatprep.subr.bf16.mxu0 0
  %190 = vmatpush1.bf16.msra.mxu0 %v165
  %191 = vmatprep.subr.bf16.mxu0 0
  %192 = vmatpush1.bf16.msra.mxu0 %v164
  %193 = vmatprep.subr.bf16.mxu0 0
  %194 = vmatpush1.bf16.msra.mxu0 %v163
  %195 = vmatprep.subr.bf16.mxu0 0
  %196 = vmatpush2.bf16.msra.mxu0 0
  %197 = vmatprep.subr.bf16.mxu0 0
  %198 = vmatpush2.bf16.msra.mxu0 0
  %199 = vmatprep.subr.bf16.mxu0 0
  %200 = vmatpush2.bf16.msra.mxu0 0
  %201 = vmatprep.subr.bf16.mxu0 0
  %202 = vmatpush2.bf16.msra.mxu0 0
  %203 = vmatprep.subr.bf16.mxu0 0
  %204 = vmatpush2.bf16.msra.mxu0 0
  %205 = vmatprep.subr.bf16.mxu0 0
  %206 = vmatpush2.bf16.msra.mxu0 0
  %207 = vmatprep.subr.bf16.mxu0 0
  %208 = vmatpush2.bf16.msra.mxu0 0
  %209 = vmatprep.subr.bf16.mxu0 0
  %210 = vmatpush2.bf16.msra.mxu0 0
  %211 = vmatprep.mubr.bf16.mxu0 0
  %212 = vmatmul.mubr.bf16.gmra.mxu0 %v115
  %v213 = vpop.f32.mrf.mxu0
  %v214 = vadd.f32 0.0, %v213
  %v215 = vpop.f32.mrf.mxu0
  %v216 = vpop.f32.mrf.mxu0
  %v217 = vadd.f32 0.0, %v216
  %v218 = vpop.f32.mrf.mxu0
  %219 = vmatprep.mubr.bf16.mxu0 0
  %220 = vmatmul.mubr.bf16.gmra.mxu0 %v116
  %v221 = vpop.f32.mrf.mxu0
  %v222 = vadd.f32 0.0, %v221
  %v223 = vpop.f32.mrf.mxu0
  %v224 = vpop.f32.mrf.mxu0
  %v225 = vadd.f32 0.0, %v224
  %v226 = vpop.f32.mrf.mxu0
  %227 = vmatprep.mubr.bf16.mxu0 0
  %228 = vmatmul.mubr.bf16.gmra.mxu0 %v117
  %v229 = vpop.f32.mrf.mxu0
  %v230 = vadd.f32 0.0, %v229
  %v231 = vpop.f32.mrf.mxu0
  %v232 = vpop.f32.mrf.mxu0
  %v233 = vadd.f32 0.0, %v232
  %v234 = vpop.f32.mrf.mxu0
  %235 = vmatprep.mubr.bf16.mxu0 0
  %236 = vmatmul.mubr.bf16.gmra.mxu0 %v118
  %v237 = vpop.f32.mrf.mxu0
  %v238 = vadd.f32 0.0, %v237
  %v239 = vpop.f32.mrf.mxu0
  %v240 = vpop.f32.mrf.mxu0
  %v241 = vadd.f32 0.0, %v240
  %v242 = vpop.f32.mrf.mxu0
  %243 = vmatprep.mubr.bf16.mxu0 0
  %244 = vmatmul.mubr.bf16.gmra.mxu0 %v119
  %v245 = vpop.f32.mrf.mxu0
  %v246 = vadd.f32 0.0, %v245
  %v247 = vpop.f32.mrf.mxu0
  %v248 = vpop.f32.mrf.mxu0
  %v249 = vadd.f32 0.0, %v248
  %v250 = vpop.f32.mrf.mxu0
  %251 = vmatprep.mubr.bf16.mxu0 0
  %252 = vmatmul.mubr.bf16.gmra.mxu0 %v120
  %v253 = vpop.f32.mrf.mxu0
  %v254 = vadd.f32 0.0, %v253
  %v255 = vpop.f32.mrf.mxu0
  %v256 = vpop.f32.mrf.mxu0
  %v257 = vadd.f32 0.0, %v256
  %v258 = vpop.f32.mrf.mxu0
  %259 = vmatprep.mubr.bf16.mxu0 0
  %260 = vmatmul.mubr.bf16.gmra.mxu0 %v121
  %v261 = vpop.f32.mrf.mxu0
  %v262 = vadd.f32 0.0, %v261
  %v263 = vpop.f32.mrf.mxu0
  %v264 = vpop.f32.mrf.mxu0
  %v265 = vadd.f32 0.0, %v264
  %v266 = vpop.f32.mrf.mxu0
  %267 = vmatprep.mubr.bf16.mxu0 0
  %268 = vmatmul.mubr.bf16.gmra.mxu0 %v122
  %v269 = vpop.f32.mrf.mxu0
  %v270 = vadd.f32 0.0, %v269
  %v271 = vpop.f32.mrf.mxu0
  %v272 = vpop.f32.mrf.mxu0
  %v273 = vadd.f32 0.0, %v272
  %v274 = vpop.f32.mrf.mxu0
  %275 = vdwg.mxu0
  %v276 = vadd.f32 %v35, %v214
  %v277 = vadd.f32 %v36, %v217
  %v278 = vadd.f32 %v37, %v222
  %v279 = vadd.f32 %v38, %v225
  %v280 = vadd.f32 %v39, %v230
  %v281 = vadd.f32 %v40, %v233
  %v282 = vadd.f32 %v41, %v238
  %v283 = vadd.f32 %v42, %v241
  %v284 = vadd.f32 %v43, %v246
  %v285 = vadd.f32 %v44, %v249
  %v286 = vadd.f32 %v45, %v254
  %v287 = vadd.f32 %v46, %v257
  %v288 = vadd.f32 %v47, %v262
  %v289 = vadd.f32 %v48, %v265
  %v290 = vadd.f32 %v49, %v270
  %v291 = vadd.f32 %v50, %v273
  %292 = vst [vmem:[#allocation2] sm:$0xff] %v276
  %293 = vst [vmem:[#allocation2 + $0x8] sm:$0xff] %v277
  %294 = vst [vmem:[#allocation2 + $0x10] sm:$0xff] %v278
  %295 = vst [vmem:[#allocation2 + $0x18] sm:$0xff] %v279
  %296 = vst [vmem:[#allocation2 + $0x20] sm:$0xff] %v280
  %297 = vst [vmem:[#allocation2 + $0x28] sm:$0xff] %v281
  %298 = vst [vmem:[#allocation2 + $0x30] sm:$0xff] %v282
  %299 = vst [vmem:[#allocation2 + $0x38] sm:$0xff] %v283
  %300 = vst [vmem:[#allocation2 + $0x40] sm:$0xff] %v284
  %301 = vst [vmem:[#allocation2 + $0x48] sm:$0xff] %v285
  %302 = vst [vmem:[#allocation2 + $0x50] sm:$0xff] %v286
  %303 = vst [vmem:[#allocation2 + $0x58] sm:$0xff] %v287
  %304 = vst [vmem:[#allocation2 + $0x60] sm:$0xff] %v288
  %305 = vst [vmem:[#allocation2 + $0x68] sm:$0xff] %v289
  %306 = vst [vmem:[#allocation2 + $0x70] sm:$0xff] %v290
  %307 = vst [vmem:[#allocation2 + $0x78] sm:$0xff] %v291
  // Predicated region
  $region18: #{efficientnet_forward.11} parent=0 // pred_check
    %p308 = pneg %p15
  $region19: #{efficientnet_forward.11} parent=0 // pred_check_branch
    %310 = sbr.rel (%p308) target = $region21
  $region20: #{efficientnet_forward.11} parent=0 // pred_region
    %v311 = vld [vmem:[#allocation2] sm:$0xff]
    %v312 = vld [vmem:[#allocation2 + $0x8] sm:$0xff]
    %v313 = vld [vmem:[#allocation2 + $0x10] sm:$0xff]
    %v314 = vld [vmem:[#allocation2 + $0x18] sm:$0xff]
    %v315 = vld [vmem:[#allocation2 + $0x20] sm:$0xff]
    %v316 = vld [vmem:[#allocation2 + $0x28] sm:$0xff]
    %v317 = vld [vmem:[#allocation2 + $0x30] sm:$0xff]
    %v318 = vld [vmem:[#allocation2 + $0x38] sm:$0xff]
    %v319 = vld [vmem:[#allocation2 + $0x40] sm:$0xff]
    %v320 = vld [vmem:[#allocation2 + $0x48] sm:$0xff]
    %v321 = vld [vmem:[#allocation2 + $0x50] sm:$0xff]
    %v322 = vld [vmem:[#allocation2 + $0x58] sm:$0xff]
    %v323 = vld [vmem:[#allocation2 + $0x60] sm:$0xff]
    %v324 = vld [vmem:[#allocation2 + $0x68] sm:$0xff]
    %v325 = vld [vmem:[#allocation2 + $0x70] sm:$0xff]
    %v326 = vld [vmem:[#allocation2 + $0x78] sm:$0xff]
    %v327 = vld [vmem:[%s2] sm:$0x1]
    %v329 = vlaneseq
    %v330 = vshrl.u32 %v329, 7
    %v331 = vsub.s32 0, %v330
    %v332 = vrot.slane %v327, %v331
    %v334 = vadd.f32 %v311, %v332
    %v335 = vadd.f32 %v312, %v332
    %v336 = vadd.f32 %v313, %v332
    %v337 = vadd.f32 %v314, %v332
    %v338 = vadd.f32 %v315, %v332
    %v339 = vadd.f32 %v316, %v332
    %v340 = vadd.f32 %v317, %v332
    %v341 = vadd.f32 %v318, %v332
    %v342 = vadd.f32 %v319, %v332
    %v343 = vadd.f32 %v320, %v332
    %v344 = vadd.f32 %v321, %v332
    %v345 = vadd.f32 %v322, %v332
    %v346 = vadd.f32 %v323, %v332
    %v347 = vadd.f32 %v324, %v332
    %v348 = vadd.f32 %v325, %v332
    %v349 = vadd.f32 %v326, %v332
    %v350 = vxor.u32 %v334, 2147483648
    %v351 = vxor.u32 %v335, 2147483648
    %v352 = vxor.u32 %v336, 2147483648
    %v353 = vxor.u32 %v337, 2147483648
    %v354 = vxor.u32 %v338, 2147483648
    %v355 = vxor.u32 %v339, 2147483648
    %v356 = vxor.u32 %v340, 2147483648
    %v357 = vxor.u32 %v341, 2147483648
    %v358 = vxor.u32 %v342, 2147483648
    %v359 = vxor.u32 %v343, 2147483648
    %v360 = vxor.u32 %v344, 2147483648
    %v361 = vxor.u32 %v345, 2147483648
    %v362 = vxor.u32 %v346, 2147483648
    %v363 = vxor.u32 %v347, 2147483648
    %v364 = vxor.u32 %v348, 2147483648
    %v365 = vxor.u32 %v349, 2147483648
    %v366 = vmul.f32 %v350, 1.442695
    %v367 = vpow.pop %v366
    %v368 = vmul.f32 %v351, 1.442695
    %v369 = vpow.pop %v368
    %v370 = vmul.f32 %v352, 1.442695
    %v371 = vpow.pop %v370
    %v372 = vmul.f32 %v353, 1.442695
    %v373 = vpow.pop %v372
    %v374 = vmul.f32 %v354, 1.442695
    %v375 = vpow.pop %v374
    %v376 = vmul.f32 %v355, 1.442695
    %v377 = vpow.pop %v376
    %v378 = vmul.f32 %v356, 1.442695
    %v379 = vpow.pop %v378
    %v380 = vmul.f32 %v357, 1.442695
    %v381 = vpow.pop %v380
    %v382 = vmul.f32 %v358, 1.442695
    %v383 = vpow.pop %v382
    %v384 = vmul.f32 %v359, 1.442695
    %v385 = vpow.pop %v384
    %v386 = vmul.f32 %v360, 1.442695
    %v387 = vpow.pop %v386
    %v388 = vmul.f32 %v361, 1.442695
    %v389 = vpow.pop %v388
    %v390 = vmul.f32 %v362, 1.442695
    %v391 = vpow.pop %v390
    %v392 = vmul.f32 %v363, 1.442695
    %v393 = vpow.pop %v392
    %v394 = vmul.f32 %v364, 1.442695
    %v395 = vpow.pop %v394
    %v396 = vmul.f32 %v365, 1.442695
    %v397 = vpow.pop %v396
    %v398 = vadd.f32 %v367, 1.0
    %v399 = vadd.f32 %v369, 1.0
    %v400 = vadd.f32 %v371, 1.0
    %v401 = vadd.f32 %v373, 1.0
    %v402 = vadd.f32 %v375, 1.0
    %v403 = vadd.f32 %v377, 1.0
    %v404 = vadd.f32 %v379, 1.0
    %v405 = vadd.f32 %v381, 1.0
    %v406 = vadd.f32 %v383, 1.0
    %v407 = vadd.f32 %v385, 1.0
    %v408 = vadd.f32 %v387, 1.0
    %v409 = vadd.f32 %v389, 1.0
    %v410 = vadd.f32 %v391, 1.0
    %v411 = vadd.f32 %v393, 1.0
    %v412 = vadd.f32 %v395, 1.0
    %v413 = vadd.f32 %v397, 1.0
    %v414 = vrcp.pop %v398
    %v415 = vmul.f32 1.0, %v414
    %v416 = vrcp.pop %v399
    %v417 = vmul.f32 1.0, %v416
    %v418 = vrcp.pop %v400
    %v419 = vmul.f32 1.0, %v418
    %v420 = vrcp.pop %v401
    %v421 = vmul.f32 1.0, %v420
    %v422 = vrcp.pop %v402
    %v423 = vmul.f32 1.0, %v422
    %v424 = vrcp.pop %v403
    %v425 = vmul.f32 1.0, %v424
    %v426 = vrcp.pop %v404
    %v427 = vmul.f32 1.0, %v426
    %v428 = vrcp.pop %v405
    %v429 = vmul.f32 1.0, %v428
    %v430 = vrcp.pop %v406
    %v431 = vmul.f32 1.0, %v430
    %v432 = vrcp.pop %v407
    %v433 = vmul.f32 1.0, %v432
    %v434 = vrcp.pop %v408
    %v435 = vmul.f32 1.0, %v434
    %v436 = vrcp.pop %v409
    %v437 = vmul.f32 1.0, %v436
    %v438 = vrcp.pop %v410
    %v439 = vmul.f32 1.0, %v438
    %v440 = vrcp.pop %v411
    %v441 = vmul.f32 1.0, %v440
    %v442 = vrcp.pop %v412
    %v443 = vmul.f32 1.0, %v442
    %v444 = vrcp.pop %v413
    %v445 = vmul.f32 1.0, %v444
    %v446 = vmul.f32 %v334, %v415
    %v447 = vmul.f32 %v335, %v417
    %v448 = vmul.f32 %v336, %v419
    %v449 = vmul.f32 %v337, %v421
    %v450 = vmul.f32 %v338, %v423
    %v451 = vmul.f32 %v339, %v425
    %v452 = vmul.f32 %v340, %v427
    %v453 = vmul.f32 %v341, %v429
    %v454 = vmul.f32 %v342, %v431
    %v455 = vmul.f32 %v343, %v433
    %v456 = vmul.f32 %v344, %v435
    %v457 = vmul.f32 %v345, %v437
    %v458 = vmul.f32 %v346, %v439
    %v459 = vmul.f32 %v347, %v441
    %v460 = vmul.f32 %v348, %v443
    %v461 = vmul.f32 %v349, %v445
    %v462 = vpack.c.bf16 %v447, %v446
    %v463 = vpack.c.bf16 %v449, %v448
    %v464 = vpack.c.bf16 %v451, %v450
    %v465 = vpack.c.bf16 %v453, %v452
    %v466 = vpack.c.bf16 %v455, %v454
    %v467 = vpack.c.bf16 %v457, %v456
    %v468 = vpack.c.bf16 %v459, %v458
    %v469 = vpack.c.bf16 %v461, %v460
    %v478 = vunpack.c.l.b16 %v462
    %v479 = vunpack.c.h.b16 %v462
    %v480 = vunpack.c.l.b16 %v463
    %v481 = vunpack.c.h.b16 %v463
    %v482 = vunpack.c.l.b16 %v464
    %v483 = vunpack.c.h.b16 %v464
    %v484 = vunpack.c.l.b16 %v465
    %v485 = vunpack.c.h.b16 %v465
    %v486 = vunpack.c.l.b16 %v466
    %v487 = vunpack.c.h.b16 %v466
    %v488 = vunpack.c.l.b16 %v467
    %v489 = vunpack.c.h.b16 %v467
    %v490 = vunpack.c.l.b16 %v468
    %v491 = vunpack.c.h.b16 %v468
    %v492 = vunpack.c.l.b16 %v469
    %v493 = vunpack.c.h.b16 %v469
    %v494 = vpack.c.b16 %v478, %v478
    %v495 = vpack.c.b16 %v479, %v479
    %v496 = vpack.c.b16 %v480, %v480
    %v497 = vpack.c.b16 %v481, %v481
    %v498 = vpack.c.b16 %v482, %v482
    %v499 = vpack.c.b16 %v483, %v483
    %v500 = vpack.c.b16 %v484, %v484
    %v501 = vpack.c.b16 %v485, %v485
    %v502 = vpack.c.b16 %v486, %v486
    %v503 = vpack.c.b16 %v487, %v487
    %v504 = vpack.c.b16 %v488, %v488
    %v505 = vpack.c.b16 %v489, %v489
    %v506 = vpack.c.b16 %v490, %v490
    %v507 = vpack.c.b16 %v491, %v491
    %v508 = vpack.c.b16 %v492, %v492
    %v509 = vpack.c.b16 %v493, %v493
    %526 = vst [vmem:[%s3] sm:$0xf] %v494
    %527 = vst [vmem:[%s3 + $0x4] sm:$0xf] %v495
    %528 = vst [vmem:[%s3 + $0x8] sm:$0xf] %v496
    %529 = vst [vmem:[%s3 + $0xc] sm:$0xf] %v497
    %530 = vst [vmem:[%s3 + $0x10] sm:$0xf] %v498
    %531 = vst [vmem:[%s3 + $0x14] sm:$0xf] %v499
    %532 = vst [vmem:[%s3 + $0x18] sm:$0xf] %v500
    %533 = vst [vmem:[%s3 + $0x1c] sm:$0xf] %v501
    %534 = vst [vmem:[%s3 + $0x20] sm:$0xf] %v502
    %535 = vst [vmem:[%s3 + $0x24] sm:$0xf] %v503
    %536 = vst [vmem:[%s3 + $0x28] sm:$0xf] %v504
    %537 = vst [vmem:[%s3 + $0x2c] sm:$0xf] %v505
    %538 = vst [vmem:[%s3 + $0x30] sm:$0xf] %v506
    %539 = vst [vmem:[%s3 + $0x34] sm:$0xf] %v507
    %540 = vst [vmem:[%s3 + $0x38] sm:$0xf] %v508
    %541 = vst [vmem:[%s3 + $0x3c] sm:$0xf] %v509
  $region21: #{efficientnet_forward.11} parent=0 // pred_fallthru
    _
  // Predicated region
  $region22: #{efficientnet_forward.11} parent=0 // pred_check
    _
  $region23: #{efficientnet_forward.11} parent=0 // pred_check_branch
    %543 = sbr.rel (0) target = $region25
  $region24: #{efficientnet_forward.11} parent=0 // pred_region
    _
  $region25: #{efficientnet_forward.11} parent=0 // pred_fallthru
    _
  // Predicated region
  $region26: #{efficientnet_forward.11} parent=0 // pred_check
    _
  $region27: #{efficientnet_forward.11} parent=0 // pred_check_branch
    %545 = sbr.rel (0) target = $region29
  $region28: #{efficientnet_forward.11} parent=0 // pred_region
    _
  $region29: #{efficientnet_forward.11} parent=0 // pred_fallthru
    _

// kernel: efficientnet_forward.14
$region0: #{efficientnet_forward.14}
  #allocation0 [shape = 'u32[]', space=smem, size = 0x4, offset = 0x4, fixed_abs, tag = 'smem constant byte address 0x4 - core index']
  #allocation1 [shape = 'u32[144,128]{1,0:T(1,128)}', space=vmem, size = 0x12000, scoped, tag = 'internal scratch']
  %s0 = inlined_call_operand.vmem [shape: bf16[2,64,32], index: 0, kind: input, shape index: {}]
  %s1 = inlined_call_operand.vmem [shape: f32[2,1,32], index: 1, kind: input, shape index: {}]
  %s2 = inlined_call_operand.vmem [shape: f32[32,8], index: 2, kind: input, shape index: {}]
  %s3 = inlined_call_operand.vmem [shape: f32[1,8], index: 3, kind: input, shape index: {}]
  %s4 = inlined_call_operand.vmem [shape: f32[8,32], index: 4, kind: input, shape index: {}]
  %s5 = inlined_call_operand.vmem [shape: f32[1,32], index: 5, kind: input, shape index: {}]
  %s6 = inlined_call_operand.vmem [shape: bf16[32,16], index: 6, kind: input, shape index: {}]
  %s7 = inlined_call_operand.vmem [shape: f32[1,16], index: 7, kind: input, shape index: {}]
  %s8 = inlined_call_operand.vmem [shape: bf16[2,64,16], index: 8, kind: output, shape index: {}]
  %s9 = sld [smem:[#allocation0]]
  $region65: #{efficientnet_forward.14} parent=0
    _
  %s11 = ssub.s32 1, %s9
  %s12 = scalar_select 0, %s11, %s9
  loop: start=0, step=1, limit=4
  $region2: #{efficientnet_forward.14} parent=0 // loop_pre_header
    _
  $region3: #{efficientnet_forward.14} parent=0 // loop_header
    %s14 = sphi 0, %s18
    %p15 = scmp.ge.s32.totalorder %s14, 4
    %s24 = sphi 0, %s26
    %s27 = sphi 0, %s24
    %s28 = sphi 0, %s27
    %s44 = sphi 0, %s28
    %s50 = sphi 0, %s52
    %s53 = sphi 0, %s50
    %s54 = sphi 0, %s53
    %s70 = sphi 0, %s54
    %s74 = sphi 0, %s74
    %s76 = sphi 0, %s74
    %s77 = sphi 0, %s76
    %s91 = sphi 0, %s77
    %s95 = sphi 0, %s95
    %s97 = sphi 0, %s95
    %s98 = sphi 0, %s97
    %s112 = sphi 0, %s98
    %s116 = sphi 0, %s116
    %s118 = sphi 0, %s116
    %s119 = sphi 0, %s118
    %s133 = sphi 0, %s119
    %s137 = sphi 0, %s137
    %s139 = sphi 0, %s137
    %s140 = sphi 0, %s139
    %s154 = sphi 0, %s140
    %s158 = sphi 0, %s158
    %s160 = sphi 0, %s158
    %s161 = sphi 0, %s160
    %s175 = sphi 0, %s161
    %s179 = sphi 0, %s179
    %s181 = sphi 0, %s179
    %s182 = sphi 0, %s181
    %s196 = sphi 0, %s182
    %s202 = sphi 0, %s204
    %s205 = sphi 0, %s202
    %s206 = sphi 0, %s205
    %s222 = sphi 0, %s206
  $region4: #{efficientnet_forward.14} parent=0 // loop_header_branch
    %17 = sbr.rel (%p15) target = $region8
  $region5: #{efficientnet_forward.14} parent=0 // loop_body
    %s19 = ssub.s32 %s14, 1
    %s20 = ssub.s32 %s14, 2
    %s21 = sadd.s32 %s14, 1
    %s22 = ssub.s32 %s14, %s21
    %p23 = scmp.eq.s32.totalorder %s22, 0
    %s25 = sadd.s32 %s24, 1
    %s26 = scalar_select %p23, %s24, %s25
    %p29 = pneg %p23
    %p30 = scmp.eq.s32.totalorder %s14, 1
    %p31 = por %p29, %p30
    %p32 = scmp.ne.s32.totalorder %s24, %s27
    %p33 = scmp.eq.s32.totalorder %s14, 0
    %p34 = por %p32, %p33
    %p35 = scmp.ne.s32.totalorder %s24, %s27
    %p36 = scmp.eq.s32.totalorder %s19, 1
    %p37 = por %p35, %p36
    %p38 = scmp.ne.s32.totalorder %s27, %s28
    %p39 = scmp.eq.s32.totalorder %s19, 0
    %p40 = por %p38, %p39
    %p41 = scmp.ne.s32.totalorder %s27, %s28
    %p42 = scmp.eq.s32.totalorder %s20, 1
    %p43 = por %p41, %p42
    %p45 = scmp.ne.s32.totalorder %s28, %s44
    %p46 = scmp.eq.s32.totalorder %s20, 0
    %p47 = por %p45, %p46
    %s48 = ssub.s32 %s14, %s21
    %p49 = scmp.eq.s32.totalorder %s48, 0
    %s51 = sadd.s32 %s50, 1
    %s52 = scalar_select %p49, %s50, %s51
    %p55 = pneg %p49
    %p56 = scmp.eq.s32.totalorder %s14, 1
    %p57 = por %p55, %p56
    %p58 = scmp.ne.s32.totalorder %s50, %s53
    %p59 = scmp.eq.s32.totalorder %s14, 0
    %p60 = por %p58, %p59
    %p61 = scmp.ne.s32.totalorder %s50, %s53
    %p62 = scmp.eq.s32.totalorder %s19, 1
    %p63 = por %p61, %p62
    %p64 = scmp.ne.s32.totalorder %s53, %s54
    %p65 = scmp.eq.s32.totalorder %s19, 0
    %p66 = por %p64, %p65
    %p67 = scmp.ne.s32.totalorder %s53, %s54
    %p68 = scmp.eq.s32.totalorder %s20, 1
    %p69 = por %p67, %p68
    %p71 = scmp.ne.s32.totalorder %s54, %s70
    %p72 = scmp.eq.s32.totalorder %s20, 0
    %p73 = por %p71, %p72
    %s75 = sadd.s32 %s74, 1
    %p78 = scmp.eq.s32.totalorder %s14, 1
    %p79 = scmp.ne.s32.totalorder %s74, %s76
    %p80 = scmp.eq.s32.totalorder %s14, 0
    %p81 = por %p79, %p80
    %p82 = scmp.ne.s32.totalorder %s74, %s76
    %p83 = scmp.eq.s32.totalorder %s19, 1
    %p84 = por %p82, %p83
    %p85 = scmp.ne.s32.totalorder %s76, %s77
    %p86 = scmp.eq.s32.totalorder %s19, 0
    %p87 = por %p85, %p86
    %p88 = scmp.ne.s32.totalorder %s76, %s77
    %p89 = scmp.eq.s32.totalorder %s20, 1
    %p90 = por %p88, %p89
    %p92 = scmp.ne.s32.totalorder %s77, %s91
    %p93 = scmp.eq.s32.totalorder %s20, 0
    %p94 = por %p92, %p93
    %s96 = sadd.s32 %s95, 1
    %p99 = scmp.eq.s32.totalorder %s14, 1
    %p100 = scmp.ne.s32.totalorder %s95, %s97
    %p101 = scmp.eq.s32.totalorder %s14, 0
    %p102 = por %p100, %p101
    %p103 = scmp.ne.s32.totalorder %s95, %s97
    %p104 = scmp.eq.s32.totalorder %s19, 1
    %p105 = por %p103, %p104
    %p106 = scmp.ne.s32.totalorder %s97, %s98
    %p107 = scmp.eq.s32.totalorder %s19, 0
    %p108 = por %p106, %p107
    %p109 = scmp.ne.s32.totalorder %s97, %s98
    %p110 = scmp.eq.s32.totalorder %s20, 1
    %p111 = por %p109, %p110
    %p113 = scmp.ne.s32.totalorder %s98, %s112
    %p114 = scmp.eq.s32.totalorder %s20, 0
    %p115 = por %p113, %p114
    %s117 = sadd.s32 %s116, 1
    %p120 = scmp.eq.s32.totalorder %s14, 1
    %p121 = scmp.ne.s32.totalorder %s116, %s118
    %p122 = scmp.eq.s32.totalorder %s14, 0
    %p123 = por %p121, %p122
    %p124 = scmp.ne.s32.totalorder %s116, %s118
    %p125 = scmp.eq.s32.totalorder %s19, 1
    %p126 = por %p124, %p125
    %p127 = scmp.ne.s32.totalorder %s118, %s119
    %p128 = scmp.eq.s32.totalorder %s19, 0
    %p129 = por %p127, %p128
    %p130 = scmp.ne.s32.totalorder %s118, %s119
    %p131 = scmp.eq.s32.totalorder %s20, 1
    %p132 = por %p130, %p131
    %p134 = scmp.ne.s32.totalorder %s119, %s133
    %p135 = scmp.eq.s32.totalorder %s20, 0
    %p136 = por %p134, %p135
    %s138 = sadd.s32 %s137, 1
    %p141 = scmp.eq.s32.totalorder %s14, 1
    %p142 = scmp.ne.s32.totalorder %s137, %s139
    %p143 = scmp.eq.s32.totalorder %s14, 0
    %p144 = por %p142, %p143
    %p145 = scmp.ne.s32.totalorder %s137, %s139
    %p146 = scmp.eq.s32.totalorder %s19, 1
    %p147 = por %p145, %p146
    %p148 = scmp.ne.s32.totalorder %s139, %s140
    %p149 = scmp.eq.s32.totalorder %s19, 0
    %p150 = por %p148, %p149
    %p151 = scmp.ne.s32.totalorder %s139, %s140
    %p152 = scmp.eq.s32.totalorder %s20, 1
    %p153 = por %p151, %p152
    %p155 = scmp.ne.s32.totalorder %s140, %s154
    %p156 = scmp.eq.s32.totalorder %s20, 0
    %p157 = por %p155, %p156
    %s159 = sadd.s32 %s158, 1
    %p162 = scmp.eq.s32.totalorder %s14, 1
    %p163 = scmp.ne.s32.totalorder %s158, %s160
    %p164 = scmp.eq.s32.totalorder %s14, 0
    %p165 = por %p163, %p164
    %p166 = scmp.ne.s32.totalorder %s158, %s160
    %p167 = scmp.eq.s32.totalorder %s19, 1
    %p168 = por %p166, %p167
    %p169 = scmp.ne.s32.totalorder %s160, %s161
    %p170 = scmp.eq.s32.totalorder %s19, 0
    %p171 = por %p169, %p170
    %p172 = scmp.ne.s32.totalorder %s160, %s161
    %p173 = scmp.eq.s32.totalorder %s20, 1
    %p174 = por %p172, %p173
    %p176 = scmp.ne.s32.totalorder %s161, %s175
    %p177 = scmp.eq.s32.totalorder %s20, 0
    %p178 = por %p176, %p177
    %s180 = sadd.s32 %s179, 1
    %p183 = scmp.eq.s32.totalorder %s14, 1
    %p184 = scmp.ne.s32.totalorder %s179, %s181
    %p185 = scmp.eq.s32.totalorder %s14, 0
    %p186 = por %p184, %p185
    %p187 = scmp.ne.s32.totalorder %s179, %s181
    %p188 = scmp.eq.s32.totalorder %s19, 1
    %p189 = por %p187, %p188
    %p190 = scmp.ne.s32.totalorder %s181, %s182
    %p191 = scmp.eq.s32.totalorder %s19, 0
    %p192 = por %p190, %p191
    %p193 = scmp.ne.s32.totalorder %s181, %s182
    %p194 = scmp.eq.s32.totalorder %s20, 1
    %p195 = por %p193, %p194
    %p197 = scmp.ne.s32.totalorder %s182, %s196
    %p198 = scmp.eq.s32.totalorder %s20, 0
    %p199 = por %p197, %p198
    %s200 = ssub.s32 %s14, %s21
    %p201 = scmp.eq.s32.totalorder %s200, 0
    %s203 = sadd.s32 %s202, 1
    %s204 = scalar_select %p201, %s202, %s203
    %p207 = pneg %p201
    %p208 = scmp.eq.s32.totalorder %s14, 1
    %p209 = por %p207, %p208
    %p210 = scmp.ne.s32.totalorder %s202, %s205
    %p211 = scmp.eq.s32.totalorder %s14, 0
    %p212 = por %p210, %p211
    %p213 = scmp.ne.s32.totalorder %s202, %s205
    %p214 = scmp.eq.s32.totalorder %s19, 1
    %p215 = por %p213, %p214
    %p216 = scmp.ne.s32.totalorder %s205, %s206
    %p217 = scmp.eq.s32.totalorder %s19, 0
    %p218 = por %p216, %p217
    %p219 = scmp.ne.s32.totalorder %s205, %s206
    %p220 = scmp.eq.s32.totalorder %s20, 1
    %p221 = por %p219, %p220
    %p223 = scmp.ne.s32.totalorder %s206, %s222
    %p224 = scmp.eq.s32.totalorder %s20, 0
    %p225 = por %p223, %p224
    %p226 = scmp.le.s32.totalorder 1, %s14
    %p227 = scmp.lt.s32.totalorder %s14, 3
    %p228 = pnand %p226, %p227
    %p229 = pneg %p228
    // Predicated region
    $region9: #{efficientnet_forward.14} parent=5 // pred_check
      _
    $region10: #{efficientnet_forward.14} parent=5 // pred_check_branch
      %231 = sbr.rel (%p228) target = $region12
    $region11: #{efficientnet_forward.14} parent=5 // pred_region
      %s232 = ssub.s32 %s14, 1
      // Predicated region
      $region13: #{efficientnet_forward.14} parent=11 // pred_check
        %p233 = pneg %p87
      $region14: #{efficientnet_forward.14} parent=11 // pred_check_branch
        %235 = sbr.rel (%p233) target = $region16
      $region15: #{efficientnet_forward.14} parent=11 // pred_region
        _
      $region16: #{efficientnet_forward.14} parent=11 // pred_fallthru
        _
      // Predicated region
      $region17: #{efficientnet_forward.14} parent=11 // pred_check
        %p236 = pneg %p108
      $region18: #{efficientnet_forward.14} parent=11 // pred_check_branch
        %238 = sbr.rel (%p236) target = $region20
      $region19: #{efficientnet_forward.14} parent=11 // pred_region
        _
      $region20: #{efficientnet_forward.14} parent=11 // pred_fallthru
        _
      // Predicated region
      $region21: #{efficientnet_forward.14} parent=11 // pred_check
        %p239 = pneg %p129
      $region22: #{efficientnet_forward.14} parent=11 // pred_check_branch
        %241 = sbr.rel (%p239) target = $region24
      $region23: #{efficientnet_forward.14} parent=11 // pred_region
        _
      $region24: #{efficientnet_forward.14} parent=11 // pred_fallthru
        _
      // Predicated region
      $region25: #{efficientnet_forward.14} parent=11 // pred_check
        %p242 = pneg %p150
      $region26: #{efficientnet_forward.14} parent=11 // pred_check_branch
        %244 = sbr.rel (%p242) target = $region28
      $region27: #{efficientnet_forward.14} parent=11 // pred_region
        _
      $region28: #{efficientnet_forward.14} parent=11 // pred_fallthru
        _
      // Predicated region
      $region29: #{efficientnet_forward.14} parent=11 // pred_check
        %p245 = pneg %p171
      $region30: #{efficientnet_forward.14} parent=11 // pred_check_branch
        %247 = sbr.rel (%p245) target = $region32
      $region31: #{efficientnet_forward.14} parent=11 // pred_region
        _
      $region32: #{efficientnet_forward.14} parent=11 // pred_fallthru
        _
      // Predicated region
      $region33: #{efficientnet_forward.14} parent=11 // pred_check
        %p248 = pneg %p192
      $region34: #{efficientnet_forward.14} parent=11 // pred_check_branch
        %250 = sbr.rel (%p248) target = $region36
      $region35: #{efficientnet_forward.14} parent=11 // pred_region
        _
      $region36: #{efficientnet_forward.14} parent=11 // pred_fallthru
        _
    $region12: #{efficientnet_forward.14} parent=5 // pred_fallthru
      _
    %p251 = scmp.lt.s32.totalorder %s14, 2
    // Predicated region
    $region37: #{efficientnet_forward.14} parent=5 // pred_check
      %p252 = pneg %p251
    $region38: #{efficientnet_forward.14} parent=5 // pred_check_branch
      %254 = sbr.rel (%p252) target = $region40
    $region39: #{efficientnet_forward.14} parent=5 // pred_region
      // Predicated region
      $region41: #{efficientnet_forward.14} parent=39 // pred_check
        %p255 = pneg %p34
      $region42: #{efficientnet_forward.14} parent=39 // pred_check_branch
        %257 = sbr.rel (%p255) target = $region44
      $region43: #{efficientnet_forward.14} parent=39 // pred_region
        %p258 = scmp.lt.s32.totalorder %s14, 1
        %s259 = scalar_select %p258, %s14, 1
        %s260 = smul.addr %s259, 8
        %s261 = smul.addr %s260, 4
        %s262 = scalar_lea.vmem %s0, %s261
      $region44: #{efficientnet_forward.14} parent=39 // pred_fallthru
        _
      // Predicated region
      $region45: #{efficientnet_forward.14} parent=39 // pred_check
        %p263 = pneg %p60
      $region46: #{efficientnet_forward.14} parent=39 // pred_check_branch
        %265 = sbr.rel (%p263) target = $region48
      $region47: #{efficientnet_forward.14} parent=39 // pred_region
        %p266 = scmp.lt.s32.totalorder %s14, 1
        %s267 = scalar_select %p266, %s14, 1
        %s268 = scalar_lea.vmem %s1, %s267
      $region48: #{efficientnet_forward.14} parent=39 // pred_fallthru
        _
    $region40: #{efficientnet_forward.14} parent=5 // pred_fallthru
      _
    %p269 = scmp.le.s32.totalorder 1, %s14
    %p270 = scmp.lt.s32.totalorder %s14, 3
    %p271 = pnand %p269, %p270
    %p272 = pneg %p271
    // Predicated region
    $region49: #{efficientnet_forward.14} parent=5 // pred_check
      _
    $region50: #{efficientnet_forward.14} parent=5 // pred_check_branch
      %274 = sbr.rel (%p271) target = $region52
    $region51: #{efficientnet_forward.14} parent=5 // pred_region
      %s275 = ssub.s32 %s14, 1
      %p276 = scmp.lt.s32.totalorder %s19, 1
      %s277 = scalar_select %p276, %s19, 1
      %s278 = smul.addr %s277, 8
      %s279 = smul.addr %s278, 4
      %s280 = scalar_lea.vmem %s0, %s279
      %p281 = pneg %p40
      %p282 = pneg %p37
      %p283 = scmp.lt.s32.totalorder %s19, 1
      %s284 = scalar_select %p283, %s19, 1
      %s285 = scalar_lea.vmem %s1, %s284
      %p286 = pneg %p66
      %p287 = pneg %p63
      %p288 = pneg %p87
      %p289 = pneg %p84
      %p290 = pneg %p108
      %p291 = pneg %p105
      %p292 = pneg %p129
      %p293 = pneg %p126
      %p294 = pneg %p150
      %p295 = pneg %p147
      %p296 = pneg %p171
      %p297 = pneg %p168
      %p298 = pneg %p192
      %p299 = pneg %p189
      %p300 = pneg %p218
      %p301 = pneg %p215
      %p302 = scmp.lt.s32.totalorder %s19, 1
      %s303 = scalar_select %p302, %s19, 1
      %s304 = smul.addr %s303, 8
      %s305 = smul.addr %s304, 4
      %s306 = scalar_lea.vmem %s8, %s305
      %p307 = scmp.lt.s32.totalorder %s19, 1
      %s308 = scalar_select %p307, %s19, 1
      %s309 = smul.addr %s308, 8
      %s310 = smul.addr %s309, 4
      %s311 = scalar_lea.vmem %s0, %s310
      %p312 = scmp.lt.s32.totalorder %s19, 1
      %s313 = scalar_select %p312, %s19, 1
      %s314 = scalar_lea.vmem %s1, %s313
      %p315 = scmp.lt.s32.totalorder %s19, 1
      %s316 = scalar_select %p315, %s19, 1
      %s317 = smul.addr %s316, 8
      %s318 = smul.addr %s317, 4
      %s319 = scalar_lea.vmem %s8, %s318
      %v321 = vld [vmem:[%s314] sm:$0x1]
      %v322 = vld [vmem:[%s2] sm:$0xff]
      %v323 = vld [vmem:[%s2 + $0x8] sm:$0xff]
      %v324 = vld [vmem:[%s2 + $0x10] sm:$0xff]
      %v325 = vld [vmem:[%s2 + $0x18] sm:$0xff]
      %v326 = vld [vmem:[%s3] sm:$0x1]
      %vm327 = vcmask 261120
      %v329 = vsel %vm327, %v321, 0
      %331 = vmatprep.subr.mxu0 0.0
      %332 = vmatpush1.msra.mxu0 0.0
      %333 = vmatprep.subr.mxu0 0.0
      %334 = vmatpush1.msra.mxu0 0.0
      %335 = vmatprep.subr.mxu0 0.0
      %336 = vmatpush1.msra.mxu0 0.0
      %337 = vmatprep.subr.mxu0 0.0
      %338 = vmatpush1.msra.mxu0 0.0
      %339 = vmatprep.subr.mxu0 0.0
      %340 = vmatpush1.msra.mxu0 0.0
      %341 = vmatprep.subr.mxu0 0.0
      %342 = vmatpush1.msra.mxu0 0.0
      %343 = vmatprep.subr.mxu0 0.0
      %344 = vmatpush1.msra.mxu0 0.0
      %345 = vmatprep.subr.mxu0 0.0
      %346 = vmatpush1.msra.mxu0 0.0
      %347 = vmatprep.subr.mxu0 0.0
      %348 = vmatpush1.msra.mxu0 0.0
      %349 = vmatprep.subr.mxu0 0.0
      %350 = vmatpush1.msra.mxu0 0.0
      %351 = vmatprep.subr.mxu0 0.0
      %352 = vmatpush1.msra.mxu0 0.0
      %353 = vmatprep.subr.mxu0 0.0
      %354 = vmatpush1.msra.mxu0 0.0
      %355 = vmatprep.subr.mxu0 0.0
      %356 = vmatpush1.msra.mxu0 %v325
      %357 = vmatprep.subr.mxu0 0.0
      %358 = vmatpush1.msra.mxu0 %v324
      %359 = vmatprep.subr.mxu0 0.0
      %360 = vmatpush1.msra.mxu0 %v323
      %361 = vmatprep.subr.mxu0 0.0
      %362 = vmatpush1.msra.mxu0 %v322
      %363 = vmatprep.subr.mxu0 0.0
      %364 = vmatpush2.msra.mxu0 0.0
      %365 = vmatprep.subr.mxu0 0.0
      %366 = vmatpush2.msra.mxu0 0.0
      %367 = vmatprep.subr.mxu0 0.0
      %368 = vmatpush2.msra.mxu0 0.0
      %369 = vmatprep.subr.mxu0 0.0
      %370 = vmatpush2.msra.mxu0 0.0
      %371 = vmatprep.subr.mxu0 0.0
      %372 = vmatpush2.msra.mxu0 0.0
      %373 = vmatprep.subr.mxu0 0.0
      %374 = vmatpush2.msra.mxu0 0.0
      %375 = vmatprep.subr.mxu0 0.0
      %376 = vmatpush2.msra.mxu0 0.0
      %377 = vmatprep.subr.mxu0 0.0
      %378 = vmatpush2.msra.mxu0 0.0
      %379 = vmatprep.subr.mxu0 0.0
      %380 = vmatpush2.msra.mxu0 0.0
      %381 = vmatprep.subr.mxu0 0.0
      %382 = vmatpush2.msra.mxu0 0.0
      %383 = vmatprep.subr.mxu0 0.0
      %384 = vmatpush2.msra.mxu0 0.0
      %385 = vmatprep.subr.mxu0 0.0
      %386 = vmatpush2.msra.mxu0 0.0
      %387 = vmatprep.subr.mxu0 0.0
      %388 = vmatpush2.msra.mxu0 0.0
      %389 = vmatprep.subr.mxu0 0.0
      %390 = vmatpush2.msra.mxu0 0.0
      %391 = vmatprep.subr.mxu0 0.0
      %392 = vmatpush2.msra.mxu0 0.0
      %393 = vmatprep.subr.mxu0 0.0
      %394 = vmatpush2.msra.mxu0 0.0
      %395 = vmatprep.mubr.f32.mxu0 0.0
      %396 = vmatmul.mubr.f32.gmra.mxu0 %v329
      %v397 = vpop.f32.mrf.mxu0
      %v398 = vadd.f32 %v326, %v397
      %v399 = vpop.f32.mrf.mxu0
      %400 = vdwg.mxu0
      %v401 = vxor.u32 %v398, 2147483648
      %v402 = vmul.f32 %v401, 1.442695
      %v403 = vpow.pop %v402
      %v404 = vadd.f32 %v403, 1.0
      %v405 = vrcp.pop %v404
      %v406 = vmul.f32 1.0, %v405
      %v407 = vmul.f32 %v398, %v406
      %v408 = vld [vmem:[%s4] sm:$0xff]
      %v409 = vld [vmem:[%s5] sm:$0x1]
      %vm410 = vcmask 64512
      %v412 = vsel %vm410, %v407, 0
      %414 = vmatprep.subr.mxu0 0.0
      %415 = vmatpush1.msra.mxu0 0.0
      %416 = vmatprep.subr.mxu0 0.0
      %417 = vmatpush1.msra.mxu0 0.0
      %418 = vmatprep.subr.mxu0 0.0
      %419 = vmatpush1.msra.mxu0 0.0
      %420 = vmatprep.subr.mxu0 0.0
      %421 = vmatpush1.msra.mxu0 0.0
      %422 = vmatprep.subr.mxu0 0.0
      %423 = vmatpush1.msra.mxu0 0.0
      %424 = vmatprep.subr.mxu0 0.0
      %425 = vmatpush1.msra.mxu0 0.0
      %426 = vmatprep.subr.mxu0 0.0
      %427 = vmatpush1.msra.mxu0 0.0
      %428 = vmatprep.subr.mxu0 0.0
      %429 = vmatpush1.msra.mxu0 0.0
      %430 = vmatprep.subr.mxu0 0.0
      %431 = vmatpush1.msra.mxu0 0.0
      %432 = vmatprep.subr.mxu0 0.0
      %433 = vmatpush1.msra.mxu0 0.0
      %434 = vmatprep.subr.mxu0 0.0
      %435 = vmatpush1.msra.mxu0 0.0
      %436 = vmatprep.subr.mxu0 0.0
      %437 = vmatpush1.msra.mxu0 0.0
      %438 = vmatprep.subr.mxu0 0.0
      %439 = vmatpush1.msra.mxu0 0.0
      %440 = vmatprep.subr.mxu0 0.0
      %441 = vmatpush1.msra.mxu0 0.0
      %442 = vmatprep.subr.mxu0 0.0
      %443 = vmatpush1.msra.mxu0 0.0
      %444 = vmatprep.subr.mxu0 0.0
      %445 = vmatpush1.msra.mxu0 %v408
      %446 = vmatprep.subr.mxu0 0.0
      %447 = vmatpush2.msra.mxu0 0.0
      %448 = vmatprep.subr.mxu0 0.0
      %449 = vmatpush2.msra.mxu0 0.0
      %450 = vmatprep.subr.mxu0 0.0
      %451 = vmatpush2.msra.mxu0 0.0
      %452 = vmatprep.subr.mxu0 0.0
      %453 = vmatpush2.msra.mxu0 0.0
      %454 = vmatprep.subr.mxu0 0.0
      %455 = vmatpush2.msra.mxu0 0.0
      %456 = vmatprep.subr.mxu0 0.0
      %457 = vmatpush2.msra.mxu0 0.0
      %458 = vmatprep.subr.mxu0 0.0
      %459 = vmatpush2.msra.mxu0 0.0
      %460 = vmatprep.subr.mxu0 0.0
      %461 = vmatpush2.msra.mxu0 0.0
      %462 = vmatprep.subr.mxu0 0.0
      %463 = vmatpush2.msra.mxu0 0.0
      %464 = vmatprep.subr.mxu0 0.0
      %465 = vmatpush2.msra.mxu0 0.0
      %466 = vmatprep.subr.mxu0 0.0
      %467 = vmatpush2.msra.mxu0 0.0
      %468 = vmatprep.subr.mxu0 0.0
      %469 = vmatpush2.msra.mxu0 0.0
      %470 = vmatprep.subr.mxu0 0.0
      %471 = vmatpush2.msra.mxu0 0.0
      %472 = vmatprep.subr.mxu0 0.0
      %473 = vmatpush2.msra.mxu0 0.0
      %474 = vmatprep.subr.mxu0 0.0
      %475 = vmatpush2.msra.mxu0 0.0
      %476 = vmatprep.subr.mxu0 0.0
      %477 = vmatpush2.msra.mxu0 0.0
      %478 = vmatprep.mubr.f32.mxu0 0.0
      %479 = vmatmul.mubr.f32.gmra.mxu0 %v412
      %v480 = vpop.f32.mrf.mxu0
      %v481 = vadd.f32 %v409, %v480
      %v482 = vpop.f32.mrf.mxu0
      %483 = vdwg.mxu0
      %v484 = vxor.u32 %v481, 2147483648
      %v485 = vmul.f32 %v484, 1.442695
      %v486 = vpow.pop %v485
      %v487 = vadd.f32 %v486, 1.0
      %v488 = vrcp.pop %v487
      %v489 = vmul.f32 1.0, %v488
      %v490 = vld [vmem:[%s311] sm:$0xf]
      %v491 = vld [vmem:[%s311 + $0x4] sm:$0xf]
      %v492 = vld [vmem:[%s311 + $0x8] sm:$0xf]
      %v493 = vld [vmem:[%s311 + $0xc] sm:$0xf]
      %v494 = vld [vmem:[%s311 + $0x10] sm:$0xf]
      %v495 = vld [vmem:[%s311 + $0x14] sm:$0xf]
      %v496 = vld [vmem:[%s311 + $0x18] sm:$0xf]
      %v497 = vld [vmem:[%s311 + $0x1c] sm:$0xf]
      %v498 = vunpack.c.l.bf16 %v490
      %v499 = vunpack.c.l.bf16 %v491
      %v500 = vunpack.c.l.bf16 %v492
      %v501 = vunpack.c.l.bf16 %v493
      %v502 = vunpack.c.l.bf16 %v494
      %v503 = vunpack.c.l.bf16 %v495
      %v504 = vunpack.c.l.bf16 %v496
      %v505 = vunpack.c.l.bf16 %v497
      %v506 = vlaneseq
      %v507 = vshrl.u32 %v506, 7
      %v508 = vsub.s32 0, %v507
      %v509 = vrot.slane %v489, %v508
      %v510 = vmul.f32 %v498, %v509
      %v511 = vmul.f32 %v499, %v509
      %v512 = vmul.f32 %v500, %v509
      %v513 = vmul.f32 %v501, %v509
      %v514 = vmul.f32 %v502, %v509
      %v515 = vmul.f32 %v503, %v509
      %v516 = vmul.f32 %v504, %v509
      %v517 = vmul.f32 %v505, %v509
      %v518 = vpack.c.bf16 %v511, %v510
      %v519 = vpack.c.bf16 %v513, %v512
      %v520 = vpack.c.bf16 %v515, %v514
      %v521 = vpack.c.bf16 %v517, %v516
      %v522 = vld [vmem:[%s6] sm:$0xf]
      %v523 = vld [vmem:[%s6 + $0x4] sm:$0xf]
      %v524 = vld [vmem:[%s6 + $0x8] sm:$0xf]
      %v525 = vld [vmem:[%s6 + $0xc] sm:$0xf]
      %v526 = vld [vmem:[%s7] sm:$0x1]
      %v528 = vlaneseq
      %v529 = vshrl.u32 %v528, 7
      %v530 = vsub.s32 0, %v529
      %v531 = vrot.slane %v526, %v530
      %v537 = vunpack.c.l.b16 %v522
      %v538 = vunpack.c.l.b16 %v523
      %v539 = vunpack.c.l.b16 %v524
      %v540 = vunpack.c.l.b16 %v525
      %v541 = vpack.c.b16 %v538, %v537
      %v542 = vpack.c.b16 %v540, %v539
      %v546 = vsel %vm327, %v518, 0
      %v549 = vsel %vm327, %v519, 0
      %v552 = vsel %vm327, %v520, 0
      %v555 = vsel %vm327, %v521, 0
      %557 = vmatprep.subr.bf16.mxu0 0
      %558 = vmatpush1.bf16.msra.mxu0 0
      %559 = vmatprep.subr.bf16.mxu0 0
      %560 = vmatpush1.bf16.msra.mxu0 0
      %561 = vmatprep.subr.bf16.mxu0 0
      %562 = vmatpush1.bf16.msra.mxu0 0
      %563 = vmatprep.subr.bf16.mxu0 0
      %564 = vmatpush1.bf16.msra.mxu0 0
      %565 = vmatprep.subr.bf16.mxu0 0
      %566 = vmatpush1.bf16.msra.mxu0 0
      %567 = vmatprep.subr.bf16.mxu0 0
      %568 = vmatpush1.bf16.msra.mxu0 0
      %569 = vmatprep.subr.bf16.mxu0 0
      %570 = vmatpush1.bf16.msra.mxu0 %v542
      %571 = vmatprep.subr.bf16.mxu0 0
      %572 = vmatpush1.bf16.msra.mxu0 %v541
      %573 = vmatprep.subr.bf16.mxu0 0
      %574 = vmatpush2.bf16.msra.mxu0 0
      %575 = vmatprep.subr.bf16.mxu0 0
      %576 = vmatpush2.bf16.msra.mxu0 0
      %577 = vmatprep.subr.bf16.mxu0 0
      %578 = vmatpush2.bf16.msra.mxu0 0
      %579 = vmatprep.subr.bf16.mxu0 0
      %580 = vmatpush2.bf16.msra.mxu0 0
      %581 = vmatprep.subr.bf16.mxu0 0
      %582 = vmatpush2.bf16.msra.mxu0 0
      %583 = vmatprep.subr.bf16.mxu0 0
      %584 = vmatpush2.bf16.msra.mxu0 0
      %585 = vmatprep.subr.bf16.mxu0 0
      %586 = vmatpush2.bf16.msra.mxu0 0
      %587 = vmatprep.subr.bf16.mxu0 0
      %588 = vmatpush2.bf16.msra.mxu0 0
      %589 = vmatprep.mubr.bf16.mxu0 0
      %590 = vmatmul.mubr.bf16.gmra.mxu0 %v546
      %v591 = vpop.f32.mrf.mxu0
      %v592 = vadd.f32 %v531, %v591
      %v593 = vpop.f32.mrf.mxu0
      %v594 = vpop.f32.mrf.mxu0
      %v595 = vadd.f32 %v531, %v594
      %v596 = vpop.f32.mrf.mxu0
      %597 = vmatprep.mubr.bf16.mxu0 0
      %598 = vmatmul.mubr.bf16.gmra.mxu0 %v549
      %v599 = vpop.f32.mrf.mxu0
      %v600 = vadd.f32 %v531, %v599
      %v601 = vpop.f32.mrf.mxu0
      %v602 = vpop.f32.mrf.mxu0
      %v603 = vadd.f32 %v531, %v602
      %v604 = vpop.f32.mrf.mxu0
      %605 = vmatprep.mubr.bf16.mxu0 0
      %606 = vmatmul.mubr.bf16.gmra.mxu0 %v552
      %v607 = vpop.f32.mrf.mxu0
      %v608 = vadd.f32 %v531, %v607
      %v609 = vpop.f32.mrf.mxu0
      %v610 = vpop.f32.mrf.mxu0
      %v611 = vadd.f32 %v531, %v610
      %v612 = vpop.f32.mrf.mxu0
      %613 = vmatprep.mubr.bf16.mxu0 0
      %614 = vmatmul.mubr.bf16.gmra.mxu0 %v555
      %v615 = vpop.f32.mrf.mxu0
      %v616 = vadd.f32 %v531, %v615
      %v617 = vpop.f32.mrf.mxu0
      %v618 = vpop.f32.mrf.mxu0
      %v619 = vadd.f32 %v531, %v618
      %v620 = vpop.f32.mrf.mxu0
      %621 = vdwg.mxu0
      %v622 = vpack.c.bf16 %v595, %v592
      %v623 = vpack.c.bf16 %v603, %v600
      %v624 = vpack.c.bf16 %v611, %v608
      %v625 = vpack.c.bf16 %v619, %v616
      %v630 = vunpack.c.l.b16 %v622
      %v631 = vunpack.c.h.b16 %v622
      %v632 = vunpack.c.l.b16 %v623
      %v633 = vunpack.c.h.b16 %v623
      %v634 = vunpack.c.l.b16 %v624
      %v635 = vunpack.c.h.b16 %v624
      %v636 = vunpack.c.l.b16 %v625
      %v637 = vunpack.c.h.b16 %v625
      %v638 = vpack.c.b16 %v630, %v630
      %v639 = vpack.c.b16 %v631, %v631
      %v640 = vpack.c.b16 %v632, %v632
      %v641 = vpack.c.b16 %v633, %v633
      %v642 = vpack.c.b16 %v634, %v634
      %v643 = vpack.c.b16 %v635, %v635
      %v644 = vpack.c.b16 %v636, %v636
      %v645 = vpack.c.b16 %v637, %v637
      %vm654 = vcmask 125952
      %655 = vst.msk [vmem:[%s319] sm:$0xf] %vm654, %v638
      %656 = vst.msk [vmem:[%s319 + $0x4] sm:$0xf] %vm654, %v639
      %657 = vst.msk [vmem:[%s319 + $0x8] sm:$0xf] %vm654, %v640
      %658 = vst.msk [vmem:[%s319 + $0xc] sm:$0xf] %vm654, %v641
      %659 = vst.msk [vmem:[%s319 + $0x10] sm:$0xf] %vm654, %v642
      %660 = vst.msk [vmem:[%s319 + $0x14] sm:$0xf] %vm654, %v643
      %661 = vst.msk [vmem:[%s319 + $0x18] sm:$0xf] %vm654, %v644
      %662 = vst.msk [vmem:[%s319 + $0x1c] sm:$0xf] %vm654, %v645
      %p663 = scmp.lt.s32.totalorder %s19, 1
      %s664 = scalar_select %p663, %s19, 1
      %s665 = smul.addr %s664, 8
      %s666 = smul.addr %s665, 4
      %s667 = scalar_lea.vmem %s8, %s666
      // Predicated region
      $region53: #{efficientnet_forward.14} parent=51 // pred_check
        %p668 = pneg %p215
      $region54: #{efficientnet_forward.14} parent=51 // pred_check_branch
        %670 = sbr.rel (%p668) target = $region56
      $region55: #{efficientnet_forward.14} parent=51 // pred_region
        _
      $region56: #{efficientnet_forward.14} parent=51 // pred_fallthru
        _
    $region52: #{efficientnet_forward.14} parent=5 // pred_fallthru
      _
    %p671 = scmp.le.s32.totalorder 2, %s14
    // Predicated region
    $region57: #{efficientnet_forward.14} parent=5 // pred_check
      %p672 = pneg %p671
    $region58: #{efficientnet_forward.14} parent=5 // pred_check_branch
      %674 = sbr.rel (%p672) target = $region60
    $region59: #{efficientnet_forward.14} parent=5 // pred_region
      %s675 = ssub.s32 %s14, 2
      // Predicated region
      $region61: #{efficientnet_forward.14} parent=59 // pred_check
        %p676 = pneg %p221
      $region62: #{efficientnet_forward.14} parent=59 // pred_check_branch
        %678 = sbr.rel (%p676) target = $region64
      $region63: #{efficientnet_forward.14} parent=59 // pred_region
        %p679 = scmp.lt.s32.totalorder %s20, 1
        %s680 = scalar_select %p679, %s20, 1
        %s681 = smul.addr %s680, 8
        %s682 = smul.addr %s681, 4
        %s683 = scalar_lea.vmem %s8, %s682
      $region64: #{efficientnet_forward.14} parent=59 // pred_fallthru
        _
    $region60: #{efficientnet_forward.14} parent=5 // pred_fallthru
      _
  $region6: #{efficientnet_forward.14} parent=0 // loop_footer
    %s18 = sadd.s32 1, %s14
  $region7: #{efficientnet_forward.14} parent=0 // loop_footer_branch
    %13 = sbr.rel target = $region3
  $region8: #{efficientnet_forward.14} parent=0 // loop_exit
    _

// kernel: efficientnet_forward.13
$region0: #{efficientnet_forward.13}
  #allocation0 [shape = 'u32[]', space=smem, size = 0x4, offset = 0x4, fixed_abs, tag = 'smem constant byte address 0x4 - core index']
  #allocation1 [shape = 'u32[144,128]{1,0:T(1,128)}', space=vmem, size = 0x12000, scoped, tag = 'internal scratch']
  %s0 = inlined_call_operand.vmem [shape: bf16[2,10,10,32], index: 0, kind: input, shape index: {}]
  %s1 = inlined_call_operand.vmem [shape: f32[9,1,32], index: 1, kind: input, shape index: {}]
  %s2 = inlined_call_operand.vmem [shape: f32[1,32], index: 2, kind: input, shape index: {}]
  %s3 = inlined_call_operand.vmem [shape: bf16[2,8,8,32], index: 3, kind: output, shape index: {0}]
  %s4 = inlined_call_operand.vmem [shape: f32[2,1,32], index: 4, kind: output, shape index: {1}]
  %5 = xla_tuple %s3, %s4
  %s6 = sld [smem:[#allocation0]]
  $region53: #{efficientnet_forward.13} parent=0
    _
  %s8 = ssub.s32 1, %s6
  %s9 = scalar_select 0, %s8, %s6
  loop: start=0, step=1, limit=4
  $region2: #{efficientnet_forward.13} parent=0 // loop_pre_header
    _
  $region3: #{efficientnet_forward.13} parent=0 // loop_header
    %s11 = sphi 0, %s15
    %p12 = scmp.ge.s32.totalorder %s11, 4
    %s21 = sphi 0, %s23
    %s24 = sphi 0, %s21
    %s25 = sphi 0, %s24
    %s41 = sphi 0, %s25
    %s45 = sphi 0, %s45
    %s47 = sphi 0, %s45
    %s48 = sphi 0, %s47
    %s62 = sphi 0, %s48
    %s66 = sphi 0, %s66
    %s68 = sphi 0, %s66
    %s69 = sphi 0, %s68
    %s83 = sphi 0, %s69
    %s89 = sphi 0, %s91
    %s92 = sphi 0, %s89
    %s93 = sphi 0, %s92
    %s109 = sphi 0, %s93
    %s115 = sphi 0, %s117
    %s118 = sphi 0, %s115
    %s119 = sphi 0, %s118
    %s135 = sphi 0, %s119
  $region4: #{efficientnet_forward.13} parent=0 // loop_header_branch
    %14 = sbr.rel (%p12) target = $region8
  $region5: #{efficientnet_forward.13} parent=0 // loop_body
    %s16 = ssub.s32 %s11, 1
    %s17 = ssub.s32 %s11, 2
    %s18 = sadd.s32 %s11, 1
    %s19 = ssub.s32 %s11, %s18
    %p20 = scmp.eq.s32.totalorder %s19, 0
    %s22 = sadd.s32 %s21, 1
    %s23 = scalar_select %p20, %s21, %s22
    %p26 = pneg %p20
    %p27 = scmp.eq.s32.totalorder %s11, 1
    %p28 = por %p26, %p27
    %p29 = scmp.ne.s32.totalorder %s21, %s24
    %p30 = scmp.eq.s32.totalorder %s11, 0
    %p31 = por %p29, %p30
    %p32 = scmp.ne.s32.totalorder %s21, %s24
    %p33 = scmp.eq.s32.totalorder %s16, 1
    %p34 = por %p32, %p33
    %p35 = scmp.ne.s32.totalorder %s24, %s25
    %p36 = scmp.eq.s32.totalorder %s16, 0
    %p37 = por %p35, %p36
    %p38 = scmp.ne.s32.totalorder %s24, %s25
    %p39 = scmp.eq.s32.totalorder %s17, 1
    %p40 = por %p38, %p39
    %p42 = scmp.ne.s32.totalorder %s25, %s41
    %p43 = scmp.eq.s32.totalorder %s17, 0
    %p44 = por %p42, %p43
    %s46 = sadd.s32 %s45, 1
    %p49 = scmp.eq.s32.totalorder %s11, 1
    %p50 = scmp.ne.s32.totalorder %s45, %s47
    %p51 = scmp.eq.s32.totalorder %s11, 0
    %p52 = por %p50, %p51
    %p53 = scmp.ne.s32.totalorder %s45, %s47
    %p54 = scmp.eq.s32.totalorder %s16, 1
    %p55 = por %p53, %p54
    %p56 = scmp.ne.s32.totalorder %s47, %s48
    %p57 = scmp.eq.s32.totalorder %s16, 0
    %p58 = por %p56, %p57
    %p59 = scmp.ne.s32.totalorder %s47, %s48
    %p60 = scmp.eq.s32.totalorder %s17, 1
    %p61 = por %p59, %p60
    %p63 = scmp.ne.s32.totalorder %s48, %s62
    %p64 = scmp.eq.s32.totalorder %s17, 0
    %p65 = por %p63, %p64
    %s67 = sadd.s32 %s66, 1
    %p70 = scmp.eq.s32.totalorder %s11, 1
    %p71 = scmp.ne.s32.totalorder %s66, %s68
    %p72 = scmp.eq.s32.totalorder %s11, 0
    %p73 = por %p71, %p72
    %p74 = scmp.ne.s32.totalorder %s66, %s68
    %p75 = scmp.eq.s32.totalorder %s16, 1
    %p76 = por %p74, %p75
    %p77 = scmp.ne.s32.totalorder %s68, %s69
    %p78 = scmp.eq.s32.totalorder %s16, 0
    %p79 = por %p77, %p78
    %p80 = scmp.ne.s32.totalorder %s68, %s69
    %p81 = scmp.eq.s32.totalorder %s17, 1
    %p82 = por %p80, %p81
    %p84 = scmp.ne.s32.totalorder %s69, %s83
    %p85 = scmp.eq.s32.totalorder %s17, 0
    %p86 = por %p84, %p85
    %s87 = ssub.s32 %s11, %s18
    %p88 = scmp.eq.s32.totalorder %s87, 0
    %s90 = sadd.s32 %s89, 1
    %s91 = scalar_select %p88, %s89, %s90
    %p94 = pneg %p88
    %p95 = scmp.eq.s32.totalorder %s11, 1
    %p96 = por %p94, %p95
    %p97 = scmp.ne.s32.totalorder %s89, %s92
    %p98 = scmp.eq.s32.totalorder %s11, 0
    %p99 = por %p97, %p98
    %p100 = scmp.ne.s32.totalorder %s89, %s92
    %p101 = scmp.eq.s32.totalorder %s16, 1
    %p102 = por %p100, %p101
    %p103 = scmp.ne.s32.totalorder %s92, %s93
    %p104 = scmp.eq.s32.totalorder %s16, 0
    %p105 = por %p103, %p104
    %p106 = scmp.ne.s32.totalorder %s92, %s93
    %p107 = scmp.eq.s32.totalorder %s17, 1
    %p108 = por %p106, %p107
    %p110 = scmp.ne.s32.totalorder %s93, %s109
    %p111 = scmp.eq.s32.totalorder %s17, 0
    %p112 = por %p110, %p111
    %s113 = ssub.s32 %s11, %s18
    %p114 = scmp.eq.s32.totalorder %s113, 0
    %s116 = sadd.s32 %s115, 1
    %s117 = scalar_select %p114, %s115, %s116
    %p120 = pneg %p114
    %p121 = scmp.eq.s32.totalorder %s11, 1
    %p122 = por %p120, %p121
    %p123 = scmp.ne.s32.totalorder %s115, %s118
    %p124 = scmp.eq.s32.totalorder %s11, 0
    %p125 = por %p123, %p124
    %p126 = scmp.ne.s32.totalorder %s115, %s118
    %p127 = scmp.eq.s32.totalorder %s16, 1
    %p128 = por %p126, %p127
    %p129 = scmp.ne.s32.totalorder %s118, %s119
    %p130 = scmp.eq.s32.totalorder %s16, 0
    %p131 = por %p129, %p130
    %p132 = scmp.ne.s32.totalorder %s118, %s119
    %p133 = scmp.eq.s32.totalorder %s17, 1
    %p134 = por %p132, %p133
    %p136 = scmp.ne.s32.totalorder %s119, %s135
    %p137 = scmp.eq.s32.totalorder %s17, 0
    %p138 = por %p136, %p137
    %p139 = scmp.le.s32.totalorder 1, %s11
    %p140 = scmp.lt.s32.totalorder %s11, 3
    %p141 = pnand %p139, %p140
    %p142 = pneg %p141
    // Predicated region
    $region9: #{efficientnet_forward.13} parent=5 // pred_check
      _
    $region10: #{efficientnet_forward.13} parent=5 // pred_check_branch
      %144 = sbr.rel (%p141) target = $region12
    $region11: #{efficientnet_forward.13} parent=5 // pred_region
      %s145 = ssub.s32 %s11, 1
      // Predicated region
      $region13: #{efficientnet_forward.13} parent=11 // pred_check
        %p146 = pneg %p58
      $region14: #{efficientnet_forward.13} parent=11 // pred_check_branch
        %148 = sbr.rel (%p146) target = $region16
      $region15: #{efficientnet_forward.13} parent=11 // pred_region
        _
      $region16: #{efficientnet_forward.13} parent=11 // pred_fallthru
        _
      // Predicated region
      $region17: #{efficientnet_forward.13} parent=11 // pred_check
        %p149 = pneg %p79
      $region18: #{efficientnet_forward.13} parent=11 // pred_check_branch
        %151 = sbr.rel (%p149) target = $region20
      $region19: #{efficientnet_forward.13} parent=11 // pred_region
        _
      $region20: #{efficientnet_forward.13} parent=11 // pred_fallthru
        _
    $region12: #{efficientnet_forward.13} parent=5 // pred_fallthru
      _
    %p152 = scmp.lt.s32.totalorder %s11, 2
    // Predicated region
    $region21: #{efficientnet_forward.13} parent=5 // pred_check
      %p153 = pneg %p152
    $region22: #{efficientnet_forward.13} parent=5 // pred_check_branch
      %155 = sbr.rel (%p153) target = $region24
    $region23: #{efficientnet_forward.13} parent=5 // pred_region
      // Predicated region
      $region25: #{efficientnet_forward.13} parent=23 // pred_check
        %p156 = pneg %p31
      $region26: #{efficientnet_forward.13} parent=23 // pred_check_branch
        %158 = sbr.rel (%p156) target = $region28
      $region27: #{efficientnet_forward.13} parent=23 // pred_region
        %p159 = scmp.lt.s32.totalorder %s11, 1
        %s160 = scalar_select %p159, %s11, 1
        %s161 = smul.addr %s160, 20
        %s162 = smul.addr %s161, 4
        %s163 = scalar_lea.vmem %s0, %s162
      $region28: #{efficientnet_forward.13} parent=23 // pred_fallthru
        _
    $region24: #{efficientnet_forward.13} parent=5 // pred_fallthru
      _
    %p164 = scmp.le.s32.totalorder 1, %s11
    %p165 = scmp.lt.s32.totalorder %s11, 3
    %p166 = pnand %p164, %p165
    %p167 = pneg %p166
    // Predicated region
    $region29: #{efficientnet_forward.13} parent=5 // pred_check
      _
    $region30: #{efficientnet_forward.13} parent=5 // pred_check_branch
      %169 = sbr.rel (%p166) target = $region32
    $region31: #{efficientnet_forward.13} parent=5 // pred_region
      %s170 = ssub.s32 %s11, 1
      %p171 = scmp.lt.s32.totalorder %s16, 1
      %s172 = scalar_select %p171, %s16, 1
      %s173 = smul.addr %s172, 20
      %s174 = smul.addr %s173, 4
      %s175 = scalar_lea.vmem %s0, %s174
      %p176 = pneg %p37
      %p177 = pneg %p34
      %p178 = pneg %p58
      %p179 = pneg %p55
      %p180 = pneg %p79
      %p181 = pneg %p76
      %p182 = pneg %p105
      %p183 = pneg %p102
      %p184 = scmp.lt.s32.totalorder %s16, 1
      %s185 = scalar_select %p184, %s16, 1
      %s186 = smul.addr %s185, 8
      %s187 = smul.addr %s186, 4
      %s188 = scalar_lea.vmem %s3, %s187
      %p189 = pneg %p131
      %p190 = pneg %p128
      %p191 = scmp.lt.s32.totalorder %s16, 1
      %s192 = scalar_select %p191, %s16, 1
      %s193 = scalar_lea.vmem %s4, %s192
      %p194 = scmp.lt.s32.totalorder %s16, 1
      %s195 = scalar_select %p194, %s16, 1
      %s196 = smul.addr %s195, 20
      %s197 = smul.addr %s196, 4
      %s198 = scalar_lea.vmem %s0, %s197
      %p199 = scmp.lt.s32.totalorder %s16, 1
      %s200 = scalar_select %p199, %s16, 1
      %s201 = smul.addr %s200, 8
      %s202 = smul.addr %s201, 4
      %s203 = scalar_lea.vmem %s3, %s202
      %p204 = scmp.lt.s32.totalorder %s16, 1
      %s205 = scalar_select %p204, %s16, 1
      %s206 = scalar_lea.vmem %s4, %s205
      %v207 = vld [vmem:[%s198] sm:$0xf]
      %v208 = vld [vmem:[%s198 + $0x8] sm:$0xf]
      %v209 = vld [vmem:[%s198 + $0x10] sm:$0xf]
      %v210 = vld [vmem:[%s198 + $0x18] sm:$0xf]
      %v211 = vld [vmem:[%s198 + $0x20] sm:$0xf]
      %v212 = vld [vmem:[%s198 + $0x28] sm:$0xf]
      %v213 = vld [vmem:[%s198 + $0x30] sm:$0xf]
      %v214 = vld [vmem:[%s198 + $0x38] sm:$0xf]
      %v215 = vunpack.c.l.bf16 %v207
      %v216 = vunpack.c.l.bf16 %v208
      %v217 = vunpack.c.l.bf16 %v209
      %v218 = vunpack.c.l.bf16 %v210
      %v219 = vunpack.c.l.bf16 %v211
      %v220 = vunpack.c.l.bf16 %v212
      %v221 = vunpack.c.l.bf16 %v213
      %v222 = vunpack.c.l.bf16 %v214
      %v223 = vld [vmem:[%s1] sm:$0x1]
      %v225 = vlaneseq
      %v226 = vshrl.u32 %v225, 7
      %v227 = vsub.s32 0, %v226
      %v228 = vrot.slane %v223, %v227
      %v230 = vmul.f32 %v215, %v228
      %v231 = vmul.f32 %v216, %v228
      %v232 = vmul.f32 %v217, %v228
      %v233 = vmul.f32 %v218, %v228
      %v234 = vmul.f32 %v219, %v228
      %v235 = vmul.f32 %v220, %v228
      %v236 = vmul.f32 %v221, %v228
      %v237 = vmul.f32 %v222, %v228
      %v238 = vld [vmem:[%s198 + $0x4] sm:$0x1]
      %v239 = vld [vmem:[%s198 + $0xc] sm:$0x1]
      %v240 = vld [vmem:[%s198 + $0x14] sm:$0x1]
      %v241 = vld [vmem:[%s198 + $0x1c] sm:$0x1]
      %v242 = vld [vmem:[%s198 + $0x24] sm:$0x1]
      %v243 = vld [vmem:[%s198 + $0x2c] sm:$0x1]
      %v244 = vld [vmem:[%s198 + $0x34] sm:$0x1]
      %v245 = vld [vmem:[%s198 + $0x3c] sm:$0x1]
      %v246 = vunpack.c.l.bf16 %v238
      %v247 = vunpack.c.l.bf16 %v239
      %v248 = vunpack.c.l.bf16 %v240
      %v249 = vunpack.c.l.bf16 %v241
      %v250 = vunpack.c.l.bf16 %v242
      %v251 = vunpack.c.l.bf16 %v243
      %v252 = vunpack.c.l.bf16 %v244
      %v253 = vunpack.c.l.bf16 %v245
      %s254 = scalar_lea.vmem %s1, 1
      %v255 = vld [vmem:[%s254] sm:$0x1]
      %v257 = vlaneseq
      %v258 = vshrl.u32 %v257, 7
      %v259 = vsub.s32 0, %v258
      %v260 = vrot.slane %v255, %v259
      %v262 = vmul.f32 %v215, %v260
      %v263 = vmul.f32 %v246, %v260
      %v264 = vmul.f32 %v216, %v260
      %v265 = vmul.f32 %v247, %v260
      %v266 = vmul.f32 %v217, %v260
      %v267 = vmul.f32 %v248, %v260
      %v268 = vmul.f32 %v218, %v260
      %v269 = vmul.f32 %v249, %v260
      %v270 = vmul.f32 %v219, %v260
      %v271 = vmul.f32 %v250, %v260
      %v272 = vmul.f32 %v220, %v260
      %v273 = vmul.f32 %v251, %v260
      %v274 = vmul.f32 %v221, %v260
      %v275 = vmul.f32 %v252, %v260
      %v276 = vmul.f32 %v222, %v260
      %v277 = vmul.f32 %v253, %v260
      %vm294 = vcmask 1046528
      %v295 = vrot.slane %v262, 1
      %v296 = vrot.slane %v263, 1
      %v297 = vsel %vm294, %v295, %v296
      %v298 = vrot.slane %v264, 1
      %v299 = vrot.slane %v265, 1
      %v300 = vsel %vm294, %v298, %v299
      %v301 = vrot.slane %v266, 1
      %v302 = vrot.slane %v267, 1
      %v303 = vsel %vm294, %v301, %v302
      %v304 = vrot.slane %v268, 1
      %v305 = vrot.slane %v269, 1
      %v306 = vsel %vm294, %v304, %v305
      %v307 = vrot.slane %v270, 1
      %v308 = vrot.slane %v271, 1
      %v309 = vsel %vm294, %v307, %v308
      %v310 = vrot.slane %v272, 1
      %v311 = vrot.slane %v273, 1
      %v312 = vsel %vm294, %v310, %v311
      %v313 = vrot.slane %v274, 1
      %v314 = vrot.slane %v275, 1
      %v315 = vsel %vm294, %v313, %v314
      %v316 = vrot.slane %v276, 1
      %v317 = vrot.slane %v277, 1
      %v318 = vsel %vm294, %v316, %v317
      %v327 = vadd.f32 %v230, %v297
      %v328 = vadd.f32 %v231, %v300
      %v329 = vadd.f32 %v232, %v303
      %v330 = vadd.f32 %v233, %v306
      %v331 = vadd.f32 %v234, %v309
      %v332 = vadd.f32 %v235, %v312
      %v333 = vadd.f32 %v236, %v315
      %v334 = vadd.f32 %v237, %v318
      %v335 = vld [vmem:[%s198] sm:$0xe]
      %v336 = vld [vmem:[%s198 + $0x8] sm:$0xe]
      %v337 = vld [vmem:[%s198 + $0x10] sm:$0xe]
      %v338 = vld [vmem:[%s198 + $0x18] sm:$0xe]
      %v339 = vld [vmem:[%s198 + $0x20] sm:$0xe]
      %v340 = vld [vmem:[%s198 + $0x28] sm:$0xe]
      %v341 = vld [vmem:[%s198 + $0x30] sm:$0xe]
      %v342 = vld [vmem:[%s198 + $0x38] sm:$0xe]
      %v343 = vunpack.c.l.bf16 %v335
      %v344 = vunpack.c.l.bf16 %v336
      %v345 = vunpack.c.l.bf16 %v337
      %v346 = vunpack.c.l.bf16 %v338
      %v347 = vunpack.c.l.bf16 %v339
      %v348 = vunpack.c.l.bf16 %v340
      %v349 = vunpack.c.l.bf16 %v341
      %v350 = vunpack.c.l.bf16 %v342
      %s351 = scalar_lea.vmem %s1, 2
      %v352 = vld [vmem:[%s351] sm:$0x1]
      %v354 = vlaneseq
      %v355 = vshrl.u32 %v354, 7
      %v356 = vsub.s32 0, %v355
      %v357 = vrot.slane %v352, %v356
      %v359 = vmul.f32 %v343, %v357
      %v360 = vmul.f32 %v246, %v357
      %v361 = vmul.f32 %v344, %v357
      %v362 = vmul.f32 %v247, %v357
      %v363 = vmul.f32 %v345, %v357
      %v364 = vmul.f32 %v248, %v357
      %v365 = vmul.f32 %v346, %v357
      %v366 = vmul.f32 %v249, %v357
      %v367 = vmul.f32 %v347, %v357
      %v368 = vmul.f32 %v250, %v357
      %v369 = vmul.f32 %v348, %v357
      %v370 = vmul.f32 %v251, %v357
      %v371 = vmul.f32 %v349, %v357
      %v372 = vmul.f32 %v252, %v357
      %v373 = vmul.f32 %v350, %v357
      %v374 = vmul.f32 %v253, %v357
      %vm391 = vcmask 1045504
      %v392 = vrot.slane %v359, 2
      %v393 = vrot.slane %v360, 2
      %v394 = vsel %vm391, %v392, %v393
      %v395 = vrot.slane %v361, 2
      %v396 = vrot.slane %v362, 2
      %v397 = vsel %vm391, %v395, %v396
      %v398 = vrot.slane %v363, 2
      %v399 = vrot.slane %v364, 2
      %v400 = vsel %vm391, %v398, %v399
      %v401 = vrot.slane %v365, 2
      %v402 = vrot.slane %v366, 2
      %v403 = vsel %vm391, %v401, %v402
      %v404 = vrot.slane %v367, 2
      %v405 = vrot.slane %v368, 2
      %v406 = vsel %vm391, %v404, %v405
      %v407 = vrot.slane %v369, 2
      %v408 = vrot.slane %v370, 2
      %v409 = vsel %vm391, %v407, %v408
      %v410 = vrot.slane %v371, 2
      %v411 = vrot.slane %v372, 2
      %v412 = vsel %vm391, %v410, %v411
      %v413 = vrot.slane %v373, 2
      %v414 = vrot.slane %v374, 2
      %v415 = vsel %vm391, %v413, %v414
      %v424 = vadd.f32 %v327, %v394
      %v425 = vadd.f32 %v328, %v397
      %v426 = vadd.f32 %v329, %v400
      %v427 = vadd.f32 %v330, %v403
      %v428 = vadd.f32 %v331, %v406
      %v429 = vadd.f32 %v332, %v409
      %v430 = vadd.f32 %v333, %v412
      %v431 = vadd.f32 %v334, %v415
      %s432 = scalar_lea.vmem %s198, 8
      %v433 = vld [vmem:[%s432] sm:$0xf]
      %v434 = vld [vmem:[%s432 + $0x8] sm:$0xf]
      %v435 = vld [vmem:[%s432 + $0x10] sm:$0xf]
      %v436 = vld [vmem:[%s432 + $0x18] sm:$0xf]
      %v437 = vld [vmem:[%s432 + $0x20] sm:$0xf]
      %v438 = vld [vmem:[%s432 + $0x28] sm:$0xf]
      %v439 = vld [vmem:[%s432 + $0x30] sm:$0xf]
      %v440 = vld [vmem:[%s432 + $0x38] sm:$0xf]
      %v441 = vunpack.c.l.bf16 %v433
      %v442 = vunpack.c.l.bf16 %v434
      %v443 = vunpack.c.l.bf16 %v435
      %v444 = vunpack.c.l.bf16 %v436
      %v445 = vunpack.c.l.bf16 %v437
      %v446 = vunpack.c.l.bf16 %v438
      %v447 = vunpack.c.l.bf16 %v439
      %v448 = vunpack.c.l.bf16 %v440
      %s449 = scalar_lea.vmem %s1, 3
      %v450 = vld [vmem:[%s449] sm:$0x1]
      %v452 = vlaneseq
      %v453 = vshrl.u32 %v452, 7
      %v454 = vsub.s32 0, %v453
      %v455 = vrot.slane %v450, %v454
      %v457 = vmul.f32 %v441, %v455
      %v458 = vmul.f32 %v442, %v455
      %v459 = vmul.f32 %v443, %v455
      %v460 = vmul.f32 %v444, %v455
      %v461 = vmul.f32 %v445, %v455
      %v462 = vmul.f32 %v446, %v455
      %v463 = vmul.f32 %v447, %v455
      %v464 = vmul.f32 %v448, %v455
      %v465 = vadd.f32 %v424, %v457
      %v466 = vadd.f32 %v425, %v458
      %v467 = vadd.f32 %v426, %v459
      %v468 = vadd.f32 %v427, %v460
      %v469 = vadd.f32 %v428, %v461
      %v470 = vadd.f32 %v429, %v462
      %v471 = vadd.f32 %v430, %v463
      %v472 = vadd.f32 %v431, %v464
      %v473 = vld [vmem:[%s432 + $0x4] sm:$0x1]
      %v474 = vld [vmem:[%s432 + $0xc] sm:$0x1]
      %v475 = vld [vmem:[%s432 + $0x14] sm:$0x1]
      %v476 = vld [vmem:[%s432 + $0x1c] sm:$0x1]
      %v477 = vld [vmem:[%s432 + $0x24] sm:$0x1]
      %v478 = vld [vmem:[%s432 + $0x2c] sm:$0x1]
      %v479 = vld [vmem:[%s432 + $0x34] sm:$0x1]
      %v480 = vld [vmem:[%s432 + $0x3c] sm:$0x1]
      %v481 = vunpack.c.l.bf16 %v473
      %v482 = vunpack.c.l.bf16 %v474
      %v483 = vunpack.c.l.bf16 %v475
      %v484 = vunpack.c.l.bf16 %v476
      %v485 = vunpack.c.l.bf16 %v477
      %v486 = vunpack.c.l.bf16 %v478
      %v487 = vunpack.c.l.bf16 %v479
      %v488 = vunpack.c.l.bf16 %v480
      %s489 = scalar_lea.vmem %s1, 4
      %v490 = vld [vmem:[%s489] sm:$0x1]
      %v492 = vlaneseq
      %v493 = vshrl.u32 %v492, 7
      %v494 = vsub.s32 0, %v493
      %v495 = vrot.slane %v490, %v494
      %v497 = vmul.f32 %v441, %v495
      %v498 = vmul.f32 %v481, %v495
      %v499 = vmul.f32 %v442, %v495
      %v500 = vmul.f32 %v482, %v495
      %v501 = vmul.f32 %v443, %v495
      %v502 = vmul.f32 %v483, %v495
      %v503 = vmul.f32 %v444, %v495
      %v504 = vmul.f32 %v484, %v495
      %v505 = vmul.f32 %v445, %v495
      %v506 = vmul.f32 %v485, %v495
      %v507 = vmul.f32 %v446, %v495
      %v508 = vmul.f32 %v486, %v495
      %v509 = vmul.f32 %v447, %v495
      %v510 = vmul.f32 %v487, %v495
      %v511 = vmul.f32 %v448, %v495
      %v512 = vmul.f32 %v488, %v495
      %v529 = vrot.slane %v497, 1
      %v530 = vrot.slane %v498, 1
      %v531 = vsel %vm294, %v529, %v530
      %v532 = vrot.slane %v499, 1
      %v533 = vrot.slane %v500, 1
      %v534 = vsel %vm294, %v532, %v533
      %v535 = vrot.slane %v501, 1
      %v536 = vrot.slane %v502, 1
      %v537 = vsel %vm294, %v535, %v536
      %v538 = vrot.slane %v503, 1
      %v539 = vrot.slane %v504, 1
      %v540 = vsel %vm294, %v538, %v539
      %v541 = vrot.slane %v505, 1
      %v542 = vrot.slane %v506, 1
      %v543 = vsel %vm294, %v541, %v542
      %v544 = vrot.slane %v507, 1
      %v545 = vrot.slane %v508, 1
      %v546 = vsel %vm294, %v544, %v545
      %v547 = vrot.slane %v509, 1
      %v548 = vrot.slane %v510, 1
      %v549 = vsel %vm294, %v547, %v548
      %v550 = vrot.slane %v511, 1
      %v551 = vrot.slane %v512, 1
      %v552 = vsel %vm294, %v550, %v551
      %v561 = vadd.f32 %v465, %v531
      %v562 = vadd.f32 %v466, %v534
      %v563 = vadd.f32 %v467, %v537
      %v564 = vadd.f32 %v468, %v540
      %v565 = vadd.f32 %v469, %v543
      %v566 = vadd.f32 %v470, %v546
      %v567 = vadd.f32 %v471, %v549
      %v568 = vadd.f32 %v472, %v552
      %v569 = vld [vmem:[%s432] sm:$0xe]
      %v570 = vld [vmem:[%s432 + $0x8] sm:$0xe]
      %v571 = vld [vmem:[%s432 + $0x10] sm:$0xe]
      %v572 = vld [vmem:[%s432 + $0x18] sm:$0xe]
      %v573 = vld [vmem:[%s432 + $0x20] sm:$0xe]
      %v574 = vld [vmem:[%s432 + $0x28] sm:$0xe]
      %v575 = vld [vmem:[%s432 + $0x30] sm:$0xe]
      %v576 = vld [vmem:[%s432 + $0x38] sm:$0xe]
      %v577 = vunpack.c.l.bf16 %v569
      %v578 = vunpack.c.l.bf16 %v570
      %v579 = vunpack.c.l.bf16 %v571
      %v580 = vunpack.c.l.bf16 %v572
      %v581 = vunpack.c.l.bf16 %v573
      %v582 = vunpack.c.l.bf16 %v574
      %v583 = vunpack.c.l.bf16 %v575
      %v584 = vunpack.c.l.bf16 %v576
      %s585 = scalar_lea.vmem %s1, 5
      %v586 = vld [vmem:[%s585] sm:$0x1]
      %v588 = vlaneseq
      %v589 = vshrl.u32 %v588, 7
      %v590 = vsub.s32 0, %v589
      %v591 = vrot.slane %v586, %v590
      %v593 = vmul.f32 %v577, %v591
      %v594 = vmul.f32 %v481, %v591
      %v595 = vmul.f32 %v578, %v591
      %v596 = vmul.f32 %v482, %v591
      %v597 = vmul.f32 %v579, %v591
      %v598 = vmul.f32 %v483, %v591
      %v599 = vmul.f32 %v580, %v591
      %v600 = vmul.f32 %v484, %v591
      %v601 = vmul.f32 %v581, %v591
      %v602 = vmul.f32 %v485, %v591
      %v603 = vmul.f32 %v582, %v591
      %v604 = vmul.f32 %v486, %v591
      %v605 = vmul.f32 %v583, %v591
      %v606 = vmul.f32 %v487, %v591
      %v607 = vmul.f32 %v584, %v591
      %v608 = vmul.f32 %v488, %v591
      %v625 = vrot.slane %v593, 2
      %v626 = vrot.slane %v594, 2
      %v627 = vsel %vm391, %v625, %v626
      %v628 = vrot.slane %v595, 2
      %v629 = vrot.slane %v596, 2
      %v630 = vsel %vm391, %v628, %v629
      %v631 = vrot.slane %v597, 2
      %v632 = vrot.slane %v598, 2
      %v633 = vsel %vm391, %v631, %v632
      %v634 = vrot.slane %v599, 2
      %v635 = vrot.slane %v600, 2
      %v636 = vsel %vm391, %v634, %v635
      %v637 = vrot.slane %v601, 2
      %v638 = vrot.slane %v602, 2
      %v639 = vsel %vm391, %v637, %v638
      %v640 = vrot.slane %v603, 2
      %v641 = vrot.slane %v604, 2
      %v642 = vsel %vm391, %v640, %v641
      %v643 = vrot.slane %v605, 2
      %v644 = vrot.slane %v606, 2
      %v645 = vsel %vm391, %v643, %v644
      %v646 = vrot.slane %v607, 2
      %v647 = vrot.slane %v608, 2
      %v648 = vsel %vm391, %v646, %v647
      %v657 = vadd.f32 %v561, %v627
      %v658 = vadd.f32 %v562, %v630
      %v659 = vadd.f32 %v563, %v633
      %v660 = vadd.f32 %v564, %v636
      %v661 = vadd.f32 %v565, %v639
      %v662 = vadd.f32 %v566, %v642
      %v663 = vadd.f32 %v567, %v645
      %v664 = vadd.f32 %v568, %v648
      %s665 = scalar_lea.vmem %s198, 16
      %v666 = vld [vmem:[%s665] sm:$0xf]
      %v667 = vld [vmem:[%s665 + $0x8] sm:$0xf]
      %v668 = vld [vmem:[%s665 + $0x10] sm:$0xf]
      %v669 = vld [vmem:[%s665 + $0x18] sm:$0xf]
      %v670 = vld [vmem:[%s665 + $0x20] sm:$0xf]
      %v671 = vld [vmem:[%s665 + $0x28] sm:$0xf]
      %v672 = vld [vmem:[%s665 + $0x30] sm:$0xf]
      %v673 = vld [vmem:[%s665 + $0x38] sm:$0xf]
      %v674 = vunpack.c.l.bf16 %v666
      %v675 = vunpack.c.l.bf16 %v667
      %v676 = vunpack.c.l.bf16 %v668
      %v677 = vunpack.c.l.bf16 %v669
      %v678 = vunpack.c.l.bf16 %v670
      %v679 = vunpack.c.l.bf16 %v671
      %v680 = vunpack.c.l.bf16 %v672
      %v681 = vunpack.c.l.bf16 %v673
      %s682 = scalar_lea.vmem %s1, 6
      %v683 = vld [vmem:[%s682] sm:$0x1]
      %v685 = vlaneseq
      %v686 = vshrl.u32 %v685, 7
      %v687 = vsub.s32 0, %v686
      %v688 = vrot.slane %v683, %v687
      %v690 = vmul.f32 %v674, %v688
      %v691 = vmul.f32 %v675, %v688
      %v692 = vmul.f32 %v676, %v688
      %v693 = vmul.f32 %v677, %v688
      %v694 = vmul.f32 %v678, %v688
      %v695 = vmul.f32 %v679, %v688
      %v696 = vmul.f32 %v680, %v688
      %v697 = vmul.f32 %v681, %v688
      %v698 = vadd.f32 %v657, %v690
      %v699 = vadd.f32 %v658, %v691
      %v700 = vadd.f32 %v659, %v692
      %v701 = vadd.f32 %v660, %v693
      %v702 = vadd.f32 %v661, %v694
      %v703 = vadd.f32 %v662, %v695
      %v704 = vadd.f32 %v663, %v696
      %v705 = vadd.f32 %v664, %v697
      %v706 = vld [vmem:[%s665 + $0x4] sm:$0x1]
      %v707 = vld [vmem:[%s665 + $0xc] sm:$0x1]
      %v708 = vld [vmem:[%s665 + $0x14] sm:$0x1]
      %v709 = vld [vmem:[%s665 + $0x1c] sm:$0x1]
      %v710 = vld [vmem:[%s665 + $0x24] sm:$0x1]
      %v711 = vld [vmem:[%s665 + $0x2c] sm:$0x1]
      %v712 = vld [vmem:[%s665 + $0x34] sm:$0x1]
      %v713 = vld [vmem:[%s665 + $0x3c] sm:$0x1]
      %v714 = vunpack.c.l.bf16 %v706
      %v715 = vunpack.c.l.bf16 %v707
      %v716 = vunpack.c.l.bf16 %v708
      %v717 = vunpack.c.l.bf16 %v709
      %v718 = vunpack.c.l.bf16 %v710
      %v719 = vunpack.c.l.bf16 %v711
      %v720 = vunpack.c.l.bf16 %v712
      %v721 = vunpack.c.l.bf16 %v713
      %s722 = scalar_lea.vmem %s1, 7
      %v723 = vld [vmem:[%s722] sm:$0x1]
      %v725 = vlaneseq
      %v726 = vshrl.u32 %v725, 7
      %v727 = vsub.s32 0, %v726
      %v728 = vrot.slane %v723, %v727
      %v730 = vmul.f32 %v674, %v728
      %v731 = vmul.f32 %v714, %v728
      %v732 = vmul.f32 %v675, %v728
      %v733 = vmul.f32 %v715, %v728
      %v734 = vmul.f32 %v676, %v728
      %v735 = vmul.f32 %v716, %v728
      %v736 = vmul.f32 %v677, %v728
      %v737 = vmul.f32 %v717, %v728
      %v738 = vmul.f32 %v678, %v728
      %v739 = vmul.f32 %v718, %v728
      %v740 = vmul.f32 %v679, %v728
      %v741 = vmul.f32 %v719, %v728
      %v742 = vmul.f32 %v680, %v728
      %v743 = vmul.f32 %v720, %v728
      %v744 = vmul.f32 %v681, %v728
      %v745 = vmul.f32 %v721, %v728
      %v762 = vrot.slane %v730, 1
      %v763 = vrot.slane %v731, 1
      %v764 = vsel %vm294, %v762, %v763
      %v765 = vrot.slane %v732, 1
      %v766 = vrot.slane %v733, 1
      %v767 = vsel %vm294, %v765, %v766
      %v768 = vrot.slane %v734, 1
      %v769 = vrot.slane %v735, 1
      %v770 = vsel %vm294, %v768, %v769
      %v771 = vrot.slane %v736, 1
      %v772 = vrot.slane %v737, 1
      %v773 = vsel %vm294, %v771, %v772
      %v774 = vrot.slane %v738, 1
      %v775 = vrot.slane %v739, 1
      %v776 = vsel %vm294, %v774, %v775
      %v777 = vrot.slane %v740, 1
      %v778 = vrot.slane %v741, 1
      %v779 = vsel %vm294, %v777, %v778
      %v780 = vrot.slane %v742, 1
      %v781 = vrot.slane %v743, 1
      %v782 = vsel %vm294, %v780, %v781
      %v783 = vrot.slane %v744, 1
      %v784 = vrot.slane %v745, 1
      %v785 = vsel %vm294, %v783, %v784
      %v794 = vadd.f32 %v698, %v764
      %v795 = vadd.f32 %v699, %v767
      %v796 = vadd.f32 %v700, %v770
      %v797 = vadd.f32 %v701, %v773
      %v798 = vadd.f32 %v702, %v776
      %v799 = vadd.f32 %v703, %v779
      %v800 = vadd.f32 %v704, %v782
      %v801 = vadd.f32 %v705, %v785
      %v802 = vld [vmem:[%s665] sm:$0xe]
      %v803 = vld [vmem:[%s665 + $0x8] sm:$0xe]
      %v804 = vld [vmem:[%s665 + $0x10] sm:$0xe]
      %v805 = vld [vmem:[%s665 + $0x18] sm:$0xe]
      %v806 = vld [vmem:[%s665 + $0x20] sm:$0xe]
      %v807 = vld [vmem:[%s665 + $0x28] sm:$0xe]
      %v808 = vld [vmem:[%s665 + $0x30] sm:$0xe]
      %v809 = vld [vmem:[%s665 + $0x38] sm:$0xe]
      %v810 = vunpack.c.l.bf16 %v802
      %v811 = vunpack.c.l.bf16 %v803
      %v812 = vunpack.c.l.bf16 %v804
      %v813 = vunpack.c.l.bf16 %v805
      %v814 = vunpack.c.l.bf16 %v806
      %v815 = vunpack.c.l.bf16 %v807
      %v816 = vunpack.c.l.bf16 %v808
      %v817 = vunpack.c.l.bf16 %v809
      %s818 = scalar_lea.vmem %s1, 8
      %v819 = vld [vmem:[%s818] sm:$0x1]
      %v821 = vlaneseq
      %v822 = vshrl.u32 %v821, 7
      %v823 = vsub.s32 0, %v822
      %v824 = vrot.slane %v819, %v823
      %v826 = vmul.f32 %v810, %v824
      %v827 = vmul.f32 %v714, %v824
      %v828 = vmul.f32 %v811, %v824
      %v829 = vmul.f32 %v715, %v824
      %v830 = vmul.f32 %v812, %v824
      %v831 = vmul.f32 %v716, %v824
      %v832 = vmul.f32 %v813, %v824
      %v833 = vmul.f32 %v717, %v824
      %v834 = vmul.f32 %v814, %v824
      %v835 = vmul.f32 %v718, %v824
      %v836 = vmul.f32 %v815, %v824
      %v837 = vmul.f32 %v719, %v824
      %v838 = vmul.f32 %v816, %v824
      %v839 = vmul.f32 %v720, %v824
      %v840 = vmul.f32 %v817, %v824
      %v841 = vmul.f32 %v721, %v824
      %v858 = vrot.slane %v826, 2
      %v859 = vrot.slane %v827, 2
      %v860 = vsel %vm391, %v858, %v859
      %v861 = vrot.slane %v828, 2
      %v862 = vrot.slane %v829, 2
      %v863 = vsel %vm391, %v861, %v862
      %v864 = vrot.slane %v830, 2
      %v865 = vrot.slane %v831, 2
      %v866 = vsel %vm391, %v864, %v865
      %v867 = vrot.slane %v832, 2
      %v868 = vrot.slane %v833, 2
      %v869 = vsel %vm391, %v867, %v868
      %v870 = vrot.slane %v834, 2
      %v871 = vrot.slane %v835, 2
      %v872 = vsel %vm391, %v870, %v871
      %v873 = vrot.slane %v836, 2
      %v874 = vrot.slane %v837, 2
      %v875 = vsel %vm391, %v873, %v874
      %v876 = vrot.slane %v838, 2
      %v877 = vrot.slane %v839, 2
      %v878 = vsel %vm391, %v876, %v877
      %v879 = vrot.slane %v840, 2
      %v880 = vrot.slane %v841, 2
      %v881 = vsel %vm391, %v879, %v880
      %v890 = vadd.f32 %v794, %v860
      %v891 = vadd.f32 %v795, %v863
      %v892 = vadd.f32 %v796, %v866
      %v893 = vadd.f32 %v797, %v869
      %v894 = vadd.f32 %v798, %v872
      %v895 = vadd.f32 %v799, %v875
      %v896 = vadd.f32 %v800, %v878
      %v897 = vadd.f32 %v801, %v881
      %v898 = vld [vmem:[%s2] sm:$0x1]
      %v900 = vlaneseq
      %v901 = vshrl.u32 %v900, 7
      %v902 = vsub.s32 0, %v901
      %v903 = vrot.slane %v898, %v902
      %v905 = vadd.f32 %v890, %v903
      %v906 = vadd.f32 %v891, %v903
      %v907 = vadd.f32 %v892, %v903
      %v908 = vadd.f32 %v893, %v903
      %v909 = vadd.f32 %v894, %v903
      %v910 = vadd.f32 %v895, %v903
      %v911 = vadd.f32 %v896, %v903
      %v912 = vadd.f32 %v897, %v903
      %v913 = vxor.u32 %v905, 2147483648
      %v914 = vxor.u32 %v906, 2147483648
      %v915 = vxor.u32 %v907, 2147483648
      %v916 = vxor.u32 %v908, 2147483648
      %v917 = vxor.u32 %v909, 2147483648
      %v918 = vxor.u32 %v910, 2147483648
      %v919 = vxor.u32 %v911, 2147483648
      %v920 = vxor.u32 %v912, 2147483648
      %v921 = vmul.f32 %v913, 1.442695
      %v922 = vpow.pop %v921
      %v923 = vmul.f32 %v914, 1.442695
      %v924 = vpow.pop %v923
      %v925 = vmul.f32 %v915, 1.442695
      %v926 = vpow.pop %v925
      %v927 = vmul.f32 %v916, 1.442695
      %v928 = vpow.pop %v927
      %v929 = vmul.f32 %v917, 1.442695
      %v930 = vpow.pop %v929
      %v931 = vmul.f32 %v918, 1.442695
      %v932 = vpow.pop %v931
      %v933 = vmul.f32 %v919, 1.442695
      %v934 = vpow.pop %v933
      %v935 = vmul.f32 %v920, 1.442695
      %v936 = vpow.pop %v935
      %v937 = vadd.f32 %v922, 1.0
      %v938 = vadd.f32 %v924, 1.0
      %v939 = vadd.f32 %v926, 1.0
      %v940 = vadd.f32 %v928, 1.0
      %v941 = vadd.f32 %v930, 1.0
      %v942 = vadd.f32 %v932, 1.0
      %v943 = vadd.f32 %v934, 1.0
      %v944 = vadd.f32 %v936, 1.0
      %v945 = vrcp.pop %v937
      %v946 = vmul.f32 1.0, %v945
      %v947 = vrcp.pop %v938
      %v948 = vmul.f32 1.0, %v947
      %v949 = vrcp.pop %v939
      %v950 = vmul.f32 1.0, %v949
      %v951 = vrcp.pop %v940
      %v952 = vmul.f32 1.0, %v951
      %v953 = vrcp.pop %v941
      %v954 = vmul.f32 1.0, %v953
      %v955 = vrcp.pop %v942
      %v956 = vmul.f32 1.0, %v955
      %v957 = vrcp.pop %v943
      %v958 = vmul.f32 1.0, %v957
      %v959 = vrcp.pop %v944
      %v960 = vmul.f32 1.0, %v959
      %v961 = vmul.f32 %v905, %v946
      %v962 = vmul.f32 %v906, %v948
      %v963 = vmul.f32 %v907, %v950
      %v964 = vmul.f32 %v908, %v952
      %v965 = vmul.f32 %v909, %v954
      %v966 = vmul.f32 %v910, %v956
      %v967 = vmul.f32 %v911, %v958
      %v968 = vmul.f32 %v912, %v960
      %v969 = vpack.c.bf16 %v961, %v961
      %v970 = vpack.c.bf16 %v962, %v962
      %v971 = vpack.c.bf16 %v963, %v963
      %v972 = vpack.c.bf16 %v964, %v964
      %v973 = vpack.c.bf16 %v965, %v965
      %v974 = vpack.c.bf16 %v966, %v966
      %v975 = vpack.c.bf16 %v967, %v967
      %v976 = vpack.c.bf16 %v968, %v968
      %vm977 = vcmask 257024
      %978 = vst.msk [vmem:[%s203] sm:$0xf] %vm977, %v969
      %979 = vst.msk [vmem:[%s203 + $0x4] sm:$0xf] %vm977, %v970
      %980 = vst.msk [vmem:[%s203 + $0x8] sm:$0xf] %vm977, %v971
      %981 = vst.msk [vmem:[%s203 + $0xc] sm:$0xf] %vm977, %v972
      %982 = vst.msk [vmem:[%s203 + $0x10] sm:$0xf] %vm977, %v973
      %983 = vst.msk [vmem:[%s203 + $0x14] sm:$0xf] %vm977, %v974
      %984 = vst.msk [vmem:[%s203 + $0x18] sm:$0xf] %vm977, %v975
      %985 = vst.msk [vmem:[%s203 + $0x1c] sm:$0xf] %vm977, %v976
      %vm986 = vcmask 261120
      %v987 = vsel %vm986, %v961, 0.0
      %v988 = vsel %vm986, %v962, 0.0
      %v989 = vadd.f32 %v987, %v988
      %v990 = vsel %vm986, %v963, 0.0
      %v991 = vadd.f32 %v989, %v990
      %v992 = vsel %vm986, %v964, 0.0
      %v993 = vadd.f32 %v991, %v992
      %v994 = vsel %vm986, %v965, 0.0
      %v995 = vadd.f32 %v993, %v994
      %v996 = vsel %vm986, %v966, 0.0
      %v997 = vadd.f32 %v995, %v996
      %v998 = vsel %vm986, %v967, 0.0
      %v999 = vadd.f32 %v997, %v998
      %v1000 = vsel %vm986, %v968, 0.0
      %v1001 = vadd.f32 %v999, %v1000
      %v1002 = vsel %vm986, %v1001, 0.0
      %v1003 = vrot.slane %v1002, 4
      %v1004 = vadd.f32 %v1002, %v1003
      %v1005 = vrot.slane %v1004, 2
      %v1006 = vadd.f32 %v1004, %v1005
      %v1007 = vrot.slane %v1006, 1
      %v1008 = vadd.f32 %v1006, %v1007
      %v1009 = vmul.f32 %v1008, 0.015625
      %vm1010 = vcmask 253952
      %1011 = vst.msk [vmem:[%s206] sm:$0x1] %vm1010, %v1009
      %p1012 = scmp.lt.s32.totalorder %s16, 1
      %s1013 = scalar_select %p1012, %s16, 1
      %s1014 = smul.addr %s1013, 8
      %s1015 = smul.addr %s1014, 4
      %s1016 = scalar_lea.vmem %s3, %s1015
      %p1017 = scmp.lt.s32.totalorder %s16, 1
      %s1018 = scalar_select %p1017, %s16, 1
      %s1019 = scalar_lea.vmem %s4, %s1018
      // Predicated region
      $region33: #{efficientnet_forward.13} parent=31 // pred_check
        %p1020 = pneg %p102
      $region34: #{efficientnet_forward.13} parent=31 // pred_check_branch
        %1022 = sbr.rel (%p1020) target = $region36
      $region35: #{efficientnet_forward.13} parent=31 // pred_region
        _
      $region36: #{efficientnet_forward.13} parent=31 // pred_fallthru
        _
      // Predicated region
      $region37: #{efficientnet_forward.13} parent=31 // pred_check
        %p1023 = pneg %p128
      $region38: #{efficientnet_forward.13} parent=31 // pred_check_branch
        %1025 = sbr.rel (%p1023) target = $region40
      $region39: #{efficientnet_forward.13} parent=31 // pred_region
        _
      $region40: #{efficientnet_forward.13} parent=31 // pred_fallthru
        _
    $region32: #{efficientnet_forward.13} parent=5 // pred_fallthru
      _
    %p1026 = scmp.le.s32.totalorder 2, %s11
    // Predicated region
    $region41: #{efficientnet_forward.13} parent=5 // pred_check
      %p1027 = pneg %p1026
    $region42: #{efficientnet_forward.13} parent=5 // pred_check_branch
      %1029 = sbr.rel (%p1027) target = $region44
    $region43: #{efficientnet_forward.13} parent=5 // pred_region
      %s1030 = ssub.s32 %s11, 2
      // Predicated region
      $region45: #{efficientnet_forward.13} parent=43 // pred_check
        %p1031 = pneg %p108
      $region46: #{efficientnet_forward.13} parent=43 // pred_check_branch
        %1033 = sbr.rel (%p1031) target = $region48
      $region47: #{efficientnet_forward.13} parent=43 // pred_region
        %p1034 = scmp.lt.s32.totalorder %s17, 1
        %s1035 = scalar_select %p1034, %s17, 1
        %s1036 = smul.addr %s1035, 8
        %s1037 = smul.addr %s1036, 4
        %s1038 = scalar_lea.vmem %s3, %s1037
      $region48: #{efficientnet_forward.13} parent=43 // pred_fallthru
        _
      // Predicated region
      $region49: #{efficientnet_forward.13} parent=43 // pred_check
        %p1039 = pneg %p134
      $region50: #{efficientnet_forward.13} parent=43 // pred_check_branch
        %1041 = sbr.rel (%p1039) target = $region52
      $region51: #{efficientnet_forward.13} parent=43 // pred_region
        %p1042 = scmp.lt.s32.totalorder %s17, 1
        %s1043 = scalar_select %p1042, %s17, 1
        %s1044 = scalar_lea.vmem %s4, %s1043
      $region52: #{efficientnet_forward.13} parent=43 // pred_fallthru
        _
    $region44: #{efficientnet_forward.13} parent=5 // pred_fallthru
      _
  $region6: #{efficientnet_forward.13} parent=0 // loop_footer
    %s15 = sadd.s32 1, %s11
  $region7: #{efficientnet_forward.13} parent=0 // loop_footer_branch
    %10 = sbr.rel target = $region3
  $region8: #{efficientnet_forward.13} parent=0 // loop_exit
    _

// kernel: efficientnet_forward.16
$region0: #{efficientnet_forward.16}
  #allocation0 [shape = 'u32[]', space=smem, size = 0x4, offset = 0x4, fixed_abs, tag = 'smem constant byte address 0x4 - core index']
  #allocation1 [shape = 'u32[144,128]{1,0:T(1,128)}', space=vmem, size = 0x12000, scoped, tag = 'internal scratch']
  %s0 = inlined_call_operand.vmem [shape: bf16[8,5,5,96], index: 0, kind: input, shape index: {}]
  %s1 = inlined_call_operand.vmem [shape: f32[9,1,96], index: 1, kind: input, shape index: {}]
  %s2 = inlined_call_operand.vmem [shape: f32[1,96], index: 2, kind: input, shape index: {}]
  %s3 = inlined_call_operand.vmem [shape: bf16[2,4,4,96], index: 3, kind: output, shape index: {0}]
  %s4 = inlined_call_operand.vmem [shape: f32[2,1,96], index: 4, kind: output, shape index: {1}]
  %5 = xla_tuple %s3, %s4
  %s6 = sld [smem:[#allocation0]]
  $region53: #{efficientnet_forward.16} parent=0
    _
  %s8 = ssub.s32 1, %s6
  %s9 = scalar_select 0, %s8, %s6
  loop: start=0, step=1, limit=4
  $region2: #{efficientnet_forward.16} parent=0 // loop_pre_header
    _
  $region3: #{efficientnet_forward.16} parent=0 // loop_header
    %s11 = sphi 0, %s15
    %p12 = scmp.ge.s32.totalorder %s11, 4
    %s21 = sphi 0, %s23
    %s24 = sphi 0, %s21
    %s25 = sphi 0, %s24
    %s41 = sphi 0, %s25
    %s45 = sphi 0, %s45
    %s47 = sphi 0, %s45
    %s48 = sphi 0, %s47
    %s62 = sphi 0, %s48
    %s66 = sphi 0, %s66
    %s68 = sphi 0, %s66
    %s69 = sphi 0, %s68
    %s83 = sphi 0, %s69
    %s89 = sphi 0, %s91
    %s92 = sphi 0, %s89
    %s93 = sphi 0, %s92
    %s109 = sphi 0, %s93
    %s115 = sphi 0, %s117
    %s118 = sphi 0, %s115
    %s119 = sphi 0, %s118
    %s135 = sphi 0, %s119
  $region4: #{efficientnet_forward.16} parent=0 // loop_header_branch
    %14 = sbr.rel (%p12) target = $region8
  $region5: #{efficientnet_forward.16} parent=0 // loop_body
    %s16 = ssub.s32 %s11, 1
    %s17 = ssub.s32 %s11, 2
    %s18 = sadd.s32 %s11, 1
    %s19 = ssub.s32 %s11, %s18
    %p20 = scmp.eq.s32.totalorder %s19, 0
    %s22 = sadd.s32 %s21, 1
    %s23 = scalar_select %p20, %s21, %s22
    %p26 = pneg %p20
    %p27 = scmp.eq.s32.totalorder %s11, 1
    %p28 = por %p26, %p27
    %p29 = scmp.ne.s32.totalorder %s21, %s24
    %p30 = scmp.eq.s32.totalorder %s11, 0
    %p31 = por %p29, %p30
    %p32 = scmp.ne.s32.totalorder %s21, %s24
    %p33 = scmp.eq.s32.totalorder %s16, 1
    %p34 = por %p32, %p33
    %p35 = scmp.ne.s32.totalorder %s24, %s25
    %p36 = scmp.eq.s32.totalorder %s16, 0
    %p37 = por %p35, %p36
    %p38 = scmp.ne.s32.totalorder %s24, %s25
    %p39 = scmp.eq.s32.totalorder %s17, 1
    %p40 = por %p38, %p39
    %p42 = scmp.ne.s32.totalorder %s25, %s41
    %p43 = scmp.eq.s32.totalorder %s17, 0
    %p44 = por %p42, %p43
    %s46 = sadd.s32 %s45, 1
    %p49 = scmp.eq.s32.totalorder %s11, 1
    %p50 = scmp.ne.s32.totalorder %s45, %s47
    %p51 = scmp.eq.s32.totalorder %s11, 0
    %p52 = por %p50, %p51
    %p53 = scmp.ne.s32.totalorder %s45, %s47
    %p54 = scmp.eq.s32.totalorder %s16, 1
    %p55 = por %p53, %p54
    %p56 = scmp.ne.s32.totalorder %s47, %s48
    %p57 = scmp.eq.s32.totalorder %s16, 0
    %p58 = por %p56, %p57
    %p59 = scmp.ne.s32.totalorder %s47, %s48
    %p60 = scmp.eq.s32.totalorder %s17, 1
    %p61 = por %p59, %p60
    %p63 = scmp.ne.s32.totalorder %s48, %s62
    %p64 = scmp.eq.s32.totalorder %s17, 0
    %p65 = por %p63, %p64
    %s67 = sadd.s32 %s66, 1
    %p70 = scmp.eq.s32.totalorder %s11, 1
    %p71 = scmp.ne.s32.totalorder %s66, %s68
    %p72 = scmp.eq.s32.totalorder %s11, 0
    %p73 = por %p71, %p72
    %p74 = scmp.ne.s32.totalorder %s66, %s68
    %p75 = scmp.eq.s32.totalorder %s16, 1
    %p76 = por %p74, %p75
    %p77 = scmp.ne.s32.totalorder %s68, %s69
    %p78 = scmp.eq.s32.totalorder %s16, 0
    %p79 = por %p77, %p78
    %p80 = scmp.ne.s32.totalorder %s68, %s69
    %p81 = scmp.eq.s32.totalorder %s17, 1
    %p82 = por %p80, %p81
    %p84 = scmp.ne.s32.totalorder %s69, %s83
    %p85 = scmp.eq.s32.totalorder %s17, 0
    %p86 = por %p84, %p85
    %s87 = ssub.s32 %s11, %s18
    %p88 = scmp.eq.s32.totalorder %s87, 0
    %s90 = sadd.s32 %s89, 1
    %s91 = scalar_select %p88, %s89, %s90
    %p94 = pneg %p88
    %p95 = scmp.eq.s32.totalorder %s11, 1
    %p96 = por %p94, %p95
    %p97 = scmp.ne.s32.totalorder %s89, %s92
    %p98 = scmp.eq.s32.totalorder %s11, 0
    %p99 = por %p97, %p98
    %p100 = scmp.ne.s32.totalorder %s89, %s92
    %p101 = scmp.eq.s32.totalorder %s16, 1
    %p102 = por %p100, %p101
    %p103 = scmp.ne.s32.totalorder %s92, %s93
    %p104 = scmp.eq.s32.totalorder %s16, 0
    %p105 = por %p103, %p104
    %p106 = scmp.ne.s32.totalorder %s92, %s93
    %p107 = scmp.eq.s32.totalorder %s17, 1
    %p108 = por %p106, %p107
    %p110 = scmp.ne.s32.totalorder %s93, %s109
    %p111 = scmp.eq.s32.totalorder %s17, 0
    %p112 = por %p110, %p111
    %s113 = ssub.s32 %s11, %s18
    %p114 = scmp.eq.s32.totalorder %s113, 0
    %s116 = sadd.s32 %s115, 1
    %s117 = scalar_select %p114, %s115, %s116
    %p120 = pneg %p114
    %p121 = scmp.eq.s32.totalorder %s11, 1
    %p122 = por %p120, %p121
    %p123 = scmp.ne.s32.totalorder %s115, %s118
    %p124 = scmp.eq.s32.totalorder %s11, 0
    %p125 = por %p123, %p124
    %p126 = scmp.ne.s32.totalorder %s115, %s118
    %p127 = scmp.eq.s32.totalorder %s16, 1
    %p128 = por %p126, %p127
    %p129 = scmp.ne.s32.totalorder %s118, %s119
    %p130 = scmp.eq.s32.totalorder %s16, 0
    %p131 = por %p129, %p130
    %p132 = scmp.ne.s32.totalorder %s118, %s119
    %p133 = scmp.eq.s32.totalorder %s17, 1
    %p134 = por %p132, %p133
    %p136 = scmp.ne.s32.totalorder %s119, %s135
    %p137 = scmp.eq.s32.totalorder %s17, 0
    %p138 = por %p136, %p137
    %p139 = scmp.le.s32.totalorder 1, %s11
    %p140 = scmp.lt.s32.totalorder %s11, 3
    %p141 = pnand %p139, %p140
    %p142 = pneg %p141
    // Predicated region
    $region9: #{efficientnet_forward.16} parent=5 // pred_check
      _
    $region10: #{efficientnet_forward.16} parent=5 // pred_check_branch
      %144 = sbr.rel (%p141) target = $region12
    $region11: #{efficientnet_forward.16} parent=5 // pred_region
      %s145 = ssub.s32 %s11, 1
      // Predicated region
      $region13: #{efficientnet_forward.16} parent=11 // pred_check
        %p146 = pneg %p58
      $region14: #{efficientnet_forward.16} parent=11 // pred_check_branch
        %148 = sbr.rel (%p146) target = $region16
      $region15: #{efficientnet_forward.16} parent=11 // pred_region
        _
      $region16: #{efficientnet_forward.16} parent=11 // pred_fallthru
        _
      // Predicated region
      $region17: #{efficientnet_forward.16} parent=11 // pred_check
        %p149 = pneg %p79
      $region18: #{efficientnet_forward.16} parent=11 // pred_check_branch
        %151 = sbr.rel (%p149) target = $region20
      $region19: #{efficientnet_forward.16} parent=11 // pred_region
        _
      $region20: #{efficientnet_forward.16} parent=11 // pred_fallthru
        _
    $region12: #{efficientnet_forward.16} parent=5 // pred_fallthru
      _
    %p152 = scmp.lt.s32.totalorder %s11, 2
    // Predicated region
    $region21: #{efficientnet_forward.16} parent=5 // pred_check
      %p153 = pneg %p152
    $region22: #{efficientnet_forward.16} parent=5 // pred_check_branch
      %155 = sbr.rel (%p153) target = $region24
    $region23: #{efficientnet_forward.16} parent=5 // pred_region
      // Predicated region
      $region25: #{efficientnet_forward.16} parent=23 // pred_check
        %p156 = pneg %p31
      $region26: #{efficientnet_forward.16} parent=23 // pred_check_branch
        %158 = sbr.rel (%p156) target = $region28
      $region27: #{efficientnet_forward.16} parent=23 // pred_region
        %s159 = smul.u32 4, %s11
        %p160 = scmp.lt.s32.totalorder %s159, 7
        %s161 = scalar_select %p160, %s159, 7
        %s162 = smul.addr %s161, 5
        %s163 = smul.addr %s162, 4
        %s164 = scalar_lea.vmem %s0, %s163
        %s165 = smul.u32 4, %s11
      $region28: #{efficientnet_forward.16} parent=23 // pred_fallthru
        _
    $region24: #{efficientnet_forward.16} parent=5 // pred_fallthru
      _
    %p166 = scmp.le.s32.totalorder 1, %s11
    %p167 = scmp.lt.s32.totalorder %s11, 3
    %p168 = pnand %p166, %p167
    %p169 = pneg %p168
    // Predicated region
    $region29: #{efficientnet_forward.16} parent=5 // pred_check
      _
    $region30: #{efficientnet_forward.16} parent=5 // pred_check_branch
      %171 = sbr.rel (%p168) target = $region32
    $region31: #{efficientnet_forward.16} parent=5 // pred_region
      %s172 = ssub.s32 %s11, 1
      %s173 = smul.u32 4, %s16
      %p174 = scmp.lt.s32.totalorder %s173, 7
      %s175 = scalar_select %p174, %s173, 7
      %s176 = smul.addr %s175, 5
      %s177 = smul.addr %s176, 4
      %s178 = scalar_lea.vmem %s0, %s177
      %p179 = pneg %p37
      %p180 = pneg %p34
      %p181 = pneg %p58
      %p182 = pneg %p55
      %p183 = pneg %p79
      %p184 = pneg %p76
      %p185 = pneg %p105
      %p186 = pneg %p102
      %p187 = scmp.lt.s32.totalorder %s16, 1
      %s188 = scalar_select %p187, %s16, 1
      %s189 = smul.addr %s188, 4
      %s190 = smul.addr %s189, 2
      %s191 = scalar_lea.vmem %s3, %s190
      %p192 = pneg %p131
      %p193 = pneg %p128
      %p194 = scmp.lt.s32.totalorder %s16, 1
      %s195 = scalar_select %p194, %s16, 1
      %s196 = scalar_lea.vmem %s4, %s195
      %s197 = smul.u32 4, %s16
      %p198 = scmp.lt.s32.totalorder %s197, 7
      %s199 = scalar_select %p198, %s197, 7
      %s200 = smul.addr %s199, 5
      %s201 = smul.addr %s200, 4
      %s202 = scalar_lea.vmem %s0, %s201
      %s203 = smul.u32 4, %s16
      %p204 = scmp.lt.s32.totalorder %s16, 1
      %s205 = scalar_select %p204, %s16, 1
      %s206 = smul.addr %s205, 4
      %s207 = smul.addr %s206, 2
      %s208 = scalar_lea.vmem %s3, %s207
      %p209 = scmp.lt.s32.totalorder %s16, 1
      %s210 = scalar_select %p209, %s16, 1
      %s211 = scalar_lea.vmem %s4, %s210
      %v212 = vld [vmem:[%s202] sm:$0x3]
      %v213 = vld [vmem:[%s202 + $0x4] sm:$0x3]
      %v214 = vld [vmem:[%s202 + $0x8] sm:$0x3]
      %v215 = vld [vmem:[%s202 + $0xc] sm:$0x3]
      %v216 = vunpack.c.l.bf16 %v212
      %v217 = vunpack.c.l.bf16 %v213
      %v218 = vunpack.c.l.bf16 %v214
      %v219 = vunpack.c.l.bf16 %v215
      %v220 = vld [vmem:[%s1] sm:$0x1]
      %v222 = vlaneseq
      %v223 = vshrl.u32 %v222, 7
      %v224 = vsub.s32 0, %v223
      %v225 = vrot.slane %v220, %v224
      %v227 = vmul.f32 %v216, %v225
      %v228 = vmul.f32 %v217, %v225
      %v229 = vmul.f32 %v218, %v225
      %v230 = vmul.f32 %v219, %v225
      %s231 = scalar_lea.vmem %s202, 20
      %v232 = vld [vmem:[%s231] sm:$0x3]
      %v233 = vld [vmem:[%s231 + $0x4] sm:$0x3]
      %v234 = vld [vmem:[%s231 + $0x8] sm:$0x3]
      %v235 = vld [vmem:[%s231 + $0xc] sm:$0x3]
      %v236 = vunpack.c.l.bf16 %v232
      %v237 = vunpack.c.l.bf16 %v233
      %v238 = vunpack.c.l.bf16 %v234
      %v239 = vunpack.c.l.bf16 %v235
      %s240 = scalar_lea.vmem %s1, 1
      %v241 = vld [vmem:[%s240] sm:$0x1]
      %v243 = vlaneseq
      %v244 = vshrl.u32 %v243, 7
      %v245 = vsub.s32 0, %v244
      %v246 = vrot.slane %v241, %v245
      %v248 = vmul.f32 %v236, %v246
      %v249 = vmul.f32 %v237, %v246
      %v250 = vmul.f32 %v238, %v246
      %v251 = vmul.f32 %v239, %v246
      %v252 = vadd.f32 %v227, %v248
      %v253 = vadd.f32 %v228, %v249
      %v254 = vadd.f32 %v229, %v250
      %v255 = vadd.f32 %v230, %v251
      %v256 = vld [vmem:[%s202] sm:$0x7]
      %v257 = vld [vmem:[%s202 + $0x4] sm:$0x7]
      %v258 = vld [vmem:[%s202 + $0x8] sm:$0x7]
      %v259 = vld [vmem:[%s202 + $0xc] sm:$0x7]
      %v260 = vunpack.c.l.bf16 %v256
      %v261 = vunpack.c.l.bf16 %v257
      %v262 = vunpack.c.l.bf16 %v258
      %v263 = vunpack.c.l.bf16 %v259
      %s264 = scalar_lea.vmem %s1, 2
      %v265 = vld [vmem:[%s264] sm:$0x1]
      %v267 = vlaneseq
      %v268 = vshrl.u32 %v267, 7
      %v269 = vsub.s32 0, %v268
      %v270 = vrot.slane %v265, %v269
      %v272 = vmul.f32 %v260, %v270
      %v273 = vmul.f32 %v261, %v270
      %v274 = vmul.f32 %v262, %v270
      %v275 = vmul.f32 %v263, %v270
      %v280 = vrot.slane %v272, 1
      %v281 = vrot.slane %v273, 1
      %v282 = vrot.slane %v274, 1
      %v283 = vrot.slane %v275, 1
      %v288 = vadd.f32 %v252, %v280
      %v289 = vadd.f32 %v253, %v281
      %v290 = vadd.f32 %v254, %v282
      %v291 = vadd.f32 %v255, %v283
      %s292 = scalar_lea.vmem %s202, 40
      %v293 = vld [vmem:[%s292] sm:$0x3]
      %v294 = vld [vmem:[%s292 + $0x4] sm:$0x3]
      %v295 = vld [vmem:[%s292 + $0x8] sm:$0x3]
      %v296 = vld [vmem:[%s292 + $0xc] sm:$0x3]
      %v297 = vunpack.c.l.bf16 %v293
      %v298 = vunpack.c.l.bf16 %v294
      %v299 = vunpack.c.l.bf16 %v295
      %v300 = vunpack.c.l.bf16 %v296
      %s301 = scalar_lea.vmem %s1, 3
      %v302 = vld [vmem:[%s301] sm:$0x1]
      %v304 = vlaneseq
      %v305 = vshrl.u32 %v304, 7
      %v306 = vsub.s32 0, %v305
      %v307 = vrot.slane %v302, %v306
      %v309 = vmul.f32 %v297, %v307
      %v310 = vmul.f32 %v298, %v307
      %v311 = vmul.f32 %v299, %v307
      %v312 = vmul.f32 %v300, %v307
      %v313 = vadd.f32 %v288, %v309
      %v314 = vadd.f32 %v289, %v310
      %v315 = vadd.f32 %v290, %v311
      %v316 = vadd.f32 %v291, %v312
      %s317 = scalar_lea.vmem %s202, 60
      %v318 = vld [vmem:[%s317] sm:$0x3]
      %v319 = vld [vmem:[%s317 + $0x4] sm:$0x3]
      %v320 = vld [vmem:[%s317 + $0x8] sm:$0x3]
      %v321 = vld [vmem:[%s317 + $0xc] sm:$0x3]
      %v322 = vunpack.c.l.bf16 %v318
      %v323 = vunpack.c.l.bf16 %v319
      %v324 = vunpack.c.l.bf16 %v320
      %v325 = vunpack.c.l.bf16 %v321
      %s326 = scalar_lea.vmem %s1, 4
      %v327 = vld [vmem:[%s326] sm:$0x1]
      %v329 = vlaneseq
      %v330 = vshrl.u32 %v329, 7
      %v331 = vsub.s32 0, %v330
      %v332 = vrot.slane %v327, %v331
      %v334 = vmul.f32 %v322, %v332
      %v335 = vmul.f32 %v323, %v332
      %v336 = vmul.f32 %v324, %v332
      %v337 = vmul.f32 %v325, %v332
      %v338 = vadd.f32 %v313, %v334
      %v339 = vadd.f32 %v314, %v335
      %v340 = vadd.f32 %v315, %v336
      %v341 = vadd.f32 %v316, %v337
      %v342 = vld [vmem:[%s292] sm:$0x7]
      %v343 = vld [vmem:[%s292 + $0x4] sm:$0x7]
      %v344 = vld [vmem:[%s292 + $0x8] sm:$0x7]
      %v345 = vld [vmem:[%s292 + $0xc] sm:$0x7]
      %v346 = vunpack.c.l.bf16 %v342
      %v347 = vunpack.c.l.bf16 %v343
      %v348 = vunpack.c.l.bf16 %v344
      %v349 = vunpack.c.l.bf16 %v345
      %s350 = scalar_lea.vmem %s1, 5
      %v351 = vld [vmem:[%s350] sm:$0x1]
      %v353 = vlaneseq
      %v354 = vshrl.u32 %v353, 7
      %v355 = vsub.s32 0, %v354
      %v356 = vrot.slane %v351, %v355
      %v358 = vmul.f32 %v346, %v356
      %v359 = vmul.f32 %v347, %v356
      %v360 = vmul.f32 %v348, %v356
      %v361 = vmul.f32 %v349, %v356
      %v366 = vrot.slane %v358, 1
      %v367 = vrot.slane %v359, 1
      %v368 = vrot.slane %v360, 1
      %v369 = vrot.slane %v361, 1
      %v374 = vadd.f32 %v338, %v366
      %v375 = vadd.f32 %v339, %v367
      %v376 = vadd.f32 %v340, %v368
      %v377 = vadd.f32 %v341, %v369
      %s378 = scalar_lea.vmem %s202, 4
      %v379 = vld [vmem:[%s378] sm:$0x3]
      %v380 = vld [vmem:[%s378 + $0x4] sm:$0x3]
      %v381 = vld [vmem:[%s378 + $0x8] sm:$0x3]
      %v382 = vld [vmem:[%s378 + $0xc] sm:$0x3]
      %v383 = vunpack.c.l.bf16 %v379
      %v384 = vunpack.c.l.bf16 %v380
      %v385 = vunpack.c.l.bf16 %v381
      %v386 = vunpack.c.l.bf16 %v382
      %s387 = scalar_lea.vmem %s1, 6
      %v388 = vld [vmem:[%s387] sm:$0x1]
      %v390 = vlaneseq
      %v391 = vshrl.u32 %v390, 7
      %v392 = vsub.s32 0, %v391
      %v393 = vrot.slane %v388, %v392
      %v395 = vmul.f32 %v383, %v393
      %v396 = vmul.f32 %v384, %v393
      %v397 = vmul.f32 %v385, %v393
      %v398 = vmul.f32 %v386, %v393
      %v399 = vadd.f32 %v374, %v395
      %v400 = vadd.f32 %v375, %v396
      %v401 = vadd.f32 %v376, %v397
      %v402 = vadd.f32 %v377, %v398
      %s403 = scalar_lea.vmem %s202, 24
      %v404 = vld [vmem:[%s403] sm:$0x3]
      %v405 = vld [vmem:[%s403 + $0x4] sm:$0x3]
      %v406 = vld [vmem:[%s403 + $0x8] sm:$0x3]
      %v407 = vld [vmem:[%s403 + $0xc] sm:$0x3]
      %v408 = vunpack.c.l.bf16 %v404
      %v409 = vunpack.c.l.bf16 %v405
      %v410 = vunpack.c.l.bf16 %v406
      %v411 = vunpack.c.l.bf16 %v407
      %s412 = scalar_lea.vmem %s1, 7
      %v413 = vld [vmem:[%s412] sm:$0x1]
      %v415 = vlaneseq
      %v416 = vshrl.u32 %v415, 7
      %v417 = vsub.s32 0, %v416
      %v418 = vrot.slane %v413, %v417
      %v420 = vmul.f32 %v408, %v418
      %v421 = vmul.f32 %v409, %v418
      %v422 = vmul.f32 %v410, %v418
      %v423 = vmul.f32 %v411, %v418
      %v424 = vadd.f32 %v399, %v420
      %v425 = vadd.f32 %v400, %v421
      %v426 = vadd.f32 %v401, %v422
      %v427 = vadd.f32 %v402, %v423
      %v428 = vld [vmem:[%s378] sm:$0x7]
      %v429 = vld [vmem:[%s378 + $0x4] sm:$0x7]
      %v430 = vld [vmem:[%s378 + $0x8] sm:$0x7]
      %v431 = vld [vmem:[%s378 + $0xc] sm:$0x7]
      %v432 = vunpack.c.l.bf16 %v428
      %v433 = vunpack.c.l.bf16 %v429
      %v434 = vunpack.c.l.bf16 %v430
      %v435 = vunpack.c.l.bf16 %v431
      %s436 = scalar_lea.vmem %s1, 8
      %v437 = vld [vmem:[%s436] sm:$0x1]
      %v439 = vlaneseq
      %v440 = vshrl.u32 %v439, 7
      %v441 = vsub.s32 0, %v440
      %v442 = vrot.slane %v437, %v441
      %v444 = vmul.f32 %v432, %v442
      %v445 = vmul.f32 %v433, %v442
      %v446 = vmul.f32 %v434, %v442
      %v447 = vmul.f32 %v435, %v442
      %v452 = vrot.slane %v444, 1
      %v453 = vrot.slane %v445, 1
      %v454 = vrot.slane %v446, 1
      %v455 = vrot.slane %v447, 1
      %v460 = vadd.f32 %v424, %v452
      %v461 = vadd.f32 %v425, %v453
      %v462 = vadd.f32 %v426, %v454
      %v463 = vadd.f32 %v427, %v455
      %v464 = vld [vmem:[%s2] sm:$0x1]
      %v466 = vlaneseq
      %v467 = vshrl.u32 %v466, 7
      %v468 = vsub.s32 0, %v467
      %v469 = vrot.slane %v464, %v468
      %v471 = vadd.f32 %v460, %v469
      %v472 = vadd.f32 %v461, %v469
      %v473 = vadd.f32 %v462, %v469
      %v474 = vadd.f32 %v463, %v469
      %v475 = vxor.u32 %v471, 2147483648
      %v476 = vxor.u32 %v472, 2147483648
      %v477 = vxor.u32 %v473, 2147483648
      %v478 = vxor.u32 %v474, 2147483648
      %v479 = vmul.f32 %v475, 1.442695
      %v480 = vpow.pop %v479
      %v481 = vmul.f32 %v476, 1.442695
      %v482 = vpow.pop %v481
      %v483 = vmul.f32 %v477, 1.442695
      %v484 = vpow.pop %v483
      %v485 = vmul.f32 %v478, 1.442695
      %v486 = vpow.pop %v485
      %v487 = vadd.f32 %v480, 1.0
      %v488 = vadd.f32 %v482, 1.0
      %v489 = vadd.f32 %v484, 1.0
      %v490 = vadd.f32 %v486, 1.0
      %v491 = vrcp.pop %v487
      %v492 = vmul.f32 1.0, %v491
      %v493 = vrcp.pop %v488
      %v494 = vmul.f32 1.0, %v493
      %v495 = vrcp.pop %v489
      %v496 = vmul.f32 1.0, %v495
      %v497 = vrcp.pop %v490
      %v498 = vmul.f32 1.0, %v497
      %v499 = vmul.f32 %v471, %v492
      %v500 = vmul.f32 %v472, %v494
      %v501 = vmul.f32 %v473, %v496
      %v502 = vmul.f32 %v474, %v498
      %v503 = vpack.c.bf16 %v499, %v499
      %v504 = vpack.c.bf16 %v500, %v500
      %v505 = vpack.c.bf16 %v501, %v501
      %v506 = vpack.c.bf16 %v502, %v502
      %vm507 = vcmask 779264
      %508 = vst.msk [vmem:[%s208] sm:$0x3] %vm507, %v503
      %509 = vst.msk [vmem:[%s208 + $0x2] sm:$0x3] %vm507, %v504
      %510 = vst.msk [vmem:[%s208 + $0x4] sm:$0x3] %vm507, %v505
      %511 = vst.msk [vmem:[%s208 + $0x6] sm:$0x3] %vm507, %v506
      %vm512 = vcmask 781312
      %v513 = vsel %vm512, %v499, 0.0
      %v514 = vsel %vm512, %v500, 0.0
      %v515 = vadd.f32 %v513, %v514
      %v516 = vsel %vm512, %v501, 0.0
      %v517 = vadd.f32 %v515, %v516
      %v518 = vsel %vm512, %v502, 0.0
      %v519 = vadd.f32 %v517, %v518
      %v520 = vsel %vm512, %v519, 0.0
      %v521 = vrot.slane %v520, 4
      %v522 = vadd.f32 %v520, %v521
      %v523 = vrot.slane %v522, 2
      %v524 = vadd.f32 %v522, %v523
      %v525 = vrot.slane %v524, 1
      %v526 = vadd.f32 %v524, %v525
      %v527 = vmul.f32 %v526, 0.0625
      %vm528 = vcmask 778240
      %529 = vst.msk [vmem:[%s211] sm:$0x1] %vm528, %v527
      %p530 = scmp.lt.s32.totalorder %s16, 1
      %s531 = scalar_select %p530, %s16, 1
      %s532 = smul.addr %s531, 4
      %s533 = smul.addr %s532, 2
      %s534 = scalar_lea.vmem %s3, %s533
      %p535 = scmp.lt.s32.totalorder %s16, 1
      %s536 = scalar_select %p535, %s16, 1
      %s537 = scalar_lea.vmem %s4, %s536
      // Predicated region
      $region33: #{efficientnet_forward.16} parent=31 // pred_check
        %p538 = pneg %p102
      $region34: #{efficientnet_forward.16} parent=31 // pred_check_branch
        %540 = sbr.rel (%p538) target = $region36
      $region35: #{efficientnet_forward.16} parent=31 // pred_region
        _
      $region36: #{efficientnet_forward.16} parent=31 // pred_fallthru
        _
      // Predicated region
      $region37: #{efficientnet_forward.16} parent=31 // pred_check
        %p541 = pneg %p128
      $region38: #{efficientnet_forward.16} parent=31 // pred_check_branch
        %543 = sbr.rel (%p541) target = $region40
      $region39: #{efficientnet_forward.16} parent=31 // pred_region
        _
      $region40: #{efficientnet_forward.16} parent=31 // pred_fallthru
        _
    $region32: #{efficientnet_forward.16} parent=5 // pred_fallthru
      _
    %p544 = scmp.le.s32.totalorder 2, %s11
    // Predicated region
    $region41: #{efficientnet_forward.16} parent=5 // pred_check
      %p545 = pneg %p544
    $region42: #{efficientnet_forward.16} parent=5 // pred_check_branch
      %547 = sbr.rel (%p545) target = $region44
    $region43: #{efficientnet_forward.16} parent=5 // pred_region
      %s548 = ssub.s32 %s11, 2
      // Predicated region
      $region45: #{efficientnet_forward.16} parent=43 // pred_check
        %p549 = pneg %p108
      $region46: #{efficientnet_forward.16} parent=43 // pred_check_branch
        %551 = sbr.rel (%p549) target = $region48
      $region47: #{efficientnet_forward.16} parent=43 // pred_region
        %p552 = scmp.lt.s32.totalorder %s17, 1
        %s553 = scalar_select %p552, %s17, 1
        %s554 = smul.addr %s553, 4
        %s555 = smul.addr %s554, 2
        %s556 = scalar_lea.vmem %s3, %s555
      $region48: #{efficientnet_forward.16} parent=43 // pred_fallthru
        _
      // Predicated region
      $region49: #{efficientnet_forward.16} parent=43 // pred_check
        %p557 = pneg %p134
      $region50: #{efficientnet_forward.16} parent=43 // pred_check_branch
        %559 = sbr.rel (%p557) target = $region52
      $region51: #{efficientnet_forward.16} parent=43 // pred_region
        %p560 = scmp.lt.s32.totalorder %s17, 1
        %s561 = scalar_select %p560, %s17, 1
        %s562 = scalar_lea.vmem %s4, %s561
      $region52: #{efficientnet_forward.16} parent=43 // pred_fallthru
        _
    $region44: #{efficientnet_forward.16} parent=5 // pred_fallthru
      _
  $region6: #{efficientnet_forward.16} parent=0 // loop_footer
    %s15 = sadd.s32 1, %s11
  $region7: #{efficientnet_forward.16} parent=0 // loop_footer_branch
    %10 = sbr.rel target = $region3
  $region8: #{efficientnet_forward.16} parent=0 // loop_exit
    _

// kernel: efficientnet_forward.17
$region0: #{efficientnet_forward.17}
  #allocation0 [shape = 'u32[]', space=smem, size = 0x4, offset = 0x4, fixed_abs, tag = 'smem constant byte address 0x4 - core index']
  #allocation1 [shape = 'u32[144,128]{1,0:T(1,128)}', space=vmem, size = 0x12000, scoped, tag = 'internal scratch']
  %s0 = inlined_call_operand.vmem [shape: bf16[2,16,96], index: 0, kind: input, shape index: {}]
  %s1 = inlined_call_operand.vmem [shape: f32[2,1,96], index: 1, kind: input, shape index: {}]
  %s2 = inlined_call_operand.vmem [shape: f32[96,24], index: 2, kind: input, shape index: {}]
  %s3 = inlined_call_operand.vmem [shape: f32[1,24], index: 3, kind: input, shape index: {}]
  %s4 = inlined_call_operand.vmem [shape: f32[24,96], index: 4, kind: input, shape index: {}]
  %s5 = inlined_call_operand.vmem [shape: f32[1,96], index: 5, kind: input, shape index: {}]
  %s6 = inlined_call_operand.vmem [shape: bf16[96,24], index: 6, kind: input, shape index: {}]
  %s7 = inlined_call_operand.vmem [shape: f32[1,24], index: 7, kind: input, shape index: {}]
  %s8 = inlined_call_operand.vmem [shape: bf16[2,16,24], index: 8, kind: output, shape index: {}]
  %s9 = sld [smem:[#allocation0]]
  $region65: #{efficientnet_forward.17} parent=0
    _
  %s11 = ssub.s32 1, %s9
  %s12 = scalar_select 0, %s11, %s9
  loop: start=0, step=1, limit=4
  $region2: #{efficientnet_forward.17} parent=0 // loop_pre_header
    _
  $region3: #{efficientnet_forward.17} parent=0 // loop_header
    %s14 = sphi 0, %s18
    %p15 = scmp.ge.s32.totalorder %s14, 4
    %s24 = sphi 0, %s26
    %s27 = sphi 0, %s24
    %s28 = sphi 0, %s27
    %s44 = sphi 0, %s28
    %s50 = sphi 0, %s52
    %s53 = sphi 0, %s50
    %s54 = sphi 0, %s53
    %s70 = sphi 0, %s54
    %s74 = sphi 0, %s74
    %s76 = sphi 0, %s74
    %s77 = sphi 0, %s76
    %s91 = sphi 0, %s77
    %s95 = sphi 0, %s95
    %s97 = sphi 0, %s95
    %s98 = sphi 0, %s97
    %s112 = sphi 0, %s98
    %s116 = sphi 0, %s116
    %s118 = sphi 0, %s116
    %s119 = sphi 0, %s118
    %s133 = sphi 0, %s119
    %s137 = sphi 0, %s137
    %s139 = sphi 0, %s137
    %s140 = sphi 0, %s139
    %s154 = sphi 0, %s140
    %s158 = sphi 0, %s158
    %s160 = sphi 0, %s158
    %s161 = sphi 0, %s160
    %s175 = sphi 0, %s161
    %s179 = sphi 0, %s179
    %s181 = sphi 0, %s179
    %s182 = sphi 0, %s181
    %s196 = sphi 0, %s182
    %s202 = sphi 0, %s204
    %s205 = sphi 0, %s202
    %s206 = sphi 0, %s205
    %s222 = sphi 0, %s206
  $region4: #{efficientnet_forward.17} parent=0 // loop_header_branch
    %17 = sbr.rel (%p15) target = $region8
  $region5: #{efficientnet_forward.17} parent=0 // loop_body
    %s19 = ssub.s32 %s14, 1
    %s20 = ssub.s32 %s14, 2
    %s21 = sadd.s32 %s14, 1
    %s22 = ssub.s32 %s14, %s21
    %p23 = scmp.eq.s32.totalorder %s22, 0
    %s25 = sadd.s32 %s24, 1
    %s26 = scalar_select %p23, %s24, %s25
    %p29 = pneg %p23
    %p30 = scmp.eq.s32.totalorder %s14, 1
    %p31 = por %p29, %p30
    %p32 = scmp.ne.s32.totalorder %s24, %s27
    %p33 = scmp.eq.s32.totalorder %s14, 0
    %p34 = por %p32, %p33
    %p35 = scmp.ne.s32.totalorder %s24, %s27
    %p36 = scmp.eq.s32.totalorder %s19, 1
    %p37 = por %p35, %p36
    %p38 = scmp.ne.s32.totalorder %s27, %s28
    %p39 = scmp.eq.s32.totalorder %s19, 0
    %p40 = por %p38, %p39
    %p41 = scmp.ne.s32.totalorder %s27, %s28
    %p42 = scmp.eq.s32.totalorder %s20, 1
    %p43 = por %p41, %p42
    %p45 = scmp.ne.s32.totalorder %s28, %s44
    %p46 = scmp.eq.s32.totalorder %s20, 0
    %p47 = por %p45, %p46
    %s48 = ssub.s32 %s14, %s21
    %p49 = scmp.eq.s32.totalorder %s48, 0
    %s51 = sadd.s32 %s50, 1
    %s52 = scalar_select %p49, %s50, %s51
    %p55 = pneg %p49
    %p56 = scmp.eq.s32.totalorder %s14, 1
    %p57 = por %p55, %p56
    %p58 = scmp.ne.s32.totalorder %s50, %s53
    %p59 = scmp.eq.s32.totalorder %s14, 0
    %p60 = por %p58, %p59
    %p61 = scmp.ne.s32.totalorder %s50, %s53
    %p62 = scmp.eq.s32.totalorder %s19, 1
    %p63 = por %p61, %p62
    %p64 = scmp.ne.s32.totalorder %s53, %s54
    %p65 = scmp.eq.s32.totalorder %s19, 0
    %p66 = por %p64, %p65
    %p67 = scmp.ne.s32.totalorder %s53, %s54
    %p68 = scmp.eq.s32.totalorder %s20, 1
    %p69 = por %p67, %p68
    %p71 = scmp.ne.s32.totalorder %s54, %s70
    %p72 = scmp.eq.s32.totalorder %s20, 0
    %p73 = por %p71, %p72
    %s75 = sadd.s32 %s74, 1
    %p78 = scmp.eq.s32.totalorder %s14, 1
    %p79 = scmp.ne.s32.totalorder %s74, %s76
    %p80 = scmp.eq.s32.totalorder %s14, 0
    %p81 = por %p79, %p80
    %p82 = scmp.ne.s32.totalorder %s74, %s76
    %p83 = scmp.eq.s32.totalorder %s19, 1
    %p84 = por %p82, %p83
    %p85 = scmp.ne.s32.totalorder %s76, %s77
    %p86 = scmp.eq.s32.totalorder %s19, 0
    %p87 = por %p85, %p86
    %p88 = scmp.ne.s32.totalorder %s76, %s77
    %p89 = scmp.eq.s32.totalorder %s20, 1
    %p90 = por %p88, %p89
    %p92 = scmp.ne.s32.totalorder %s77, %s91
    %p93 = scmp.eq.s32.totalorder %s20, 0
    %p94 = por %p92, %p93
    %s96 = sadd.s32 %s95, 1
    %p99 = scmp.eq.s32.totalorder %s14, 1
    %p100 = scmp.ne.s32.totalorder %s95, %s97
    %p101 = scmp.eq.s32.totalorder %s14, 0
    %p102 = por %p100, %p101
    %p103 = scmp.ne.s32.totalorder %s95, %s97
    %p104 = scmp.eq.s32.totalorder %s19, 1
    %p105 = por %p103, %p104
    %p106 = scmp.ne.s32.totalorder %s97, %s98
    %p107 = scmp.eq.s32.totalorder %s19, 0
    %p108 = por %p106, %p107
    %p109 = scmp.ne.s32.totalorder %s97, %s98
    %p110 = scmp.eq.s32.totalorder %s20, 1
    %p111 = por %p109, %p110
    %p113 = scmp.ne.s32.totalorder %s98, %s112
    %p114 = scmp.eq.s32.totalorder %s20, 0
    %p115 = por %p113, %p114
    %s117 = sadd.s32 %s116, 1
    %p120 = scmp.eq.s32.totalorder %s14, 1
    %p121 = scmp.ne.s32.totalorder %s116, %s118
    %p122 = scmp.eq.s32.totalorder %s14, 0
    %p123 = por %p121, %p122
    %p124 = scmp.ne.s32.totalorder %s116, %s118
    %p125 = scmp.eq.s32.totalorder %s19, 1
    %p126 = por %p124, %p125
    %p127 = scmp.ne.s32.totalorder %s118, %s119
    %p128 = scmp.eq.s32.totalorder %s19, 0
    %p129 = por %p127, %p128
    %p130 = scmp.ne.s32.totalorder %s118, %s119
    %p131 = scmp.eq.s32.totalorder %s20, 1
    %p132 = por %p130, %p131
    %p134 = scmp.ne.s32.totalorder %s119, %s133
    %p135 = scmp.eq.s32.totalorder %s20, 0
    %p136 = por %p134, %p135
    %s138 = sadd.s32 %s137, 1
    %p141 = scmp.eq.s32.totalorder %s14, 1
    %p142 = scmp.ne.s32.totalorder %s137, %s139
    %p143 = scmp.eq.s32.totalorder %s14, 0
    %p144 = por %p142, %p143
    %p145 = scmp.ne.s32.totalorder %s137, %s139
    %p146 = scmp.eq.s32.totalorder %s19, 1
    %p147 = por %p145, %p146
    %p148 = scmp.ne.s32.totalorder %s139, %s140
    %p149 = scmp.eq.s32.totalorder %s19, 0
    %p150 = por %p148, %p149
    %p151 = scmp.ne.s32.totalorder %s139, %s140
    %p152 = scmp.eq.s32.totalorder %s20, 1
    %p153 = por %p151, %p152
    %p155 = scmp.ne.s32.totalorder %s140, %s154
    %p156 = scmp.eq.s32.totalorder %s20, 0
    %p157 = por %p155, %p156
    %s159 = sadd.s32 %s158, 1
    %p162 = scmp.eq.s32.totalorder %s14, 1
    %p163 = scmp.ne.s32.totalorder %s158, %s160
    %p164 = scmp.eq.s32.totalorder %s14, 0
    %p165 = por %p163, %p164
    %p166 = scmp.ne.s32.totalorder %s158, %s160
    %p167 = scmp.eq.s32.totalorder %s19, 1
    %p168 = por %p166, %p167
    %p169 = scmp.ne.s32.totalorder %s160, %s161
    %p170 = scmp.eq.s32.totalorder %s19, 0
    %p171 = por %p169, %p170
    %p172 = scmp.ne.s32.totalorder %s160, %s161
    %p173 = scmp.eq.s32.totalorder %s20, 1
    %p174 = por %p172, %p173
    %p176 = scmp.ne.s32.totalorder %s161, %s175
    %p177 = scmp.eq.s32.totalorder %s20, 0
    %p178 = por %p176, %p177
    %s180 = sadd.s32 %s179, 1
    %p183 = scmp.eq.s32.totalorder %s14, 1
    %p184 = scmp.ne.s32.totalorder %s179, %s181
    %p185 = scmp.eq.s32.totalorder %s14, 0
    %p186 = por %p184, %p185
    %p187 = scmp.ne.s32.totalorder %s179, %s181
    %p188 = scmp.eq.s32.totalorder %s19, 1
    %p189 = por %p187, %p188
    %p190 = scmp.ne.s32.totalorder %s181, %s182
    %p191 = scmp.eq.s32.totalorder %s19, 0
    %p192 = por %p190, %p191
    %p193 = scmp.ne.s32.totalorder %s181, %s182
    %p194 = scmp.eq.s32.totalorder %s20, 1
    %p195 = por %p193, %p194
    %p197 = scmp.ne.s32.totalorder %s182, %s196
    %p198 = scmp.eq.s32.totalorder %s20, 0
    %p199 = por %p197, %p198
    %s200 = ssub.s32 %s14, %s21
    %p201 = scmp.eq.s32.totalorder %s200, 0
    %s203 = sadd.s32 %s202, 1
    %s204 = scalar_select %p201, %s202, %s203
    %p207 = pneg %p201
    %p208 = scmp.eq.s32.totalorder %s14, 1
    %p209 = por %p207, %p208
    %p210 = scmp.ne.s32.totalorder %s202, %s205
    %p211 = scmp.eq.s32.totalorder %s14, 0
    %p212 = por %p210, %p211
    %p213 = scmp.ne.s32.totalorder %s202, %s205
    %p214 = scmp.eq.s32.totalorder %s19, 1
    %p215 = por %p213, %p214
    %p216 = scmp.ne.s32.totalorder %s205, %s206
    %p217 = scmp.eq.s32.totalorder %s19, 0
    %p218 = por %p216, %p217
    %p219 = scmp.ne.s32.totalorder %s205, %s206
    %p220 = scmp.eq.s32.totalorder %s20, 1
    %p221 = por %p219, %p220
    %p223 = scmp.ne.s32.totalorder %s206, %s222
    %p224 = scmp.eq.s32.totalorder %s20, 0
    %p225 = por %p223, %p224
    %p226 = scmp.le.s32.totalorder 1, %s14
    %p227 = scmp.lt.s32.totalorder %s14, 3
    %p228 = pnand %p226, %p227
    %p229 = pneg %p228
    // Predicated region
    $region9: #{efficientnet_forward.17} parent=5 // pred_check
      _
    $region10: #{efficientnet_forward.17} parent=5 // pred_check_branch
      %231 = sbr.rel (%p228) target = $region12
    $region11: #{efficientnet_forward.17} parent=5 // pred_region
      %s232 = ssub.s32 %s14, 1
      // Predicated region
      $region13: #{efficientnet_forward.17} parent=11 // pred_check
        %p233 = pneg %p87
      $region14: #{efficientnet_forward.17} parent=11 // pred_check_branch
        %235 = sbr.rel (%p233) target = $region16
      $region15: #{efficientnet_forward.17} parent=11 // pred_region
        _
      $region16: #{efficientnet_forward.17} parent=11 // pred_fallthru
        _
      // Predicated region
      $region17: #{efficientnet_forward.17} parent=11 // pred_check
        %p236 = pneg %p108
      $region18: #{efficientnet_forward.17} parent=11 // pred_check_branch
        %238 = sbr.rel (%p236) target = $region20
      $region19: #{efficientnet_forward.17} parent=11 // pred_region
        _
      $region20: #{efficientnet_forward.17} parent=11 // pred_fallthru
        _
      // Predicated region
      $region21: #{efficientnet_forward.17} parent=11 // pred_check
        %p239 = pneg %p129
      $region22: #{efficientnet_forward.17} parent=11 // pred_check_branch
        %241 = sbr.rel (%p239) target = $region24
      $region23: #{efficientnet_forward.17} parent=11 // pred_region
        _
      $region24: #{efficientnet_forward.17} parent=11 // pred_fallthru
        _
      // Predicated region
      $region25: #{efficientnet_forward.17} parent=11 // pred_check
        %p242 = pneg %p150
      $region26: #{efficientnet_forward.17} parent=11 // pred_check_branch
        %244 = sbr.rel (%p242) target = $region28
      $region27: #{efficientnet_forward.17} parent=11 // pred_region
        _
      $region28: #{efficientnet_forward.17} parent=11 // pred_fallthru
        _
      // Predicated region
      $region29: #{efficientnet_forward.17} parent=11 // pred_check
        %p245 = pneg %p171
      $region30: #{efficientnet_forward.17} parent=11 // pred_check_branch
        %247 = sbr.rel (%p245) target = $region32
      $region31: #{efficientnet_forward.17} parent=11 // pred_region
        _
      $region32: #{efficientnet_forward.17} parent=11 // pred_fallthru
        _
      // Predicated region
      $region33: #{efficientnet_forward.17} parent=11 // pred_check
        %p248 = pneg %p192
      $region34: #{efficientnet_forward.17} parent=11 // pred_check_branch
        %250 = sbr.rel (%p248) target = $region36
      $region35: #{efficientnet_forward.17} parent=11 // pred_region
        _
      $region36: #{efficientnet_forward.17} parent=11 // pred_fallthru
        _
    $region12: #{efficientnet_forward.17} parent=5 // pred_fallthru
      _
    %p251 = scmp.lt.s32.totalorder %s14, 2
    // Predicated region
    $region37: #{efficientnet_forward.17} parent=5 // pred_check
      %p252 = pneg %p251
    $region38: #{efficientnet_forward.17} parent=5 // pred_check_branch
      %254 = sbr.rel (%p252) target = $region40
    $region39: #{efficientnet_forward.17} parent=5 // pred_region
      // Predicated region
      $region41: #{efficientnet_forward.17} parent=39 // pred_check
        %p255 = pneg %p34
      $region42: #{efficientnet_forward.17} parent=39 // pred_check_branch
        %257 = sbr.rel (%p255) target = $region44
      $region43: #{efficientnet_forward.17} parent=39 // pred_region
        %p258 = scmp.lt.s32.totalorder %s14, 1
        %s259 = scalar_select %p258, %s14, 1
        %s260 = smul.addr %s259, 2
        %s261 = smul.addr %s260, 4
        %s262 = scalar_lea.vmem %s0, %s261
      $region44: #{efficientnet_forward.17} parent=39 // pred_fallthru
        _
      // Predicated region
      $region45: #{efficientnet_forward.17} parent=39 // pred_check
        %p263 = pneg %p60
      $region46: #{efficientnet_forward.17} parent=39 // pred_check_branch
        %265 = sbr.rel (%p263) target = $region48
      $region47: #{efficientnet_forward.17} parent=39 // pred_region
        %p266 = scmp.lt.s32.totalorder %s14, 1
        %s267 = scalar_select %p266, %s14, 1
        %s268 = scalar_lea.vmem %s1, %s267
      $region48: #{efficientnet_forward.17} parent=39 // pred_fallthru
        _
    $region40: #{efficientnet_forward.17} parent=5 // pred_fallthru
      _
    %p269 = scmp.le.s32.totalorder 1, %s14
    %p270 = scmp.lt.s32.totalorder %s14, 3
    %p271 = pnand %p269, %p270
    %p272 = pneg %p271
    // Predicated region
    $region49: #{efficientnet_forward.17} parent=5 // pred_check
      _
    $region50: #{efficientnet_forward.17} parent=5 // pred_check_branch
      %274 = sbr.rel (%p271) target = $region52
    $region51: #{efficientnet_forward.17} parent=5 // pred_region
      %s275 = ssub.s32 %s14, 1
      %p276 = scmp.lt.s32.totalorder %s19, 1
      %s277 = scalar_select %p276, %s19, 1
      %s278 = smul.addr %s277, 2
      %s279 = smul.addr %s278, 4
      %s280 = scalar_lea.vmem %s0, %s279
      %p281 = pneg %p40
      %p282 = pneg %p37
      %p283 = scmp.lt.s32.totalorder %s19, 1
      %s284 = scalar_select %p283, %s19, 1
      %s285 = scalar_lea.vmem %s1, %s284
      %p286 = pneg %p66
      %p287 = pneg %p63
      %p288 = pneg %p87
      %p289 = pneg %p84
      %p290 = pneg %p108
      %p291 = pneg %p105
      %p292 = pneg %p129
      %p293 = pneg %p126
      %p294 = pneg %p150
      %p295 = pneg %p147
      %p296 = pneg %p171
      %p297 = pneg %p168
      %p298 = pneg %p192
      %p299 = pneg %p189
      %p300 = pneg %p218
      %p301 = pneg %p215
      %p302 = scmp.lt.s32.totalorder %s19, 1
      %s303 = scalar_select %p302, %s19, 1
      %s304 = smul.addr %s303, 2
      %s305 = smul.addr %s304, 4
      %s306 = scalar_lea.vmem %s8, %s305
      %p307 = scmp.lt.s32.totalorder %s19, 1
      %s308 = scalar_select %p307, %s19, 1
      %s309 = smul.addr %s308, 2
      %s310 = smul.addr %s309, 4
      %s311 = scalar_lea.vmem %s0, %s310
      %p312 = scmp.lt.s32.totalorder %s19, 1
      %s313 = scalar_select %p312, %s19, 1
      %s314 = scalar_lea.vmem %s1, %s313
      %p315 = scmp.lt.s32.totalorder %s19, 1
      %s316 = scalar_select %p315, %s19, 1
      %s317 = smul.addr %s316, 2
      %s318 = smul.addr %s317, 4
      %s319 = scalar_lea.vmem %s8, %s318
      %v321 = vld [vmem:[%s314] sm:$0x1]
      %v322 = vld [vmem:[%s2] sm:$0xff]
      %v323 = vld [vmem:[%s2 + $0x8] sm:$0xff]
      %v324 = vld [vmem:[%s2 + $0x10] sm:$0xff]
      %v325 = vld [vmem:[%s2 + $0x18] sm:$0xff]
      %v326 = vld [vmem:[%s2 + $0x20] sm:$0xff]
      %v327 = vld [vmem:[%s2 + $0x28] sm:$0xff]
      %v328 = vld [vmem:[%s2 + $0x30] sm:$0xff]
      %v329 = vld [vmem:[%s2 + $0x38] sm:$0xff]
      %v330 = vld [vmem:[%s2 + $0x40] sm:$0xff]
      %v331 = vld [vmem:[%s2 + $0x48] sm:$0xff]
      %v332 = vld [vmem:[%s2 + $0x50] sm:$0xff]
      %v333 = vld [vmem:[%s2 + $0x58] sm:$0xff]
      %v334 = vld [vmem:[%s3] sm:$0x1]
      %vm335 = vcmask 785408
      %v337 = vsel %vm335, %v321, 0
      %339 = vmatprep.subr.mxu0 0.0
      %340 = vmatpush1.msra.mxu0 0.0
      %341 = vmatprep.subr.mxu0 0.0
      %342 = vmatpush1.msra.mxu0 0.0
      %343 = vmatprep.subr.mxu0 0.0
      %344 = vmatpush1.msra.mxu0 0.0
      %345 = vmatprep.subr.mxu0 0.0
      %346 = vmatpush1.msra.mxu0 0.0
      %347 = vmatprep.subr.mxu0 0.0
      %348 = vmatpush1.msra.mxu0 %v333
      %349 = vmatprep.subr.mxu0 0.0
      %350 = vmatpush1.msra.mxu0 %v332
      %351 = vmatprep.subr.mxu0 0.0
      %352 = vmatpush1.msra.mxu0 %v331
      %353 = vmatprep.subr.mxu0 0.0
      %354 = vmatpush1.msra.mxu0 %v330
      %355 = vmatprep.subr.mxu0 0.0
      %356 = vmatpush1.msra.mxu0 %v329
      %357 = vmatprep.subr.mxu0 0.0
      %358 = vmatpush1.msra.mxu0 %v328
      %359 = vmatprep.subr.mxu0 0.0
      %360 = vmatpush1.msra.mxu0 %v327
      %361 = vmatprep.subr.mxu0 0.0
      %362 = vmatpush1.msra.mxu0 %v326
      %363 = vmatprep.subr.mxu0 0.0
      %364 = vmatpush1.msra.mxu0 %v325
      %365 = vmatprep.subr.mxu0 0.0
      %366 = vmatpush1.msra.mxu0 %v324
      %367 = vmatprep.subr.mxu0 0.0
      %368 = vmatpush1.msra.mxu0 %v323
      %369 = vmatprep.subr.mxu0 0.0
      %370 = vmatpush1.msra.mxu0 %v322
      %371 = vmatprep.subr.mxu0 0.0
      %372 = vmatpush2.msra.mxu0 0.0
      %373 = vmatprep.subr.mxu0 0.0
      %374 = vmatpush2.msra.mxu0 0.0
      %375 = vmatprep.subr.mxu0 0.0
      %376 = vmatpush2.msra.mxu0 0.0
      %377 = vmatprep.subr.mxu0 0.0
      %378 = vmatpush2.msra.mxu0 0.0
      %379 = vmatprep.subr.mxu0 0.0
      %380 = vmatpush2.msra.mxu0 0.0
      %381 = vmatprep.subr.mxu0 0.0
      %382 = vmatpush2.msra.mxu0 0.0
      %383 = vmatprep.subr.mxu0 0.0
      %384 = vmatpush2.msra.mxu0 0.0
      %385 = vmatprep.subr.mxu0 0.0
      %386 = vmatpush2.msra.mxu0 0.0
      %387 = vmatprep.subr.mxu0 0.0
      %388 = vmatpush2.msra.mxu0 0.0
      %389 = vmatprep.subr.mxu0 0.0
      %390 = vmatpush2.msra.mxu0 0.0
      %391 = vmatprep.subr.mxu0 0.0
      %392 = vmatpush2.msra.mxu0 0.0
      %393 = vmatprep.subr.mxu0 0.0
      %394 = vmatpush2.msra.mxu0 0.0
      %395 = vmatprep.subr.mxu0 0.0
      %396 = vmatpush2.msra.mxu0 0.0
      %397 = vmatprep.subr.mxu0 0.0
      %398 = vmatpush2.msra.mxu0 0.0
      %399 = vmatprep.subr.mxu0 0.0
      %400 = vmatpush2.msra.mxu0 0.0
      %401 = vmatprep.subr.mxu0 0.0
      %402 = vmatpush2.msra.mxu0 0.0
      %403 = vmatprep.mubr.f32.mxu0 0.0
      %404 = vmatmul.mubr.f32.gmra.mxu0 %v337
      %v405 = vpop.f32.mrf.mxu0
      %v406 = vadd.f32 %v334, %v405
      %v407 = vpop.f32.mrf.mxu0
      %408 = vdwg.mxu0
      %v409 = vxor.u32 %v406, 2147483648
      %v410 = vmul.f32 %v409, 1.442695
      %v411 = vpow.pop %v410
      %v412 = vadd.f32 %v411, 1.0
      %v413 = vrcp.pop %v412
      %v414 = vmul.f32 1.0, %v413
      %v415 = vmul.f32 %v406, %v414
      %v416 = vld [vmem:[%s4] sm:$0xff]
      %v417 = vld [vmem:[%s4 + $0x8] sm:$0xff]
      %v418 = vld [vmem:[%s4 + $0x10] sm:$0xff]
      %v419 = vld [vmem:[%s5] sm:$0x1]
      %vm420 = vcmask 195584
      %v422 = vsel %vm420, %v415, 0
      %424 = vmatprep.subr.mxu0 0.0
      %425 = vmatpush1.msra.mxu0 0.0
      %426 = vmatprep.subr.mxu0 0.0
      %427 = vmatpush1.msra.mxu0 0.0
      %428 = vmatprep.subr.mxu0 0.0
      %429 = vmatpush1.msra.mxu0 0.0
      %430 = vmatprep.subr.mxu0 0.0
      %431 = vmatpush1.msra.mxu0 0.0
      %432 = vmatprep.subr.mxu0 0.0
      %433 = vmatpush1.msra.mxu0 0.0
      %434 = vmatprep.subr.mxu0 0.0
      %435 = vmatpush1.msra.mxu0 0.0
      %436 = vmatprep.subr.mxu0 0.0
      %437 = vmatpush1.msra.mxu0 0.0
      %438 = vmatprep.subr.mxu0 0.0
      %439 = vmatpush1.msra.mxu0 0.0
      %440 = vmatprep.subr.mxu0 0.0
      %441 = vmatpush1.msra.mxu0 0.0
      %442 = vmatprep.subr.mxu0 0.0
      %443 = vmatpush1.msra.mxu0 0.0
      %444 = vmatprep.subr.mxu0 0.0
      %445 = vmatpush1.msra.mxu0 0.0
      %446 = vmatprep.subr.mxu0 0.0
      %447 = vmatpush1.msra.mxu0 0.0
      %448 = vmatprep.subr.mxu0 0.0
      %449 = vmatpush1.msra.mxu0 0.0
      %450 = vmatprep.subr.mxu0 0.0
      %451 = vmatpush1.msra.mxu0 %v418
      %452 = vmatprep.subr.mxu0 0.0
      %453 = vmatpush1.msra.mxu0 %v417
      %454 = vmatprep.subr.mxu0 0.0
      %455 = vmatpush1.msra.mxu0 %v416
      %456 = vmatprep.subr.mxu0 0.0
      %457 = vmatpush2.msra.mxu0 0.0
      %458 = vmatprep.subr.mxu0 0.0
      %459 = vmatpush2.msra.mxu0 0.0
      %460 = vmatprep.subr.mxu0 0.0
      %461 = vmatpush2.msra.mxu0 0.0
      %462 = vmatprep.subr.mxu0 0.0
      %463 = vmatpush2.msra.mxu0 0.0
      %464 = vmatprep.subr.mxu0 0.0
      %465 = vmatpush2.msra.mxu0 0.0
      %466 = vmatprep.subr.mxu0 0.0
      %467 = vmatpush2.msra.mxu0 0.0
      %468 = vmatprep.subr.mxu0 0.0
      %469 = vmatpush2.msra.mxu0 0.0
      %470 = vmatprep.subr.mxu0 0.0
      %471 = vmatpush2.msra.mxu0 0.0
      %472 = vmatprep.subr.mxu0 0.0
      %473 = vmatpush2.msra.mxu0 0.0
      %474 = vmatprep.subr.mxu0 0.0
      %475 = vmatpush2.msra.mxu0 0.0
      %476 = vmatprep.subr.mxu0 0.0
      %477 = vmatpush2.msra.mxu0 0.0
      %478 = vmatprep.subr.mxu0 0.0
      %479 = vmatpush2.msra.mxu0 0.0
      %480 = vmatprep.subr.mxu0 0.0
      %481 = vmatpush2.msra.mxu0 0.0
      %482 = vmatprep.subr.mxu0 0.0
      %483 = vmatpush2.msra.mxu0 0.0
      %484 = vmatprep.subr.mxu0 0.0
      %485 = vmatpush2.msra.mxu0 0.0
      %486 = vmatprep.subr.mxu0 0.0
      %487 = vmatpush2.msra.mxu0 0.0
      %488 = vmatprep.mubr.f32.mxu0 0.0
      %489 = vmatmul.mubr.f32.gmra.mxu0 %v422
      %v490 = vpop.f32.mrf.mxu0
      %v491 = vadd.f32 %v419, %v490
      %v492 = vpop.f32.mrf.mxu0
      %493 = vdwg.mxu0
      %v494 = vxor.u32 %v491, 2147483648
      %v495 = vmul.f32 %v494, 1.442695
      %v496 = vpow.pop %v495
      %v497 = vadd.f32 %v496, 1.0
      %v498 = vrcp.pop %v497
      %v499 = vmul.f32 1.0, %v498
      %v500 = vld [vmem:[%s311] sm:$0xf]
      %v501 = vld [vmem:[%s311 + $0x4] sm:$0xf]
      %v502 = vunpack.c.l.bf16 %v500
      %v503 = vunpack.c.l.bf16 %v501
      %v504 = vlaneseq
      %v505 = vshrl.u32 %v504, 7
      %v506 = vsub.s32 0, %v505
      %v507 = vrot.slane %v499, %v506
      %v508 = vmul.f32 %v502, %v507
      %v509 = vmul.f32 %v503, %v507
      %v510 = vpack.c.bf16 %v509, %v508
      %v511 = vld [vmem:[%s6] sm:$0xf]
      %v512 = vld [vmem:[%s6 + $0x4] sm:$0xf]
      %v513 = vld [vmem:[%s6 + $0x8] sm:$0xf]
      %v514 = vld [vmem:[%s6 + $0xc] sm:$0xf]
      %v515 = vld [vmem:[%s6 + $0x10] sm:$0xf]
      %v516 = vld [vmem:[%s6 + $0x14] sm:$0xf]
      %v517 = vld [vmem:[%s6 + $0x18] sm:$0xf]
      %v518 = vld [vmem:[%s6 + $0x1c] sm:$0xf]
      %v519 = vld [vmem:[%s6 + $0x20] sm:$0xf]
      %v520 = vld [vmem:[%s6 + $0x24] sm:$0xf]
      %v521 = vld [vmem:[%s6 + $0x28] sm:$0xf]
      %v522 = vld [vmem:[%s6 + $0x2c] sm:$0xf]
      %v523 = vld [vmem:[%s7] sm:$0x1]
      %v525 = vlaneseq
      %v526 = vshrl.u32 %v525, 7
      %v527 = vsub.s32 0, %v526
      %v528 = vrot.slane %v523, %v527
      %v542 = vunpack.c.l.b16 %v511
      %v543 = vunpack.c.l.b16 %v512
      %v544 = vunpack.c.l.b16 %v513
      %v545 = vunpack.c.l.b16 %v514
      %v546 = vunpack.c.l.b16 %v515
      %v547 = vunpack.c.l.b16 %v516
      %v548 = vunpack.c.l.b16 %v517
      %v549 = vunpack.c.l.b16 %v518
      %v550 = vunpack.c.l.b16 %v519
      %v551 = vunpack.c.l.b16 %v520
      %v552 = vunpack.c.l.b16 %v521
      %v553 = vunpack.c.l.b16 %v522
      %v554 = vpack.c.b16 %v543, %v542
      %v555 = vpack.c.b16 %v545, %v544
      %v556 = vpack.c.b16 %v547, %v546
      %v557 = vpack.c.b16 %v549, %v548
      %v558 = vpack.c.b16 %v551, %v550
      %v559 = vpack.c.b16 %v553, %v552
      %v567 = vsel %vm335, %v510, 0
      %569 = vmatprep.subr.bf16.mxu0 0
      %570 = vmatpush1.bf16.msra.mxu0 0
      %571 = vmatprep.subr.bf16.mxu0 0
      %572 = vmatpush1.bf16.msra.mxu0 0
      %573 = vmatprep.subr.bf16.mxu0 0
      %574 = vmatpush1.bf16.msra.mxu0 %v559
      %575 = vmatprep.subr.bf16.mxu0 0
      %576 = vmatpush1.bf16.msra.mxu0 %v558
      %577 = vmatprep.subr.bf16.mxu0 0
      %578 = vmatpush1.bf16.msra.mxu0 %v557
      %579 = vmatprep.subr.bf16.mxu0 0
      %580 = vmatpush1.bf16.msra.mxu0 %v556
      %581 = vmatprep.subr.bf16.mxu0 0
      %582 = vmatpush1.bf16.msra.mxu0 %v555
      %583 = vmatprep.subr.bf16.mxu0 0
      %584 = vmatpush1.bf16.msra.mxu0 %v554
      %585 = vmatprep.subr.bf16.mxu0 0
      %586 = vmatpush2.bf16.msra.mxu0 0
      %587 = vmatprep.subr.bf16.mxu0 0
      %588 = vmatpush2.bf16.msra.mxu0 0
      %589 = vmatprep.subr.bf16.mxu0 0
      %590 = vmatpush2.bf16.msra.mxu0 0
      %591 = vmatprep.subr.bf16.mxu0 0
      %592 = vmatpush2.bf16.msra.mxu0 0
      %593 = vmatprep.subr.bf16.mxu0 0
      %594 = vmatpush2.bf16.msra.mxu0 0
      %595 = vmatprep.subr.bf16.mxu0 0
      %596 = vmatpush2.bf16.msra.mxu0 0
      %597 = vmatprep.subr.bf16.mxu0 0
      %598 = vmatpush2.bf16.msra.mxu0 0
      %599 = vmatprep.subr.bf16.mxu0 0
      %600 = vmatpush2.bf16.msra.mxu0 0
      %601 = vmatprep.mubr.bf16.mxu0 0
      %602 = vmatmul.mubr.bf16.gmra.mxu0 %v567
      %v603 = vpop.f32.mrf.mxu0
      %v604 = vadd.f32 %v528, %v603
      %v605 = vpop.f32.mrf.mxu0
      %v606 = vpop.f32.mrf.mxu0
      %v607 = vadd.f32 %v528, %v606
      %v608 = vpop.f32.mrf.mxu0
      %609 = vdwg.mxu0
      %v610 = vpack.c.bf16 %v607, %v604
      %v612 = vunpack.c.l.b16 %v610
      %v613 = vunpack.c.h.b16 %v610
      %v614 = vpack.c.b16 %v612, %v612
      %v615 = vpack.c.b16 %v613, %v613
      %vm618 = vcmask 191488
      %619 = vst.msk [vmem:[%s319] sm:$0xf] %vm618, %v614
      %620 = vst.msk [vmem:[%s319 + $0x4] sm:$0xf] %vm618, %v615
      %p621 = scmp.lt.s32.totalorder %s19, 1
      %s622 = scalar_select %p621, %s19, 1
      %s623 = smul.addr %s622, 2
      %s624 = smul.addr %s623, 4
      %s625 = scalar_lea.vmem %s8, %s624
      // Predicated region
      $region53: #{efficientnet_forward.17} parent=51 // pred_check
        %p626 = pneg %p215
      $region54: #{efficientnet_forward.17} parent=51 // pred_check_branch
        %628 = sbr.rel (%p626) target = $region56
      $region55: #{efficientnet_forward.17} parent=51 // pred_region
        _
      $region56: #{efficientnet_forward.17} parent=51 // pred_fallthru
        _
    $region52: #{efficientnet_forward.17} parent=5 // pred_fallthru
      _
    %p629 = scmp.le.s32.totalorder 2, %s14
    // Predicated region
    $region57: #{efficientnet_forward.17} parent=5 // pred_check
      %p630 = pneg %p629
    $region58: #{efficientnet_forward.17} parent=5 // pred_check_branch
      %632 = sbr.rel (%p630) target = $region60
    $region59: #{efficientnet_forward.17} parent=5 // pred_region
      %s633 = ssub.s32 %s14, 2
      // Predicated region
      $region61: #{efficientnet_forward.17} parent=59 // pred_check
        %p634 = pneg %p221
      $region62: #{efficientnet_forward.17} parent=59 // pred_check_branch
        %636 = sbr.rel (%p634) target = $region64
      $region63: #{efficientnet_forward.17} parent=59 // pred_region
        %p637 = scmp.lt.s32.totalorder %s20, 1
        %s638 = scalar_select %p637, %s20, 1
        %s639 = smul.addr %s638, 2
        %s640 = smul.addr %s639, 4
        %s641 = scalar_lea.vmem %s8, %s640
      $region64: #{efficientnet_forward.17} parent=59 // pred_fallthru
        _
    $region60: #{efficientnet_forward.17} parent=5 // pred_fallthru
      _
  $region6: #{efficientnet_forward.17} parent=0 // loop_footer
    %s18 = sadd.s32 1, %s14
  $region7: #{efficientnet_forward.17} parent=0 // loop_footer_branch
    %13 = sbr.rel target = $region3
  $region8: #{efficientnet_forward.17} parent=0 // loop_exit
    _

// kernel: efficientnet_forward.18
$region0: #{efficientnet_forward.18}
  #allocation0 [shape = 'u32[]', space=smem, size = 0x4, offset = 0x4, fixed_abs, tag = 'smem constant byte address 0x4 - core index']
  #allocation1 [shape = 'u32[144,128]{1,0:T(1,128)}', space=vmem, size = 0x12000, scoped, tag = 'internal scratch']
  #allocation2 [shape = 'f32[32,256]{1,0:T(8,128)}', space=vmem, size = 0x8000, scoped, tag = 'scratch operand']
  %s0 = inlined_call_operand.vmem [shape: bf16[32,128], index: 0, kind: input, shape index: {}]
  %s1 = inlined_call_operand.vmem [shape: bf16[128,256], index: 1, kind: input, shape index: {}]
  %s2 = inlined_call_operand.vmem [shape: f32[1,256], index: 2, kind: input, shape index: {}]
  %s3 = inlined_call_operand.vmem [shape: bf16[32,256], index: 3, kind: output, shape index: {}]
  %s4 = sld [smem:[#allocation0]]
  $region30: #{efficientnet_forward.18} parent=0
    _
  %s6 = ssub.s32 1, %s4
  %s7 = scalar_select 0, %s6, %s4
  // Predicated region
  $region2: #{efficientnet_forward.18} parent=0 // pred_check
    _
  $region3: #{efficientnet_forward.18} parent=0 // pred_check_branch
    %9 = sbr.rel (0) target = $region5
  $region4: #{efficientnet_forward.18} parent=0 // pred_region
    _
  $region5: #{efficientnet_forward.18} parent=0 // pred_fallthru
    _
  // Predicated region
  $region6: #{efficientnet_forward.18} parent=0 // pred_check
    _
  $region7: #{efficientnet_forward.18} parent=0 // pred_check_branch
    %11 = sbr.rel (0) target = $region9
  $region8: #{efficientnet_forward.18} parent=0 // pred_region
    _
  $region9: #{efficientnet_forward.18} parent=0 // pred_fallthru
    _
  // Predicated region
  $region10: #{efficientnet_forward.18} parent=0 // pred_check
    _
  $region11: #{efficientnet_forward.18} parent=0 // pred_check_branch
    %13 = sbr.rel (0) target = $region13
  $region12: #{efficientnet_forward.18} parent=0 // pred_region
    _
  $region13: #{efficientnet_forward.18} parent=0 // pred_fallthru
    _
  %p15 = scmp.eq.s32.totalorder 0, 0
  // Predicated region
  $region14: #{efficientnet_forward.18} parent=0 // pred_check
    %p16 = pneg %p15
  $region15: #{efficientnet_forward.18} parent=0 // pred_check_branch
    %18 = sbr.rel (%p16) target = $region17
  $region16: #{efficientnet_forward.18} parent=0 // pred_region
    %19 = vst [vmem:[#allocation2] sm:$0xff] 0.0
    %20 = vst [vmem:[#allocation2 + $0x8] sm:$0xff] 0.0
    %21 = vst [vmem:[#allocation2 + $0x10] sm:$0xff] 0.0
    %22 = vst [vmem:[#allocation2 + $0x18] sm:$0xff] 0.0
    %23 = vst [vmem:[#allocation2 + $0x20] sm:$0xff] 0.0
    %24 = vst [vmem:[#allocation2 + $0x28] sm:$0xff] 0.0
    %25 = vst [vmem:[#allocation2 + $0x30] sm:$0xff] 0.0
    %26 = vst [vmem:[#allocation2 + $0x38] sm:$0xff] 0.0
  $region17: #{efficientnet_forward.18} parent=0 // pred_fallthru
    _
  %v27 = vld [vmem:[#allocation2] sm:$0xff]
  %v28 = vld [vmem:[#allocation2 + $0x8] sm:$0xff]
  %v29 = vld [vmem:[#allocation2 + $0x10] sm:$0xff]
  %v30 = vld [vmem:[#allocation2 + $0x18] sm:$0xff]
  %v31 = vld [vmem:[#allocation2 + $0x20] sm:$0xff]
  %v32 = vld [vmem:[#allocation2 + $0x28] sm:$0xff]
  %v33 = vld [vmem:[#allocation2 + $0x30] sm:$0xff]
  %v34 = vld [vmem:[#allocation2 + $0x38] sm:$0xff]
  %v35 = vld [vmem:[%s0] sm:$0xf]
  %v36 = vld [vmem:[%s0 + $0x4] sm:$0xf]
  %v37 = vld [vmem:[%s0 + $0x8] sm:$0xf]
  %v38 = vld [vmem:[%s0 + $0xc] sm:$0xf]
  %v39 = vld [vmem:[%s1] sm:$0xff]
  %v40 = vld [vmem:[%s1 + $0x8] sm:$0xff]
  %v41 = vld [vmem:[%s1 + $0x10] sm:$0xff]
  %v42 = vld [vmem:[%s1 + $0x18] sm:$0xff]
  %v43 = vld [vmem:[%s1 + $0x20] sm:$0xff]
  %v44 = vld [vmem:[%s1 + $0x28] sm:$0xff]
  %v45 = vld [vmem:[%s1 + $0x30] sm:$0xff]
  %v46 = vld [vmem:[%s1 + $0x38] sm:$0xff]
  %v47 = vld [vmem:[%s1 + $0x40] sm:$0xff]
  %v48 = vld [vmem:[%s1 + $0x48] sm:$0xff]
  %v49 = vld [vmem:[%s1 + $0x50] sm:$0xff]
  %v50 = vld [vmem:[%s1 + $0x58] sm:$0xff]
  %v51 = vld [vmem:[%s1 + $0x60] sm:$0xff]
  %v52 = vld [vmem:[%s1 + $0x68] sm:$0xff]
  %v53 = vld [vmem:[%s1 + $0x70] sm:$0xff]
  %v54 = vld [vmem:[%s1 + $0x78] sm:$0xff]
  %v59 = vunpack.c.l.b16 %v35
  %v60 = vunpack.c.l.b16 %v36
  %v61 = vunpack.c.l.b16 %v37
  %v62 = vunpack.c.l.b16 %v38
  %v63 = vpack.c.b16 %v60, %v59
  %v64 = vpack.c.b16 %v62, %v61
  %v83 = vunpack.c.l.b16 %v39
  %v84 = vunpack.c.h.b16 %v39
  %v85 = vunpack.c.l.b16 %v40
  %v86 = vunpack.c.h.b16 %v40
  %v87 = vunpack.c.l.b16 %v41
  %v88 = vunpack.c.h.b16 %v41
  %v89 = vunpack.c.l.b16 %v42
  %v90 = vunpack.c.h.b16 %v42
  %v91 = vunpack.c.l.b16 %v43
  %v92 = vunpack.c.h.b16 %v43
  %v93 = vunpack.c.l.b16 %v44
  %v94 = vunpack.c.h.b16 %v44
  %v95 = vunpack.c.l.b16 %v45
  %v96 = vunpack.c.h.b16 %v45
  %v97 = vunpack.c.l.b16 %v46
  %v98 = vunpack.c.h.b16 %v46
  %v99 = vunpack.c.l.b16 %v47
  %v100 = vunpack.c.h.b16 %v47
  %v101 = vunpack.c.l.b16 %v48
  %v102 = vunpack.c.h.b16 %v48
  %v103 = vunpack.c.l.b16 %v49
  %v104 = vunpack.c.h.b16 %v49
  %v105 = vunpack.c.l.b16 %v50
  %v106 = vunpack.c.h.b16 %v50
  %v107 = vunpack.c.l.b16 %v51
  %v108 = vunpack.c.h.b16 %v51
  %v109 = vunpack.c.l.b16 %v52
  %v110 = vunpack.c.h.b16 %v52
  %v111 = vunpack.c.l.b16 %v53
  %v112 = vunpack.c.h.b16 %v53
  %v113 = vunpack.c.l.b16 %v54
  %v114 = vunpack.c.h.b16 %v54
  %v115 = vpack.c.b16 %v85, %v83
  %v116 = vpack.c.b16 %v86, %v84
  %v117 = vpack.c.b16 %v89, %v87
  %v118 = vpack.c.b16 %v90, %v88
  %v119 = vpack.c.b16 %v93, %v91
  %v120 = vpack.c.b16 %v94, %v92
  %v121 = vpack.c.b16 %v97, %v95
  %v122 = vpack.c.b16 %v98, %v96
  %v123 = vpack.c.b16 %v101, %v99
  %v124 = vpack.c.b16 %v102, %v100
  %v125 = vpack.c.b16 %v105, %v103
  %v126 = vpack.c.b16 %v106, %v104
  %v127 = vpack.c.b16 %v109, %v107
  %v128 = vpack.c.b16 %v110, %v108
  %v129 = vpack.c.b16 %v113, %v111
  %v130 = vpack.c.b16 %v114, %v112
  %147 = vmatprep.subr.bf16.mxu0 %v130
  %148 = vmatpush1.bf16.msra.mxu0 %v129
  %149 = vmatprep.subr.bf16.mxu0 %v128
  %150 = vmatpush1.bf16.msra.mxu0 %v127
  %151 = vmatprep.subr.bf16.mxu0 %v126
  %152 = vmatpush1.bf16.msra.mxu0 %v125
  %153 = vmatprep.subr.bf16.mxu0 %v124
  %154 = vmatpush1.bf16.msra.mxu0 %v123
  %155 = vmatprep.subr.bf16.mxu0 %v122
  %156 = vmatpush1.bf16.msra.mxu0 %v121
  %157 = vmatprep.subr.bf16.mxu0 %v120
  %158 = vmatpush1.bf16.msra.mxu0 %v119
  %159 = vmatprep.subr.bf16.mxu0 %v118
  %160 = vmatpush1.bf16.msra.mxu0 %v117
  %161 = vmatprep.subr.bf16.mxu0 %v116
  %162 = vmatpush1.bf16.msra.mxu0 %v115
  %163 = vmatprep.subr.bf16.mxu0 0
  %164 = vmatpush2.bf16.msra.mxu0 0
  %165 = vmatprep.subr.bf16.mxu0 0
  %166 = vmatpush2.bf16.msra.mxu0 0
  %167 = vmatprep.subr.bf16.mxu0 0
  %168 = vmatpush2.bf16.msra.mxu0 0
  %169 = vmatprep.subr.bf16.mxu0 0
  %170 = vmatpush2.bf16.msra.mxu0 0
  %171 = vmatprep.subr.bf16.mxu0 0
  %172 = vmatpush2.bf16.msra.mxu0 0
  %173 = vmatprep.subr.bf16.mxu0 0
  %174 = vmatpush2.bf16.msra.mxu0 0
  %175 = vmatprep.subr.bf16.mxu0 0
  %176 = vmatpush2.bf16.msra.mxu0 0
  %177 = vmatprep.subr.bf16.mxu0 0
  %178 = vmatpush2.bf16.msra.mxu0 0
  %179 = vmatprep.mubr.bf16.mxu0 0
  %180 = vmatmul.mubr.bf16.gmra.mxu0 %v63
  %v181 = vpop.f32.mrf.mxu0
  %v182 = vadd.f32 0.0, %v181
  %v183 = vpop.f32.mrf.mxu0
  %v184 = vadd.f32 0.0, %v183
  %v185 = vpop.f32.mrf.mxu0
  %v186 = vadd.f32 0.0, %v185
  %v187 = vpop.f32.mrf.mxu0
  %v188 = vadd.f32 0.0, %v187
  %189 = vmatprep.mubr.bf16.mxu0 0
  %190 = vmatmul.mubr.bf16.gmra.mxu0 %v64
  %v191 = vpop.f32.mrf.mxu0
  %v192 = vadd.f32 0.0, %v191
  %v193 = vpop.f32.mrf.mxu0
  %v194 = vadd.f32 0.0, %v193
  %v195 = vpop.f32.mrf.mxu0
  %v196 = vadd.f32 0.0, %v195
  %v197 = vpop.f32.mrf.mxu0
  %v198 = vadd.f32 0.0, %v197
  %199 = vdwg.mxu0
  %v200 = vadd.f32 %v27, %v182
  %v201 = vadd.f32 %v28, %v184
  %v202 = vadd.f32 %v29, %v186
  %v203 = vadd.f32 %v30, %v188
  %v204 = vadd.f32 %v31, %v192
  %v205 = vadd.f32 %v32, %v194
  %v206 = vadd.f32 %v33, %v196
  %v207 = vadd.f32 %v34, %v198
  %208 = vst [vmem:[#allocation2] sm:$0xff] %v200
  %209 = vst [vmem:[#allocation2 + $0x8] sm:$0xff] %v201
  %210 = vst [vmem:[#allocation2 + $0x10] sm:$0xff] %v202
  %211 = vst [vmem:[#allocation2 + $0x18] sm:$0xff] %v203
  %212 = vst [vmem:[#allocation2 + $0x20] sm:$0xff] %v204
  %213 = vst [vmem:[#allocation2 + $0x28] sm:$0xff] %v205
  %214 = vst [vmem:[#allocation2 + $0x30] sm:$0xff] %v206
  %215 = vst [vmem:[#allocation2 + $0x38] sm:$0xff] %v207
  // Predicated region
  $region18: #{efficientnet_forward.18} parent=0 // pred_check
    %p216 = pneg %p15
  $region19: #{efficientnet_forward.18} parent=0 // pred_check_branch
    %218 = sbr.rel (%p216) target = $region21
  $region20: #{efficientnet_forward.18} parent=0 // pred_region
    %v219 = vld [vmem:[#allocation2] sm:$0xff]
    %v220 = vld [vmem:[#allocation2 + $0x8] sm:$0xff]
    %v221 = vld [vmem:[#allocation2 + $0x10] sm:$0xff]
    %v222 = vld [vmem:[#allocation2 + $0x18] sm:$0xff]
    %v223 = vld [vmem:[#allocation2 + $0x20] sm:$0xff]
    %v224 = vld [vmem:[#allocation2 + $0x28] sm:$0xff]
    %v225 = vld [vmem:[#allocation2 + $0x30] sm:$0xff]
    %v226 = vld [vmem:[#allocation2 + $0x38] sm:$0xff]
    %v227 = vld [vmem:[%s2] sm:$0x3]
    %v229 = vlaneseq
    %v230 = vshrl.u32 %v229, 7
    %v231 = vsub.s32 0, %v230
    %v232 = vrot.slane %v227, %v231
    %v233 = vlaneseq
    %v234 = vshrl.u32 %v233, 7
    %v235 = vsub.s32 1, %v234
    %v236 = vrot.slane %v227, %v235
    %v239 = vadd.f32 %v219, %v232
    %v240 = vadd.f32 %v220, %v236
    %v241 = vadd.f32 %v221, %v232
    %v242 = vadd.f32 %v222, %v236
    %v243 = vadd.f32 %v223, %v232
    %v244 = vadd.f32 %v224, %v236
    %v245 = vadd.f32 %v225, %v232
    %v246 = vadd.f32 %v226, %v236
    %v247 = vxor.u32 %v239, 2147483648
    %v248 = vxor.u32 %v240, 2147483648
    %v249 = vxor.u32 %v241, 2147483648
    %v250 = vxor.u32 %v242, 2147483648
    %v251 = vxor.u32 %v243, 2147483648
    %v252 = vxor.u32 %v244, 2147483648
    %v253 = vxor.u32 %v245, 2147483648
    %v254 = vxor.u32 %v246, 2147483648
    %v255 = vmul.f32 %v247, 1.442695
    %v256 = vpow.pop %v255
    %v257 = vmul.f32 %v248, 1.442695
    %v258 = vpow.pop %v257
    %v259 = vmul.f32 %v249, 1.442695
    %v260 = vpow.pop %v259
    %v261 = vmul.f32 %v250, 1.442695
    %v262 = vpow.pop %v261
    %v263 = vmul.f32 %v251, 1.442695
    %v264 = vpow.pop %v263
    %v265 = vmul.f32 %v252, 1.442695
    %v266 = vpow.pop %v265
    %v267 = vmul.f32 %v253, 1.442695
    %v268 = vpow.pop %v267
    %v269 = vmul.f32 %v254, 1.442695
    %v270 = vpow.pop %v269
    %v271 = vadd.f32 %v256, 1.0
    %v272 = vadd.f32 %v258, 1.0
    %v273 = vadd.f32 %v260, 1.0
    %v274 = vadd.f32 %v262, 1.0
    %v275 = vadd.f32 %v264, 1.0
    %v276 = vadd.f32 %v266, 1.0
    %v277 = vadd.f32 %v268, 1.0
    %v278 = vadd.f32 %v270, 1.0
    %v279 = vrcp.pop %v271
    %v280 = vmul.f32 1.0, %v279
    %v281 = vrcp.pop %v272
    %v282 = vmul.f32 1.0, %v281
    %v283 = vrcp.pop %v273
    %v284 = vmul.f32 1.0, %v283
    %v285 = vrcp.pop %v274
    %v286 = vmul.f32 1.0, %v285
    %v287 = vrcp.pop %v275
    %v288 = vmul.f32 1.0, %v287
    %v289 = vrcp.pop %v276
    %v290 = vmul.f32 1.0, %v289
    %v291 = vrcp.pop %v277
    %v292 = vmul.f32 1.0, %v291
    %v293 = vrcp.pop %v278
    %v294 = vmul.f32 1.0, %v293
    %v295 = vmul.f32 %v239, %v280
    %v296 = vmul.f32 %v240, %v282
    %v297 = vmul.f32 %v241, %v284
    %v298 = vmul.f32 %v242, %v286
    %v299 = vmul.f32 %v243, %v288
    %v300 = vmul.f32 %v244, %v290
    %v301 = vmul.f32 %v245, %v292
    %v302 = vmul.f32 %v246, %v294
    %v303 = vpack.c.bf16 %v297, %v295
    %v304 = vpack.c.bf16 %v298, %v296
    %v305 = vpack.c.bf16 %v301, %v299
    %v306 = vpack.c.bf16 %v302, %v300
    %v311 = vunpack.c.l.b16 %v303
    %v312 = vunpack.c.l.b16 %v304
    %v313 = vunpack.c.h.b16 %v303
    %v314 = vunpack.c.h.b16 %v304
    %v315 = vunpack.c.l.b16 %v305
    %v316 = vunpack.c.l.b16 %v306
    %v317 = vunpack.c.h.b16 %v305
    %v318 = vunpack.c.h.b16 %v306
    %v319 = vpack.c.b16 %v312, %v311
    %v320 = vpack.c.b16 %v314, %v313
    %v321 = vpack.c.b16 %v316, %v315
    %v322 = vpack.c.b16 %v318, %v317
    %327 = vst [vmem:[%s3] sm:$0xff] %v319
    %328 = vst [vmem:[%s3 + $0x8] sm:$0xff] %v320
    %329 = vst [vmem:[%s3 + $0x10] sm:$0xff] %v321
    %330 = vst [vmem:[%s3 + $0x18] sm:$0xff] %v322
  $region21: #{efficientnet_forward.18} parent=0 // pred_fallthru
    _
  // Predicated region
  $region22: #{efficientnet_forward.18} parent=0 // pred_check
    _
  $region23: #{efficientnet_forward.18} parent=0 // pred_check_branch
    %332 = sbr.rel (0) target = $region25
  $region24: #{efficientnet_forward.18} parent=0 // pred_region
    _
  $region25: #{efficientnet_forward.18} parent=0 // pred_fallthru
    _
  // Predicated region
  $region26: #{efficientnet_forward.18} parent=0 // pred_check
    _
  $region27: #{efficientnet_forward.18} parent=0 // pred_check_branch
    %334 = sbr.rel (0) target = $region29
  $region28: #{efficientnet_forward.18} parent=0 // pred_region
    _
  $region29: #{efficientnet_forward.18} parent=0 // pred_fallthru
    _

// kernel: efficientnet_forward.19
$region0: #{efficientnet_forward.19}
  #allocation0 [shape = 'u32[]', space=smem, size = 0x4, offset = 0x4, fixed_abs, tag = 'smem constant byte address 0x4 - core index']
  #allocation1 [shape = 'u32[144,128]{1,0:T(1,128)}', space=vmem, size = 0x12000, scoped, tag = 'internal scratch']
  %s0 = inlined_call_operand.vmem [shape: bf16[2,6,6,144], index: 0, kind: input, shape index: {}]
  %s1 = inlined_call_operand.vmem [shape: f32[9,1,144], index: 1, kind: input, shape index: {}]
  %s2 = inlined_call_operand.vmem [shape: f32[1,144], index: 2, kind: input, shape index: {}]
  %s3 = inlined_call_operand.vmem [shape: bf16[2,4,4,144], index: 3, kind: output, shape index: {0}]
  %s4 = inlined_call_operand.vmem [shape: f32[2,1,144], index: 4, kind: output, shape index: {1}]
  %5 = xla_tuple %s3, %s4
  %s6 = sld [smem:[#allocation0]]
  $region53: #{efficientnet_forward.19} parent=0
    _
  %s8 = ssub.s32 1, %s6
  %s9 = scalar_select 0, %s8, %s6
  loop: start=0, step=1, limit=4
  $region2: #{efficientnet_forward.19} parent=0 // loop_pre_header
    _
  $region3: #{efficientnet_forward.19} parent=0 // loop_header
    %s11 = sphi 0, %s15
    %p12 = scmp.ge.s32.totalorder %s11, 4
    %s21 = sphi 0, %s23
    %s24 = sphi 0, %s21
    %s25 = sphi 0, %s24
    %s41 = sphi 0, %s25
    %s45 = sphi 0, %s45
    %s47 = sphi 0, %s45
    %s48 = sphi 0, %s47
    %s62 = sphi 0, %s48
    %s66 = sphi 0, %s66
    %s68 = sphi 0, %s66
    %s69 = sphi 0, %s68
    %s83 = sphi 0, %s69
    %s89 = sphi 0, %s91
    %s92 = sphi 0, %s89
    %s93 = sphi 0, %s92
    %s109 = sphi 0, %s93
    %s115 = sphi 0, %s117
    %s118 = sphi 0, %s115
    %s119 = sphi 0, %s118
    %s135 = sphi 0, %s119
  $region4: #{efficientnet_forward.19} parent=0 // loop_header_branch
    %14 = sbr.rel (%p12) target = $region8
  $region5: #{efficientnet_forward.19} parent=0 // loop_body
    %s16 = ssub.s32 %s11, 1
    %s17 = ssub.s32 %s11, 2
    %s18 = sadd.s32 %s11, 1
    %s19 = ssub.s32 %s11, %s18
    %p20 = scmp.eq.s32.totalorder %s19, 0
    %s22 = sadd.s32 %s21, 1
    %s23 = scalar_select %p20, %s21, %s22
    %p26 = pneg %p20
    %p27 = scmp.eq.s32.totalorder %s11, 1
    %p28 = por %p26, %p27
    %p29 = scmp.ne.s32.totalorder %s21, %s24
    %p30 = scmp.eq.s32.totalorder %s11, 0
    %p31 = por %p29, %p30
    %p32 = scmp.ne.s32.totalorder %s21, %s24
    %p33 = scmp.eq.s32.totalorder %s16, 1
    %p34 = por %p32, %p33
    %p35 = scmp.ne.s32.totalorder %s24, %s25
    %p36 = scmp.eq.s32.totalorder %s16, 0
    %p37 = por %p35, %p36
    %p38 = scmp.ne.s32.totalorder %s24, %s25
    %p39 = scmp.eq.s32.totalorder %s17, 1
    %p40 = por %p38, %p39
    %p42 = scmp.ne.s32.totalorder %s25, %s41
    %p43 = scmp.eq.s32.totalorder %s17, 0
    %p44 = por %p42, %p43
    %s46 = sadd.s32 %s45, 1
    %p49 = scmp.eq.s32.totalorder %s11, 1
    %p50 = scmp.ne.s32.totalorder %s45, %s47
    %p51 = scmp.eq.s32.totalorder %s11, 0
    %p52 = por %p50, %p51
    %p53 = scmp.ne.s32.totalorder %s45, %s47
    %p54 = scmp.eq.s32.totalorder %s16, 1
    %p55 = por %p53, %p54
    %p56 = scmp.ne.s32.totalorder %s47, %s48
    %p57 = scmp.eq.s32.totalorder %s16, 0
    %p58 = por %p56, %p57
    %p59 = scmp.ne.s32.totalorder %s47, %s48
    %p60 = scmp.eq.s32.totalorder %s17, 1
    %p61 = por %p59, %p60
    %p63 = scmp.ne.s32.totalorder %s48, %s62
    %p64 = scmp.eq.s32.totalorder %s17, 0
    %p65 = por %p63, %p64
    %s67 = sadd.s32 %s66, 1
    %p70 = scmp.eq.s32.totalorder %s11, 1
    %p71 = scmp.ne.s32.totalorder %s66, %s68
    %p72 = scmp.eq.s32.totalorder %s11, 0
    %p73 = por %p71, %p72
    %p74 = scmp.ne.s32.totalorder %s66, %s68
    %p75 = scmp.eq.s32.totalorder %s16, 1
    %p76 = por %p74, %p75
    %p77 = scmp.ne.s32.totalorder %s68, %s69
    %p78 = scmp.eq.s32.totalorder %s16, 0
    %p79 = por %p77, %p78
    %p80 = scmp.ne.s32.totalorder %s68, %s69
    %p81 = scmp.eq.s32.totalorder %s17, 1
    %p82 = por %p80, %p81
    %p84 = scmp.ne.s32.totalorder %s69, %s83
    %p85 = scmp.eq.s32.totalorder %s17, 0
    %p86 = por %p84, %p85
    %s87 = ssub.s32 %s11, %s18
    %p88 = scmp.eq.s32.totalorder %s87, 0
    %s90 = sadd.s32 %s89, 1
    %s91 = scalar_select %p88, %s89, %s90
    %p94 = pneg %p88
    %p95 = scmp.eq.s32.totalorder %s11, 1
    %p96 = por %p94, %p95
    %p97 = scmp.ne.s32.totalorder %s89, %s92
    %p98 = scmp.eq.s32.totalorder %s11, 0
    %p99 = por %p97, %p98
    %p100 = scmp.ne.s32.totalorder %s89, %s92
    %p101 = scmp.eq.s32.totalorder %s16, 1
    %p102 = por %p100, %p101
    %p103 = scmp.ne.s32.totalorder %s92, %s93
    %p104 = scmp.eq.s32.totalorder %s16, 0
    %p105 = por %p103, %p104
    %p106 = scmp.ne.s32.totalorder %s92, %s93
    %p107 = scmp.eq.s32.totalorder %s17, 1
    %p108 = por %p106, %p107
    %p110 = scmp.ne.s32.totalorder %s93, %s109
    %p111 = scmp.eq.s32.totalorder %s17, 0
    %p112 = por %p110, %p111
    %s113 = ssub.s32 %s11, %s18
    %p114 = scmp.eq.s32.totalorder %s113, 0
    %s116 = sadd.s32 %s115, 1
    %s117 = scalar_select %p114, %s115, %s116
    %p120 = pneg %p114
    %p121 = scmp.eq.s32.totalorder %s11, 1
    %p122 = por %p120, %p121
    %p123 = scmp.ne.s32.totalorder %s115, %s118
    %p124 = scmp.eq.s32.totalorder %s11, 0
    %p125 = por %p123, %p124
    %p126 = scmp.ne.s32.totalorder %s115, %s118
    %p127 = scmp.eq.s32.totalorder %s16, 1
    %p128 = por %p126, %p127
    %p129 = scmp.ne.s32.totalorder %s118, %s119
    %p130 = scmp.eq.s32.totalorder %s16, 0
    %p131 = por %p129, %p130
    %p132 = scmp.ne.s32.totalorder %s118, %s119
    %p133 = scmp.eq.s32.totalorder %s17, 1
    %p134 = por %p132, %p133
    %p136 = scmp.ne.s32.totalorder %s119, %s135
    %p137 = scmp.eq.s32.totalorder %s17, 0
    %p138 = por %p136, %p137
    %p139 = scmp.le.s32.totalorder 1, %s11
    %p140 = scmp.lt.s32.totalorder %s11, 3
    %p141 = pnand %p139, %p140
    %p142 = pneg %p141
    // Predicated region
    $region9: #{efficientnet_forward.19} parent=5 // pred_check
      _
    $region10: #{efficientnet_forward.19} parent=5 // pred_check_branch
      %144 = sbr.rel (%p141) target = $region12
    $region11: #{efficientnet_forward.19} parent=5 // pred_region
      %s145 = ssub.s32 %s11, 1
      // Predicated region
      $region13: #{efficientnet_forward.19} parent=11 // pred_check
        %p146 = pneg %p58
      $region14: #{efficientnet_forward.19} parent=11 // pred_check_branch
        %148 = sbr.rel (%p146) target = $region16
      $region15: #{efficientnet_forward.19} parent=11 // pred_region
        _
      $region16: #{efficientnet_forward.19} parent=11 // pred_fallthru
        _
      // Predicated region
      $region17: #{efficientnet_forward.19} parent=11 // pred_check
        %p149 = pneg %p79
      $region18: #{efficientnet_forward.19} parent=11 // pred_check_branch
        %151 = sbr.rel (%p149) target = $region20
      $region19: #{efficientnet_forward.19} parent=11 // pred_region
        _
      $region20: #{efficientnet_forward.19} parent=11 // pred_fallthru
        _
    $region12: #{efficientnet_forward.19} parent=5 // pred_fallthru
      _
    %p152 = scmp.lt.s32.totalorder %s11, 2
    // Predicated region
    $region21: #{efficientnet_forward.19} parent=5 // pred_check
      %p153 = pneg %p152
    $region22: #{efficientnet_forward.19} parent=5 // pred_check_branch
      %155 = sbr.rel (%p153) target = $region24
    $region23: #{efficientnet_forward.19} parent=5 // pred_region
      // Predicated region
      $region25: #{efficientnet_forward.19} parent=23 // pred_check
        %p156 = pneg %p31
      $region26: #{efficientnet_forward.19} parent=23 // pred_check_branch
        %158 = sbr.rel (%p156) target = $region28
      $region27: #{efficientnet_forward.19} parent=23 // pred_region
        %p159 = scmp.lt.s32.totalorder %s11, 1
        %s160 = scalar_select %p159, %s11, 1
        %s161 = smul.addr %s160, 12
        %s162 = smul.addr %s161, 4
        %s163 = scalar_lea.vmem %s0, %s162
      $region28: #{efficientnet_forward.19} parent=23 // pred_fallthru
        _
    $region24: #{efficientnet_forward.19} parent=5 // pred_fallthru
      _
    %p164 = scmp.le.s32.totalorder 1, %s11
    %p165 = scmp.lt.s32.totalorder %s11, 3
    %p166 = pnand %p164, %p165
    %p167 = pneg %p166
    // Predicated region
    $region29: #{efficientnet_forward.19} parent=5 // pred_check
      _
    $region30: #{efficientnet_forward.19} parent=5 // pred_check_branch
      %169 = sbr.rel (%p166) target = $region32
    $region31: #{efficientnet_forward.19} parent=5 // pred_region
      %s170 = ssub.s32 %s11, 1
      %p171 = scmp.lt.s32.totalorder %s16, 1
      %s172 = scalar_select %p171, %s16, 1
      %s173 = smul.addr %s172, 12
      %s174 = smul.addr %s173, 4
      %s175 = scalar_lea.vmem %s0, %s174
      %p176 = pneg %p37
      %p177 = pneg %p34
      %p178 = pneg %p58
      %p179 = pneg %p55
      %p180 = pneg %p79
      %p181 = pneg %p76
      %p182 = pneg %p105
      %p183 = pneg %p102
      %p184 = scmp.lt.s32.totalorder %s16, 1
      %s185 = scalar_select %p184, %s16, 1
      %s186 = smul.addr %s185, 8
      %s187 = smul.addr %s186, 2
      %s188 = scalar_lea.vmem %s3, %s187
      %p189 = pneg %p131
      %p190 = pneg %p128
      %p191 = scmp.lt.s32.totalorder %s16, 1
      %s192 = scalar_select %p191, %s16, 1
      %s193 = smul.addr %s192, 2
      %s194 = scalar_lea.vmem %s4, %s193
      %p195 = scmp.lt.s32.totalorder %s16, 1
      %s196 = scalar_select %p195, %s16, 1
      %s197 = smul.addr %s196, 12
      %s198 = smul.addr %s197, 4
      %s199 = scalar_lea.vmem %s0, %s198
      %p200 = scmp.lt.s32.totalorder %s16, 1
      %s201 = scalar_select %p200, %s16, 1
      %s202 = smul.addr %s201, 8
      %s203 = smul.addr %s202, 2
      %s204 = scalar_lea.vmem %s3, %s203
      %p205 = scmp.lt.s32.totalorder %s16, 1
      %s206 = scalar_select %p205, %s16, 1
      %s207 = smul.addr %s206, 2
      %s208 = scalar_lea.vmem %s4, %s207
      %v209 = vld [vmem:[%s199] sm:$0x33]
      %v210 = vld [vmem:[%s199 + $0x8] sm:$0x33]
      %v211 = vld [vmem:[%s199 + $0x10] sm:$0x33]
      %v212 = vld [vmem:[%s199 + $0x18] sm:$0x33]
      %v213 = vunpack.c.l.bf16 %v209
      %v214 = vunpack.c.h.bf16 %v209
      %v215 = vunpack.c.l.bf16 %v210
      %v216 = vunpack.c.h.bf16 %v210
      %v217 = vunpack.c.l.bf16 %v211
      %v218 = vunpack.c.h.bf16 %v211
      %v219 = vunpack.c.l.bf16 %v212
      %v220 = vunpack.c.h.bf16 %v212
      %v221 = vld [vmem:[%s1] sm:$0x3]
      %v223 = vlaneseq
      %v224 = vshrl.u32 %v223, 7
      %v225 = vsub.s32 0, %v224
      %v226 = vrot.slane %v221, %v225
      %v227 = vlaneseq
      %v228 = vshrl.u32 %v227, 7
      %v229 = vsub.s32 1, %v228
      %v230 = vrot.slane %v221, %v229
      %v233 = vmul.f32 %v213, %v226
      %v234 = vmul.f32 %v214, %v230
      %v235 = vmul.f32 %v215, %v226
      %v236 = vmul.f32 %v216, %v230
      %v237 = vmul.f32 %v217, %v226
      %v238 = vmul.f32 %v218, %v230
      %v239 = vmul.f32 %v219, %v226
      %v240 = vmul.f32 %v220, %v230
      %v241 = vld [vmem:[%s199] sm:$0x77]
      %v242 = vld [vmem:[%s199 + $0x8] sm:$0x77]
      %v243 = vld [vmem:[%s199 + $0x10] sm:$0x77]
      %v244 = vld [vmem:[%s199 + $0x18] sm:$0x77]
      %v245 = vunpack.c.l.bf16 %v241
      %v246 = vunpack.c.h.bf16 %v241
      %v247 = vunpack.c.l.bf16 %v242
      %v248 = vunpack.c.h.bf16 %v242
      %v249 = vunpack.c.l.bf16 %v243
      %v250 = vunpack.c.h.bf16 %v243
      %v251 = vunpack.c.l.bf16 %v244
      %v252 = vunpack.c.h.bf16 %v244
      %s253 = scalar_lea.vmem %s1, 2
      %v254 = vld [vmem:[%s253] sm:$0x3]
      %v256 = vlaneseq
      %v257 = vshrl.u32 %v256, 7
      %v258 = vsub.s32 0, %v257
      %v259 = vrot.slane %v254, %v258
      %v260 = vlaneseq
      %v261 = vshrl.u32 %v260, 7
      %v262 = vsub.s32 1, %v261
      %v263 = vrot.slane %v254, %v262
      %v266 = vmul.f32 %v245, %v259
      %v267 = vmul.f32 %v246, %v263
      %v268 = vmul.f32 %v247, %v259
      %v269 = vmul.f32 %v248, %v263
      %v270 = vmul.f32 %v249, %v259
      %v271 = vmul.f32 %v250, %v263
      %v272 = vmul.f32 %v251, %v259
      %v273 = vmul.f32 %v252, %v263
      %v282 = vrot.slane %v266, 1
      %v283 = vrot.slane %v267, 1
      %v284 = vrot.slane %v268, 1
      %v285 = vrot.slane %v269, 1
      %v286 = vrot.slane %v270, 1
      %v287 = vrot.slane %v271, 1
      %v288 = vrot.slane %v272, 1
      %v289 = vrot.slane %v273, 1
      %v298 = vadd.f32 %v233, %v282
      %v299 = vadd.f32 %v234, %v283
      %v300 = vadd.f32 %v235, %v284
      %v301 = vadd.f32 %v236, %v285
      %v302 = vadd.f32 %v237, %v286
      %v303 = vadd.f32 %v238, %v287
      %v304 = vadd.f32 %v239, %v288
      %v305 = vadd.f32 %v240, %v289
      %v306 = vld [vmem:[%s199] sm:$0x66]
      %v307 = vld [vmem:[%s199 + $0x8] sm:$0x66]
      %v308 = vld [vmem:[%s199 + $0x10] sm:$0x66]
      %v309 = vld [vmem:[%s199 + $0x18] sm:$0x66]
      %v310 = vunpack.c.l.bf16 %v306
      %v311 = vunpack.c.h.bf16 %v306
      %v312 = vunpack.c.l.bf16 %v307
      %v313 = vunpack.c.h.bf16 %v307
      %v314 = vunpack.c.l.bf16 %v308
      %v315 = vunpack.c.h.bf16 %v308
      %v316 = vunpack.c.l.bf16 %v309
      %v317 = vunpack.c.h.bf16 %v309
      %s318 = scalar_lea.vmem %s1, 4
      %v319 = vld [vmem:[%s318] sm:$0x3]
      %v321 = vlaneseq
      %v322 = vshrl.u32 %v321, 7
      %v323 = vsub.s32 0, %v322
      %v324 = vrot.slane %v319, %v323
      %v325 = vlaneseq
      %v326 = vshrl.u32 %v325, 7
      %v327 = vsub.s32 1, %v326
      %v328 = vrot.slane %v319, %v327
      %v331 = vmul.f32 %v310, %v324
      %v332 = vmul.f32 %v311, %v328
      %v333 = vmul.f32 %v312, %v324
      %v334 = vmul.f32 %v313, %v328
      %v335 = vmul.f32 %v314, %v324
      %v336 = vmul.f32 %v315, %v328
      %v337 = vmul.f32 %v316, %v324
      %v338 = vmul.f32 %v317, %v328
      %v347 = vrot.slane %v331, 2
      %v348 = vrot.slane %v332, 2
      %v349 = vrot.slane %v333, 2
      %v350 = vrot.slane %v334, 2
      %v351 = vrot.slane %v335, 2
      %v352 = vrot.slane %v336, 2
      %v353 = vrot.slane %v337, 2
      %v354 = vrot.slane %v338, 2
      %v363 = vadd.f32 %v298, %v347
      %v364 = vadd.f32 %v299, %v348
      %v365 = vadd.f32 %v300, %v349
      %v366 = vadd.f32 %v301, %v350
      %v367 = vadd.f32 %v302, %v351
      %v368 = vadd.f32 %v303, %v352
      %v369 = vadd.f32 %v304, %v353
      %v370 = vadd.f32 %v305, %v354
      %s371 = scalar_lea.vmem %s199, 8
      %v372 = vld [vmem:[%s371] sm:$0x33]
      %v373 = vld [vmem:[%s371 + $0x8] sm:$0x33]
      %v374 = vld [vmem:[%s371 + $0x10] sm:$0x33]
      %v375 = vld [vmem:[%s371 + $0x18] sm:$0x33]
      %v376 = vunpack.c.l.bf16 %v372
      %v377 = vunpack.c.h.bf16 %v372
      %v378 = vunpack.c.l.bf16 %v373
      %v379 = vunpack.c.h.bf16 %v373
      %v380 = vunpack.c.l.bf16 %v374
      %v381 = vunpack.c.h.bf16 %v374
      %v382 = vunpack.c.l.bf16 %v375
      %v383 = vunpack.c.h.bf16 %v375
      %s384 = scalar_lea.vmem %s1, 6
      %v385 = vld [vmem:[%s384] sm:$0x3]
      %v387 = vlaneseq
      %v388 = vshrl.u32 %v387, 7
      %v389 = vsub.s32 0, %v388
      %v390 = vrot.slane %v385, %v389
      %v391 = vlaneseq
      %v392 = vshrl.u32 %v391, 7
      %v393 = vsub.s32 1, %v392
      %v394 = vrot.slane %v385, %v393
      %v397 = vmul.f32 %v376, %v390
      %v398 = vmul.f32 %v377, %v394
      %v399 = vmul.f32 %v378, %v390
      %v400 = vmul.f32 %v379, %v394
      %v401 = vmul.f32 %v380, %v390
      %v402 = vmul.f32 %v381, %v394
      %v403 = vmul.f32 %v382, %v390
      %v404 = vmul.f32 %v383, %v394
      %v405 = vadd.f32 %v363, %v397
      %v406 = vadd.f32 %v364, %v398
      %v407 = vadd.f32 %v365, %v399
      %v408 = vadd.f32 %v366, %v400
      %v409 = vadd.f32 %v367, %v401
      %v410 = vadd.f32 %v368, %v402
      %v411 = vadd.f32 %v369, %v403
      %v412 = vadd.f32 %v370, %v404
      %v413 = vld [vmem:[%s371] sm:$0x77]
      %v414 = vld [vmem:[%s371 + $0x8] sm:$0x77]
      %v415 = vld [vmem:[%s371 + $0x10] sm:$0x77]
      %v416 = vld [vmem:[%s371 + $0x18] sm:$0x77]
      %v417 = vunpack.c.l.bf16 %v413
      %v418 = vunpack.c.h.bf16 %v413
      %v419 = vunpack.c.l.bf16 %v414
      %v420 = vunpack.c.h.bf16 %v414
      %v421 = vunpack.c.l.bf16 %v415
      %v422 = vunpack.c.h.bf16 %v415
      %v423 = vunpack.c.l.bf16 %v416
      %v424 = vunpack.c.h.bf16 %v416
      %s425 = scalar_lea.vmem %s1, 8
      %v426 = vld [vmem:[%s425] sm:$0x3]
      %v428 = vlaneseq
      %v429 = vshrl.u32 %v428, 7
      %v430 = vsub.s32 0, %v429
      %v431 = vrot.slane %v426, %v430
      %v432 = vlaneseq
      %v433 = vshrl.u32 %v432, 7
      %v434 = vsub.s32 1, %v433
      %v435 = vrot.slane %v426, %v434
      %v438 = vmul.f32 %v417, %v431
      %v439 = vmul.f32 %v418, %v435
      %v440 = vmul.f32 %v419, %v431
      %v441 = vmul.f32 %v420, %v435
      %v442 = vmul.f32 %v421, %v431
      %v443 = vmul.f32 %v422, %v435
      %v444 = vmul.f32 %v423, %v431
      %v445 = vmul.f32 %v424, %v435
      %v454 = vrot.slane %v438, 1
      %v455 = vrot.slane %v439, 1
      %v456 = vrot.slane %v440, 1
      %v457 = vrot.slane %v441, 1
      %v458 = vrot.slane %v442, 1
      %v459 = vrot.slane %v443, 1
      %v460 = vrot.slane %v444, 1
      %v461 = vrot.slane %v445, 1
      %v470 = vadd.f32 %v405, %v454
      %v471 = vadd.f32 %v406, %v455
      %v472 = vadd.f32 %v407, %v456
      %v473 = vadd.f32 %v408, %v457
      %v474 = vadd.f32 %v409, %v458
      %v475 = vadd.f32 %v410, %v459
      %v476 = vadd.f32 %v411, %v460
      %v477 = vadd.f32 %v412, %v461
      %v478 = vld [vmem:[%s371] sm:$0x66]
      %v479 = vld [vmem:[%s371 + $0x8] sm:$0x66]
      %v480 = vld [vmem:[%s371 + $0x10] sm:$0x66]
      %v481 = vld [vmem:[%s371 + $0x18] sm:$0x66]
      %v482 = vunpack.c.l.bf16 %v478
      %v483 = vunpack.c.h.bf16 %v478
      %v484 = vunpack.c.l.bf16 %v479
      %v485 = vunpack.c.h.bf16 %v479
      %v486 = vunpack.c.l.bf16 %v480
      %v487 = vunpack.c.h.bf16 %v480
      %v488 = vunpack.c.l.bf16 %v481
      %v489 = vunpack.c.h.bf16 %v481
      %s490 = scalar_lea.vmem %s1, 10
      %v491 = vld [vmem:[%s490] sm:$0x3]
      %v493 = vlaneseq
      %v494 = vshrl.u32 %v493, 7
      %v495 = vsub.s32 0, %v494
      %v496 = vrot.slane %v491, %v495
      %v497 = vlaneseq
      %v498 = vshrl.u32 %v497, 7
      %v499 = vsub.s32 1, %v498
      %v500 = vrot.slane %v491, %v499
      %v503 = vmul.f32 %v482, %v496
      %v504 = vmul.f32 %v483, %v500
      %v505 = vmul.f32 %v484, %v496
      %v506 = vmul.f32 %v485, %v500
      %v507 = vmul.f32 %v486, %v496
      %v508 = vmul.f32 %v487, %v500
      %v509 = vmul.f32 %v488, %v496
      %v510 = vmul.f32 %v489, %v500
      %v519 = vrot.slane %v503, 2
      %v520 = vrot.slane %v504, 2
      %v521 = vrot.slane %v505, 2
      %v522 = vrot.slane %v506, 2
      %v523 = vrot.slane %v507, 2
      %v524 = vrot.slane %v508, 2
      %v525 = vrot.slane %v509, 2
      %v526 = vrot.slane %v510, 2
      %v535 = vadd.f32 %v470, %v519
      %v536 = vadd.f32 %v471, %v520
      %v537 = vadd.f32 %v472, %v521
      %v538 = vadd.f32 %v473, %v522
      %v539 = vadd.f32 %v474, %v523
      %v540 = vadd.f32 %v475, %v524
      %v541 = vadd.f32 %v476, %v525
      %v542 = vadd.f32 %v477, %v526
      %s543 = scalar_lea.vmem %s199, 16
      %v544 = vld [vmem:[%s543] sm:$0x33]
      %v545 = vld [vmem:[%s543 + $0x8] sm:$0x33]
      %v546 = vld [vmem:[%s543 + $0x10] sm:$0x33]
      %v547 = vld [vmem:[%s543 + $0x18] sm:$0x33]
      %v548 = vunpack.c.l.bf16 %v544
      %v549 = vunpack.c.h.bf16 %v544
      %v550 = vunpack.c.l.bf16 %v545
      %v551 = vunpack.c.h.bf16 %v545
      %v552 = vunpack.c.l.bf16 %v546
      %v553 = vunpack.c.h.bf16 %v546
      %v554 = vunpack.c.l.bf16 %v547
      %v555 = vunpack.c.h.bf16 %v547
      %s556 = scalar_lea.vmem %s1, 12
      %v557 = vld [vmem:[%s556] sm:$0x3]
      %v559 = vlaneseq
      %v560 = vshrl.u32 %v559, 7
      %v561 = vsub.s32 0, %v560
      %v562 = vrot.slane %v557, %v561
      %v563 = vlaneseq
      %v564 = vshrl.u32 %v563, 7
      %v565 = vsub.s32 1, %v564
      %v566 = vrot.slane %v557, %v565
      %v569 = vmul.f32 %v548, %v562
      %v570 = vmul.f32 %v549, %v566
      %v571 = vmul.f32 %v550, %v562
      %v572 = vmul.f32 %v551, %v566
      %v573 = vmul.f32 %v552, %v562
      %v574 = vmul.f32 %v553, %v566
      %v575 = vmul.f32 %v554, %v562
      %v576 = vmul.f32 %v555, %v566
      %v577 = vadd.f32 %v535, %v569
      %v578 = vadd.f32 %v536, %v570
      %v579 = vadd.f32 %v537, %v571
      %v580 = vadd.f32 %v538, %v572
      %v581 = vadd.f32 %v539, %v573
      %v582 = vadd.f32 %v540, %v574
      %v583 = vadd.f32 %v541, %v575
      %v584 = vadd.f32 %v542, %v576
      %v585 = vld [vmem:[%s543] sm:$0x77]
      %v586 = vld [vmem:[%s543 + $0x8] sm:$0x77]
      %v587 = vld [vmem:[%s543 + $0x10] sm:$0x77]
      %v588 = vld [vmem:[%s543 + $0x18] sm:$0x77]
      %v589 = vunpack.c.l.bf16 %v585
      %v590 = vunpack.c.h.bf16 %v585
      %v591 = vunpack.c.l.bf16 %v586
      %v592 = vunpack.c.h.bf16 %v586
      %v593 = vunpack.c.l.bf16 %v587
      %v594 = vunpack.c.h.bf16 %v587
      %v595 = vunpack.c.l.bf16 %v588
      %v596 = vunpack.c.h.bf16 %v588
      %s597 = scalar_lea.vmem %s1, 14
      %v598 = vld [vmem:[%s597] sm:$0x3]
      %v600 = vlaneseq
      %v601 = vshrl.u32 %v600, 7
      %v602 = vsub.s32 0, %v601
      %v603 = vrot.slane %v598, %v602
      %v604 = vlaneseq
      %v605 = vshrl.u32 %v604, 7
      %v606 = vsub.s32 1, %v605
      %v607 = vrot.slane %v598, %v606
      %v610 = vmul.f32 %v589, %v603
      %v611 = vmul.f32 %v590, %v607
      %v612 = vmul.f32 %v591, %v603
      %v613 = vmul.f32 %v592, %v607
      %v614 = vmul.f32 %v593, %v603
      %v615 = vmul.f32 %v594, %v607
      %v616 = vmul.f32 %v595, %v603
      %v617 = vmul.f32 %v596, %v607
      %v626 = vrot.slane %v610, 1
      %v627 = vrot.slane %v611, 1
      %v628 = vrot.slane %v612, 1
      %v629 = vrot.slane %v613, 1
      %v630 = vrot.slane %v614, 1
      %v631 = vrot.slane %v615, 1
      %v632 = vrot.slane %v616, 1
      %v633 = vrot.slane %v617, 1
      %v642 = vadd.f32 %v577, %v626
      %v643 = vadd.f32 %v578, %v627
      %v644 = vadd.f32 %v579, %v628
      %v645 = vadd.f32 %v580, %v629
      %v646 = vadd.f32 %v581, %v630
      %v647 = vadd.f32 %v582, %v631
      %v648 = vadd.f32 %v583, %v632
      %v649 = vadd.f32 %v584, %v633
      %v650 = vld [vmem:[%s543] sm:$0x66]
      %v651 = vld [vmem:[%s543 + $0x8] sm:$0x66]
      %v652 = vld [vmem:[%s543 + $0x10] sm:$0x66]
      %v653 = vld [vmem:[%s543 + $0x18] sm:$0x66]
      %v654 = vunpack.c.l.bf16 %v650
      %v655 = vunpack.c.h.bf16 %v650
      %v656 = vunpack.c.l.bf16 %v651
      %v657 = vunpack.c.h.bf16 %v651
      %v658 = vunpack.c.l.bf16 %v652
      %v659 = vunpack.c.h.bf16 %v652
      %v660 = vunpack.c.l.bf16 %v653
      %v661 = vunpack.c.h.bf16 %v653
      %s662 = scalar_lea.vmem %s1, 16
      %v663 = vld [vmem:[%s662] sm:$0x3]
      %v665 = vlaneseq
      %v666 = vshrl.u32 %v665, 7
      %v667 = vsub.s32 0, %v666
      %v668 = vrot.slane %v663, %v667
      %v669 = vlaneseq
      %v670 = vshrl.u32 %v669, 7
      %v671 = vsub.s32 1, %v670
      %v672 = vrot.slane %v663, %v671
      %v675 = vmul.f32 %v654, %v668
      %v676 = vmul.f32 %v655, %v672
      %v677 = vmul.f32 %v656, %v668
      %v678 = vmul.f32 %v657, %v672
      %v679 = vmul.f32 %v658, %v668
      %v680 = vmul.f32 %v659, %v672
      %v681 = vmul.f32 %v660, %v668
      %v682 = vmul.f32 %v661, %v672
      %v691 = vrot.slane %v675, 2
      %v692 = vrot.slane %v676, 2
      %v693 = vrot.slane %v677, 2
      %v694 = vrot.slane %v678, 2
      %v695 = vrot.slane %v679, 2
      %v696 = vrot.slane %v680, 2
      %v697 = vrot.slane %v681, 2
      %v698 = vrot.slane %v682, 2
      %v707 = vadd.f32 %v642, %v691
      %v708 = vadd.f32 %v643, %v692
      %v709 = vadd.f32 %v644, %v693
      %v710 = vadd.f32 %v645, %v694
      %v711 = vadd.f32 %v646, %v695
      %v712 = vadd.f32 %v647, %v696
      %v713 = vadd.f32 %v648, %v697
      %v714 = vadd.f32 %v649, %v698
      %v715 = vld [vmem:[%s2] sm:$0x3]
      %v717 = vlaneseq
      %v718 = vshrl.u32 %v717, 7
      %v719 = vsub.s32 0, %v718
      %v720 = vrot.slane %v715, %v719
      %v721 = vlaneseq
      %v722 = vshrl.u32 %v721, 7
      %v723 = vsub.s32 1, %v722
      %v724 = vrot.slane %v715, %v723
      %v727 = vadd.f32 %v707, %v720
      %v728 = vadd.f32 %v708, %v724
      %v729 = vadd.f32 %v709, %v720
      %v730 = vadd.f32 %v710, %v724
      %v731 = vadd.f32 %v711, %v720
      %v732 = vadd.f32 %v712, %v724
      %v733 = vadd.f32 %v713, %v720
      %v734 = vadd.f32 %v714, %v724
      %v735 = vxor.u32 %v727, 2147483648
      %v736 = vxor.u32 %v728, 2147483648
      %v737 = vxor.u32 %v729, 2147483648
      %v738 = vxor.u32 %v730, 2147483648
      %v739 = vxor.u32 %v731, 2147483648
      %v740 = vxor.u32 %v732, 2147483648
      %v741 = vxor.u32 %v733, 2147483648
      %v742 = vxor.u32 %v734, 2147483648
      %v743 = vmul.f32 %v735, 1.442695
      %v744 = vpow.pop %v743
      %v745 = vmul.f32 %v736, 1.442695
      %v746 = vpow.pop %v745
      %v747 = vmul.f32 %v737, 1.442695
      %v748 = vpow.pop %v747
      %v749 = vmul.f32 %v738, 1.442695
      %v750 = vpow.pop %v749
      %v751 = vmul.f32 %v739, 1.442695
      %v752 = vpow.pop %v751
      %v753 = vmul.f32 %v740, 1.442695
      %v754 = vpow.pop %v753
      %v755 = vmul.f32 %v741, 1.442695
      %v756 = vpow.pop %v755
      %v757 = vmul.f32 %v742, 1.442695
      %v758 = vpow.pop %v757
      %v759 = vadd.f32 %v744, 1.0
      %v760 = vadd.f32 %v746, 1.0
      %v761 = vadd.f32 %v748, 1.0
      %v762 = vadd.f32 %v750, 1.0
      %v763 = vadd.f32 %v752, 1.0
      %v764 = vadd.f32 %v754, 1.0
      %v765 = vadd.f32 %v756, 1.0
      %v766 = vadd.f32 %v758, 1.0
      %v767 = vrcp.pop %v759
      %v768 = vmul.f32 1.0, %v767
      %v769 = vrcp.pop %v760
      %v770 = vmul.f32 1.0, %v769
      %v771 = vrcp.pop %v761
      %v772 = vmul.f32 1.0, %v771
      %v773 = vrcp.pop %v762
      %v774 = vmul.f32 1.0, %v773
      %v775 = vrcp.pop %v763
      %v776 = vmul.f32 1.0, %v775
      %v777 = vrcp.pop %v764
      %v778 = vmul.f32 1.0, %v777
      %v779 = vrcp.pop %v765
      %v780 = vmul.f32 1.0, %v779
      %v781 = vrcp.pop %v766
      %v782 = vmul.f32 1.0, %v781
      %v783 = vmul.f32 %v727, %v768
      %v784 = vmul.f32 %v728, %v770
      %v785 = vmul.f32 %v729, %v772
      %v786 = vmul.f32 %v730, %v774
      %v787 = vmul.f32 %v731, %v776
      %v788 = vmul.f32 %v732, %v778
      %v789 = vmul.f32 %v733, %v780
      %v790 = vmul.f32 %v734, %v782
      %v791 = vpack.c.bf16 %v783, %v783
      %v792 = vpack.c.bf16 %v784, %v784
      %v793 = vpack.c.bf16 %v785, %v785
      %v794 = vpack.c.bf16 %v786, %v786
      %v795 = vpack.c.bf16 %v787, %v787
      %v796 = vpack.c.bf16 %v788, %v788
      %v797 = vpack.c.bf16 %v789, %v789
      %v798 = vpack.c.bf16 %v790, %v790
      %v807 = vcombine.low %v791, %v792
      %v809 = vunpack.c.l.s4 1983009808
      %v810 = vunpack.c.0.s8 %v809
      %v811 = vlaneseq
      %v812 = vshrl.u32 %v811, 7
      %v813 = vsub.s32 %v810, %v812
      %v814 = vrot.slane %v807, %v813
      %v815 = vcombine.low %v793, %v794
      %v817 = vunpack.c.l.s4 1983009808
      %v818 = vunpack.c.0.s8 %v817
      %v819 = vlaneseq
      %v820 = vshrl.u32 %v819, 7
      %v821 = vsub.s32 %v818, %v820
      %v822 = vrot.slane %v815, %v821
      %v823 = vcombine.low %v795, %v796
      %v825 = vunpack.c.l.s4 1983009808
      %v826 = vunpack.c.0.s8 %v825
      %v827 = vlaneseq
      %v828 = vshrl.u32 %v827, 7
      %v829 = vsub.s32 %v826, %v828
      %v830 = vrot.slane %v823, %v829
      %v831 = vcombine.low %v797, %v798
      %v833 = vunpack.c.l.s4 1983009808
      %v834 = vunpack.c.0.s8 %v833
      %v835 = vlaneseq
      %v836 = vshrl.u32 %v835, 7
      %v837 = vsub.s32 %v834, %v836
      %v838 = vrot.slane %v831, %v837
      %vm843 = vcmask 1041408
      %vm844 = vcmask 125954
      %vm845 = vmor %vm844, %vm843
      %846 = vst.msk [vmem:[%s204] sm:$0xf] %vm845, %v814
      %847 = vst.msk [vmem:[%s204 + $0x4] sm:$0xf] %vm845, %v822
      %848 = vst.msk [vmem:[%s204 + $0x8] sm:$0xf] %vm845, %v830
      %849 = vst.msk [vmem:[%s204 + $0xc] sm:$0xf] %vm845, %v838
      %vm850 = vcmask 1043456
      %v851 = vsel %vm850, %v783, 0.0
      %v852 = vsel %vm850, %v785, 0.0
      %v853 = vadd.f32 %v851, %v852
      %v854 = vsel %vm850, %v787, 0.0
      %v855 = vadd.f32 %v853, %v854
      %v856 = vsel %vm850, %v789, 0.0
      %v857 = vadd.f32 %v855, %v856
      %vm858 = vcmask 125952
      %v859 = vsel %vm858, %v784, 0.0
      %v860 = vsel %vm858, %v786, 0.0
      %v861 = vadd.f32 %v859, %v860
      %v862 = vsel %vm858, %v788, 0.0
      %v863 = vadd.f32 %v861, %v862
      %v864 = vsel %vm858, %v790, 0.0
      %v865 = vadd.f32 %v863, %v864
      %v866 = vsel %vm850, %v857, 0.0
      %v867 = vrot.slane %v866, 4
      %v868 = vadd.f32 %v866, %v867
      %v869 = vrot.slane %v868, 2
      %v870 = vadd.f32 %v868, %v869
      %v871 = vrot.slane %v870, 1
      %v872 = vadd.f32 %v870, %v871
      %v873 = vsel %vm858, %v865, 0.0
      %v874 = vrot.slane %v873, 4
      %v875 = vadd.f32 %v873, %v874
      %v876 = vrot.slane %v875, 2
      %v877 = vadd.f32 %v875, %v876
      %v878 = vrot.slane %v877, 1
      %v879 = vadd.f32 %v877, %v878
      %v880 = vmul.f32 %v872, 0.0625
      %v881 = vmul.f32 %v879, 0.0625
      %v884 = vcombine.low %v880, %v881
      %v886 = vunpack.c.l.s4 1966171168
      %v887 = vunpack.c.0.s8 %v886
      %v888 = vlaneseq
      %v889 = vshrl.u32 %v888, 7
      %v890 = vsub.s32 %v887, %v889
      %v891 = vrot.slane %v884, %v890
      %v893 = vunpack.c.l.s4 1966171168
      %v894 = vunpack.c.0.s8 %v893
      %v895 = vlaneseq
      %v896 = vshrl.u32 %v895, 7
      %v897 = vsub.s32 %v894, %v896
      %v898 = vrot.slane %v891, %v897
      %v900 = vlaneseq
      %vm901 = vcmp.ge.s32.totalorder %v900, 0
      %vm902 = vcmp.lt.s32.totalorder %v900, 144
      %vm903 = vmand %vm901, %vm902
      %904 = vst.msk [vmem:[%s208] sm:$0x3] %vm903, %v898
      %p905 = scmp.lt.s32.totalorder %s16, 1
      %s906 = scalar_select %p905, %s16, 1
      %s907 = smul.addr %s906, 8
      %s908 = smul.addr %s907, 2
      %s909 = scalar_lea.vmem %s3, %s908
      %p910 = scmp.lt.s32.totalorder %s16, 1
      %s911 = scalar_select %p910, %s16, 1
      %s912 = smul.addr %s911, 2
      %s913 = scalar_lea.vmem %s4, %s912
      // Predicated region
      $region33: #{efficientnet_forward.19} parent=31 // pred_check
        %p914 = pneg %p102
      $region34: #{efficientnet_forward.19} parent=31 // pred_check_branch
        %916 = sbr.rel (%p914) target = $region36
      $region35: #{efficientnet_forward.19} parent=31 // pred_region
        _
      $region36: #{efficientnet_forward.19} parent=31 // pred_fallthru
        _
      // Predicated region
      $region37: #{efficientnet_forward.19} parent=31 // pred_check
        %p917 = pneg %p128
      $region38: #{efficientnet_forward.19} parent=31 // pred_check_branch
        %919 = sbr.rel (%p917) target = $region40
      $region39: #{efficientnet_forward.19} parent=31 // pred_region
        _
      $region40: #{efficientnet_forward.19} parent=31 // pred_fallthru
        _
    $region32: #{efficientnet_forward.19} parent=5 // pred_fallthru
      _
    %p920 = scmp.le.s32.totalorder 2, %s11
    // Predicated region
    $region41: #{efficientnet_forward.19} parent=5 // pred_check
      %p921 = pneg %p920
    $region42: #{efficientnet_forward.19} parent=5 // pred_check_branch
      %923 = sbr.rel (%p921) target = $region44
    $region43: #{efficientnet_forward.19} parent=5 // pred_region
      %s924 = ssub.s32 %s11, 2
      // Predicated region
      $region45: #{efficientnet_forward.19} parent=43 // pred_check
        %p925 = pneg %p108
      $region46: #{efficientnet_forward.19} parent=43 // pred_check_branch
        %927 = sbr.rel (%p925) target = $region48
      $region47: #{efficientnet_forward.19} parent=43 // pred_region
        %p928 = scmp.lt.s32.totalorder %s17, 1
        %s929 = scalar_select %p928, %s17, 1
        %s930 = smul.addr %s929, 8
        %s931 = smul.addr %s930, 2
        %s932 = scalar_lea.vmem %s3, %s931
      $region48: #{efficientnet_forward.19} parent=43 // pred_fallthru
        _
      // Predicated region
      $region49: #{efficientnet_forward.19} parent=43 // pred_check
        %p933 = pneg %p134
      $region50: #{efficientnet_forward.19} parent=43 // pred_check_branch
        %935 = sbr.rel (%p933) target = $region52
      $region51: #{efficientnet_forward.19} parent=43 // pred_region
        %p936 = scmp.lt.s32.totalorder %s17, 1
        %s937 = scalar_select %p936, %s17, 1
        %s938 = smul.addr %s937, 2
        %s939 = scalar_lea.vmem %s4, %s938
      $region52: #{efficientnet_forward.19} parent=43 // pred_fallthru
        _
    $region44: #{efficientnet_forward.19} parent=5 // pred_fallthru
      _
  $region6: #{efficientnet_forward.19} parent=0 // loop_footer
    %s15 = sadd.s32 1, %s11
  $region7: #{efficientnet_forward.19} parent=0 // loop_footer_branch
    %10 = sbr.rel target = $region3
  $region8: #{efficientnet_forward.19} parent=0 // loop_exit
    _

// kernel: efficientnet_forward.20
$region0: #{efficientnet_forward.20}
  #allocation0 [shape = 'u32[]', space=smem, size = 0x4, offset = 0x4, fixed_abs, tag = 'smem constant byte address 0x4 - core index']
  #allocation1 [shape = 'u32[144,128]{1,0:T(1,128)}', space=vmem, size = 0x12000, scoped, tag = 'internal scratch']
  %s0 = inlined_call_operand.vmem [shape: bf16[2,16,144], index: 0, kind: input, shape index: {}]
  %s1 = inlined_call_operand.vmem [shape: f32[2,1,144], index: 1, kind: input, shape index: {}]
  %s2 = inlined_call_operand.vmem [shape: f32[144,36], index: 2, kind: input, shape index: {}]
  %s3 = inlined_call_operand.vmem [shape: f32[1,36], index: 3, kind: input, shape index: {}]
  %s4 = inlined_call_operand.vmem [shape: f32[36,144], index: 4, kind: input, shape index: {}]
  %s5 = inlined_call_operand.vmem [shape: f32[1,144], index: 5, kind: input, shape index: {}]
  %s6 = inlined_call_operand.vmem [shape: bf16[144,24], index: 6, kind: input, shape index: {}]
  %s7 = inlined_call_operand.vmem [shape: f32[1,24], index: 7, kind: input, shape index: {}]
  %s8 = inlined_call_operand.vmem [shape: bf16[2,16,24], index: 8, kind: input, shape index: {}]
  %s9 = inlined_call_operand.vmem [shape: bf16[2,16,24], index: 9, kind: output, shape index: {}]
  %s10 = sld [smem:[#allocation0]]
  $region69: #{efficientnet_forward.20} parent=0
    _
  %s12 = ssub.s32 1, %s10
  %s13 = scalar_select 0, %s12, %s10
  loop: start=0, step=1, limit=4
  $region2: #{efficientnet_forward.20} parent=0 // loop_pre_header
    _
  $region3: #{efficientnet_forward.20} parent=0 // loop_header
    %s15 = sphi 0, %s19
    %p16 = scmp.ge.s32.totalorder %s15, 4
    %s25 = sphi 0, %s27
    %s28 = sphi 0, %s25
    %s29 = sphi 0, %s28
    %s45 = sphi 0, %s29
    %s51 = sphi 0, %s53
    %s54 = sphi 0, %s51
    %s55 = sphi 0, %s54
    %s71 = sphi 0, %s55
    %s75 = sphi 0, %s75
    %s77 = sphi 0, %s75
    %s78 = sphi 0, %s77
    %s92 = sphi 0, %s78
    %s96 = sphi 0, %s96
    %s98 = sphi 0, %s96
    %s99 = sphi 0, %s98
    %s113 = sphi 0, %s99
    %s117 = sphi 0, %s117
    %s119 = sphi 0, %s117
    %s120 = sphi 0, %s119
    %s134 = sphi 0, %s120
    %s138 = sphi 0, %s138
    %s140 = sphi 0, %s138
    %s141 = sphi 0, %s140
    %s155 = sphi 0, %s141
    %s159 = sphi 0, %s159
    %s161 = sphi 0, %s159
    %s162 = sphi 0, %s161
    %s176 = sphi 0, %s162
    %s180 = sphi 0, %s180
    %s182 = sphi 0, %s180
    %s183 = sphi 0, %s182
    %s197 = sphi 0, %s183
    %s203 = sphi 0, %s205
    %s206 = sphi 0, %s203
    %s207 = sphi 0, %s206
    %s223 = sphi 0, %s207
    %s229 = sphi 0, %s231
    %s232 = sphi 0, %s229
    %s233 = sphi 0, %s232
    %s249 = sphi 0, %s233
  $region4: #{efficientnet_forward.20} parent=0 // loop_header_branch
    %18 = sbr.rel (%p16) target = $region8
  $region5: #{efficientnet_forward.20} parent=0 // loop_body
    %s20 = ssub.s32 %s15, 1
    %s21 = ssub.s32 %s15, 2
    %s22 = sadd.s32 %s15, 1
    %s23 = ssub.s32 %s15, %s22
    %p24 = scmp.eq.s32.totalorder %s23, 0
    %s26 = sadd.s32 %s25, 1
    %s27 = scalar_select %p24, %s25, %s26
    %p30 = pneg %p24
    %p31 = scmp.eq.s32.totalorder %s15, 1
    %p32 = por %p30, %p31
    %p33 = scmp.ne.s32.totalorder %s25, %s28
    %p34 = scmp.eq.s32.totalorder %s15, 0
    %p35 = por %p33, %p34
    %p36 = scmp.ne.s32.totalorder %s25, %s28
    %p37 = scmp.eq.s32.totalorder %s20, 1
    %p38 = por %p36, %p37
    %p39 = scmp.ne.s32.totalorder %s28, %s29
    %p40 = scmp.eq.s32.totalorder %s20, 0
    %p41 = por %p39, %p40
    %p42 = scmp.ne.s32.totalorder %s28, %s29
    %p43 = scmp.eq.s32.totalorder %s21, 1
    %p44 = por %p42, %p43
    %p46 = scmp.ne.s32.totalorder %s29, %s45
    %p47 = scmp.eq.s32.totalorder %s21, 0
    %p48 = por %p46, %p47
    %s49 = ssub.s32 %s15, %s22
    %p50 = scmp.eq.s32.totalorder %s49, 0
    %s52 = sadd.s32 %s51, 1
    %s53 = scalar_select %p50, %s51, %s52
    %p56 = pneg %p50
    %p57 = scmp.eq.s32.totalorder %s15, 1
    %p58 = por %p56, %p57
    %p59 = scmp.ne.s32.totalorder %s51, %s54
    %p60 = scmp.eq.s32.totalorder %s15, 0
    %p61 = por %p59, %p60
    %p62 = scmp.ne.s32.totalorder %s51, %s54
    %p63 = scmp.eq.s32.totalorder %s20, 1
    %p64 = por %p62, %p63
    %p65 = scmp.ne.s32.totalorder %s54, %s55
    %p66 = scmp.eq.s32.totalorder %s20, 0
    %p67 = por %p65, %p66
    %p68 = scmp.ne.s32.totalorder %s54, %s55
    %p69 = scmp.eq.s32.totalorder %s21, 1
    %p70 = por %p68, %p69
    %p72 = scmp.ne.s32.totalorder %s55, %s71
    %p73 = scmp.eq.s32.totalorder %s21, 0
    %p74 = por %p72, %p73
    %s76 = sadd.s32 %s75, 1
    %p79 = scmp.eq.s32.totalorder %s15, 1
    %p80 = scmp.ne.s32.totalorder %s75, %s77
    %p81 = scmp.eq.s32.totalorder %s15, 0
    %p82 = por %p80, %p81
    %p83 = scmp.ne.s32.totalorder %s75, %s77
    %p84 = scmp.eq.s32.totalorder %s20, 1
    %p85 = por %p83, %p84
    %p86 = scmp.ne.s32.totalorder %s77, %s78
    %p87 = scmp.eq.s32.totalorder %s20, 0
    %p88 = por %p86, %p87
    %p89 = scmp.ne.s32.totalorder %s77, %s78
    %p90 = scmp.eq.s32.totalorder %s21, 1
    %p91 = por %p89, %p90
    %p93 = scmp.ne.s32.totalorder %s78, %s92
    %p94 = scmp.eq.s32.totalorder %s21, 0
    %p95 = por %p93, %p94
    %s97 = sadd.s32 %s96, 1
    %p100 = scmp.eq.s32.totalorder %s15, 1
    %p101 = scmp.ne.s32.totalorder %s96, %s98
    %p102 = scmp.eq.s32.totalorder %s15, 0
    %p103 = por %p101, %p102
    %p104 = scmp.ne.s32.totalorder %s96, %s98
    %p105 = scmp.eq.s32.totalorder %s20, 1
    %p106 = por %p104, %p105
    %p107 = scmp.ne.s32.totalorder %s98, %s99
    %p108 = scmp.eq.s32.totalorder %s20, 0
    %p109 = por %p107, %p108
    %p110 = scmp.ne.s32.totalorder %s98, %s99
    %p111 = scmp.eq.s32.totalorder %s21, 1
    %p112 = por %p110, %p111
    %p114 = scmp.ne.s32.totalorder %s99, %s113
    %p115 = scmp.eq.s32.totalorder %s21, 0
    %p116 = por %p114, %p115
    %s118 = sadd.s32 %s117, 1
    %p121 = scmp.eq.s32.totalorder %s15, 1
    %p122 = scmp.ne.s32.totalorder %s117, %s119
    %p123 = scmp.eq.s32.totalorder %s15, 0
    %p124 = por %p122, %p123
    %p125 = scmp.ne.s32.totalorder %s117, %s119
    %p126 = scmp.eq.s32.totalorder %s20, 1
    %p127 = por %p125, %p126
    %p128 = scmp.ne.s32.totalorder %s119, %s120
    %p129 = scmp.eq.s32.totalorder %s20, 0
    %p130 = por %p128, %p129
    %p131 = scmp.ne.s32.totalorder %s119, %s120
    %p132 = scmp.eq.s32.totalorder %s21, 1
    %p133 = por %p131, %p132
    %p135 = scmp.ne.s32.totalorder %s120, %s134
    %p136 = scmp.eq.s32.totalorder %s21, 0
    %p137 = por %p135, %p136
    %s139 = sadd.s32 %s138, 1
    %p142 = scmp.eq.s32.totalorder %s15, 1
    %p143 = scmp.ne.s32.totalorder %s138, %s140
    %p144 = scmp.eq.s32.totalorder %s15, 0
    %p145 = por %p143, %p144
    %p146 = scmp.ne.s32.totalorder %s138, %s140
    %p147 = scmp.eq.s32.totalorder %s20, 1
    %p148 = por %p146, %p147
    %p149 = scmp.ne.s32.totalorder %s140, %s141
    %p150 = scmp.eq.s32.totalorder %s20, 0
    %p151 = por %p149, %p150
    %p152 = scmp.ne.s32.totalorder %s140, %s141
    %p153 = scmp.eq.s32.totalorder %s21, 1
    %p154 = por %p152, %p153
    %p156 = scmp.ne.s32.totalorder %s141, %s155
    %p157 = scmp.eq.s32.totalorder %s21, 0
    %p158 = por %p156, %p157
    %s160 = sadd.s32 %s159, 1
    %p163 = scmp.eq.s32.totalorder %s15, 1
    %p164 = scmp.ne.s32.totalorder %s159, %s161
    %p165 = scmp.eq.s32.totalorder %s15, 0
    %p166 = por %p164, %p165
    %p167 = scmp.ne.s32.totalorder %s159, %s161
    %p168 = scmp.eq.s32.totalorder %s20, 1
    %p169 = por %p167, %p168
    %p170 = scmp.ne.s32.totalorder %s161, %s162
    %p171 = scmp.eq.s32.totalorder %s20, 0
    %p172 = por %p170, %p171
    %p173 = scmp.ne.s32.totalorder %s161, %s162
    %p174 = scmp.eq.s32.totalorder %s21, 1
    %p175 = por %p173, %p174
    %p177 = scmp.ne.s32.totalorder %s162, %s176
    %p178 = scmp.eq.s32.totalorder %s21, 0
    %p179 = por %p177, %p178
    %s181 = sadd.s32 %s180, 1
    %p184 = scmp.eq.s32.totalorder %s15, 1
    %p185 = scmp.ne.s32.totalorder %s180, %s182
    %p186 = scmp.eq.s32.totalorder %s15, 0
    %p187 = por %p185, %p186
    %p188 = scmp.ne.s32.totalorder %s180, %s182
    %p189 = scmp.eq.s32.totalorder %s20, 1
    %p190 = por %p188, %p189
    %p191 = scmp.ne.s32.totalorder %s182, %s183
    %p192 = scmp.eq.s32.totalorder %s20, 0
    %p193 = por %p191, %p192
    %p194 = scmp.ne.s32.totalorder %s182, %s183
    %p195 = scmp.eq.s32.totalorder %s21, 1
    %p196 = por %p194, %p195
    %p198 = scmp.ne.s32.totalorder %s183, %s197
    %p199 = scmp.eq.s32.totalorder %s21, 0
    %p200 = por %p198, %p199
    %s201 = ssub.s32 %s15, %s22
    %p202 = scmp.eq.s32.totalorder %s201, 0
    %s204 = sadd.s32 %s203, 1
    %s205 = scalar_select %p202, %s203, %s204
    %p208 = pneg %p202
    %p209 = scmp.eq.s32.totalorder %s15, 1
    %p210 = por %p208, %p209
    %p211 = scmp.ne.s32.totalorder %s203, %s206
    %p212 = scmp.eq.s32.totalorder %s15, 0
    %p213 = por %p211, %p212
    %p214 = scmp.ne.s32.totalorder %s203, %s206
    %p215 = scmp.eq.s32.totalorder %s20, 1
    %p216 = por %p214, %p215
    %p217 = scmp.ne.s32.totalorder %s206, %s207
    %p218 = scmp.eq.s32.totalorder %s20, 0
    %p219 = por %p217, %p218
    %p220 = scmp.ne.s32.totalorder %s206, %s207
    %p221 = scmp.eq.s32.totalorder %s21, 1
    %p222 = por %p220, %p221
    %p224 = scmp.ne.s32.totalorder %s207, %s223
    %p225 = scmp.eq.s32.totalorder %s21, 0
    %p226 = por %p224, %p225
    %s227 = ssub.s32 %s15, %s22
    %p228 = scmp.eq.s32.totalorder %s227, 0
    %s230 = sadd.s32 %s229, 1
    %s231 = scalar_select %p228, %s229, %s230
    %p234 = pneg %p228
    %p235 = scmp.eq.s32.totalorder %s15, 1
    %p236 = por %p234, %p235
    %p237 = scmp.ne.s32.totalorder %s229, %s232
    %p238 = scmp.eq.s32.totalorder %s15, 0
    %p239 = por %p237, %p238
    %p240 = scmp.ne.s32.totalorder %s229, %s232
    %p241 = scmp.eq.s32.totalorder %s20, 1
    %p242 = por %p240, %p241
    %p243 = scmp.ne.s32.totalorder %s232, %s233
    %p244 = scmp.eq.s32.totalorder %s20, 0
    %p245 = por %p243, %p244
    %p246 = scmp.ne.s32.totalorder %s232, %s233
    %p247 = scmp.eq.s32.totalorder %s21, 1
    %p248 = por %p246, %p247
    %p250 = scmp.ne.s32.totalorder %s233, %s249
    %p251 = scmp.eq.s32.totalorder %s21, 0
    %p252 = por %p250, %p251
    %p253 = scmp.le.s32.totalorder 1, %s15
    %p254 = scmp.lt.s32.totalorder %s15, 3
    %p255 = pnand %p253, %p254
    %p256 = pneg %p255
    // Predicated region
    $region9: #{efficientnet_forward.20} parent=5 // pred_check
      _
    $region10: #{efficientnet_forward.20} parent=5 // pred_check_branch
      %258 = sbr.rel (%p255) target = $region12
    $region11: #{efficientnet_forward.20} parent=5 // pred_region
      %s259 = ssub.s32 %s15, 1
      // Predicated region
      $region13: #{efficientnet_forward.20} parent=11 // pred_check
        %p260 = pneg %p88
      $region14: #{efficientnet_forward.20} parent=11 // pred_check_branch
        %262 = sbr.rel (%p260) target = $region16
      $region15: #{efficientnet_forward.20} parent=11 // pred_region
        _
      $region16: #{efficientnet_forward.20} parent=11 // pred_fallthru
        _
      // Predicated region
      $region17: #{efficientnet_forward.20} parent=11 // pred_check
        %p263 = pneg %p109
      $region18: #{efficientnet_forward.20} parent=11 // pred_check_branch
        %265 = sbr.rel (%p263) target = $region20
      $region19: #{efficientnet_forward.20} parent=11 // pred_region
        _
      $region20: #{efficientnet_forward.20} parent=11 // pred_fallthru
        _
      // Predicated region
      $region21: #{efficientnet_forward.20} parent=11 // pred_check
        %p266 = pneg %p130
      $region22: #{efficientnet_forward.20} parent=11 // pred_check_branch
        %268 = sbr.rel (%p266) target = $region24
      $region23: #{efficientnet_forward.20} parent=11 // pred_region
        _
      $region24: #{efficientnet_forward.20} parent=11 // pred_fallthru
        _
      // Predicated region
      $region25: #{efficientnet_forward.20} parent=11 // pred_check
        %p269 = pneg %p151
      $region26: #{efficientnet_forward.20} parent=11 // pred_check_branch
        %271 = sbr.rel (%p269) target = $region28
      $region27: #{efficientnet_forward.20} parent=11 // pred_region
        _
      $region28: #{efficientnet_forward.20} parent=11 // pred_fallthru
        _
      // Predicated region
      $region29: #{efficientnet_forward.20} parent=11 // pred_check
        %p272 = pneg %p172
      $region30: #{efficientnet_forward.20} parent=11 // pred_check_branch
        %274 = sbr.rel (%p272) target = $region32
      $region31: #{efficientnet_forward.20} parent=11 // pred_region
        _
      $region32: #{efficientnet_forward.20} parent=11 // pred_fallthru
        _
      // Predicated region
      $region33: #{efficientnet_forward.20} parent=11 // pred_check
        %p275 = pneg %p193
      $region34: #{efficientnet_forward.20} parent=11 // pred_check_branch
        %277 = sbr.rel (%p275) target = $region36
      $region35: #{efficientnet_forward.20} parent=11 // pred_region
        _
      $region36: #{efficientnet_forward.20} parent=11 // pred_fallthru
        _
    $region12: #{efficientnet_forward.20} parent=5 // pred_fallthru
      _
    %p278 = scmp.lt.s32.totalorder %s15, 2
    // Predicated region
    $region37: #{efficientnet_forward.20} parent=5 // pred_check
      %p279 = pneg %p278
    $region38: #{efficientnet_forward.20} parent=5 // pred_check_branch
      %281 = sbr.rel (%p279) target = $region40
    $region39: #{efficientnet_forward.20} parent=5 // pred_region
      // Predicated region
      $region41: #{efficientnet_forward.20} parent=39 // pred_check
        %p282 = pneg %p35
      $region42: #{efficientnet_forward.20} parent=39 // pred_check_branch
        %284 = sbr.rel (%p282) target = $region44
      $region43: #{efficientnet_forward.20} parent=39 // pred_region
        %p285 = scmp.lt.s32.totalorder %s15, 1
        %s286 = scalar_select %p285, %s15, 1
        %s287 = smul.addr %s286, 4
        %s288 = smul.addr %s287, 4
        %s289 = scalar_lea.vmem %s0, %s288
      $region44: #{efficientnet_forward.20} parent=39 // pred_fallthru
        _
      // Predicated region
      $region45: #{efficientnet_forward.20} parent=39 // pred_check
        %p290 = pneg %p61
      $region46: #{efficientnet_forward.20} parent=39 // pred_check_branch
        %292 = sbr.rel (%p290) target = $region48
      $region47: #{efficientnet_forward.20} parent=39 // pred_region
        %p293 = scmp.lt.s32.totalorder %s15, 1
        %s294 = scalar_select %p293, %s15, 1
        %s295 = smul.addr %s294, 2
        %s296 = scalar_lea.vmem %s1, %s295
      $region48: #{efficientnet_forward.20} parent=39 // pred_fallthru
        _
      // Predicated region
      $region49: #{efficientnet_forward.20} parent=39 // pred_check
        %p297 = pneg %p213
      $region50: #{efficientnet_forward.20} parent=39 // pred_check_branch
        %299 = sbr.rel (%p297) target = $region52
      $region51: #{efficientnet_forward.20} parent=39 // pred_region
        %p300 = scmp.lt.s32.totalorder %s15, 1
        %s301 = scalar_select %p300, %s15, 1
        %s302 = smul.addr %s301, 2
        %s303 = smul.addr %s302, 4
        %s304 = scalar_lea.vmem %s8, %s303
      $region52: #{efficientnet_forward.20} parent=39 // pred_fallthru
        _
    $region40: #{efficientnet_forward.20} parent=5 // pred_fallthru
      _
    %p305 = scmp.le.s32.totalorder 1, %s15
    %p306 = scmp.lt.s32.totalorder %s15, 3
    %p307 = pnand %p305, %p306
    %p308 = pneg %p307
    // Predicated region
    $region53: #{efficientnet_forward.20} parent=5 // pred_check
      _
    $region54: #{efficientnet_forward.20} parent=5 // pred_check_branch
      %310 = sbr.rel (%p307) target = $region56
    $region55: #{efficientnet_forward.20} parent=5 // pred_region
      %s311 = ssub.s32 %s15, 1
      %p312 = scmp.lt.s32.totalorder %s20, 1
      %s313 = scalar_select %p312, %s20, 1
      %s314 = smul.addr %s313, 4
      %s315 = smul.addr %s314, 4
      %s316 = scalar_lea.vmem %s0, %s315
      %p317 = pneg %p41
      %p318 = pneg %p38
      %p319 = scmp.lt.s32.totalorder %s20, 1
      %s320 = scalar_select %p319, %s20, 1
      %s321 = smul.addr %s320, 2
      %s322 = scalar_lea.vmem %s1, %s321
      %p323 = pneg %p67
      %p324 = pneg %p64
      %p325 = pneg %p88
      %p326 = pneg %p85
      %p327 = pneg %p109
      %p328 = pneg %p106
      %p329 = pneg %p130
      %p330 = pneg %p127
      %p331 = pneg %p151
      %p332 = pneg %p148
      %p333 = pneg %p172
      %p334 = pneg %p169
      %p335 = pneg %p193
      %p336 = pneg %p190
      %p337 = scmp.lt.s32.totalorder %s20, 1
      %s338 = scalar_select %p337, %s20, 1
      %s339 = smul.addr %s338, 2
      %s340 = smul.addr %s339, 4
      %s341 = scalar_lea.vmem %s8, %s340
      %p342 = pneg %p219
      %p343 = pneg %p216
      %p344 = pneg %p245
      %p345 = pneg %p242
      %p346 = scmp.lt.s32.totalorder %s20, 1
      %s347 = scalar_select %p346, %s20, 1
      %s348 = smul.addr %s347, 2
      %s349 = smul.addr %s348, 4
      %s350 = scalar_lea.vmem %s9, %s349
      %p351 = scmp.lt.s32.totalorder %s20, 1
      %s352 = scalar_select %p351, %s20, 1
      %s353 = smul.addr %s352, 4
      %s354 = smul.addr %s353, 4
      %s355 = scalar_lea.vmem %s0, %s354
      %p356 = scmp.lt.s32.totalorder %s20, 1
      %s357 = scalar_select %p356, %s20, 1
      %s358 = smul.addr %s357, 2
      %s359 = scalar_lea.vmem %s1, %s358
      %p360 = scmp.lt.s32.totalorder %s20, 1
      %s361 = scalar_select %p360, %s20, 1
      %s362 = smul.addr %s361, 2
      %s363 = smul.addr %s362, 4
      %s364 = scalar_lea.vmem %s8, %s363
      %p365 = scmp.lt.s32.totalorder %s20, 1
      %s366 = scalar_select %p365, %s20, 1
      %s367 = smul.addr %s366, 2
      %s368 = smul.addr %s367, 4
      %s369 = scalar_lea.vmem %s9, %s368
      %v371 = vld [vmem:[%s359] sm:$0x3]
      %v372 = vld [vmem:[%s2] sm:$0xff]
      %v373 = vld [vmem:[%s2 + $0x8] sm:$0xff]
      %v374 = vld [vmem:[%s2 + $0x10] sm:$0xff]
      %v375 = vld [vmem:[%s2 + $0x18] sm:$0xff]
      %v376 = vld [vmem:[%s2 + $0x20] sm:$0xff]
      %v377 = vld [vmem:[%s2 + $0x28] sm:$0xff]
      %v378 = vld [vmem:[%s2 + $0x30] sm:$0xff]
      %v379 = vld [vmem:[%s2 + $0x38] sm:$0xff]
      %v380 = vld [vmem:[%s2 + $0x40] sm:$0xff]
      %v381 = vld [vmem:[%s2 + $0x48] sm:$0xff]
      %v382 = vld [vmem:[%s2 + $0x50] sm:$0xff]
      %v383 = vld [vmem:[%s2 + $0x58] sm:$0xff]
      %v384 = vld [vmem:[%s2 + $0x60] sm:$0xff]
      %v385 = vld [vmem:[%s2 + $0x68] sm:$0xff]
      %v386 = vld [vmem:[%s2 + $0x70] sm:$0xff]
      %v387 = vld [vmem:[%s2 + $0x78] sm:$0xff]
      %v388 = vld [vmem:[%s2 + $0x80] sm:$0xff]
      %v389 = vld [vmem:[%s2 + $0x88] sm:$0xff]
      %v390 = vld [vmem:[%s3] sm:$0x1]
      %v392 = vlaneseq
      %v393 = vshrl.u32 %v392, 7
      %v394 = vsub.s32 0, %v393
      %v395 = vrot.slane %v371, %v394
      %v396 = vlaneseq
      %v397 = vshrl.u32 %v396, 7
      %v398 = vsub.s32 1, %v397
      %v399 = vrot.slane %v371, %v398
      %vm401 = vcmask 130048
      %v402 = vsel %vm401, %v399, 0
      %404 = vmatprep.subr.mxu0 0.0
      %405 = vmatpush1.msra.mxu0 %v387
      %406 = vmatprep.subr.mxu0 0.0
      %407 = vmatpush1.msra.mxu0 %v386
      %408 = vmatprep.subr.mxu0 0.0
      %409 = vmatpush1.msra.mxu0 %v385
      %410 = vmatprep.subr.mxu0 0.0
      %411 = vmatpush1.msra.mxu0 %v384
      %412 = vmatprep.subr.mxu0 0.0
      %413 = vmatpush1.msra.mxu0 %v383
      %414 = vmatprep.subr.mxu0 0.0
      %415 = vmatpush1.msra.mxu0 %v382
      %416 = vmatprep.subr.mxu0 0.0
      %417 = vmatpush1.msra.mxu0 %v381
      %418 = vmatprep.subr.mxu0 0.0
      %419 = vmatpush1.msra.mxu0 %v380
      %420 = vmatprep.subr.mxu0 0.0
      %421 = vmatpush1.msra.mxu0 %v379
      %422 = vmatprep.subr.mxu0 0.0
      %423 = vmatpush1.msra.mxu0 %v378
      %424 = vmatprep.subr.mxu0 0.0
      %425 = vmatpush1.msra.mxu0 %v377
      %426 = vmatprep.subr.mxu0 0.0
      %427 = vmatpush1.msra.mxu0 %v376
      %428 = vmatprep.subr.mxu0 0.0
      %429 = vmatpush1.msra.mxu0 %v375
      %430 = vmatprep.subr.mxu0 0.0
      %431 = vmatpush1.msra.mxu0 %v374
      %432 = vmatprep.subr.mxu0 0.0
      %433 = vmatpush1.msra.mxu0 %v373
      %434 = vmatprep.subr.mxu0 0.0
      %435 = vmatpush1.msra.mxu0 %v372
      %436 = vmatprep.subr.mxu0 0.0
      %437 = vmatpush2.msra.mxu0 0.0
      %438 = vmatprep.subr.mxu0 0.0
      %439 = vmatpush2.msra.mxu0 0.0
      %440 = vmatprep.subr.mxu0 0.0
      %441 = vmatpush2.msra.mxu0 0.0
      %442 = vmatprep.subr.mxu0 0.0
      %443 = vmatpush2.msra.mxu0 0.0
      %444 = vmatprep.subr.mxu0 0.0
      %445 = vmatpush2.msra.mxu0 0.0
      %446 = vmatprep.subr.mxu0 0.0
      %447 = vmatpush2.msra.mxu0 0.0
      %448 = vmatprep.subr.mxu0 0.0
      %449 = vmatpush2.msra.mxu0 0.0
      %450 = vmatprep.subr.mxu0 0.0
      %451 = vmatpush2.msra.mxu0 0.0
      %452 = vmatprep.subr.mxu0 0.0
      %453 = vmatpush2.msra.mxu0 0.0
      %454 = vmatprep.subr.mxu0 0.0
      %455 = vmatpush2.msra.mxu0 0.0
      %456 = vmatprep.subr.mxu0 0.0
      %457 = vmatpush2.msra.mxu0 0.0
      %458 = vmatprep.subr.mxu0 0.0
      %459 = vmatpush2.msra.mxu0 0.0
      %460 = vmatprep.subr.mxu0 0.0
      %461 = vmatpush2.msra.mxu0 0.0
      %462 = vmatprep.subr.mxu0 0.0
      %463 = vmatpush2.msra.mxu0 0.0
      %464 = vmatprep.subr.mxu0 0.0
      %465 = vmatpush2.msra.mxu0 %v389
      %466 = vmatprep.subr.mxu0 0.0
      %467 = vmatpush2.msra.mxu0 %v388
      %468 = vmatprep.mubr.f32.mxu0 %v402
      %469 = vmatmul.mubr.f32.gmra.mxu0 %v395
      %v470 = vpop.f32.mrf.mxu0
      %v471 = vadd.f32 %v390, %v470
      %v472 = vpop.f32.mrf.mxu0
      %473 = vdwg.mxu0
      %v474 = vxor.u32 %v471, 2147483648
      %v475 = vmul.f32 %v474, 1.442695
      %v476 = vpow.pop %v475
      %v477 = vadd.f32 %v476, 1.0
      %v478 = vrcp.pop %v477
      %v479 = vmul.f32 1.0, %v478
      %v480 = vmul.f32 %v471, %v479
      %v481 = vld [vmem:[%s4] sm:$0xff]
      %v482 = vld [vmem:[%s4 + $0x8] sm:$0xff]
      %v483 = vld [vmem:[%s4 + $0x10] sm:$0xff]
      %v484 = vld [vmem:[%s4 + $0x18] sm:$0xff]
      %v485 = vld [vmem:[%s4 + $0x20] sm:$0xff]
      %v486 = vld [vmem:[%s4 + $0x28] sm:$0xff]
      %v487 = vld [vmem:[%s4 + $0x30] sm:$0xff]
      %v488 = vld [vmem:[%s4 + $0x38] sm:$0xff]
      %v489 = vld [vmem:[%s4 + $0x40] sm:$0xf]
      %v490 = vld [vmem:[%s4 + $0x48] sm:$0xf]
      %v491 = vld [vmem:[%s5] sm:$0x3]
      %v493 = vlaneseq
      %v494 = vshrl.u32 %v493, 7
      %v495 = vsub.s32 0, %v494
      %v496 = vrot.slane %v491, %v495
      %v497 = vlaneseq
      %v498 = vshrl.u32 %v497, 7
      %v499 = vsub.s32 1, %v498
      %v500 = vrot.slane %v491, %v499
      %vm503 = vcmask 293888
      %v505 = vsel %vm503, %v480, 0
      %vm507 = vcmask 1043456
      %v509 = vsel %vm507, %v489, 0
      %v512 = vsel %vm507, %v490, 0
      %514 = vmatprep.subr.mxu0 0.0
      %515 = vmatpush1.msra.mxu0 0.0
      %516 = vmatprep.subr.mxu0 0.0
      %517 = vmatpush1.msra.mxu0 0.0
      %518 = vmatprep.subr.mxu0 0.0
      %519 = vmatpush1.msra.mxu0 0.0
      %520 = vmatprep.subr.mxu0 0.0
      %521 = vmatpush1.msra.mxu0 0.0
      %522 = vmatprep.subr.mxu0 0.0
      %523 = vmatpush1.msra.mxu0 0.0
      %524 = vmatprep.subr.mxu0 0.0
      %525 = vmatpush1.msra.mxu0 0.0
      %526 = vmatprep.subr.mxu0 0.0
      %527 = vmatpush1.msra.mxu0 0.0
      %528 = vmatprep.subr.mxu0 0.0
      %529 = vmatpush1.msra.mxu0 0.0
      %530 = vmatprep.subr.mxu0 0.0
      %531 = vmatpush1.msra.mxu0 0.0
      %532 = vmatprep.subr.mxu0 0.0
      %533 = vmatpush1.msra.mxu0 0.0
      %534 = vmatprep.subr.mxu0 0.0
      %535 = vmatpush1.msra.mxu0 0.0
      %536 = vmatprep.subr.mxu0 %v512
      %537 = vmatpush1.msra.mxu0 %v509
      %538 = vmatprep.subr.mxu0 %v488
      %539 = vmatpush1.msra.mxu0 %v487
      %540 = vmatprep.subr.mxu0 %v486
      %541 = vmatpush1.msra.mxu0 %v485
      %542 = vmatprep.subr.mxu0 %v484
      %543 = vmatpush1.msra.mxu0 %v483
      %544 = vmatprep.subr.mxu0 %v482
      %545 = vmatpush1.msra.mxu0 %v481
      %546 = vmatprep.subr.mxu0 0.0
      %547 = vmatpush2.msra.mxu0 0.0
      %548 = vmatprep.subr.mxu0 0.0
      %549 = vmatpush2.msra.mxu0 0.0
      %550 = vmatprep.subr.mxu0 0.0
      %551 = vmatpush2.msra.mxu0 0.0
      %552 = vmatprep.subr.mxu0 0.0
      %553 = vmatpush2.msra.mxu0 0.0
      %554 = vmatprep.subr.mxu0 0.0
      %555 = vmatpush2.msra.mxu0 0.0
      %556 = vmatprep.subr.mxu0 0.0
      %557 = vmatpush2.msra.mxu0 0.0
      %558 = vmatprep.subr.mxu0 0.0
      %559 = vmatpush2.msra.mxu0 0.0
      %560 = vmatprep.subr.mxu0 0.0
      %561 = vmatpush2.msra.mxu0 0.0
      %562 = vmatprep.subr.mxu0 0.0
      %563 = vmatpush2.msra.mxu0 0.0
      %564 = vmatprep.subr.mxu0 0.0
      %565 = vmatpush2.msra.mxu0 0.0
      %566 = vmatprep.subr.mxu0 0.0
      %567 = vmatpush2.msra.mxu0 0.0
      %568 = vmatprep.subr.mxu0 0.0
      %569 = vmatpush2.msra.mxu0 0.0
      %570 = vmatprep.subr.mxu0 0.0
      %571 = vmatpush2.msra.mxu0 0.0
      %572 = vmatprep.subr.mxu0 0.0
      %573 = vmatpush2.msra.mxu0 0.0
      %574 = vmatprep.subr.mxu0 0.0
      %575 = vmatpush2.msra.mxu0 0.0
      %576 = vmatprep.subr.mxu0 0.0
      %577 = vmatpush2.msra.mxu0 0.0
      %578 = vmatprep.mubr.f32.mxu0 0.0
      %579 = vmatmul.mubr.f32.gmra.mxu0 %v505
      %v580 = vpop.f32.mrf.mxu0
      %v581 = vadd.f32 %v496, %v580
      %v582 = vpop.f32.mrf.mxu0
      %v583 = vadd.f32 %v500, %v582
      %584 = vdwg.mxu0
      %v585 = vxor.u32 %v581, 2147483648
      %v586 = vxor.u32 %v583, 2147483648
      %v587 = vmul.f32 %v585, 1.442695
      %v588 = vpow.pop %v587
      %v589 = vmul.f32 %v586, 1.442695
      %v590 = vpow.pop %v589
      %v591 = vadd.f32 %v588, 1.0
      %v592 = vadd.f32 %v590, 1.0
      %v593 = vrcp.pop %v591
      %v594 = vmul.f32 1.0, %v593
      %v595 = vrcp.pop %v592
      %v596 = vmul.f32 1.0, %v595
      %v597 = vld [vmem:[%s355] sm:$0xff]
      %v598 = vld [vmem:[%s355 + $0x8] sm:$0xff]
      %v599 = vunpack.c.l.bf16 %v597
      %v600 = vunpack.c.h.bf16 %v597
      %v601 = vunpack.c.l.bf16 %v598
      %v602 = vunpack.c.h.bf16 %v598
      %v603 = vlaneseq
      %v604 = vshrl.u32 %v603, 7
      %v605 = vsub.s32 0, %v604
      %v606 = vrot.slane %v594, %v605
      %v607 = vlaneseq
      %v608 = vshrl.u32 %v607, 7
      %v609 = vsub.s32 0, %v608
      %v610 = vrot.slane %v596, %v609
      %v611 = vmul.f32 %v599, %v606
      %v612 = vmul.f32 %v600, %v610
      %v613 = vmul.f32 %v601, %v606
      %v614 = vmul.f32 %v602, %v610
      %v615 = vpack.c.bf16 %v613, %v611
      %v616 = vpack.c.bf16 %v614, %v612
      %v617 = vld [vmem:[%s6] sm:$0xf]
      %v618 = vld [vmem:[%s6 + $0x4] sm:$0xf]
      %v619 = vld [vmem:[%s6 + $0x8] sm:$0xf]
      %v620 = vld [vmem:[%s6 + $0xc] sm:$0xf]
      %v621 = vld [vmem:[%s6 + $0x10] sm:$0xf]
      %v622 = vld [vmem:[%s6 + $0x14] sm:$0xf]
      %v623 = vld [vmem:[%s6 + $0x18] sm:$0xf]
      %v624 = vld [vmem:[%s6 + $0x1c] sm:$0xf]
      %v625 = vld [vmem:[%s6 + $0x20] sm:$0xf]
      %v626 = vld [vmem:[%s6 + $0x24] sm:$0xf]
      %v627 = vld [vmem:[%s6 + $0x28] sm:$0xf]
      %v628 = vld [vmem:[%s6 + $0x2c] sm:$0xf]
      %v629 = vld [vmem:[%s6 + $0x30] sm:$0xf]
      %v630 = vld [vmem:[%s6 + $0x34] sm:$0xf]
      %v631 = vld [vmem:[%s6 + $0x38] sm:$0xf]
      %v632 = vld [vmem:[%s6 + $0x3c] sm:$0xf]
      %v633 = vld [vmem:[%s6 + $0x40] sm:$0xf]
      %v634 = vld [vmem:[%s6 + $0x44] sm:$0xf]
      %v635 = vld [vmem:[%s7] sm:$0x1]
      %v637 = vlaneseq
      %v638 = vshrl.u32 %v637, 7
      %v639 = vsub.s32 0, %v638
      %v640 = vrot.slane %v635, %v639
      %v660 = vunpack.c.l.b16 %v617
      %v661 = vunpack.c.l.b16 %v618
      %v662 = vunpack.c.l.b16 %v619
      %v663 = vunpack.c.l.b16 %v620
      %v664 = vunpack.c.l.b16 %v621
      %v665 = vunpack.c.l.b16 %v622
      %v666 = vunpack.c.l.b16 %v623
      %v667 = vunpack.c.l.b16 %v624
      %v668 = vunpack.c.l.b16 %v625
      %v669 = vunpack.c.l.b16 %v626
      %v670 = vunpack.c.l.b16 %v627
      %v671 = vunpack.c.l.b16 %v628
      %v672 = vunpack.c.l.b16 %v629
      %v673 = vunpack.c.l.b16 %v630
      %v674 = vunpack.c.l.b16 %v631
      %v675 = vunpack.c.l.b16 %v632
      %v676 = vunpack.c.l.b16 %v633
      %v677 = vunpack.c.l.b16 %v634
      %v678 = vpack.c.b16 %v661, %v660
      %v679 = vpack.c.b16 %v663, %v662
      %v680 = vpack.c.b16 %v665, %v664
      %v681 = vpack.c.b16 %v667, %v666
      %v682 = vpack.c.b16 %v669, %v668
      %v683 = vpack.c.b16 %v671, %v670
      %v684 = vpack.c.b16 %v673, %v672
      %v685 = vpack.c.b16 %v675, %v674
      %v686 = vpack.c.b16 %v677, %v676
      %v697 = vsel %vm401, %v616, 0
      %699 = vmatprep.subr.bf16.mxu0 0
      %700 = vmatpush1.bf16.msra.mxu0 %v685
      %701 = vmatprep.subr.bf16.mxu0 0
      %702 = vmatpush1.bf16.msra.mxu0 %v684
      %703 = vmatprep.subr.bf16.mxu0 0
      %704 = vmatpush1.bf16.msra.mxu0 %v683
      %705 = vmatprep.subr.bf16.mxu0 0
      %706 = vmatpush1.bf16.msra.mxu0 %v682
      %707 = vmatprep.subr.bf16.mxu0 0
      %708 = vmatpush1.bf16.msra.mxu0 %v681
      %709 = vmatprep.subr.bf16.mxu0 0
      %710 = vmatpush1.bf16.msra.mxu0 %v680
      %711 = vmatprep.subr.bf16.mxu0 0
      %712 = vmatpush1.bf16.msra.mxu0 %v679
      %713 = vmatprep.subr.bf16.mxu0 0
      %714 = vmatpush1.bf16.msra.mxu0 %v678
      %715 = vmatprep.subr.bf16.mxu0 0
      %716 = vmatpush2.bf16.msra.mxu0 0
      %717 = vmatprep.subr.bf16.mxu0 0
      %718 = vmatpush2.bf16.msra.mxu0 0
      %719 = vmatprep.subr.bf16.mxu0 0
      %720 = vmatpush2.bf16.msra.mxu0 0
      %721 = vmatprep.subr.bf16.mxu0 0
      %722 = vmatpush2.bf16.msra.mxu0 0
      %723 = vmatprep.subr.bf16.mxu0 0
      %724 = vmatpush2.bf16.msra.mxu0 0
      %725 = vmatprep.subr.bf16.mxu0 0
      %726 = vmatpush2.bf16.msra.mxu0 0
      %727 = vmatprep.subr.bf16.mxu0 0
      %728 = vmatpush2.bf16.msra.mxu0 0
      %729 = vmatprep.subr.bf16.mxu0 0
      %730 = vmatpush2.bf16.msra.mxu0 %v686
      %731 = vmatprep.mubr.bf16.mxu0 %v697
      %732 = vmatmul.mubr.bf16.gmra.mxu0 %v615
      %v733 = vpop.f32.mrf.mxu0
      %v734 = vadd.f32 %v640, %v733
      %v735 = vpop.f32.mrf.mxu0
      %v736 = vpop.f32.mrf.mxu0
      %v737 = vadd.f32 %v640, %v736
      %v738 = vpop.f32.mrf.mxu0
      %739 = vdwg.mxu0
      %v740 = vld [vmem:[%s364] sm:$0xf]
      %v741 = vld [vmem:[%s364 + $0x4] sm:$0xf]
      %v742 = vunpack.c.l.bf16 %v740
      %v743 = vunpack.c.l.bf16 %v741
      %v744 = vadd.f32 %v734, %v742
      %v745 = vadd.f32 %v737, %v743
      %v746 = vpack.c.bf16 %v745, %v744
      %v748 = vunpack.c.l.b16 %v746
      %v749 = vunpack.c.h.b16 %v746
      %v750 = vpack.c.b16 %v748, %v748
      %v751 = vpack.c.b16 %v749, %v749
      %vm754 = vcmask 191488
      %755 = vst.msk [vmem:[%s369] sm:$0xf] %vm754, %v750
      %756 = vst.msk [vmem:[%s369 + $0x4] sm:$0xf] %vm754, %v751
      %p757 = scmp.lt.s32.totalorder %s20, 1
      %s758 = scalar_select %p757, %s20, 1
      %s759 = smul.addr %s758, 2
      %s760 = smul.addr %s759, 4
      %s761 = scalar_lea.vmem %s9, %s760
      // Predicated region
      $region57: #{efficientnet_forward.20} parent=55 // pred_check
        %p762 = pneg %p242
      $region58: #{efficientnet_forward.20} parent=55 // pred_check_branch
        %764 = sbr.rel (%p762) target = $region60
      $region59: #{efficientnet_forward.20} parent=55 // pred_region
        _
      $region60: #{efficientnet_forward.20} parent=55 // pred_fallthru
        _
    $region56: #{efficientnet_forward.20} parent=5 // pred_fallthru
      _
    %p765 = scmp.le.s32.totalorder 2, %s15
    // Predicated region
    $region61: #{efficientnet_forward.20} parent=5 // pred_check
      %p766 = pneg %p765
    $region62: #{efficientnet_forward.20} parent=5 // pred_check_branch
      %768 = sbr.rel (%p766) target = $region64
    $region63: #{efficientnet_forward.20} parent=5 // pred_region
      %s769 = ssub.s32 %s15, 2
      // Predicated region
      $region65: #{efficientnet_forward.20} parent=63 // pred_check
        %p770 = pneg %p248
      $region66: #{efficientnet_forward.20} parent=63 // pred_check_branch
        %772 = sbr.rel (%p770) target = $region68
      $region67: #{efficientnet_forward.20} parent=63 // pred_region
        %p773 = scmp.lt.s32.totalorder %s21, 1
        %s774 = scalar_select %p773, %s21, 1
        %s775 = smul.addr %s774, 2
        %s776 = smul.addr %s775, 4
        %s777 = scalar_lea.vmem %s9, %s776
      $region68: #{efficientnet_forward.20} parent=63 // pred_fallthru
        _
    $region64: #{efficientnet_forward.20} parent=5 // pred_fallthru
      _
  $region6: #{efficientnet_forward.20} parent=0 // loop_footer
    %s19 = sadd.s32 1, %s15
  $region7: #{efficientnet_forward.20} parent=0 // loop_footer_branch
    %14 = sbr.rel target = $region3
  $region8: #{efficientnet_forward.20} parent=0 // loop_exit
    _

// kernel: efficientnet_forward.21
$region0: #{efficientnet_forward.21}
  #allocation0 [shape = 'u32[]', space=smem, size = 0x4, offset = 0x4, fixed_abs, tag = 'smem constant byte address 0x4 - core index']
  #allocation1 [shape = 'u32[144,128]{1,0:T(1,128)}', space=vmem, size = 0x12000, scoped, tag = 'internal scratch']
  #allocation2 [shape = 'f32[32,640]{1,0:T(8,128)}', space=vmem, size = 0x14000, scoped, tag = 'scratch operand']
  %s0 = inlined_call_operand.vmem [shape: bf16[32,128], index: 0, kind: input, shape index: {}]
  %s1 = inlined_call_operand.vmem [shape: bf16[128,1280], index: 1, kind: input, shape index: {}]
  %s2 = inlined_call_operand.vmem [shape: f32[1,1280], index: 2, kind: input, shape index: {}]
  %s3 = inlined_call_operand.vmem [shape: bf16[32,1280], index: 3, kind: output, shape index: {}]
  %s4 = sld [smem:[#allocation0]]
  $region101: #{efficientnet_forward.21} parent=0
    _
  %s6 = ssub.s32 1, %s4
  %s7 = scalar_select 0, %s6, %s4
  $region1: #{efficientnet_forward.21} parent=0
    #allocation3 [shape = 'u8[327680]{0}', space=vmem, size = 0x50000, scoped, tag = 'input window, operand 1']
    #allocation4 [shape = 'u8[81920]{0}', space=vmem, size = 0x14000, scoped, tag = 'output window, operand 0']
    loop: start=0, step=1, limit=4
    $region2: #{efficientnet_forward.21} parent=1 // loop_pre_header
      _
    $region3: #{efficientnet_forward.21} parent=1 // loop_header
      %s9 = sphi 0, %s13
      %p10 = scmp.ge.s32.totalorder %s9, 4
      %s16 = sphi 0, %s35
      %s17 = sphi 0, %s31
      %s18 = sphi 0, %s27
      %s19 = sphi 0, %s16
      %s20 = sphi 0, %s17
      %s21 = sphi 0, %s18
      %s22 = sphi 0, %s19
      %s23 = sphi 0, %s20
      %s24 = sphi 0, %s21
      %s40 = sphi 0, %s42
      %s43 = sphi 0, %s40
      %s44 = sphi 0, %s43
      %s60 = sphi 0, %s44
      %s68 = sphi 0, %s70
      %s71 = sphi 0, %s68
      %s72 = sphi 0, %s71
      %s88 = sphi 0, %s72
      %s94 = sphi 0, %s96
      %s97 = sphi 0, %s94
      %s98 = sphi 0, %s97
      %s114 = sphi 0, %s98
      %s122 = sphi 0, %s124
      %s125 = sphi 0, %s122
      %s126 = sphi 0, %s125
      %s142 = sphi 0, %s126
    $region4: #{efficientnet_forward.21} parent=1 // loop_header_branch
      %12 = sbr.rel (%p10) target = $region8
    $region5: #{efficientnet_forward.21} parent=1 // loop_body
      %s14 = ssub.s32 %s9, 1
      %s15 = ssub.s32 %s9, 2
      %s25 = sadd.s32 1, %s18
      %p26 = scmp.ge.s32.totalorder %s25, 1
      %s27 = scalar_select %p26, 0, %s25
      %s28 = sadd.s32 1, %s17
      %s29 = scalar_select %p26, %s28, %s17
      %p30 = scmp.ge.s32.totalorder %s29, 2
      %s31 = scalar_select %p30, 0, %s29
      %s32 = sadd.s32 1, %s16
      %s33 = scalar_select %p30, %s32, %s16
      %p34 = scmp.ge.s32.totalorder %s33, 1
      %s35 = scalar_select %p34, 0, %s33
      %s36 = ssub.s32 %s16, %s35
      %s37 = ssub.s32 %s18, %s27
      %s38 = sor.u32 %s36, %s37
      %p39 = scmp.eq.s32.totalorder %s38, 0
      %s41 = sadd.s32 %s40, 1
      %s42 = scalar_select %p39, %s40, %s41
      %p45 = pneg %p39
      %p46 = scmp.eq.s32.totalorder %s9, 1
      %p47 = por %p45, %p46
      %p48 = scmp.ne.s32.totalorder %s40, %s43
      %p49 = scmp.eq.s32.totalorder %s9, 0
      %p50 = por %p48, %p49
      %p51 = scmp.ne.s32.totalorder %s40, %s43
      %p52 = scmp.eq.s32.totalorder %s14, 1
      %p53 = por %p51, %p52
      %p54 = scmp.ne.s32.totalorder %s43, %s44
      %p55 = scmp.eq.s32.totalorder %s14, 0
      %p56 = por %p54, %p55
      %p57 = scmp.ne.s32.totalorder %s43, %s44
      %p58 = scmp.eq.s32.totalorder %s15, 1
      %p59 = por %p57, %p58
      %p61 = scmp.ne.s32.totalorder %s44, %s60
      %p62 = scmp.eq.s32.totalorder %s15, 0
      %p63 = por %p61, %p62
      %s64 = ssub.s32 %s18, %s27
      %s65 = ssub.s32 %s17, %s31
      %s66 = sor.u32 %s64, %s65
      %p67 = scmp.eq.s32.totalorder %s66, 0
      %s69 = sadd.s32 %s68, 1
      %s70 = scalar_select %p67, %s68, %s69
      %p73 = pneg %p67
      %p74 = scmp.eq.s32.totalorder %s9, 1
      %p75 = por %p73, %p74
      %p76 = scmp.ne.s32.totalorder %s68, %s71
      %p77 = scmp.eq.s32.totalorder %s9, 0
      %p78 = por %p76, %p77
      %p79 = scmp.ne.s32.totalorder %s68, %s71
      %p80 = scmp.eq.s32.totalorder %s14, 1
      %p81 = por %p79, %p80
      %p82 = scmp.ne.s32.totalorder %s71, %s72
      %p83 = scmp.eq.s32.totalorder %s14, 0
      %p84 = por %p82, %p83
      %p85 = scmp.ne.s32.totalorder %s71, %s72
      %p86 = scmp.eq.s32.totalorder %s15, 1
      %p87 = por %p85, %p86
      %p89 = scmp.ne.s32.totalorder %s72, %s88
      %p90 = scmp.eq.s32.totalorder %s15, 0
      %p91 = por %p89, %p90
      %s92 = ssub.s32 %s17, %s31
      %p93 = scmp.eq.s32.totalorder %s92, 0
      %s95 = sadd.s32 %s94, 1
      %s96 = scalar_select %p93, %s94, %s95
      %p99 = pneg %p93
      %p100 = scmp.eq.s32.totalorder %s9, 1
      %p101 = por %p99, %p100
      %p102 = scmp.ne.s32.totalorder %s94, %s97
      %p103 = scmp.eq.s32.totalorder %s9, 0
      %p104 = por %p102, %p103
      %p105 = scmp.ne.s32.totalorder %s94, %s97
      %p106 = scmp.eq.s32.totalorder %s14, 1
      %p107 = por %p105, %p106
      %p108 = scmp.ne.s32.totalorder %s97, %s98
      %p109 = scmp.eq.s32.totalorder %s14, 0
      %p110 = por %p108, %p109
      %p111 = scmp.ne.s32.totalorder %s97, %s98
      %p112 = scmp.eq.s32.totalorder %s15, 1
      %p113 = por %p111, %p112
      %p115 = scmp.ne.s32.totalorder %s98, %s114
      %p116 = scmp.eq.s32.totalorder %s15, 0
      %p117 = por %p115, %p116
      %s118 = ssub.s32 %s16, %s35
      %s119 = ssub.s32 %s17, %s31
      %s120 = sor.u32 %s118, %s119
      %p121 = scmp.eq.s32.totalorder %s120, 0
      %s123 = sadd.s32 %s122, 1
      %s124 = scalar_select %p121, %s122, %s123
      %p127 = pneg %p121
      %p128 = scmp.eq.s32.totalorder %s9, 1
      %p129 = por %p127, %p128
      %p130 = scmp.ne.s32.totalorder %s122, %s125
      %p131 = scmp.eq.s32.totalorder %s9, 0
      %p132 = por %p130, %p131
      %p133 = scmp.ne.s32.totalorder %s122, %s125
      %p134 = scmp.eq.s32.totalorder %s14, 1
      %p135 = por %p133, %p134
      %p136 = scmp.ne.s32.totalorder %s125, %s126
      %p137 = scmp.eq.s32.totalorder %s14, 0
      %p138 = por %p136, %p137
      %p139 = scmp.ne.s32.totalorder %s125, %s126
      %p140 = scmp.eq.s32.totalorder %s15, 1
      %p141 = por %p139, %p140
      %p143 = scmp.ne.s32.totalorder %s126, %s142
      %p144 = scmp.eq.s32.totalorder %s15, 0
      %p145 = por %p143, %p144
      %p146 = scmp.le.s32.totalorder 1, %s9
      %p147 = scmp.lt.s32.totalorder %s9, 3
      %p148 = pnand %p146, %p147
      %p149 = pneg %p148
      // Predicated region
      $region9: #{efficientnet_forward.21} parent=5 // pred_check
        _
      $region10: #{efficientnet_forward.21} parent=5 // pred_check_branch
        %151 = sbr.rel (%p148) target = $region12
      $region11: #{efficientnet_forward.21} parent=5 // pred_region
        %s152 = ssub.s32 %s9, 1
        // Predicated region
        $region13: #{efficientnet_forward.21} parent=11 // pred_check
          %p153 = pneg %p56
        $region14: #{efficientnet_forward.21} parent=11 // pred_check_branch
          %155 = sbr.rel (%p153) target = $region16
        $region15: #{efficientnet_forward.21} parent=11 // pred_region
          %s156 = smul.u32 4, %s19
          %p157 = scmp.lt.s32.totalorder %s156, 3
          %s158 = scalar_select %p157, %s156, 3
          %p159 = scmp.lt.s32.totalorder %s21, 0
          %s160 = scalar_select %p159, %s21, 0
          %s161 = sadd.s32 %s160, %s158
          %s162 = smul.addr %s161, 4
          %s163 = scalar_lea.vmem %s0, %s162
          %s164 = smul.u32 4, %s19
        $region16: #{efficientnet_forward.21} parent=11 // pred_fallthru
          _
      $region12: #{efficientnet_forward.21} parent=5 // pred_fallthru
        _
      %p165 = scmp.lt.s32.totalorder %s9, 2
      // Predicated region
      $region17: #{efficientnet_forward.21} parent=5 // pred_check
        %p166 = pneg %p165
      $region18: #{efficientnet_forward.21} parent=5 // pred_check_branch
        %168 = sbr.rel (%p166) target = $region20
      $region19: #{efficientnet_forward.21} parent=5 // pred_region
        // Predicated region
        $region21: #{efficientnet_forward.21} parent=19 // pred_check
          %p169 = pneg %p78
        $region22: #{efficientnet_forward.21} parent=19 // pred_check_branch
          %171 = sbr.rel (%p169) target = $region24
        $region23: #{efficientnet_forward.21} parent=19 // pred_region
          %s172 = sand.u32 %s68, 1
          %s173 = sand.u32 %s68, 1
          %s174 = smul.addr %s173, 320
          %s175 = scalar_lea.vmem [#allocation3], %s174
          %s176 = smul.u32 16, %s18
          %s177 = smul.u32 5, %s17
          %s178 = smul.addr %s176, 10
          %s179 = sadd.s32 %s177, %s178
          %s180 = smul.addr %s179, 4
          %s181 = scalar_lea.vmem %s1, %s180
          // Predicated region
          $region25: #{efficientnet_forward.21} parent=23 // pred_check
            _
          $region26: #{efficientnet_forward.21} parent=23 // pred_check_branch
            %183 = sbr.rel (0) target = $region28
          $region27: #{efficientnet_forward.21} parent=23 // pred_region
            // Predicated region
            $region29: #{efficientnet_forward.21} parent=27 // pred_check
              _
            $region30: #{efficientnet_forward.21} parent=27 // pred_check_branch
              %185 = sbr.rel (0) target = $region32
            $region31: #{efficientnet_forward.21} parent=27 // pred_region
              %s186 = scalar_lea.vmem %s181, 16
              %s187 = scalar_lea.vmem %s175, 16 [#allocation3]
              loop: start=0, step=1, limit=1
              $region33: #{efficientnet_forward.21} parent=31 // loop_pre_header
                _
              $region34: #{efficientnet_forward.21} parent=31 // loop_header
                %s189 = sphi 0, %s193
                %p190 = scmp.ge.s32.totalorder %s189, 1
                %s194 = sphi %s181, %s181
                %s195 = sphi %s175, %s175
              $region35: #{efficientnet_forward.21} parent=31 // loop_header_branch
                %192 = sbr.rel (%p190) target = $region39
              $region36: #{efficientnet_forward.21} parent=31 // loop_body
                %v196 = vld [vmem:[%s194] sm:$0xff]
                %197 = vst [vmem:[%s195] sm:$0xff] %v196
                %v198 = vld [vmem:[%s194 + $0x8] sm:$0xff]
                %199 = vst [vmem:[%s195 + $0x8] sm:$0xff] %v198
                %v200 = vld [vmem:[%s194 + $0x28] sm:$0xff]
                %201 = vst [vmem:[%s195 + $0x14] sm:$0xff] %v200
                %v202 = vld [vmem:[%s194 + $0x30] sm:$0xff]
                %203 = vst [vmem:[%s195 + $0x1c] sm:$0xff] %v202
                %v204 = vld [vmem:[%s194 + $0x50] sm:$0xff]
                %205 = vst [vmem:[%s195 + $0x28] sm:$0xff] %v204
                %v206 = vld [vmem:[%s194 + $0x58] sm:$0xff]
                %207 = vst [vmem:[%s195 + $0x30] sm:$0xff] %v206
                %v208 = vld [vmem:[%s194 + $0x78] sm:$0xff]
                %209 = vst [vmem:[%s195 + $0x3c] sm:$0xff] %v208
                %v210 = vld [vmem:[%s194 + $0x80] sm:$0xff]
                %211 = vst [vmem:[%s195 + $0x44] sm:$0xff] %v210
                %v212 = vld [vmem:[%s194 + $0xa0] sm:$0xff]
                %213 = vst [vmem:[%s195 + $0x50] sm:$0xff] %v212
                %v214 = vld [vmem:[%s194 + $0xa8] sm:$0xff]
                %215 = vst [vmem:[%s195 + $0x58] sm:$0xff] %v214
                %v216 = vld [vmem:[%s194 + $0xc8] sm:$0xff]
                %217 = vst [vmem:[%s195 + $0x64] sm:$0xff] %v216
                %v218 = vld [vmem:[%s194 + $0xd0] sm:$0xff]
                %219 = vst [vmem:[%s195 + $0x6c] sm:$0xff] %v218
                %v220 = vld [vmem:[%s194 + $0xf0] sm:$0xff]
                %221 = vst [vmem:[%s195 + $0x78] sm:$0xff] %v220
                %v222 = vld [vmem:[%s194 + $0xf8] sm:$0xff]
                %223 = vst [vmem:[%s195 + $0x80] sm:$0xff] %v222
                %v224 = vld [vmem:[%s194 + $0x118] sm:$0xff]
                %225 = vst [vmem:[%s195 + $0x8c] sm:$0xff] %v224
                %v226 = vld [vmem:[%s194 + $0x120] sm:$0xff]
                %227 = vst [vmem:[%s195 + $0x94] sm:$0xff] %v226
                %v228 = vld [vmem:[%s194 + $0x140] sm:$0xff]
                %229 = vst [vmem:[%s195 + $0xa0] sm:$0xff] %v228
                %v230 = vld [vmem:[%s194 + $0x148] sm:$0xff]
                %231 = vst [vmem:[%s195 + $0xa8] sm:$0xff] %v230
                %v232 = vld [vmem:[%s194 + $0x168] sm:$0xff]
                %233 = vst [vmem:[%s195 + $0xb4] sm:$0xff] %v232
                %v234 = vld [vmem:[%s194 + $0x170] sm:$0xff]
                %235 = vst [vmem:[%s195 + $0xbc] sm:$0xff] %v234
                %v236 = vld [vmem:[%s194 + $0x190] sm:$0xff]
                %237 = vst [vmem:[%s195 + $0xc8] sm:$0xff] %v236
                %v238 = vld [vmem:[%s194 + $0x198] sm:$0xff]
                %239 = vst [vmem:[%s195 + $0xd0] sm:$0xff] %v238
                %v240 = vld [vmem:[%s194 + $0x1b8] sm:$0xff]
                %241 = vst [vmem:[%s195 + $0xdc] sm:$0xff] %v240
                %v242 = vld [vmem:[%s194 + $0x1c0] sm:$0xff]
                %243 = vst [vmem:[%s195 + $0xe4] sm:$0xff] %v242
                %v244 = vld [vmem:[%s194 + $0x1e0] sm:$0xff]
                %245 = vst [vmem:[%s195 + $0xf0] sm:$0xff] %v244
                %v246 = vld [vmem:[%s194 + $0x1e8] sm:$0xff]
                %247 = vst [vmem:[%s195 + $0xf8] sm:$0xff] %v246
                %v248 = vld [vmem:[%s194 + $0x208] sm:$0xff]
                %249 = vst [vmem:[%s195 + $0x104] sm:$0xff] %v248
                %v250 = vld [vmem:[%s194 + $0x210] sm:$0xff]
                %251 = vst [vmem:[%s195 + $0x10c] sm:$0xff] %v250
                %v252 = vld [vmem:[%s194 + $0x230] sm:$0xff]
                %253 = vst [vmem:[%s195 + $0x118] sm:$0xff] %v252
                %v254 = vld [vmem:[%s194 + $0x238] sm:$0xff]
                %255 = vst [vmem:[%s195 + $0x120] sm:$0xff] %v254
                %v256 = vld [vmem:[%s194 + $0x258] sm:$0xff]
                %257 = vst [vmem:[%s195 + $0x12c] sm:$0xff] %v256
                %v258 = vld [vmem:[%s194 + $0x260] sm:$0xff]
                %259 = vst [vmem:[%s195 + $0x134] sm:$0xff] %v258
              $region37: #{efficientnet_forward.21} parent=31 // loop_footer
                %s193 = sadd.s32 1, %s189
              $region38: #{efficientnet_forward.21} parent=31 // loop_footer_branch
                %188 = sbr.rel target = $region34
              $region39: #{efficientnet_forward.21} parent=31 // loop_exit
                _
              %s261 = ssub.s32 16, 1
              loop: start=0, step=1, limit=1
              $region40: #{efficientnet_forward.21} parent=31 // loop_pre_header
                _
              $region41: #{efficientnet_forward.21} parent=31 // loop_header
                %s263 = sphi 0, %s267
                %p264 = scmp.ge.s32.totalorder %s263, 1
                %s268 = sphi %s186, %s186
                %s269 = sphi %s187, %s187
              $region42: #{efficientnet_forward.21} parent=31 // loop_header_branch
                %266 = sbr.rel (%p264) target = $region46
              $region43: #{efficientnet_forward.21} parent=31 // loop_body
                %v270 = vld [vmem:[%s268] sm:%s261]
                %271 = vst [vmem:[%s269] sm:%s261] %v270
                %v272 = vld [vmem:[%s268 + $0x28] sm:%s261]
                %273 = vst [vmem:[%s269 + $0x14] sm:%s261] %v272
                %v274 = vld [vmem:[%s268 + $0x50] sm:%s261]
                %275 = vst [vmem:[%s269 + $0x28] sm:%s261] %v274
                %v276 = vld [vmem:[%s268 + $0x78] sm:%s261]
                %277 = vst [vmem:[%s269 + $0x3c] sm:%s261] %v276
                %v278 = vld [vmem:[%s268 + $0xa0] sm:%s261]
                %279 = vst [vmem:[%s269 + $0x50] sm:%s261] %v278
                %v280 = vld [vmem:[%s268 + $0xc8] sm:%s261]
                %281 = vst [vmem:[%s269 + $0x64] sm:%s261] %v280
                %v282 = vld [vmem:[%s268 + $0xf0] sm:%s261]
                %283 = vst [vmem:[%s269 + $0x78] sm:%s261] %v282
                %v284 = vld [vmem:[%s268 + $0x118] sm:%s261]
                %285 = vst [vmem:[%s269 + $0x8c] sm:%s261] %v284
                %v286 = vld [vmem:[%s268 + $0x140] sm:%s261]
                %287 = vst [vmem:[%s269 + $0xa0] sm:%s261] %v286
                %v288 = vld [vmem:[%s268 + $0x168] sm:%s261]
                %289 = vst [vmem:[%s269 + $0xb4] sm:%s261] %v288
                %v290 = vld [vmem:[%s268 + $0x190] sm:%s261]
                %291 = vst [vmem:[%s269 + $0xc8] sm:%s261] %v290
                %v292 = vld [vmem:[%s268 + $0x1b8] sm:%s261]
                %293 = vst [vmem:[%s269 + $0xdc] sm:%s261] %v292
                %v294 = vld [vmem:[%s268 + $0x1e0] sm:%s261]
                %295 = vst [vmem:[%s269 + $0xf0] sm:%s261] %v294
                %v296 = vld [vmem:[%s268 + $0x208] sm:%s261]
                %297 = vst [vmem:[%s269 + $0x104] sm:%s261] %v296
                %v298 = vld [vmem:[%s268 + $0x230] sm:%s261]
                %299 = vst [vmem:[%s269 + $0x118] sm:%s261] %v298
                %v300 = vld [vmem:[%s268 + $0x258] sm:%s261]
                %301 = vst [vmem:[%s269 + $0x12c] sm:%s261] %v300
              $region44: #{efficientnet_forward.21} parent=31 // loop_footer
                %s267 = sadd.s32 1, %s263
              $region45: #{efficientnet_forward.21} parent=31 // loop_footer_branch
                %262 = sbr.rel target = $region41
              $region46: #{efficientnet_forward.21} parent=31 // loop_exit
                _
            $region32: #{efficientnet_forward.21} parent=27 // pred_fallthru
              _
          $region28: #{efficientnet_forward.21} parent=23 // pred_fallthru
            _
          %302 = vnop
        $region24: #{efficientnet_forward.21} parent=19 // pred_fallthru
          _
        // Predicated region
        $region47: #{efficientnet_forward.21} parent=19 // pred_check
          %p303 = pneg %p104
        $region48: #{efficientnet_forward.21} parent=19 // pred_check_branch
          %305 = sbr.rel (%p303) target = $region50
        $region49: #{efficientnet_forward.21} parent=19 // pred_region
          %s306 = smul.u32 5, %s17
          %p307 = scmp.lt.s32.totalorder %s306, 9
          %s308 = scalar_select %p307, %s306, 9
          %s309 = scalar_lea.vmem %s2, %s308
          %s310 = smul.u32 5, %s17
        $region50: #{efficientnet_forward.21} parent=19 // pred_fallthru
          _
      $region20: #{efficientnet_forward.21} parent=5 // pred_fallthru
        _
      %p311 = scmp.le.s32.totalorder 1, %s9
      %p312 = scmp.lt.s32.totalorder %s9, 3
      %p313 = pnand %p311, %p312
      %p314 = pneg %p313
      // Predicated region
      $region51: #{efficientnet_forward.21} parent=5 // pred_check
        _
      $region52: #{efficientnet_forward.21} parent=5 // pred_check_branch
        %316 = sbr.rel (%p313) target = $region54
      $region53: #{efficientnet_forward.21} parent=5 // pred_region
        %s317 = ssub.s32 %s9, 1
        %s318 = sand.u32 %s71, 1
        %s319 = sand.u32 %s71, 1
        %s320 = smul.addr %s319, 320
        %s321 = scalar_lea.vmem [#allocation3], %s320
        // Predicated region
        $region55: #{efficientnet_forward.21} parent=53 // pred_check
          %p322 = pneg %p84
        $region56: #{efficientnet_forward.21} parent=53 // pred_check_branch
          %324 = sbr.rel (%p322) target = $region58
        $region57: #{efficientnet_forward.21} parent=53 // pred_region
          _
        $region58: #{efficientnet_forward.21} parent=53 // pred_fallthru
          _
        %s325 = smul.u32 4, %s19
        %p326 = scmp.lt.s32.totalorder %s325, 3
        %s327 = scalar_select %p326, %s325, 3
        %p328 = scmp.lt.s32.totalorder %s21, 0
        %s329 = scalar_select %p328, %s21, 0
        %s330 = sadd.s32 %s329, %s327
        %s331 = smul.addr %s330, 4
        %s332 = scalar_lea.vmem %s0, %s331
        %p333 = pneg %p56
        %p334 = pneg %p53
        %s335 = sand.u32 %s71, 1
        %s336 = sand.u32 %s71, 1
        %s337 = smul.addr %s336, 320
        %s338 = scalar_lea.vmem [#allocation3], %s337
        %p339 = pneg %p84
        %p340 = pneg %p81
        %s341 = smul.u32 5, %s20
        %p342 = scmp.lt.s32.totalorder %s341, 9
        %s343 = scalar_select %p342, %s341, 9
        %s344 = scalar_lea.vmem %s2, %s343
        %p345 = pneg %p110
        %p346 = pneg %p107
        %p347 = pneg %p138
        %p348 = pneg %p135
        %s349 = sand.u32 %s125, 1
        %s350 = sand.u32 %s125, 1
        %s351 = smul.addr %s350, 80
        %s352 = scalar_lea.vmem [#allocation4], %s351
        %s353 = smul.u32 4, %s19
        %p354 = scmp.lt.s32.totalorder %s353, 3
        %s355 = scalar_select %p354, %s353, 3
        %p356 = scmp.lt.s32.totalorder %s21, 0
        %s357 = scalar_select %p356, %s21, 0
        %s358 = sadd.s32 %s357, %s355
        %s359 = smul.addr %s358, 4
        %s360 = scalar_lea.vmem %s0, %s359
        %s361 = smul.u32 4, %s19
        %s362 = smul.u32 16, %s21
        %s363 = smul.u32 5, %s20
        %s364 = smul.u32 5, %s20
        %p365 = scmp.lt.s32.totalorder %s364, 9
        %s366 = scalar_select %p365, %s364, 9
        %s367 = scalar_lea.vmem %s2, %s366
        %s368 = smul.u32 5, %s20
        %s369 = smul.u32 4, %s19
        %s370 = smul.u32 5, %s20
        %p372 = scmp.eq.s32.totalorder %s21, 0
        // Predicated region
        $region59: #{efficientnet_forward.21} parent=53 // pred_check
          %p373 = pneg %p372
        $region60: #{efficientnet_forward.21} parent=53 // pred_check_branch
          %375 = sbr.rel (%p373) target = $region62
        $region61: #{efficientnet_forward.21} parent=53 // pred_region
          %376 = vst [vmem:[#allocation2] sm:$0xff] 0.0
          %377 = vst [vmem:[#allocation2 + $0x8] sm:$0xff] 0.0
          %378 = vst [vmem:[#allocation2 + $0x10] sm:$0xff] 0.0
          %379 = vst [vmem:[#allocation2 + $0x18] sm:$0xff] 0.0
          %380 = vst [vmem:[#allocation2 + $0x20] sm:$0xff] 0.0
          %381 = vst [vmem:[#allocation2 + $0x28] sm:$0xff] 0.0
          %382 = vst [vmem:[#allocation2 + $0x30] sm:$0xff] 0.0
          %383 = vst [vmem:[#allocation2 + $0x38] sm:$0xff] 0.0
          %384 = vst [vmem:[#allocation2 + $0x40] sm:$0xff] 0.0
          %385 = vst [vmem:[#allocation2 + $0x48] sm:$0xff] 0.0
          %386 = vst [vmem:[#allocation2 + $0x50] sm:$0xff] 0.0
          %387 = vst [vmem:[#allocation2 + $0x58] sm:$0xff] 0.0
          %388 = vst [vmem:[#allocation2 + $0x60] sm:$0xff] 0.0
          %389 = vst [vmem:[#allocation2 + $0x68] sm:$0xff] 0.0
          %390 = vst [vmem:[#allocation2 + $0x70] sm:$0xff] 0.0
          %391 = vst [vmem:[#allocation2 + $0x78] sm:$0xff] 0.0
          %392 = vst [vmem:[#allocation2 + $0x80] sm:$0xff] 0.0
          %393 = vst [vmem:[#allocation2 + $0x88] sm:$0xff] 0.0
          %394 = vst [vmem:[#allocation2 + $0x90] sm:$0xff] 0.0
          %395 = vst [vmem:[#allocation2 + $0x98] sm:$0xff] 0.0
        $region62: #{efficientnet_forward.21} parent=53 // pred_fallthru
          _
        %v396 = vld [vmem:[#allocation2] sm:$0xff]
        %v397 = vld [vmem:[#allocation2 + $0x8] sm:$0xff]
        %v398 = vld [vmem:[#allocation2 + $0x10] sm:$0xff]
        %v399 = vld [vmem:[#allocation2 + $0x18] sm:$0xff]
        %v400 = vld [vmem:[#allocation2 + $0x20] sm:$0xff]
        %v401 = vld [vmem:[#allocation2 + $0x28] sm:$0xff]
        %v402 = vld [vmem:[#allocation2 + $0x30] sm:$0xff]
        %v403 = vld [vmem:[#allocation2 + $0x38] sm:$0xff]
        %v404 = vld [vmem:[#allocation2 + $0x40] sm:$0xff]
        %v405 = vld [vmem:[#allocation2 + $0x48] sm:$0xff]
        %v406 = vld [vmem:[#allocation2 + $0x50] sm:$0xff]
        %v407 = vld [vmem:[#allocation2 + $0x58] sm:$0xff]
        %v408 = vld [vmem:[#allocation2 + $0x60] sm:$0xff]
        %v409 = vld [vmem:[#allocation2 + $0x68] sm:$0xff]
        %v410 = vld [vmem:[#allocation2 + $0x70] sm:$0xff]
        %v411 = vld [vmem:[#allocation2 + $0x78] sm:$0xff]
        %v412 = vld [vmem:[#allocation2 + $0x80] sm:$0xff]
        %v413 = vld [vmem:[#allocation2 + $0x88] sm:$0xff]
        %v414 = vld [vmem:[#allocation2 + $0x90] sm:$0xff]
        %v415 = vld [vmem:[#allocation2 + $0x98] sm:$0xff]
        %v416 = vld [vmem:[%s360] sm:$0xf]
        %v417 = vld [vmem:[%s360 + $0x4] sm:$0xf]
        %v418 = vld [vmem:[%s360 + $0x8] sm:$0xf]
        %v419 = vld [vmem:[%s360 + $0xc] sm:$0xf]
        %v420 = vld [vmem:[%s321] sm:$0xff]
        %v421 = vld [vmem:[%s321 + $0x8] sm:$0xff]
        %v422 = vld [vmem:[%s321 + $0x10] sm:$0xf]
        %v423 = vld [vmem:[%s321 + $0x14] sm:$0xff]
        %v424 = vld [vmem:[%s321 + $0x1c] sm:$0xff]
        %v425 = vld [vmem:[%s321 + $0x24] sm:$0xf]
        %v426 = vld [vmem:[%s321 + $0x28] sm:$0xff]
        %v427 = vld [vmem:[%s321 + $0x30] sm:$0xff]
        %v428 = vld [vmem:[%s321 + $0x38] sm:$0xf]
        %v429 = vld [vmem:[%s321 + $0x3c] sm:$0xff]
        %v430 = vld [vmem:[%s321 + $0x44] sm:$0xff]
        %v431 = vld [vmem:[%s321 + $0x4c] sm:$0xf]
        %v432 = vld [vmem:[%s321 + $0x50] sm:$0xff]
        %v433 = vld [vmem:[%s321 + $0x58] sm:$0xff]
        %v434 = vld [vmem:[%s321 + $0x60] sm:$0xf]
        %v435 = vld [vmem:[%s321 + $0x64] sm:$0xff]
        %v436 = vld [vmem:[%s321 + $0x6c] sm:$0xff]
        %v437 = vld [vmem:[%s321 + $0x74] sm:$0xf]
        %v438 = vld [vmem:[%s321 + $0x78] sm:$0xff]
        %v439 = vld [vmem:[%s321 + $0x80] sm:$0xff]
        %v440 = vld [vmem:[%s321 + $0x88] sm:$0xf]
        %v441 = vld [vmem:[%s321 + $0x8c] sm:$0xff]
        %v442 = vld [vmem:[%s321 + $0x94] sm:$0xff]
        %v443 = vld [vmem:[%s321 + $0x9c] sm:$0xf]
        %v444 = vld [vmem:[%s321 + $0xa0] sm:$0xff]
        %v445 = vld [vmem:[%s321 + $0xa8] sm:$0xff]
        %v446 = vld [vmem:[%s321 + $0xb0] sm:$0xf]
        %v447 = vld [vmem:[%s321 + $0xb4] sm:$0xff]
        %v448 = vld [vmem:[%s321 + $0xbc] sm:$0xff]
        %v449 = vld [vmem:[%s321 + $0xc4] sm:$0xf]
        %v450 = vld [vmem:[%s321 + $0xc8] sm:$0xff]
        %v451 = vld [vmem:[%s321 + $0xd0] sm:$0xff]
        %v452 = vld [vmem:[%s321 + $0xd8] sm:$0xf]
        %v453 = vld [vmem:[%s321 + $0xdc] sm:$0xff]
        %v454 = vld [vmem:[%s321 + $0xe4] sm:$0xff]
        %v455 = vld [vmem:[%s321 + $0xec] sm:$0xf]
        %v456 = vld [vmem:[%s321 + $0xf0] sm:$0xff]
        %v457 = vld [vmem:[%s321 + $0xf8] sm:$0xff]
        %v458 = vld [vmem:[%s321 + $0x100] sm:$0xf]
        %v459 = vld [vmem:[%s321 + $0x104] sm:$0xff]
        %v460 = vld [vmem:[%s321 + $0x10c] sm:$0xff]
        %v461 = vld [vmem:[%s321 + $0x114] sm:$0xf]
        %v462 = vld [vmem:[%s321 + $0x118] sm:$0xff]
        %v463 = vld [vmem:[%s321 + $0x120] sm:$0xff]
        %v464 = vld [vmem:[%s321 + $0x128] sm:$0xf]
        %v465 = vld [vmem:[%s321 + $0x12c] sm:$0xff]
        %v466 = vld [vmem:[%s321 + $0x134] sm:$0xff]
        %v467 = vld [vmem:[%s321 + $0x13c] sm:$0xf]
        %v472 = vunpack.c.l.b16 %v416
        %v473 = vunpack.c.l.b16 %v417
        %v474 = vunpack.c.l.b16 %v418
        %v475 = vunpack.c.l.b16 %v419
        %v476 = vpack.c.b16 %v473, %v472
        %v477 = vpack.c.b16 %v475, %v474
        %v528 = vunpack.c.l.b16 %v420
        %v529 = vunpack.c.h.b16 %v420
        %v530 = vunpack.c.l.b16 %v421
        %v531 = vunpack.c.h.b16 %v421
        %v532 = vunpack.c.l.b16 %v422
        %v533 = vunpack.c.l.b16 %v423
        %v534 = vunpack.c.h.b16 %v423
        %v535 = vunpack.c.l.b16 %v424
        %v536 = vunpack.c.h.b16 %v424
        %v537 = vunpack.c.l.b16 %v425
        %v538 = vunpack.c.l.b16 %v426
        %v539 = vunpack.c.h.b16 %v426
        %v540 = vunpack.c.l.b16 %v427
        %v541 = vunpack.c.h.b16 %v427
        %v542 = vunpack.c.l.b16 %v428
        %v543 = vunpack.c.l.b16 %v429
        %v544 = vunpack.c.h.b16 %v429
        %v545 = vunpack.c.l.b16 %v430
        %v546 = vunpack.c.h.b16 %v430
        %v547 = vunpack.c.l.b16 %v431
        %v548 = vunpack.c.l.b16 %v432
        %v549 = vunpack.c.h.b16 %v432
        %v550 = vunpack.c.l.b16 %v433
        %v551 = vunpack.c.h.b16 %v433
        %v552 = vunpack.c.l.b16 %v434
        %v553 = vunpack.c.l.b16 %v435
        %v554 = vunpack.c.h.b16 %v435
        %v555 = vunpack.c.l.b16 %v436
        %v556 = vunpack.c.h.b16 %v436
        %v557 = vunpack.c.l.b16 %v437
        %v558 = vunpack.c.l.b16 %v438
        %v559 = vunpack.c.h.b16 %v438
        %v560 = vunpack.c.l.b16 %v439
        %v561 = vunpack.c.h.b16 %v439
        %v562 = vunpack.c.l.b16 %v440
        %v563 = vunpack.c.l.b16 %v441
        %v564 = vunpack.c.h.b16 %v441
        %v565 = vunpack.c.l.b16 %v442
        %v566 = vunpack.c.h.b16 %v442
        %v567 = vunpack.c.l.b16 %v443
        %v568 = vunpack.c.l.b16 %v444
        %v569 = vunpack.c.h.b16 %v444
        %v570 = vunpack.c.l.b16 %v445
        %v571 = vunpack.c.h.b16 %v445
        %v572 = vunpack.c.l.b16 %v446
        %v573 = vunpack.c.l.b16 %v447
        %v574 = vunpack.c.h.b16 %v447
        %v575 = vunpack.c.l.b16 %v448
        %v576 = vunpack.c.h.b16 %v448
        %v577 = vunpack.c.l.b16 %v449
        %v578 = vunpack.c.l.b16 %v450
        %v579 = vunpack.c.h.b16 %v450
        %v580 = vunpack.c.l.b16 %v451
        %v581 = vunpack.c.h.b16 %v451
        %v582 = vunpack.c.l.b16 %v452
        %v583 = vunpack.c.l.b16 %v453
        %v584 = vunpack.c.h.b16 %v453
        %v585 = vunpack.c.l.b16 %v454
        %v586 = vunpack.c.h.b16 %v454
        %v587 = vunpack.c.l.b16 %v455
        %v588 = vunpack.c.l.b16 %v456
        %v589 = vunpack.c.h.b16 %v456
        %v590 = vunpack.c.l.b16 %v457
        %v591 = vunpack.c.h.b16 %v457
        %v592 = vunpack.c.l.b16 %v458
        %v593 = vunpack.c.l.b16 %v459
        %v594 = vunpack.c.h.b16 %v459
        %v595 = vunpack.c.l.b16 %v460
        %v596 = vunpack.c.h.b16 %v460
        %v597 = vunpack.c.l.b16 %v461
        %v598 = vunpack.c.l.b16 %v462
        %v599 = vunpack.c.h.b16 %v462
        %v600 = vunpack.c.l.b16 %v463
        %v601 = vunpack.c.h.b16 %v463
        %v602 = vunpack.c.l.b16 %v464
        %v603 = vunpack.c.l.b16 %v465
        %v604 = vunpack.c.h.b16 %v465
        %v605 = vunpack.c.l.b16 %v466
        %v606 = vunpack.c.h.b16 %v466
        %v607 = vunpack.c.l.b16 %v467
        %v608 = vpack.c.b16 %v533, %v528
        %v609 = vpack.c.b16 %v534, %v529
        %v610 = vpack.c.b16 %v535, %v530
        %v611 = vpack.c.b16 %v536, %v531
        %v612 = vpack.c.b16 %v537, %v532
        %v613 = vpack.c.b16 %v543, %v538
        %v614 = vpack.c.b16 %v544, %v539
        %v615 = vpack.c.b16 %v545, %v540
        %v616 = vpack.c.b16 %v546, %v541
        %v617 = vpack.c.b16 %v547, %v542
        %v618 = vpack.c.b16 %v553, %v548
        %v619 = vpack.c.b16 %v554, %v549
        %v620 = vpack.c.b16 %v555, %v550
        %v621 = vpack.c.b16 %v556, %v551
        %v622 = vpack.c.b16 %v557, %v552
        %v623 = vpack.c.b16 %v563, %v558
        %v624 = vpack.c.b16 %v564, %v559
        %v625 = vpack.c.b16 %v565, %v560
        %v626 = vpack.c.b16 %v566, %v561
        %v627 = vpack.c.b16 %v567, %v562
        %v628 = vpack.c.b16 %v573, %v568
        %v629 = vpack.c.b16 %v574, %v569
        %v630 = vpack.c.b16 %v575, %v570
        %v631 = vpack.c.b16 %v576, %v571
        %v632 = vpack.c.b16 %v577, %v572
        %v633 = vpack.c.b16 %v583, %v578
        %v634 = vpack.c.b16 %v584, %v579
        %v635 = vpack.c.b16 %v585, %v580
        %v636 = vpack.c.b16 %v586, %v581
        %v637 = vpack.c.b16 %v587, %v582
        %v638 = vpack.c.b16 %v593, %v588
        %v639 = vpack.c.b16 %v594, %v589
        %v640 = vpack.c.b16 %v595, %v590
        %v641 = vpack.c.b16 %v596, %v591
        %v642 = vpack.c.b16 %v597, %v592
        %v643 = vpack.c.b16 %v603, %v598
        %v644 = vpack.c.b16 %v604, %v599
        %v645 = vpack.c.b16 %v605, %v600
        %v646 = vpack.c.b16 %v606, %v601
        %v647 = vpack.c.b16 %v607, %v602
        %688 = vmatprep.subr.bf16.mxu0 %v644
        %689 = vmatpush1.bf16.msra.mxu0 %v643
        %690 = vmatprep.subr.bf16.mxu0 %v639
        %691 = vmatpush1.bf16.msra.mxu0 %v638
        %692 = vmatprep.subr.bf16.mxu0 %v634
        %693 = vmatpush1.bf16.msra.mxu0 %v633
        %694 = vmatprep.subr.bf16.mxu0 %v629
        %695 = vmatpush1.bf16.msra.mxu0 %v628
        %696 = vmatprep.subr.bf16.mxu0 %v624
        %697 = vmatpush1.bf16.msra.mxu0 %v623
        %698 = vmatprep.subr.bf16.mxu0 %v619
        %699 = vmatpush1.bf16.msra.mxu0 %v618
        %700 = vmatprep.subr.bf16.mxu0 %v614
        %701 = vmatpush1.bf16.msra.mxu0 %v613
        %702 = vmatprep.subr.bf16.mxu0 %v609
        %703 = vmatpush1.bf16.msra.mxu0 %v608
        %704 = vmatprep.subr.bf16.mxu0 0
        %705 = vmatpush2.bf16.msra.mxu0 0
        %706 = vmatprep.subr.bf16.mxu0 0
        %707 = vmatpush2.bf16.msra.mxu0 0
        %708 = vmatprep.subr.bf16.mxu0 0
        %709 = vmatpush2.bf16.msra.mxu0 0
        %710 = vmatprep.subr.bf16.mxu0 0
        %711 = vmatpush2.bf16.msra.mxu0 0
        %712 = vmatprep.subr.bf16.mxu0 0
        %713 = vmatpush2.bf16.msra.mxu0 0
        %714 = vmatprep.subr.bf16.mxu0 0
        %715 = vmatpush2.bf16.msra.mxu0 0
        %716 = vmatprep.subr.bf16.mxu0 0
        %717 = vmatpush2.bf16.msra.mxu0 0
        %718 = vmatprep.subr.bf16.mxu0 0
        %719 = vmatpush2.bf16.msra.mxu0 0
        %720 = vmatprep.mubr.bf16.mxu0 0
        %721 = vmatmul.mubr.bf16.gmra.mxu0 %v476
        %v722 = vpop.f32.mrf.mxu0
        %v723 = vadd.f32 0.0, %v722
        %v724 = vpop.f32.mrf.mxu0
        %v725 = vadd.f32 0.0, %v724
        %v726 = vpop.f32.mrf.mxu0
        %v727 = vadd.f32 0.0, %v726
        %v728 = vpop.f32.mrf.mxu0
        %v729 = vadd.f32 0.0, %v728
        %730 = vmatprep.mubr.bf16.mxu0 0
        %731 = vmatmul.mubr.bf16.gmra.mxu0 %v477
        %v732 = vpop.f32.mrf.mxu0
        %v733 = vadd.f32 0.0, %v732
        %v734 = vpop.f32.mrf.mxu0
        %v735 = vadd.f32 0.0, %v734
        %v736 = vpop.f32.mrf.mxu0
        %v737 = vadd.f32 0.0, %v736
        %v738 = vpop.f32.mrf.mxu0
        %v739 = vadd.f32 0.0, %v738
        %740 = vdwg.mxu0
        %741 = vmatprep.subr.bf16.mxu0 %v646
        %742 = vmatpush1.bf16.msra.mxu0 %v645
        %743 = vmatprep.subr.bf16.mxu0 %v641
        %744 = vmatpush1.bf16.msra.mxu0 %v640
        %745 = vmatprep.subr.bf16.mxu0 %v636
        %746 = vmatpush1.bf16.msra.mxu0 %v635
        %747 = vmatprep.subr.bf16.mxu0 %v631
        %748 = vmatpush1.bf16.msra.mxu0 %v630
        %749 = vmatprep.subr.bf16.mxu0 %v626
        %750 = vmatpush1.bf16.msra.mxu0 %v625
        %751 = vmatprep.subr.bf16.mxu0 %v621
        %752 = vmatpush1.bf16.msra.mxu0 %v620
        %753 = vmatprep.subr.bf16.mxu0 %v616
        %754 = vmatpush1.bf16.msra.mxu0 %v615
        %755 = vmatprep.subr.bf16.mxu0 %v611
        %756 = vmatpush1.bf16.msra.mxu0 %v610
        %757 = vmatprep.subr.bf16.mxu0 0
        %758 = vmatpush2.bf16.msra.mxu0 0
        %759 = vmatprep.subr.bf16.mxu0 0
        %760 = vmatpush2.bf16.msra.mxu0 0
        %761 = vmatprep.subr.bf16.mxu0 0
        %762 = vmatpush2.bf16.msra.mxu0 0
        %763 = vmatprep.subr.bf16.mxu0 0
        %764 = vmatpush2.bf16.msra.mxu0 0
        %765 = vmatprep.subr.bf16.mxu0 0
        %766 = vmatpush2.bf16.msra.mxu0 0
        %767 = vmatprep.subr.bf16.mxu0 0
        %768 = vmatpush2.bf16.msra.mxu0 0
        %769 = vmatprep.subr.bf16.mxu0 0
        %770 = vmatpush2.bf16.msra.mxu0 0
        %771 = vmatprep.subr.bf16.mxu0 0
        %772 = vmatpush2.bf16.msra.mxu0 0
        %773 = vmatprep.mubr.bf16.mxu0 0
        %774 = vmatmul.mubr.bf16.gmra.mxu0 %v476
        %v775 = vpop.f32.mrf.mxu0
        %v776 = vadd.f32 0.0, %v775
        %v777 = vpop.f32.mrf.mxu0
        %v778 = vadd.f32 0.0, %v777
        %v779 = vpop.f32.mrf.mxu0
        %v780 = vadd.f32 0.0, %v779
        %v781 = vpop.f32.mrf.mxu0
        %v782 = vadd.f32 0.0, %v781
        %783 = vmatprep.mubr.bf16.mxu0 0
        %784 = vmatmul.mubr.bf16.gmra.mxu0 %v477
        %v785 = vpop.f32.mrf.mxu0
        %v786 = vadd.f32 0.0, %v785
        %v787 = vpop.f32.mrf.mxu0
        %v788 = vadd.f32 0.0, %v787
        %v789 = vpop.f32.mrf.mxu0
        %v790 = vadd.f32 0.0, %v789
        %v791 = vpop.f32.mrf.mxu0
        %v792 = vadd.f32 0.0, %v791
        %793 = vdwg.mxu0
        %794 = vmatprep.subr.bf16.mxu0 0
        %795 = vmatpush1.bf16.msra.mxu0 %v647
        %796 = vmatprep.subr.bf16.mxu0 0
        %797 = vmatpush1.bf16.msra.mxu0 %v642
        %798 = vmatprep.subr.bf16.mxu0 0
        %799 = vmatpush1.bf16.msra.mxu0 %v637
        %800 = vmatprep.subr.bf16.mxu0 0
        %801 = vmatpush1.bf16.msra.mxu0 %v632
        %802 = vmatprep.subr.bf16.mxu0 0
        %803 = vmatpush1.bf16.msra.mxu0 %v627
        %804 = vmatprep.subr.bf16.mxu0 0
        %805 = vmatpush1.bf16.msra.mxu0 %v622
        %806 = vmatprep.subr.bf16.mxu0 0
        %807 = vmatpush1.bf16.msra.mxu0 %v617
        %808 = vmatprep.subr.bf16.mxu0 0
        %809 = vmatpush1.bf16.msra.mxu0 %v612
        %810 = vmatprep.subr.bf16.mxu0 0
        %811 = vmatpush2.bf16.msra.mxu0 0
        %812 = vmatprep.subr.bf16.mxu0 0
        %813 = vmatpush2.bf16.msra.mxu0 0
        %814 = vmatprep.subr.bf16.mxu0 0
        %815 = vmatpush2.bf16.msra.mxu0 0
        %816 = vmatprep.subr.bf16.mxu0 0
        %817 = vmatpush2.bf16.msra.mxu0 0
        %818 = vmatprep.subr.bf16.mxu0 0
        %819 = vmatpush2.bf16.msra.mxu0 0
        %820 = vmatprep.subr.bf16.mxu0 0
        %821 = vmatpush2.bf16.msra.mxu0 0
        %822 = vmatprep.subr.bf16.mxu0 0
        %823 = vmatpush2.bf16.msra.mxu0 0
        %824 = vmatprep.subr.bf16.mxu0 0
        %825 = vmatpush2.bf16.msra.mxu0 0
        %826 = vmatprep.mubr.bf16.mxu0 0
        %827 = vmatmul.mubr.bf16.gmra.mxu0 %v476
        %v828 = vpop.f32.mrf.mxu0
        %v829 = vadd.f32 0.0, %v828
        %v830 = vpop.f32.mrf.mxu0
        %v831 = vpop.f32.mrf.mxu0
        %v832 = vadd.f32 0.0, %v831
        %v833 = vpop.f32.mrf.mxu0
        %834 = vmatprep.mubr.bf16.mxu0 0
        %835 = vmatmul.mubr.bf16.gmra.mxu0 %v477
        %v836 = vpop.f32.mrf.mxu0
        %v837 = vadd.f32 0.0, %v836
        %v838 = vpop.f32.mrf.mxu0
        %v839 = vpop.f32.mrf.mxu0
        %v840 = vadd.f32 0.0, %v839
        %v841 = vpop.f32.mrf.mxu0
        %842 = vdwg.mxu0
        %v843 = vadd.f32 %v396, %v723
        %v844 = vadd.f32 %v397, %v725
        %v845 = vadd.f32 %v398, %v776
        %v846 = vadd.f32 %v399, %v778
        %v847 = vadd.f32 %v400, %v829
        %v848 = vadd.f32 %v401, %v727
        %v849 = vadd.f32 %v402, %v729
        %v850 = vadd.f32 %v403, %v780
        %v851 = vadd.f32 %v404, %v782
        %v852 = vadd.f32 %v405, %v832
        %v853 = vadd.f32 %v406, %v733
        %v854 = vadd.f32 %v407, %v735
        %v855 = vadd.f32 %v408, %v786
        %v856 = vadd.f32 %v409, %v788
        %v857 = vadd.f32 %v410, %v837
        %v858 = vadd.f32 %v411, %v737
        %v859 = vadd.f32 %v412, %v739
        %v860 = vadd.f32 %v413, %v790
        %v861 = vadd.f32 %v414, %v792
        %v862 = vadd.f32 %v415, %v840
        %863 = vst [vmem:[#allocation2] sm:$0xff] %v843
        %864 = vst [vmem:[#allocation2 + $0x8] sm:$0xff] %v844
        %865 = vst [vmem:[#allocation2 + $0x10] sm:$0xff] %v845
        %866 = vst [vmem:[#allocation2 + $0x18] sm:$0xff] %v846
        %867 = vst [vmem:[#allocation2 + $0x20] sm:$0xff] %v847
        %868 = vst [vmem:[#allocation2 + $0x28] sm:$0xff] %v848
        %869 = vst [vmem:[#allocation2 + $0x30] sm:$0xff] %v849
        %870 = vst [vmem:[#allocation2 + $0x38] sm:$0xff] %v850
        %871 = vst [vmem:[#allocation2 + $0x40] sm:$0xff] %v851
        %872 = vst [vmem:[#allocation2 + $0x48] sm:$0xff] %v852
        %873 = vst [vmem:[#allocation2 + $0x50] sm:$0xff] %v853
        %874 = vst [vmem:[#allocation2 + $0x58] sm:$0xff] %v854
        %875 = vst [vmem:[#allocation2 + $0x60] sm:$0xff] %v855
        %876 = vst [vmem:[#allocation2 + $0x68] sm:$0xff] %v856
        %877 = vst [vmem:[#allocation2 + $0x70] sm:$0xff] %v857
        %878 = vst [vmem:[#allocation2 + $0x78] sm:$0xff] %v858
        %879 = vst [vmem:[#allocation2 + $0x80] sm:$0xff] %v859
        %880 = vst [vmem:[#allocation2 + $0x88] sm:$0xff] %v860
        %881 = vst [vmem:[#allocation2 + $0x90] sm:$0xff] %v861
        %882 = vst [vmem:[#allocation2 + $0x98] sm:$0xff] %v862
        // Predicated region
        $region63: #{efficientnet_forward.21} parent=53 // pred_check
          %p883 = pneg %p372
        $region64: #{efficientnet_forward.21} parent=53 // pred_check_branch
          %885 = sbr.rel (%p883) target = $region66
        $region65: #{efficientnet_forward.21} parent=53 // pred_region
          %v886 = vld [vmem:[#allocation2] sm:$0xff]
          %v887 = vld [vmem:[#allocation2 + $0x8] sm:$0xff]
          %v888 = vld [vmem:[#allocation2 + $0x10] sm:$0xff]
          %v889 = vld [vmem:[#allocation2 + $0x18] sm:$0xff]
          %v890 = vld [vmem:[#allocation2 + $0x20] sm:$0xff]
          %v891 = vld [vmem:[#allocation2 + $0x28] sm:$0xff]
          %v892 = vld [vmem:[#allocation2 + $0x30] sm:$0xff]
          %v893 = vld [vmem:[#allocation2 + $0x38] sm:$0xff]
          %v894 = vld [vmem:[#allocation2 + $0x40] sm:$0xff]
          %v895 = vld [vmem:[#allocation2 + $0x48] sm:$0xff]
          %v896 = vld [vmem:[#allocation2 + $0x50] sm:$0xff]
          %v897 = vld [vmem:[#allocation2 + $0x58] sm:$0xff]
          %v898 = vld [vmem:[#allocation2 + $0x60] sm:$0xff]
          %v899 = vld [vmem:[#allocation2 + $0x68] sm:$0xff]
          %v900 = vld [vmem:[#allocation2 + $0x70] sm:$0xff]
          %v901 = vld [vmem:[#allocation2 + $0x78] sm:$0xff]
          %v902 = vld [vmem:[#allocation2 + $0x80] sm:$0xff]
          %v903 = vld [vmem:[#allocation2 + $0x88] sm:$0xff]
          %v904 = vld [vmem:[#allocation2 + $0x90] sm:$0xff]
          %v905 = vld [vmem:[#allocation2 + $0x98] sm:$0xff]
          %v906 = vld [vmem:[%s367] sm:$0x1f]
          %v908 = vlaneseq
          %v909 = vshrl.u32 %v908, 7
          %v910 = vsub.s32 0, %v909
          %v911 = vrot.slane %v906, %v910
          %v912 = vlaneseq
          %v913 = vshrl.u32 %v912, 7
          %v914 = vsub.s32 1, %v913
          %v915 = vrot.slane %v906, %v914
          %v916 = vlaneseq
          %v917 = vshrl.u32 %v916, 7
          %v918 = vsub.s32 2, %v917
          %v919 = vrot.slane %v906, %v918
          %v920 = vlaneseq
          %v921 = vshrl.u32 %v920, 7
          %v922 = vsub.s32 3, %v921
          %v923 = vrot.slane %v906, %v922
          %v924 = vlaneseq
          %v925 = vshrl.u32 %v924, 7
          %v926 = vsub.s32 4, %v925
          %v927 = vrot.slane %v906, %v926
          %v933 = vadd.f32 %v886, %v911
          %v934 = vadd.f32 %v887, %v915
          %v935 = vadd.f32 %v888, %v919
          %v936 = vadd.f32 %v889, %v923
          %v937 = vadd.f32 %v890, %v927
          %v938 = vadd.f32 %v891, %v911
          %v939 = vadd.f32 %v892, %v915
          %v940 = vadd.f32 %v893, %v919
          %v941 = vadd.f32 %v894, %v923
          %v942 = vadd.f32 %v895, %v927
          %v943 = vadd.f32 %v896, %v911
          %v944 = vadd.f32 %v897, %v915
          %v945 = vadd.f32 %v898, %v919
          %v946 = vadd.f32 %v899, %v923
          %v947 = vadd.f32 %v900, %v927
          %v948 = vadd.f32 %v901, %v911
          %v949 = vadd.f32 %v902, %v915
          %v950 = vadd.f32 %v903, %v919
          %v951 = vadd.f32 %v904, %v923
          %v952 = vadd.f32 %v905, %v927
          %v953 = vxor.u32 %v933, 2147483648
          %v954 = vxor.u32 %v934, 2147483648
          %v955 = vxor.u32 %v935, 2147483648
          %v956 = vxor.u32 %v936, 2147483648
          %v957 = vxor.u32 %v937, 2147483648
          %v958 = vxor.u32 %v938, 2147483648
          %v959 = vxor.u32 %v939, 2147483648
          %v960 = vxor.u32 %v940, 2147483648
          %v961 = vxor.u32 %v941, 2147483648
          %v962 = vxor.u32 %v942, 2147483648
          %v963 = vxor.u32 %v943, 2147483648
          %v964 = vxor.u32 %v944, 2147483648
          %v965 = vxor.u32 %v945, 2147483648
          %v966 = vxor.u32 %v946, 2147483648
          %v967 = vxor.u32 %v947, 2147483648
          %v968 = vxor.u32 %v948, 2147483648
          %v969 = vxor.u32 %v949, 2147483648
          %v970 = vxor.u32 %v950, 2147483648
          %v971 = vxor.u32 %v951, 2147483648
          %v972 = vxor.u32 %v952, 2147483648
          %v973 = vmul.f32 %v953, 1.442695
          %v974 = vpow.pop %v973
          %v975 = vmul.f32 %v954, 1.442695
          %v976 = vpow.pop %v975
          %v977 = vmul.f32 %v955, 1.442695
          %v978 = vpow.pop %v977
          %v979 = vmul.f32 %v956, 1.442695
          %v980 = vpow.pop %v979
          %v981 = vmul.f32 %v957, 1.442695
          %v982 = vpow.pop %v981
          %v983 = vmul.f32 %v958, 1.442695
          %v984 = vpow.pop %v983
          %v985 = vmul.f32 %v959, 1.442695
          %v986 = vpow.pop %v985
          %v987 = vmul.f32 %v960, 1.442695
          %v988 = vpow.pop %v987
          %v989 = vmul.f32 %v961, 1.442695
          %v990 = vpow.pop %v989
          %v991 = vmul.f32 %v962, 1.442695
          %v992 = vpow.pop %v991
          %v993 = vmul.f32 %v963, 1.442695
          %v994 = vpow.pop %v993
          %v995 = vmul.f32 %v964, 1.442695
          %v996 = vpow.pop %v995
          %v997 = vmul.f32 %v965, 1.442695
          %v998 = vpow.pop %v997
          %v999 = vmul.f32 %v966, 1.442695
          %v1000 = vpow.pop %v999
          %v1001 = vmul.f32 %v967, 1.442695
          %v1002 = vpow.pop %v1001
          %v1003 = vmul.f32 %v968, 1.442695
          %v1004 = vpow.pop %v1003
          %v1005 = vmul.f32 %v969, 1.442695
          %v1006 = vpow.pop %v1005
          %v1007 = vmul.f32 %v970, 1.442695
          %v1008 = vpow.pop %v1007
          %v1009 = vmul.f32 %v971, 1.442695
          %v1010 = vpow.pop %v1009
          %v1011 = vmul.f32 %v972, 1.442695
          %v1012 = vpow.pop %v1011
          %v1013 = vadd.f32 %v974, 1.0
          %v1014 = vadd.f32 %v976, 1.0
          %v1015 = vadd.f32 %v978, 1.0
          %v1016 = vadd.f32 %v980, 1.0
          %v1017 = vadd.f32 %v982, 1.0
          %v1018 = vadd.f32 %v984, 1.0
          %v1019 = vadd.f32 %v986, 1.0
          %v1020 = vadd.f32 %v988, 1.0
          %v1021 = vadd.f32 %v990, 1.0
          %v1022 = vadd.f32 %v992, 1.0
          %v1023 = vadd.f32 %v994, 1.0
          %v1024 = vadd.f32 %v996, 1.0
          %v1025 = vadd.f32 %v998, 1.0
          %v1026 = vadd.f32 %v1000, 1.0
          %v1027 = vadd.f32 %v1002, 1.0
          %v1028 = vadd.f32 %v1004, 1.0
          %v1029 = vadd.f32 %v1006, 1.0
          %v1030 = vadd.f32 %v1008, 1.0
          %v1031 = vadd.f32 %v1010, 1.0
          %v1032 = vadd.f32 %v1012, 1.0
          %v1033 = vrcp.pop %v1013
          %v1034 = vmul.f32 1.0, %v1033
          %v1035 = vrcp.pop %v1014
          %v1036 = vmul.f32 1.0, %v1035
          %v1037 = vrcp.pop %v1015
          %v1038 = vmul.f32 1.0, %v1037
          %v1039 = vrcp.pop %v1016
          %v1040 = vmul.f32 1.0, %v1039
          %v1041 = vrcp.pop %v1017
          %v1042 = vmul.f32 1.0, %v1041
          %v1043 = vrcp.pop %v1018
          %v1044 = vmul.f32 1.0, %v1043
          %v1045 = vrcp.pop %v1019
          %v1046 = vmul.f32 1.0, %v1045
          %v1047 = vrcp.pop %v1020
          %v1048 = vmul.f32 1.0, %v1047
          %v1049 = vrcp.pop %v1021
          %v1050 = vmul.f32 1.0, %v1049
          %v1051 = vrcp.pop %v1022
          %v1052 = vmul.f32 1.0, %v1051
          %v1053 = vrcp.pop %v1023
          %v1054 = vmul.f32 1.0, %v1053
          %v1055 = vrcp.pop %v1024
          %v1056 = vmul.f32 1.0, %v1055
          %v1057 = vrcp.pop %v1025
          %v1058 = vmul.f32 1.0, %v1057
          %v1059 = vrcp.pop %v1026
          %v1060 = vmul.f32 1.0, %v1059
          %v1061 = vrcp.pop %v1027
          %v1062 = vmul.f32 1.0, %v1061
          %v1063 = vrcp.pop %v1028
          %v1064 = vmul.f32 1.0, %v1063
          %v1065 = vrcp.pop %v1029
          %v1066 = vmul.f32 1.0, %v1065
          %v1067 = vrcp.pop %v1030
          %v1068 = vmul.f32 1.0, %v1067
          %v1069 = vrcp.pop %v1031
          %v1070 = vmul.f32 1.0, %v1069
          %v1071 = vrcp.pop %v1032
          %v1072 = vmul.f32 1.0, %v1071
          %v1073 = vmul.f32 %v933, %v1034
          %v1074 = vmul.f32 %v934, %v1036
          %v1075 = vmul.f32 %v935, %v1038
          %v1076 = vmul.f32 %v936, %v1040
          %v1077 = vmul.f32 %v937, %v1042
          %v1078 = vmul.f32 %v938, %v1044
          %v1079 = vmul.f32 %v939, %v1046
          %v1080 = vmul.f32 %v940, %v1048
          %v1081 = vmul.f32 %v941, %v1050
          %v1082 = vmul.f32 %v942, %v1052
          %v1083 = vmul.f32 %v943, %v1054
          %v1084 = vmul.f32 %v944, %v1056
          %v1085 = vmul.f32 %v945, %v1058
          %v1086 = vmul.f32 %v946, %v1060
          %v1087 = vmul.f32 %v947, %v1062
          %v1088 = vmul.f32 %v948, %v1064
          %v1089 = vmul.f32 %v949, %v1066
          %v1090 = vmul.f32 %v950, %v1068
          %v1091 = vmul.f32 %v951, %v1070
          %v1092 = vmul.f32 %v952, %v1072
          %v1093 = vpack.c.bf16 %v1078, %v1073
          %v1094 = vpack.c.bf16 %v1079, %v1074
          %v1095 = vpack.c.bf16 %v1080, %v1075
          %v1096 = vpack.c.bf16 %v1081, %v1076
          %v1097 = vpack.c.bf16 %v1082, %v1077
          %v1098 = vpack.c.bf16 %v1088, %v1083
          %v1099 = vpack.c.bf16 %v1089, %v1084
          %v1100 = vpack.c.bf16 %v1090, %v1085
          %v1101 = vpack.c.bf16 %v1091, %v1086
          %v1102 = vpack.c.bf16 %v1092, %v1087
          %v1113 = vunpack.c.l.b16 %v1093
          %v1114 = vunpack.c.l.b16 %v1094
          %v1115 = vunpack.c.l.b16 %v1095
          %v1116 = vunpack.c.l.b16 %v1096
          %v1117 = vunpack.c.l.b16 %v1097
          %v1118 = vunpack.c.h.b16 %v1093
          %v1119 = vunpack.c.h.b16 %v1094
          %v1120 = vunpack.c.h.b16 %v1095
          %v1121 = vunpack.c.h.b16 %v1096
          %v1122 = vunpack.c.h.b16 %v1097
          %v1123 = vunpack.c.l.b16 %v1098
          %v1124 = vunpack.c.l.b16 %v1099
          %v1125 = vunpack.c.l.b16 %v1100
          %v1126 = vunpack.c.l.b16 %v1101
          %v1127 = vunpack.c.l.b16 %v1102
          %v1128 = vunpack.c.h.b16 %v1098
          %v1129 = vunpack.c.h.b16 %v1099
          %v1130 = vunpack.c.h.b16 %v1100
          %v1131 = vunpack.c.h.b16 %v1101
          %v1132 = vunpack.c.h.b16 %v1102
          %v1133 = vpack.c.b16 %v1114, %v1113
          %v1134 = vpack.c.b16 %v1116, %v1115
          %v1135 = vpack.c.b16 %v1117, %v1117
          %v1136 = vpack.c.b16 %v1119, %v1118
          %v1137 = vpack.c.b16 %v1121, %v1120
          %v1138 = vpack.c.b16 %v1122, %v1122
          %v1139 = vpack.c.b16 %v1124, %v1123
          %v1140 = vpack.c.b16 %v1126, %v1125
          %v1141 = vpack.c.b16 %v1127, %v1127
          %v1142 = vpack.c.b16 %v1129, %v1128
          %v1143 = vpack.c.b16 %v1131, %v1130
          %v1144 = vpack.c.b16 %v1132, %v1132
          %1157 = vst [vmem:[%s352] sm:$0xff] %v1133
          %1158 = vst [vmem:[%s352 + $0x8] sm:$0xff] %v1134
          %1159 = vst [vmem:[%s352 + $0x10] sm:$0xf] %v1135
          %1160 = vst [vmem:[%s352 + $0x14] sm:$0xff] %v1136
          %1161 = vst [vmem:[%s352 + $0x1c] sm:$0xff] %v1137
          %1162 = vst [vmem:[%s352 + $0x24] sm:$0xf] %v1138
          %1163 = vst [vmem:[%s352 + $0x28] sm:$0xff] %v1139
          %1164 = vst [vmem:[%s352 + $0x30] sm:$0xff] %v1140
          %1165 = vst [vmem:[%s352 + $0x38] sm:$0xf] %v1141
          %1166 = vst [vmem:[%s352 + $0x3c] sm:$0xff] %v1142
          %1167 = vst [vmem:[%s352 + $0x44] sm:$0xff] %v1143
          %1168 = vst [vmem:[%s352 + $0x4c] sm:$0xf] %v1144
        $region66: #{efficientnet_forward.21} parent=53 // pred_fallthru
          _
        %s1169 = sand.u32 %s125, 1
        %s1170 = sand.u32 %s125, 1
        %s1171 = smul.addr %s1170, 80
        %s1172 = scalar_lea.vmem [#allocation4], %s1171
        // Predicated region
        $region67: #{efficientnet_forward.21} parent=53 // pred_check
          %p1173 = pneg %p135
        $region68: #{efficientnet_forward.21} parent=53 // pred_check_branch
          %1175 = sbr.rel (%p1173) target = $region70
        $region69: #{efficientnet_forward.21} parent=53 // pred_region
          %s1176 = smul.u32 4, %s19
          %s1177 = smul.u32 5, %s20
          %s1178 = smul.addr %s1176, 10
          %s1179 = sadd.s32 %s1177, %s1178
          %s1180 = smul.addr %s1179, 4
          %s1181 = scalar_lea.vmem %s3, %s1180
          // Predicated region
          $region71: #{efficientnet_forward.21} parent=69 // pred_check
            _
          $region72: #{efficientnet_forward.21} parent=69 // pred_check_branch
            %1183 = sbr.rel (0) target = $region74
          $region73: #{efficientnet_forward.21} parent=69 // pred_region
            // Predicated region
            $region75: #{efficientnet_forward.21} parent=73 // pred_check
              _
            $region76: #{efficientnet_forward.21} parent=73 // pred_check_branch
              %1185 = sbr.rel (0) target = $region78
            $region77: #{efficientnet_forward.21} parent=73 // pred_region
              %s1186 = scalar_lea.vmem %s1172, 16 [#allocation4]
              %s1187 = scalar_lea.vmem %s1181, 16
              loop: start=0, step=1, limit=1
              $region79: #{efficientnet_forward.21} parent=77 // loop_pre_header
                _
              $region80: #{efficientnet_forward.21} parent=77 // loop_header
                %s1189 = sphi 0, %s1193
                %p1190 = scmp.ge.s32.totalorder %s1189, 1
                %s1194 = sphi %s1172, %s1172
                %s1195 = sphi %s1181, %s1181
              $region81: #{efficientnet_forward.21} parent=77 // loop_header_branch
                %1192 = sbr.rel (%p1190) target = $region85
              $region82: #{efficientnet_forward.21} parent=77 // loop_body
                %v1196 = vld [vmem:[%s1194] sm:$0xff]
                %1197 = vst [vmem:[%s1195] sm:$0xff] %v1196
                %v1198 = vld [vmem:[%s1194 + $0x8] sm:$0xff]
                %1199 = vst [vmem:[%s1195 + $0x8] sm:$0xff] %v1198
                %v1200 = vld [vmem:[%s1194 + $0x14] sm:$0xff]
                %1201 = vst [vmem:[%s1195 + $0x28] sm:$0xff] %v1200
                %v1202 = vld [vmem:[%s1194 + $0x1c] sm:$0xff]
                %1203 = vst [vmem:[%s1195 + $0x30] sm:$0xff] %v1202
                %v1204 = vld [vmem:[%s1194 + $0x28] sm:$0xff]
                %1205 = vst [vmem:[%s1195 + $0x50] sm:$0xff] %v1204
                %v1206 = vld [vmem:[%s1194 + $0x30] sm:$0xff]
                %1207 = vst [vmem:[%s1195 + $0x58] sm:$0xff] %v1206
                %v1208 = vld [vmem:[%s1194 + $0x3c] sm:$0xff]
                %1209 = vst [vmem:[%s1195 + $0x78] sm:$0xff] %v1208
                %v1210 = vld [vmem:[%s1194 + $0x44] sm:$0xff]
                %1211 = vst [vmem:[%s1195 + $0x80] sm:$0xff] %v1210
              $region83: #{efficientnet_forward.21} parent=77 // loop_footer
                %s1193 = sadd.s32 1, %s1189
              $region84: #{efficientnet_forward.21} parent=77 // loop_footer_branch
                %1188 = sbr.rel target = $region80
              $region85: #{efficientnet_forward.21} parent=77 // loop_exit
                _
              %s1213 = ssub.s32 16, 1
              loop: start=0, step=1, limit=1
              $region86: #{efficientnet_forward.21} parent=77 // loop_pre_header
                _
              $region87: #{efficientnet_forward.21} parent=77 // loop_header
                %s1215 = sphi 0, %s1219
                %p1216 = scmp.ge.s32.totalorder %s1215, 1
                %s1220 = sphi %s1186, %s1186
                %s1221 = sphi %s1187, %s1187
              $region88: #{efficientnet_forward.21} parent=77 // loop_header_branch
                %1218 = sbr.rel (%p1216) target = $region92
              $region89: #{efficientnet_forward.21} parent=77 // loop_body
                %v1222 = vld [vmem:[%s1220] sm:%s1213]
                %1223 = vst [vmem:[%s1221] sm:%s1213] %v1222
                %v1224 = vld [vmem:[%s1220 + $0x14] sm:%s1213]
                %1225 = vst [vmem:[%s1221 + $0x28] sm:%s1213] %v1224
                %v1226 = vld [vmem:[%s1220 + $0x28] sm:%s1213]
                %1227 = vst [vmem:[%s1221 + $0x50] sm:%s1213] %v1226
                %v1228 = vld [vmem:[%s1220 + $0x3c] sm:%s1213]
                %1229 = vst [vmem:[%s1221 + $0x78] sm:%s1213] %v1228
              $region90: #{efficientnet_forward.21} parent=77 // loop_footer
                %s1219 = sadd.s32 1, %s1215
              $region91: #{efficientnet_forward.21} parent=77 // loop_footer_branch
                %1214 = sbr.rel target = $region87
              $region92: #{efficientnet_forward.21} parent=77 // loop_exit
                _
            $region78: #{efficientnet_forward.21} parent=73 // pred_fallthru
              _
          $region74: #{efficientnet_forward.21} parent=69 // pred_fallthru
            _
          %1230 = vnop
        $region70: #{efficientnet_forward.21} parent=53 // pred_fallthru
          _
      $region54: #{efficientnet_forward.21} parent=5 // pred_fallthru
        _
      %p1231 = scmp.le.s32.totalorder 2, %s9
      // Predicated region
      $region93: #{efficientnet_forward.21} parent=5 // pred_check
        %p1232 = pneg %p1231
      $region94: #{efficientnet_forward.21} parent=5 // pred_check_branch
        %1234 = sbr.rel (%p1232) target = $region96
      $region95: #{efficientnet_forward.21} parent=5 // pred_region
        %s1235 = ssub.s32 %s9, 2
        // Predicated region
        $region97: #{efficientnet_forward.21} parent=95 // pred_check
          %p1236 = pneg %p141
        $region98: #{efficientnet_forward.21} parent=95 // pred_check_branch
          %1238 = sbr.rel (%p1236) target = $region100
        $region99: #{efficientnet_forward.21} parent=95 // pred_region
          %s1239 = sand.u32 %s126, 1
          %s1240 = sand.u32 %s126, 1
          %s1241 = smul.addr %s1240, 80
          %s1242 = scalar_lea.vmem [#allocation4], %s1241
        $region100: #{efficientnet_forward.21} parent=95 // pred_fallthru
          _
      $region96: #{efficientnet_forward.21} parent=5 // pred_fallthru
        _
    $region6: #{efficientnet_forward.21} parent=1 // loop_footer
      %s13 = sadd.s32 1, %s9
    $region7: #{efficientnet_forward.21} parent=1 // loop_footer_branch
      %8 = sbr.rel target = $region3
    $region8: #{efficientnet_forward.21} parent=1 // loop_exit
      _

</llo_original>
